<compile_context>
chip_gen: v5e
topology: v5e:2x2
jax: 0.10.0
libtpu: 0.0.40
codegen_flags: <defaults>
</compile_context>

<pallas_src>
import functools
import math

import jax
import jax.numpy as jnp
from jax.experimental import pallas as pl
from jax.experimental.pallas import tpu as pltpu


def _sinpos_kernel(pos_ref, freq_ref, out_ref, *, padding_idx: int,
                   half_dim: int, chunk: int):
    """One (B_t, TS) tile of positions -> (B_t, TS, E) tile of embeddings."""
    pos = pos_ref[...].astype(jnp.float32)          # (B_t, TS), exact ints
    bt, ts = pos.shape

    # Pay the sublane->lane relayout once: broadcast positions into the 3-D tile
    # layout, then the pad mask is one VALU compare on that same layout
    # (positions == padding_idx exactly for padded tokens).
    pos_b = jnp.broadcast_to(pos[:, :, None], (bt, ts, chunk))
    keep = pos_b > jnp.float32(padding_idx)

    # Static, unrolled chunk loop over the frequency axis keeps live temporaries
    # at O(B_t * TS * chunk); both half-stores are direct (no concat, no full-E
    # temporary, no masked full-slab product).
    for c0 in range(0, half_dim, chunk):
        f = freq_ref[:, :, c0:c0 + chunk]           # (1, 1, chunk) constant
        ang = pos_b * f                              # (B_t, TS, chunk)
        out_ref[:, :, c0:c0 + chunk] = jnp.where(keep, jnp.sin(ang), 0.0)
        out_ref[:, :, half_dim + c0:half_dim + c0 + chunk] = (
            jnp.where(keep, jnp.cos(ang), 0.0))


def _choose_chunk(half_dim: int) -> int:
    for c in (512, 256, 128):
        if half_dim % c == 0:
            return c
    return half_dim


def _choose_tiles(B: int, S: int, E: int, chunk: int):
    """Pick (batch_tile, seq_tile) against an explicit VMEM budget."""
    B_t = 8 if B % 8 == 0 else B                 # sublane-aligned when possible

    def vmem_bytes(bt, ts):
        out_tile = bt * ts * E * 4               # f32 output tile
        pos_tile = bt * ts * 4                   # int32 positions tile
        temps = 4 * bt * ts * chunk * 4          # pos_b, mask, ang, sin/cos result
        return 2 * out_tile + 2 * pos_tile + temps   # 2x = double buffering

    budget = 20 * 1024 * 1024                    # leaves headroom under 32 MiB limit
    ts_candidates = [c for c in (4096, 2048, 1024, 512, 256, 128) if S % c == 0]
    TS = None
    for cand in ts_candidates:
        if vmem_bytes(B_t, cand) <= budget:
            TS = cand
            break
    if TS is None:
        TS = ts_candidates[-1] if ts_candidates else S

    # v7x has two TensorCores sharding the parallel grid axes: make sure there
    # are at least 2 blocks in total when the shape allows it.
    if (B // B_t) * (S // TS) < 2 and TS % 256 == 0:
        TS //= 2
    return B_t, TS


def sinusoidal_positional_embedding(tokens: jax.Array,
                                    embedding_dim: int,
                                    padding_idx: int,
                                    *,
                                    batch_tile: int | None = None,
                                    seq_tile: int | None = None) -> jax.Array:
    """tokens: (bsz, seqlen) int; returns (bsz, seqlen, embedding_dim) f32."""
    assert embedding_dim % 2 == 0, "embedding_dim must be even"
    assert embedding_dim >= 4, "half_dim must be > 1 (log(10000)/(half_dim-1))"
    B, S = tokens.shape
    E = embedding_dim
    half_dim = E // 2
    # Positions must stay exactly representable once cast to f32 in the kernel.
    assert S + padding_idx + 1 < 2 ** 24, "sequence too long for exact f32 positions"

    tokens = tokens.astype(jnp.int32)
    mask = (tokens != padding_idx).astype(jnp.int32)
    # Cheap XLA pre-pass (O(B*S) int32) that removes the serial cross-seq-tile
    # carry from the kernel and makes both grid axes independent.
    positions = jnp.cumsum(mask, axis=1) * mask + padding_idx        # (B, S) int32

    chunk = _choose_chunk(half_dim)
    bt_auto, ts_auto = _choose_tiles(B, S, E, chunk)
    B_t = batch_tile if batch_tile is not None else bt_auto
    TS = seq_tile if seq_tile is not None else ts_auto
    assert B % B_t == 0 and (B_t == B or B_t % 8 == 0), "invalid batch tile"
    assert S % TS == 0 and (TS == S or TS % 128 == 0), "invalid sequence tile"

    # Hoisted, grid-invariant constant: inv_freq[k] = exp(-k*log(10000)/(half_dim-1)).
    inv_freq = jnp.exp(
        jnp.arange(half_dim, dtype=jnp.float32)
        * jnp.float32(-math.log(10000.0) / (half_dim - 1))
    ).reshape(1, 1, half_dim)

    kernel = functools.partial(_sinpos_kernel, padding_idx=padding_idx,
                               half_dim=half_dim, chunk=chunk)

    grid_spec = pltpu.PrefetchScalarGridSpec(
        num_scalar_prefetch=0,
        grid=(B // B_t, S // TS),
        in_specs=[
            pl.BlockSpec((B_t, TS), lambda b, s: (b, s)),
            pl.BlockSpec((1, 1, half_dim), lambda b, s: (0, 0, 0)),  # constant block
        ],
        out_specs=pl.BlockSpec((B_t, TS, E), lambda b, s: (b, s, 0)),
    )

    return pl.pallas_call(
        kernel,
        out_shape=jax.ShapeDtypeStruct((B, S, E), jnp.float32),
        grid_spec=grid_spec,
        compiler_params=pltpu.CompilerParams(
            dimension_semantics=("parallel", "parallel"),
            vmem_limit_bytes=32 * 1024 * 1024,
        ),
    )(positions, inv_freq)


def _reference(tokens: jax.Array, embedding_dim: int, padding_idx: int) -> jax.Array:
    """Pure-JAX reference replicating the PyTorch forward (default path)."""
    tokens = tokens.astype(jnp.int32)
    half_dim = embedding_dim // 2
    mask = tokens != padding_idx
    positions = jnp.cumsum(mask.astype(jnp.int32), axis=1) * mask + padding_idx

    emb_scale = math.log(10000.0) / (half_dim - 1)
    inv_freq = jnp.exp(jnp.arange(half_dim, dtype=jnp.float32) * -emb_scale)
    ang = positions.astype(jnp.float32)[:, :, None] * inv_freq[None, None, :]
    emb = jnp.concatenate([jnp.sin(ang), jnp.cos(ang)], axis=-1)
    # table row `padding_idx` is zeroed -> padded tokens map to zero vectors
    emb = jnp.where(mask[:, :, None], emb, 0.0)
    return emb.astype(jnp.float32)


if __name__ == "__main__":
    bsz, seqlen, embedding_dim, padding_idx = 2, 256, 32, 1

    key = jax.random.PRNGKey(0)
    # token ids in [0, 10); id == padding_idx (1) acts as the pad symbol
    tokens = jax.random.randint(key, (bsz, seqlen), 0, 10, dtype=jnp.int32)

    ref = _reference(tokens, embedding_dim, padding_idx)

    # Auto-chosen tiling (splits the sequence so the grid has >= 2 blocks).
    out = sinusoidal_positional_embedding(tokens, embedding_dim, padding_idx)
    out = jax.block_until_ready(out)
    assert out.shape == (bsz, seqlen, embedding_dim)
    assert out.dtype == jnp.float32
    assert jnp.allclose(out, ref, rtol=1e-5, atol=1e-5), "mismatch vs reference (auto tiles)"

    # Single whole-sequence tile path.
    out2 = sinusoidal_positional_embedding(tokens, embedding_dim, padding_idx,
                                           seq_tile=seqlen)
    out2 = jax.block_until_ready(out2)
    assert jnp.allclose(out2, ref, rtol=1e-5, atol=1e-5), "mismatch vs reference (seq_tile=S)"

    print("KERNEL_OK")
</pallas_src>

<mosaic_0001>
module attributes {stable_mosaic.version = 11 : i64} {
  func.func @_sinpos_kernel(%arg0: i32, %arg1: i32, %arg2: memref<2x128xi32, #tpu.memory_space<vmem>>, %arg3: memref<1x1x16xf32, #tpu.memory_space<vmem>>, %arg4: memref<2x128x32xf32, #tpu.memory_space<vmem>>) attributes {dimension_semantics = [#tpu.dimension_semantics<parallel>, #tpu.dimension_semantics<parallel>], iteration_bounds = array<i64: 1, 2>, scalar_prefetch = 0 : i64, scratch_operands = 0 : i64, tpu.core_type = #tpu.core_type<tc>, window_params = [{transform_indices = @transform_0, window_bounds = array<i64: 2, 128>}, {pipeline_mode = #tpu.pipeline_mode<synchronous>, transform_indices = @transform_1, window_bounds = array<i64: 1, 1, 16>}, {transform_indices = @transform_2, window_bounds = array<i64: 2, 128, 32>}]} {
    %c0 = arith.constant 0 : index
    %c0_0 = arith.constant 0 : index
    %0 = vector.load %arg2[%c0, %c0_0] : memref<2x128xi32, #tpu.memory_space<vmem>>, vector<2x128xi32>
    %1 = arith.sitofp %0 : vector<2x128xi32> to vector<2x128xf32>
    %2 = vector.shape_cast %1 : vector<2x128xf32> to vector<2x128x1xf32>
    %3 = vector.shape_cast %2 : vector<2x128x1xf32> to vector<2x128x1xf32>
    %4 = vector.broadcast %3 : vector<2x128x1xf32> to vector<2x128x16xf32>
    %cst = arith.constant 1.000000e+00 : f32
    %5 = vector.broadcast %cst : f32 to vector<2x128x16xf32>
    %6 = arith.cmpf ogt, %4, %5 : vector<2x128x16xf32>
    %c0_1 = arith.constant 0 : index
    %c0_2 = arith.constant 0 : index
    %c0_3 = arith.constant 0 : index
    %7 = vector.load %arg3[%c0_1, %c0_2, %c0_3] : memref<1x1x16xf32, #tpu.memory_space<vmem>>, vector<1x1x16xf32>
    %8 = vector.broadcast %7 : vector<1x1x16xf32> to vector<2x128x16xf32>
    %9 = arith.mulf %4, %8 : vector<2x128x16xf32>
    %10 = math.sin %9 : vector<2x128x16xf32>
    %cst_4 = arith.constant 0.000000e+00 : f32
    %11 = vector.broadcast %cst_4 : f32 to vector<2x128x16xf32>
    %12 = arith.select %6, %10, %11 : vector<2x128x16xi1>, vector<2x128x16xf32>
    %c0_5 = arith.constant 0 : index
    %c0_6 = arith.constant 0 : index
    %c0_7 = arith.constant 0 : index
    %13 = vector.load %arg4[%c0_5, %c0_6, %c0_7] : memref<2x128x32xf32, #tpu.memory_space<vmem>>, vector<2x128x16xf32>
    tpu.vector_store %arg4[%c0_5, %c0_6, %c0_7], %12 {strides = array<i32>} : memref<2x128x32xf32, #tpu.memory_space<vmem>>, vector<2x128x16xf32>,
    %14 = math.cos %9 : vector<2x128x16xf32>
    %cst_8 = arith.constant 0.000000e+00 : f32
    %15 = vector.broadcast %cst_8 : f32 to vector<2x128x16xf32>
    %16 = arith.select %6, %14, %15 : vector<2x128x16xi1>, vector<2x128x16xf32>
    %c0_9 = arith.constant 0 : index
    %c0_10 = arith.constant 0 : index
    %c16 = arith.constant 16 : index
    %17 = vector.load %arg4[%c0_9, %c0_10, %c16] : memref<2x128x32xf32, #tpu.memory_space<vmem>>, vector<2x128x16xf32>
    tpu.vector_store %arg4[%c0_9, %c0_10, %c16], %16 {strides = array<i32>} : memref<2x128x32xf32, #tpu.memory_space<vmem>>, vector<2x128x16xf32>,
    return
  }
  func.func @transform_0(%arg0: i32, %arg1: i32) -> (i32, i32) {
    %c0_i32 = arith.constant 0 : i32
    return %arg0, %arg1 : i32, i32
  }
  func.func @transform_1(%arg0: i32, %arg1: i32) -> (i32, i32, i32) {
    %c0_i32 = arith.constant 0 : i32
    %c0_i32_0 = arith.constant 0 : i32
    %c0_i32_1 = arith.constant 0 : i32
    %c0_i32_2 = arith.constant 0 : i32
    return %c0_i32, %c0_i32_0, %c0_i32_1 : i32, i32, i32
  }
  func.func @transform_2(%arg0: i32, %arg1: i32) -> (i32, i32, i32) {
    %c0_i32 = arith.constant 0 : i32
    %c0_i32_0 = arith.constant 0 : i32
    return %arg0, %arg1, %c0_i32 : i32, i32, i32
  }
}

</mosaic_0001>

<llo_original>
// kernel: tpu_custom_call.1
$region0: #{tpu_custom_call.1}
  #allocation0 [shape = 'u32[]', space=smem, size = 0x4, offset = 0x4, fixed_abs, tag = 'smem constant byte address 0x4 - core index']
  #allocation1 [shape = 'u32[72,128]{1,0:T(1,128)}', space=vmem, size = 0x9000, scoped, tag = 'internal scratch']
  %s0 = inlined_call_operand.hbm [shape: s32[2,256], index: 0, kind: input, shape index: {}]
  %s1 = inlined_call_operand.hbm [shape: f32[1,1,16], index: 1, kind: input, shape index: {}]
  %s2 = inlined_call_operand.vmem [shape: f32[2,256,32], index: 2, kind: output, shape index: {}]
  %s3 = sld [smem:[#allocation0]]
  $region83: #{tpu_custom_call.1} parent=0
    _
  %s5 = ssub.s32 1, %s3
  %s6 = scalar_select 0, %s5, %s3
  $region1: #{tpu_custom_call.1} parent=0
    #allocation2 [shape = 'u8[2048]{0}', space=vmem, size = 0x800, scoped, tag = 'input window, operand 0']
    #allocation3 [shape = 's32[2]{0}', space=sflag, size = 0x8, scoped, tag = 'scoped memory for tpu_custom_call.1']
    #allocation4 [shape = 'u8[512]{0}', space=vmem, size = 0x400, scoped, tag = 'input window, operand 1, single buffered']
    #allocation5 [shape = 's32[1]{0}', space=sflag, size = 0x4, scoped, tag = 'scoped memory for tpu_custom_call.1']
    #allocation6 [shape = 'u8[262144]{0}', space=vmem, size = 0x40000, scoped, tag = 'output window, operand 0']
    %7 = vsyncpa [#allocation3], 0
    %s8 = scalar_lea.sflag [#allocation3], 1
    %9 = vsyncpa %s8, 0
    %10 = vsyncpa [#allocation5], 0
    loop: start=0, step=1, limit=4
    $region2: #{tpu_custom_call.1} parent=1 // loop_pre_header
      _
    $region3: #{tpu_custom_call.1} parent=1 // loop_header
      %s12 = sphi 0, %s16
      %p13 = scmp.ge.s32.totalorder %s12, 4
      %s19 = sphi 0, %s31
      %s20 = sphi 0, %s27
      %s21 = sphi 0, %s19
      %s22 = sphi 0, %s20
      %s23 = sphi 0, %s21
      %s24 = sphi 0, %s22
      %s36 = sphi 0, %s38
      %s39 = sphi 0, %s36
      %s40 = sphi 0, %s39
      %s56 = sphi 0, %s40
      %s60 = sphi 0, %s60
      %s62 = sphi 0, %s60
      %s63 = sphi 0, %s62
      %s77 = sphi 0, %s63
      %s85 = sphi 0, %s87
      %s88 = sphi 0, %s85
      %s89 = sphi 0, %s88
      %s105 = sphi 0, %s89
    $region4: #{tpu_custom_call.1} parent=1 // loop_header_branch
      %15 = sbr.rel (%p13) target = $region8
    $region5: #{tpu_custom_call.1} parent=1 // loop_body
      %s17 = ssub.s32 %s12, 1
      %s18 = ssub.s32 %s12, 2
      %s25 = sadd.s32 1, %s20
      %p26 = scmp.ge.s32.totalorder %s25, 2
      %s27 = scalar_select %p26, 0, %s25
      %s28 = sadd.s32 1, %s19
      %s29 = scalar_select %p26, %s28, %s19
      %p30 = scmp.ge.s32.totalorder %s29, 1
      %s31 = scalar_select %p30, 0, %s29
      %s32 = ssub.s32 %s19, %s31
      %s33 = ssub.s32 %s20, %s27
      %s34 = sor.u32 %s32, %s33
      %p35 = scmp.eq.s32.totalorder %s34, 0
      %s37 = sadd.s32 %s36, 1
      %s38 = scalar_select %p35, %s36, %s37
      %p41 = pneg %p35
      %p42 = scmp.eq.s32.totalorder %s12, 1
      %p43 = por %p41, %p42
      %p44 = scmp.ne.s32.totalorder %s36, %s39
      %p45 = scmp.eq.s32.totalorder %s12, 0
      %p46 = por %p44, %p45
      %p47 = scmp.ne.s32.totalorder %s36, %s39
      %p48 = scmp.eq.s32.totalorder %s17, 1
      %p49 = por %p47, %p48
      %p50 = scmp.ne.s32.totalorder %s39, %s40
      %p51 = scmp.eq.s32.totalorder %s17, 0
      %p52 = por %p50, %p51
      %p53 = scmp.ne.s32.totalorder %s39, %s40
      %p54 = scmp.eq.s32.totalorder %s18, 1
      %p55 = por %p53, %p54
      %p57 = scmp.ne.s32.totalorder %s40, %s56
      %p58 = scmp.eq.s32.totalorder %s18, 0
      %p59 = por %p57, %p58
      %s61 = sadd.s32 %s60, 1
      %p64 = scmp.eq.s32.totalorder %s12, 1
      %p65 = scmp.ne.s32.totalorder %s60, %s62
      %p66 = scmp.eq.s32.totalorder %s12, 0
      %p67 = por %p65, %p66
      %p68 = scmp.ne.s32.totalorder %s60, %s62
      %p69 = scmp.eq.s32.totalorder %s17, 1
      %p70 = por %p68, %p69
      %p71 = scmp.ne.s32.totalorder %s62, %s63
      %p72 = scmp.eq.s32.totalorder %s17, 0
      %p73 = por %p71, %p72
      %p74 = scmp.ne.s32.totalorder %s62, %s63
      %p75 = scmp.eq.s32.totalorder %s18, 1
      %p76 = por %p74, %p75
      %p78 = scmp.ne.s32.totalorder %s63, %s77
      %p79 = scmp.eq.s32.totalorder %s18, 0
      %p80 = por %p78, %p79
      %s81 = ssub.s32 %s19, %s31
      %s82 = ssub.s32 %s20, %s27
      %s83 = sor.u32 %s81, %s82
      %p84 = scmp.eq.s32.totalorder %s83, 0
      %s86 = sadd.s32 %s85, 1
      %s87 = scalar_select %p84, %s85, %s86
      %p90 = pneg %p84
      %p91 = scmp.eq.s32.totalorder %s12, 1
      %p92 = por %p90, %p91
      %p93 = scmp.ne.s32.totalorder %s85, %s88
      %p94 = scmp.eq.s32.totalorder %s12, 0
      %p95 = por %p93, %p94
      %p96 = scmp.ne.s32.totalorder %s85, %s88
      %p97 = scmp.eq.s32.totalorder %s17, 1
      %p98 = por %p96, %p97
      %p99 = scmp.ne.s32.totalorder %s88, %s89
      %p100 = scmp.eq.s32.totalorder %s17, 0
      %p101 = por %p99, %p100
      %p102 = scmp.ne.s32.totalorder %s88, %s89
      %p103 = scmp.eq.s32.totalorder %s18, 1
      %p104 = por %p102, %p103
      %p106 = scmp.ne.s32.totalorder %s89, %s105
      %p107 = scmp.eq.s32.totalorder %s18, 0
      %p108 = por %p106, %p107
      %p109 = scmp.le.s32.totalorder 1, %s12
      %p110 = scmp.lt.s32.totalorder %s12, 3
      %p111 = pnand %p109, %p110
      %p112 = pneg %p111
      // Predicated region
      $region9: #{tpu_custom_call.1} parent=5 // pred_check
        _
      $region10: #{tpu_custom_call.1} parent=5 // pred_check_branch
        %114 = sbr.rel (%p111) target = $region12
      $region11: #{tpu_custom_call.1} parent=5 // pred_region
        %s115 = ssub.s32 %s12, 1
        // Predicated region
        $region13: #{tpu_custom_call.1} parent=11 // pred_check
          %p116 = pneg %p73
        $region14: #{tpu_custom_call.1} parent=11 // pred_check_branch
          %118 = sbr.rel (%p116) target = $region16
        $region15: #{tpu_custom_call.1} parent=11 // pred_region
          %120 = vsyncadd [#allocation5], 0
          %s122 = sshll.u32 %s1, 4
          %s123 = int_to_ptr.hbm [resolvable:$true] %s122
          %s124 = sshll.u32 [#allocation4], 4
          %s125 = int_to_ptr.vmem [resolvable:$true] %s124
          %127 = dma.hbm_to_vmem [thread:$0]  %s123, 16, %s125, [#allocation5]
        $region16: #{tpu_custom_call.1} parent=11 // pred_fallthru
          _
      $region12: #{tpu_custom_call.1} parent=5 // pred_fallthru
        _
      %p128 = scmp.lt.s32.totalorder %s12, 2
      // Predicated region
      $region17: #{tpu_custom_call.1} parent=5 // pred_check
        %p129 = pneg %p128
      $region18: #{tpu_custom_call.1} parent=5 // pred_check_branch
        %131 = sbr.rel (%p129) target = $region20
      $region19: #{tpu_custom_call.1} parent=5 // pred_region
        // Predicated region
        $region21: #{tpu_custom_call.1} parent=19 // pred_check
          %p132 = pneg %p46
        $region22: #{tpu_custom_call.1} parent=19 // pred_check_branch
          %134 = sbr.rel (%p132) target = $region24
        $region23: #{tpu_custom_call.1} parent=19 // pred_region
          %s135 = sand.u32 %s36, 1
          %s136 = scalar_lea.sflag [#allocation3], %s135
          %s137 = sand.u32 %s36, 1
          %s138 = smul.addr %s137, 2
          %s139 = scalar_lea.vmem [#allocation2], %s138
          %141 = vsyncadd %s136, 0
          %s142 = smul.addr %s19, 2
          %s143 = sadd.s32 %s20, %s142
          %s144 = smul.addr %s143, 2
          %s145 = scalar_lea.hbm %s0, %s144
          %s147 = sshll.u32 %s145, 4
          %s148 = int_to_ptr.hbm [resolvable:$true] %s147
          %s149 = sshll.u32 %s139, 4
          %s150 = int_to_ptr.vmem [resolvable:$true] %s149
          %152 = dma.hbm_to_vmem [thread:$0]  %s148, 32, %s150, %s136
        $region24: #{tpu_custom_call.1} parent=19 // pred_fallthru
          _
      $region20: #{tpu_custom_call.1} parent=5 // pred_fallthru
        _
      %p153 = scmp.le.s32.totalorder 1, %s12
      %p154 = scmp.lt.s32.totalorder %s12, 3
      %p155 = pnand %p153, %p154
      %p156 = pneg %p155
      // Predicated region
      $region25: #{tpu_custom_call.1} parent=5 // pred_check
        _
      $region26: #{tpu_custom_call.1} parent=5 // pred_check_branch
        %158 = sbr.rel (%p155) target = $region28
      $region27: #{tpu_custom_call.1} parent=5 // pred_region
        %s159 = ssub.s32 %s12, 1
        %s160 = sand.u32 %s39, 1
        %s161 = scalar_lea.sflag [#allocation3], %s160
        %s162 = sand.u32 %s39, 1
        %s163 = smul.addr %s162, 2
        %s164 = scalar_lea.vmem [#allocation2], %s163
        // Predicated region
        $region29: #{tpu_custom_call.1} parent=27 // pred_check
          %p165 = pneg %p52
        $region30: #{tpu_custom_call.1} parent=27 // pred_check_branch
          %167 = sbr.rel (%p165) target = $region32
        $region31: #{tpu_custom_call.1} parent=27 // pred_region
          %169 = dma.done %s161, 32
        $region32: #{tpu_custom_call.1} parent=27 // pred_fallthru
          _
        // Predicated region
        $region33: #{tpu_custom_call.1} parent=27 // pred_check
          %p170 = pneg %p73
        $region34: #{tpu_custom_call.1} parent=27 // pred_check_branch
          %172 = sbr.rel (%p170) target = $region36
        $region35: #{tpu_custom_call.1} parent=27 // pred_region
          %174 = dma.done [#allocation5], 16
        $region36: #{tpu_custom_call.1} parent=27 // pred_fallthru
          _
        %s175 = sand.u32 %s39, 1
        %s176 = scalar_lea.sflag [#allocation3], %s175
        %s177 = sand.u32 %s39, 1
        %s178 = smul.addr %s177, 2
        %s179 = scalar_lea.vmem [#allocation2], %s178
        %p180 = pneg %p52
        %p181 = pneg %p49
        %p182 = pneg %p73
        %p183 = pneg %p70
        %p184 = pneg %p101
        %p185 = pneg %p98
        %s186 = sand.u32 %s88, 1
        %s187 = sand.u32 %s88, 1
        %s188 = smul.addr %s187, 256
        %s189 = scalar_lea.vmem [#allocation6], %s188
        %s190 = smul.u32 2, %s21
        %s191 = smul.u32 16, %s22
        %v192 = vld [vmem:[%s164] sm:$0x3]
        %v193 = vcvt.s32.f32 %v192
        %v194 = vperm.slane %v193, 0
        %v195 = vlaneseq
        %v196 = vshrl.u32 %v195, 7
        %198 = vset.pattern.permute.xlu0 %v196
        %199 = vperm.xlu0 %198, %v194
        %v200 = vpop.permute.xlu0 %199
        %v201 = vlaneseq
        %v202 = vshrl.u32 %v201, 7
        %v203 = vadd.s32 %v202, 8
        %204 = vset.pattern.permute.xlu0 %v203
        %205 = vperm.xlu0 %204, %v194
        %v206 = vpop.permute.xlu0 %205
        %v207 = vlaneseq
        %v208 = vshrl.u32 %v207, 7
        %v209 = vadd.s32 %v208, 16
        %210 = vset.pattern.permute.xlu0 %v209
        %211 = vperm.xlu0 %210, %v194
        %v212 = vpop.permute.xlu0 %211
        %v213 = vlaneseq
        %v214 = vshrl.u32 %v213, 7
        %v215 = vadd.s32 %v214, 24
        %216 = vset.pattern.permute.xlu0 %v215
        %217 = vperm.xlu0 %216, %v194
        %v218 = vpop.permute.xlu0 %217
        %v219 = vlaneseq
        %v220 = vshrl.u32 %v219, 7
        %v221 = vadd.s32 %v220, 32
        %222 = vset.pattern.permute.xlu0 %v221
        %223 = vperm.xlu0 %222, %v194
        %v224 = vpop.permute.xlu0 %223
        %v225 = vlaneseq
        %v226 = vshrl.u32 %v225, 7
        %v227 = vadd.s32 %v226, 40
        %228 = vset.pattern.permute.xlu0 %v227
        %229 = vperm.xlu0 %228, %v194
        %v230 = vpop.permute.xlu0 %229
        %v231 = vlaneseq
        %v232 = vshrl.u32 %v231, 7
        %v233 = vadd.s32 %v232, 48
        %234 = vset.pattern.permute.xlu0 %v233
        %235 = vperm.xlu0 %234, %v194
        %v236 = vpop.permute.xlu0 %235
        %v237 = vlaneseq
        %v238 = vshrl.u32 %v237, 7
        %v239 = vadd.s32 %v238, 56
        %240 = vset.pattern.permute.xlu0 %v239
        %241 = vperm.xlu0 %240, %v194
        %v242 = vpop.permute.xlu0 %241
        %v243 = vlaneseq
        %v244 = vshrl.u32 %v243, 7
        %v245 = vadd.s32 %v244, 64
        %246 = vset.pattern.permute.xlu0 %v245
        %247 = vperm.xlu0 %246, %v194
        %v248 = vpop.permute.xlu0 %247
        %v249 = vlaneseq
        %v250 = vshrl.u32 %v249, 7
        %v251 = vadd.s32 %v250, 72
        %252 = vset.pattern.permute.xlu0 %v251
        %253 = vperm.xlu0 %252, %v194
        %v254 = vpop.permute.xlu0 %253
        %v255 = vlaneseq
        %v256 = vshrl.u32 %v255, 7
        %v257 = vadd.s32 %v256, 80
        %258 = vset.pattern.permute.xlu0 %v257
        %259 = vperm.xlu0 %258, %v194
        %v260 = vpop.permute.xlu0 %259
        %v261 = vlaneseq
        %v262 = vshrl.u32 %v261, 7
        %v263 = vadd.s32 %v262, 88
        %264 = vset.pattern.permute.xlu0 %v263
        %265 = vperm.xlu0 %264, %v194
        %v266 = vpop.permute.xlu0 %265
        %v267 = vlaneseq
        %v268 = vshrl.u32 %v267, 7
        %v269 = vadd.s32 %v268, 96
        %270 = vset.pattern.permute.xlu0 %v269
        %271 = vperm.xlu0 %270, %v194
        %v272 = vpop.permute.xlu0 %271
        %v273 = vlaneseq
        %v274 = vshrl.u32 %v273, 7
        %v275 = vadd.s32 %v274, 104
        %276 = vset.pattern.permute.xlu0 %v275
        %277 = vperm.xlu0 %276, %v194
        %v278 = vpop.permute.xlu0 %277
        %v279 = vlaneseq
        %v280 = vshrl.u32 %v279, 7
        %v281 = vadd.s32 %v280, 112
        %282 = vset.pattern.permute.xlu0 %v281
        %283 = vperm.xlu0 %282, %v194
        %v284 = vpop.permute.xlu0 %283
        %v285 = vlaneseq
        %v286 = vshrl.u32 %v285, 7
        %v287 = vadd.s32 %v286, 120
        %288 = vset.pattern.permute.xlu0 %v287
        %289 = vperm.xlu0 %288, %v194
        %v290 = vpop.permute.xlu0 %289
        %v291 = vperm.slane %v193, 1
        %v292 = vlaneseq
        %v293 = vshrl.u32 %v292, 7
        %295 = vset.pattern.permute.xlu0 %v293
        %296 = vperm.xlu0 %295, %v291
        %v297 = vpop.permute.xlu0 %296
        %v298 = vlaneseq
        %v299 = vshrl.u32 %v298, 7
        %v300 = vadd.s32 %v299, 8
        %301 = vset.pattern.permute.xlu0 %v300
        %302 = vperm.xlu0 %301, %v291
        %v303 = vpop.permute.xlu0 %302
        %v304 = vlaneseq
        %v305 = vshrl.u32 %v304, 7
        %v306 = vadd.s32 %v305, 16
        %307 = vset.pattern.permute.xlu0 %v306
        %308 = vperm.xlu0 %307, %v291
        %v309 = vpop.permute.xlu0 %308
        %v310 = vlaneseq
        %v311 = vshrl.u32 %v310, 7
        %v312 = vadd.s32 %v311, 24
        %313 = vset.pattern.permute.xlu0 %v312
        %314 = vperm.xlu0 %313, %v291
        %v315 = vpop.permute.xlu0 %314
        %v316 = vlaneseq
        %v317 = vshrl.u32 %v316, 7
        %v318 = vadd.s32 %v317, 32
        %319 = vset.pattern.permute.xlu0 %v318
        %320 = vperm.xlu0 %319, %v291
        %v321 = vpop.permute.xlu0 %320
        %v322 = vlaneseq
        %v323 = vshrl.u32 %v322, 7
        %v324 = vadd.s32 %v323, 40
        %325 = vset.pattern.permute.xlu0 %v324
        %326 = vperm.xlu0 %325, %v291
        %v327 = vpop.permute.xlu0 %326
        %v328 = vlaneseq
        %v329 = vshrl.u32 %v328, 7
        %v330 = vadd.s32 %v329, 48
        %331 = vset.pattern.permute.xlu0 %v330
        %332 = vperm.xlu0 %331, %v291
        %v333 = vpop.permute.xlu0 %332
        %v334 = vlaneseq
        %v335 = vshrl.u32 %v334, 7
        %v336 = vadd.s32 %v335, 56
        %337 = vset.pattern.permute.xlu0 %v336
        %338 = vperm.xlu0 %337, %v291
        %v339 = vpop.permute.xlu0 %338
        %v340 = vlaneseq
        %v341 = vshrl.u32 %v340, 7
        %v342 = vadd.s32 %v341, 64
        %343 = vset.pattern.permute.xlu0 %v342
        %344 = vperm.xlu0 %343, %v291
        %v345 = vpop.permute.xlu0 %344
        %v346 = vlaneseq
        %v347 = vshrl.u32 %v346, 7
        %v348 = vadd.s32 %v347, 72
        %349 = vset.pattern.permute.xlu0 %v348
        %350 = vperm.xlu0 %349, %v291
        %v351 = vpop.permute.xlu0 %350
        %v352 = vlaneseq
        %v353 = vshrl.u32 %v352, 7
        %v354 = vadd.s32 %v353, 80
        %355 = vset.pattern.permute.xlu0 %v354
        %356 = vperm.xlu0 %355, %v291
        %v357 = vpop.permute.xlu0 %356
        %v358 = vlaneseq
        %v359 = vshrl.u32 %v358, 7
        %v360 = vadd.s32 %v359, 88
        %361 = vset.pattern.permute.xlu0 %v360
        %362 = vperm.xlu0 %361, %v291
        %v363 = vpop.permute.xlu0 %362
        %v364 = vlaneseq
        %v365 = vshrl.u32 %v364, 7
        %v366 = vadd.s32 %v365, 96
        %367 = vset.pattern.permute.xlu0 %v366
        %368 = vperm.xlu0 %367, %v291
        %v369 = vpop.permute.xlu0 %368
        %v370 = vlaneseq
        %v371 = vshrl.u32 %v370, 7
        %v372 = vadd.s32 %v371, 104
        %373 = vset.pattern.permute.xlu0 %v372
        %374 = vperm.xlu0 %373, %v291
        %v375 = vpop.permute.xlu0 %374
        %v376 = vlaneseq
        %v377 = vshrl.u32 %v376, 7
        %v378 = vadd.s32 %v377, 112
        %379 = vset.pattern.permute.xlu0 %v378
        %380 = vperm.xlu0 %379, %v291
        %v381 = vpop.permute.xlu0 %380
        %v382 = vlaneseq
        %v383 = vshrl.u32 %v382, 7
        %v384 = vadd.s32 %v383, 120
        %385 = vset.pattern.permute.xlu0 %v384
        %386 = vperm.xlu0 %385, %v291
        %v387 = vpop.permute.xlu0 %386
        %vm388 = vcmp.gt.f32.partialorder %v200, 1.0
        %vm389 = vcmp.gt.f32.partialorder %v206, 1.0
        %vm390 = vcmp.gt.f32.partialorder %v212, 1.0
        %vm391 = vcmp.gt.f32.partialorder %v218, 1.0
        %vm392 = vcmp.gt.f32.partialorder %v224, 1.0
        %vm393 = vcmp.gt.f32.partialorder %v230, 1.0
        %vm394 = vcmp.gt.f32.partialorder %v236, 1.0
        %vm395 = vcmp.gt.f32.partialorder %v242, 1.0
        %vm396 = vcmp.gt.f32.partialorder %v248, 1.0
        %vm397 = vcmp.gt.f32.partialorder %v254, 1.0
        %vm398 = vcmp.gt.f32.partialorder %v260, 1.0
        %vm399 = vcmp.gt.f32.partialorder %v266, 1.0
        %vm400 = vcmp.gt.f32.partialorder %v272, 1.0
        %vm401 = vcmp.gt.f32.partialorder %v278, 1.0
        %vm402 = vcmp.gt.f32.partialorder %v284, 1.0
        %vm403 = vcmp.gt.f32.partialorder %v290, 1.0
        %vm404 = vcmp.gt.f32.partialorder %v297, 1.0
        %vm405 = vcmp.gt.f32.partialorder %v303, 1.0
        %vm406 = vcmp.gt.f32.partialorder %v309, 1.0
        %vm407 = vcmp.gt.f32.partialorder %v315, 1.0
        %vm408 = vcmp.gt.f32.partialorder %v321, 1.0
        %vm409 = vcmp.gt.f32.partialorder %v327, 1.0
        %vm410 = vcmp.gt.f32.partialorder %v333, 1.0
        %vm411 = vcmp.gt.f32.partialorder %v339, 1.0
        %vm412 = vcmp.gt.f32.partialorder %v345, 1.0
        %vm413 = vcmp.gt.f32.partialorder %v351, 1.0
        %vm414 = vcmp.gt.f32.partialorder %v357, 1.0
        %vm415 = vcmp.gt.f32.partialorder %v363, 1.0
        %vm416 = vcmp.gt.f32.partialorder %v369, 1.0
        %vm417 = vcmp.gt.f32.partialorder %v375, 1.0
        %vm418 = vcmp.gt.f32.partialorder %v381, 1.0
        %vm419 = vcmp.gt.f32.partialorder %v387, 1.0
        %v420 = vld [vmem:[#allocation4] sm:$0x1]
        %v422 = vperm.slane %v420, 0
        %v424 = vmul.f32 %v200, %v422
        %v425 = vmul.f32 %v206, %v422
        %v426 = vmul.f32 %v212, %v422
        %v427 = vmul.f32 %v218, %v422
        %v428 = vmul.f32 %v224, %v422
        %v429 = vmul.f32 %v230, %v422
        %v430 = vmul.f32 %v236, %v422
        %v431 = vmul.f32 %v242, %v422
        %v432 = vmul.f32 %v248, %v422
        %v433 = vmul.f32 %v254, %v422
        %v434 = vmul.f32 %v260, %v422
        %v435 = vmul.f32 %v266, %v422
        %v436 = vmul.f32 %v272, %v422
        %v437 = vmul.f32 %v278, %v422
        %v438 = vmul.f32 %v284, %v422
        %v439 = vmul.f32 %v290, %v422
        %v440 = vmul.f32 %v297, %v422
        %v441 = vmul.f32 %v303, %v422
        %v442 = vmul.f32 %v309, %v422
        %v443 = vmul.f32 %v315, %v422
        %v444 = vmul.f32 %v321, %v422
        %v445 = vmul.f32 %v327, %v422
        %v446 = vmul.f32 %v333, %v422
        %v447 = vmul.f32 %v339, %v422
        %v448 = vmul.f32 %v345, %v422
        %v449 = vmul.f32 %v351, %v422
        %v450 = vmul.f32 %v357, %v422
        %v451 = vmul.f32 %v363, %v422
        %v452 = vmul.f32 %v369, %v422
        %v453 = vmul.f32 %v375, %v422
        %v454 = vmul.f32 %v381, %v422
        %v455 = vmul.f32 %v387, %v422
        %v456 = vand.u32 2147483647, %v424
        %vm457 = vcmp.le.f32.partialorder %v456, 0.7853982
        %vm458 = vcmp.lt.s32.totalorder %v424, 0
        %v459 = vand.u32 %v424, 2139095040
        %v460 = vshrl.u32 %v459, 23
        %v461 = vsub.s32 %v460, 127
        %v462 = vand.u32 2147483647, %v424
        %v463 = vand.u32 %v462, 8388607
        %v464 = vor.u32 %v463, 8388608
        %v465 = vsub.s32 0, %v464
        %v466 = vadd.s32 %v461, 1
        %vm467 = vcmp.gt.s32.totalorder %v466, 0
        %v468 = vsel %vm467, %v466, 0
        %v469 = vshrl.u32 %v468, 5
        %v470 = vand.u32 %v468, 31
        %v471 = vsub.s32 32, %v470
        %v472 = vshrl.u32 683565275, %v471
        %v473 = vshll.u32 683565275, %v470
        %v474 = vshrl.u32 2475754826, %v471
        %v475 = vor.u32 %v473, %v474
        %v476 = vshll.u32 2475754826, %v470
        %v477 = vshrl.u32 2131351028, %v471
        %v478 = vor.u32 %v476, %v477
        %v479 = vshll.u32 2131351028, %v470
        %v480 = vshrl.u32 2102212464, %v471
        %v481 = vor.u32 %v479, %v480
        %v482 = vshll.u32 2102212464, %v470
        %v483 = vshrl.u32 920167782, %v471
        %v484 = vor.u32 %v482, %v483
        %v485 = vshll.u32 920167782, %v470
        %v486 = vshrl.u32 1326507024, %v471
        %v487 = vor.u32 %v485, %v486
        %vm488 = vcmp.lt.s32.totalorder %v469, 1
        %vm489 = vcmp.lt.s32.totalorder %v469, 2
        %vm490 = vcmp.lt.s32.totalorder %v469, 3
        %vm491 = vcmp.lt.s32.totalorder %v469, 4
        %v492 = vsel %vm488, %v472, %v475
        %v493 = vsel %vm491, %v481, 2102212464
        %v494 = vsel %vm490, %v478, %v493
        %v495 = vsel %vm489, %v492, %v494
        %v496 = vsel %vm488, %v475, %v478
        %v497 = vsel %vm491, %v484, 920167782
        %v498 = vsel %vm490, %v481, %v497
        %v499 = vsel %vm489, %v496, %v498
        %v500 = vsel %vm488, %v478, %v481
        %v501 = vsel %vm491, %v487, 1326507024
        %v502 = vsel %vm490, %v484, %v501
        %v503 = vsel %vm489, %v500, %v502
        %v504 = vshll.u32 %v464, 8
        %v505 = vand.u32 %v504, 65535
        %v506 = vshrl.u32 %v504, 16
        %v507 = vand.u32 %v503, 65535
        %v508 = vshrl.u32 %v503, 16
        %v509 = vmul.u32 %v505, %v507
        %v510 = vmul.u32 %v505, %v508
        %v511 = vmul.u32 %v506, %v507
        %v512 = vmul.u32 %v506, %v508
        %v513 = vshll.u32 %v510, 16
        %v514 = vshrl.u32 %v510, 16
        %v515 = vshll.u32 %v511, 16
        %v516 = vshrl.u32 %v511, 16
        %vm517 = vc.u32 %v509, %v513
        %v518 = vsel %vm517, 1, 0
        %v519 = vadd.s32 %v509, %v513
        %v520 = vadd.s32 %v512, %v518
        %vm521 = vc.u32 %v519, %v515
        %v522 = vsel %vm521, 1, 0
        %v523 = vadd.s32 %v519, %v515
        %v524 = vadd.s32 %v520, %v522
        %v525 = vadd.s32 %v524, %v514
        %v526 = vadd.s32 %v525, %v516
        %v527 = vand.u32 %v504, 65535
        %v528 = vshrl.u32 %v504, 16
        %v529 = vand.u32 %v499, 65535
        %v530 = vshrl.u32 %v499, 16
        %v531 = vmul.u32 %v527, %v529
        %v532 = vmul.u32 %v527, %v530
        %v533 = vmul.u32 %v528, %v529
        %v534 = vmul.u32 %v528, %v530
        %v535 = vshll.u32 %v532, 16
        %v536 = vshrl.u32 %v532, 16
        %v537 = vshll.u32 %v533, 16
        %v538 = vshrl.u32 %v533, 16
        %vm539 = vc.u32 %v531, %v535
        %v540 = vsel %vm539, 1, 0
        %v541 = vadd.s32 %v531, %v535
        %v542 = vadd.s32 %v534, %v540
        %vm543 = vc.u32 %v541, %v537
        %v544 = vsel %vm543, 1, 0
        %v545 = vadd.s32 %v541, %v537
        %v546 = vadd.s32 %v542, %v544
        %v547 = vadd.s32 %v546, %v536
        %v548 = vadd.s32 %v547, %v538
        %v549 = vmul.u32 %v504, %v495
        %v550 = vadd.s32 %v526, %v545
        %vm551 = vc.u32 %v526, %v545
        %v552 = vadd.s32 %v548, 1
        %v553 = vsel %vm551, %v552, %v548
        %v554 = vadd.s32 %v549, %v553
        %v555 = vadd.s32 %v554, 536870912
        %v556 = vshrl.u32 %v555, 30
        %v557 = vshll.u32 %v556, 30
        %v558 = vsub.s32 %v554, %v557
        %vm559 = vcmp.lt.s32.totalorder %v558, 0
        %v560 = vsub.s32 0, %v558
        %v561 = vsel %vm559, %v560, %v558
        %v562 = vclz %v561
        %v563 = vsub.s32 %v562, 2
        %vm564 = vcmp.gt.s32.totalorder 0, %v563
        %v565 = vsel %vm564, 0, %v563
        %v566 = vsub.s32 32, %v565
        %v567 = vshll.u32 %v558, %v565
        %v568 = vshrl.u32 %v550, %v566
        %v569 = vor.u32 %v567, %v568
        %v570 = vsub.s32 4294967266, %v565
        %v571 = vadd.s32 %v570, 127
        %v572 = vshll.u32 %v571, 23
        %v573 = vor.u32 4788187, %v572
        %v574 = vand.u32 2147483647, %v573
        %v576 = vcvt.s32.f32 %v569
        %v577 = vmul.f32 %v576, %v574
        %v578 = vxor.u32 %v577, 2147483648
        %v579 = vsel %vm458, %v578, %v577
        %v580 = vsub.s32 4, %v556
        %v581 = vsel %vm458, %v580, %v556
        %v582 = vsel %vm457, %v424, %v579
        %v583 = vsel %vm457, 0, %v581
        %v584 = vmul.f32 %v582, %v582
        %v585 = vmul.f32 %v584, -0.001358992
        %v586 = vadd.f32 %v585, 0.041655596
        %v587 = vmul.f32 %v584, %v586
        %v588 = vadd.f32 %v587, -0.4999988
        %v589 = vmul.f32 %v584, %v588
        %v590 = vadd.f32 1.0, %v589
        %v591 = vmul.f32 %v582, %v582
        %v592 = vmul.f32 %v591, -0.00019511016
        %v593 = vadd.f32 %v592, 0.008332121
        %v594 = vmul.f32 %v591, %v593
        %v595 = vadd.f32 %v594, -0.16666654
        %v596 = vmul.f32 %v591, %v595
        %v597 = vadd.f32 %v596, 1.0
        %v598 = vmul.f32 %v597, %v582
        %vm599 = vweird.f32 %v424
        %v600 = vadd.s32 %v583, 3
        %v601 = vand.u32 %v600, 3
        %vm602 = vcmp.lt.s32.totalorder %v601, 2
        %vm603 = vcmp.eq.s32.totalorder %v601, 0
        %v604 = vxor.u32 %v598, 2147483648
        %v605 = vsel %vm603, %v590, %v604
        %vm606 = vcmp.eq.s32.totalorder %v601, 2
        %v607 = vxor.u32 %v590, 2147483648
        %v608 = vsel %vm606, %v607, %v598
        %v609 = vsel %vm602, %v605, %v608
        %v610 = vsel %vm599, nan, %v609
        %v611 = vand.u32 2147483647, %v425
        %vm612 = vcmp.le.f32.partialorder %v611, 0.7853982
        %vm613 = vcmp.lt.s32.totalorder %v425, 0
        %v614 = vand.u32 %v425, 2139095040
        %v615 = vshrl.u32 %v614, 23
        %v616 = vsub.s32 %v615, 127
        %v617 = vand.u32 2147483647, %v425
        %v618 = vand.u32 %v617, 8388607
        %v619 = vor.u32 %v618, 8388608
        %v620 = vsub.s32 0, %v619
        %v621 = vadd.s32 %v616, 1
        %vm622 = vcmp.gt.s32.totalorder %v621, 0
        %v623 = vsel %vm622, %v621, 0
        %v624 = vshrl.u32 %v623, 5
        %v625 = vand.u32 %v623, 31
        %v626 = vsub.s32 32, %v625
        %v627 = vshrl.u32 683565275, %v626
        %v628 = vshll.u32 683565275, %v625
        %v629 = vshrl.u32 2475754826, %v626
        %v630 = vor.u32 %v628, %v629
        %v631 = vshll.u32 2475754826, %v625
        %v632 = vshrl.u32 2131351028, %v626
        %v633 = vor.u32 %v631, %v632
        %v634 = vshll.u32 2131351028, %v625
        %v635 = vshrl.u32 2102212464, %v626
        %v636 = vor.u32 %v634, %v635
        %v637 = vshll.u32 2102212464, %v625
        %v638 = vshrl.u32 920167782, %v626
        %v639 = vor.u32 %v637, %v638
        %v640 = vshll.u32 920167782, %v625
        %v641 = vshrl.u32 1326507024, %v626
        %v642 = vor.u32 %v640, %v641
        %vm643 = vcmp.lt.s32.totalorder %v624, 1
        %vm644 = vcmp.lt.s32.totalorder %v624, 2
        %vm645 = vcmp.lt.s32.totalorder %v624, 3
        %vm646 = vcmp.lt.s32.totalorder %v624, 4
        %v647 = vsel %vm643, %v627, %v630
        %v648 = vsel %vm646, %v636, 2102212464
        %v649 = vsel %vm645, %v633, %v648
        %v650 = vsel %vm644, %v647, %v649
        %v651 = vsel %vm643, %v630, %v633
        %v652 = vsel %vm646, %v639, 920167782
        %v653 = vsel %vm645, %v636, %v652
        %v654 = vsel %vm644, %v651, %v653
        %v655 = vsel %vm643, %v633, %v636
        %v656 = vsel %vm646, %v642, 1326507024
        %v657 = vsel %vm645, %v639, %v656
        %v658 = vsel %vm644, %v655, %v657
        %v659 = vshll.u32 %v619, 8
        %v660 = vand.u32 %v659, 65535
        %v661 = vshrl.u32 %v659, 16
        %v662 = vand.u32 %v658, 65535
        %v663 = vshrl.u32 %v658, 16
        %v664 = vmul.u32 %v660, %v662
        %v665 = vmul.u32 %v660, %v663
        %v666 = vmul.u32 %v661, %v662
        %v667 = vmul.u32 %v661, %v663
        %v668 = vshll.u32 %v665, 16
        %v669 = vshrl.u32 %v665, 16
        %v670 = vshll.u32 %v666, 16
        %v671 = vshrl.u32 %v666, 16
        %vm672 = vc.u32 %v664, %v668
        %v673 = vsel %vm672, 1, 0
        %v674 = vadd.s32 %v664, %v668
        %v675 = vadd.s32 %v667, %v673
        %vm676 = vc.u32 %v674, %v670
        %v677 = vsel %vm676, 1, 0
        %v678 = vadd.s32 %v674, %v670
        %v679 = vadd.s32 %v675, %v677
        %v680 = vadd.s32 %v679, %v669
        %v681 = vadd.s32 %v680, %v671
        %v682 = vand.u32 %v659, 65535
        %v683 = vshrl.u32 %v659, 16
        %v684 = vand.u32 %v654, 65535
        %v685 = vshrl.u32 %v654, 16
        %v686 = vmul.u32 %v682, %v684
        %v687 = vmul.u32 %v682, %v685
        %v688 = vmul.u32 %v683, %v684
        %v689 = vmul.u32 %v683, %v685
        %v690 = vshll.u32 %v687, 16
        %v691 = vshrl.u32 %v687, 16
        %v692 = vshll.u32 %v688, 16
        %v693 = vshrl.u32 %v688, 16
        %vm694 = vc.u32 %v686, %v690
        %v695 = vsel %vm694, 1, 0
        %v696 = vadd.s32 %v686, %v690
        %v697 = vadd.s32 %v689, %v695
        %vm698 = vc.u32 %v696, %v692
        %v699 = vsel %vm698, 1, 0
        %v700 = vadd.s32 %v696, %v692
        %v701 = vadd.s32 %v697, %v699
        %v702 = vadd.s32 %v701, %v691
        %v703 = vadd.s32 %v702, %v693
        %v704 = vmul.u32 %v659, %v650
        %v705 = vadd.s32 %v681, %v700
        %vm706 = vc.u32 %v681, %v700
        %v707 = vadd.s32 %v703, 1
        %v708 = vsel %vm706, %v707, %v703
        %v709 = vadd.s32 %v704, %v708
        %v710 = vadd.s32 %v709, 536870912
        %v711 = vshrl.u32 %v710, 30
        %v712 = vshll.u32 %v711, 30
        %v713 = vsub.s32 %v709, %v712
        %vm714 = vcmp.lt.s32.totalorder %v713, 0
        %v715 = vsub.s32 0, %v713
        %v716 = vsel %vm714, %v715, %v713
        %v717 = vclz %v716
        %v718 = vsub.s32 %v717, 2
        %vm719 = vcmp.gt.s32.totalorder 0, %v718
        %v720 = vsel %vm719, 0, %v718
        %v721 = vsub.s32 32, %v720
        %v722 = vshll.u32 %v713, %v720
        %v723 = vshrl.u32 %v705, %v721
        %v724 = vor.u32 %v722, %v723
        %v725 = vsub.s32 4294967266, %v720
        %v726 = vadd.s32 %v725, 127
        %v727 = vshll.u32 %v726, 23
        %v728 = vor.u32 4788187, %v727
        %v729 = vand.u32 2147483647, %v728
        %v731 = vcvt.s32.f32 %v724
        %v732 = vmul.f32 %v731, %v729
        %v733 = vxor.u32 %v732, 2147483648
        %v734 = vsel %vm613, %v733, %v732
        %v735 = vsub.s32 4, %v711
        %v736 = vsel %vm613, %v735, %v711
        %v737 = vsel %vm612, %v425, %v734
        %v738 = vsel %vm612, 0, %v736
        %v739 = vmul.f32 %v737, %v737
        %v740 = vmul.f32 %v739, -0.001358992
        %v741 = vadd.f32 %v740, 0.041655596
        %v742 = vmul.f32 %v739, %v741
        %v743 = vadd.f32 %v742, -0.4999988
        %v744 = vmul.f32 %v739, %v743
        %v745 = vadd.f32 1.0, %v744
        %v746 = vmul.f32 %v737, %v737
        %v747 = vmul.f32 %v746, -0.00019511016
        %v748 = vadd.f32 %v747, 0.008332121
        %v749 = vmul.f32 %v746, %v748
        %v750 = vadd.f32 %v749, -0.16666654
        %v751 = vmul.f32 %v746, %v750
        %v752 = vadd.f32 %v751, 1.0
        %v753 = vmul.f32 %v752, %v737
        %vm754 = vweird.f32 %v425
        %v755 = vadd.s32 %v738, 3
        %v756 = vand.u32 %v755, 3
        %vm757 = vcmp.lt.s32.totalorder %v756, 2
        %vm758 = vcmp.eq.s32.totalorder %v756, 0
        %v759 = vxor.u32 %v753, 2147483648
        %v760 = vsel %vm758, %v745, %v759
        %vm761 = vcmp.eq.s32.totalorder %v756, 2
        %v762 = vxor.u32 %v745, 2147483648
        %v763 = vsel %vm761, %v762, %v753
        %v764 = vsel %vm757, %v760, %v763
        %v765 = vsel %vm754, nan, %v764
        %v766 = vand.u32 2147483647, %v426
        %vm767 = vcmp.le.f32.partialorder %v766, 0.7853982
        %vm768 = vcmp.lt.s32.totalorder %v426, 0
        %v769 = vand.u32 %v426, 2139095040
        %v770 = vshrl.u32 %v769, 23
        %v771 = vsub.s32 %v770, 127
        %v772 = vand.u32 2147483647, %v426
        %v773 = vand.u32 %v772, 8388607
        %v774 = vor.u32 %v773, 8388608
        %v775 = vsub.s32 0, %v774
        %v776 = vadd.s32 %v771, 1
        %vm777 = vcmp.gt.s32.totalorder %v776, 0
        %v778 = vsel %vm777, %v776, 0
        %v779 = vshrl.u32 %v778, 5
        %v780 = vand.u32 %v778, 31
        %v781 = vsub.s32 32, %v780
        %v782 = vshrl.u32 683565275, %v781
        %v783 = vshll.u32 683565275, %v780
        %v784 = vshrl.u32 2475754826, %v781
        %v785 = vor.u32 %v783, %v784
        %v786 = vshll.u32 2475754826, %v780
        %v787 = vshrl.u32 2131351028, %v781
        %v788 = vor.u32 %v786, %v787
        %v789 = vshll.u32 2131351028, %v780
        %v790 = vshrl.u32 2102212464, %v781
        %v791 = vor.u32 %v789, %v790
        %v792 = vshll.u32 2102212464, %v780
        %v793 = vshrl.u32 920167782, %v781
        %v794 = vor.u32 %v792, %v793
        %v795 = vshll.u32 920167782, %v780
        %v796 = vshrl.u32 1326507024, %v781
        %v797 = vor.u32 %v795, %v796
        %vm798 = vcmp.lt.s32.totalorder %v779, 1
        %vm799 = vcmp.lt.s32.totalorder %v779, 2
        %vm800 = vcmp.lt.s32.totalorder %v779, 3
        %vm801 = vcmp.lt.s32.totalorder %v779, 4
        %v802 = vsel %vm798, %v782, %v785
        %v803 = vsel %vm801, %v791, 2102212464
        %v804 = vsel %vm800, %v788, %v803
        %v805 = vsel %vm799, %v802, %v804
        %v806 = vsel %vm798, %v785, %v788
        %v807 = vsel %vm801, %v794, 920167782
        %v808 = vsel %vm800, %v791, %v807
        %v809 = vsel %vm799, %v806, %v808
        %v810 = vsel %vm798, %v788, %v791
        %v811 = vsel %vm801, %v797, 1326507024
        %v812 = vsel %vm800, %v794, %v811
        %v813 = vsel %vm799, %v810, %v812
        %v814 = vshll.u32 %v774, 8
        %v815 = vand.u32 %v814, 65535
        %v816 = vshrl.u32 %v814, 16
        %v817 = vand.u32 %v813, 65535
        %v818 = vshrl.u32 %v813, 16
        %v819 = vmul.u32 %v815, %v817
        %v820 = vmul.u32 %v815, %v818
        %v821 = vmul.u32 %v816, %v817
        %v822 = vmul.u32 %v816, %v818
        %v823 = vshll.u32 %v820, 16
        %v824 = vshrl.u32 %v820, 16
        %v825 = vshll.u32 %v821, 16
        %v826 = vshrl.u32 %v821, 16
        %vm827 = vc.u32 %v819, %v823
        %v828 = vsel %vm827, 1, 0
        %v829 = vadd.s32 %v819, %v823
        %v830 = vadd.s32 %v822, %v828
        %vm831 = vc.u32 %v829, %v825
        %v832 = vsel %vm831, 1, 0
        %v833 = vadd.s32 %v829, %v825
        %v834 = vadd.s32 %v830, %v832
        %v835 = vadd.s32 %v834, %v824
        %v836 = vadd.s32 %v835, %v826
        %v837 = vand.u32 %v814, 65535
        %v838 = vshrl.u32 %v814, 16
        %v839 = vand.u32 %v809, 65535
        %v840 = vshrl.u32 %v809, 16
        %v841 = vmul.u32 %v837, %v839
        %v842 = vmul.u32 %v837, %v840
        %v843 = vmul.u32 %v838, %v839
        %v844 = vmul.u32 %v838, %v840
        %v845 = vshll.u32 %v842, 16
        %v846 = vshrl.u32 %v842, 16
        %v847 = vshll.u32 %v843, 16
        %v848 = vshrl.u32 %v843, 16
        %vm849 = vc.u32 %v841, %v845
        %v850 = vsel %vm849, 1, 0
        %v851 = vadd.s32 %v841, %v845
        %v852 = vadd.s32 %v844, %v850
        %vm853 = vc.u32 %v851, %v847
        %v854 = vsel %vm853, 1, 0
        %v855 = vadd.s32 %v851, %v847
        %v856 = vadd.s32 %v852, %v854
        %v857 = vadd.s32 %v856, %v846
        %v858 = vadd.s32 %v857, %v848
        %v859 = vmul.u32 %v814, %v805
        %v860 = vadd.s32 %v836, %v855
        %vm861 = vc.u32 %v836, %v855
        %v862 = vadd.s32 %v858, 1
        %v863 = vsel %vm861, %v862, %v858
        %v864 = vadd.s32 %v859, %v863
        %v865 = vadd.s32 %v864, 536870912
        %v866 = vshrl.u32 %v865, 30
        %v867 = vshll.u32 %v866, 30
        %v868 = vsub.s32 %v864, %v867
        %vm869 = vcmp.lt.s32.totalorder %v868, 0
        %v870 = vsub.s32 0, %v868
        %v871 = vsel %vm869, %v870, %v868
        %v872 = vclz %v871
        %v873 = vsub.s32 %v872, 2
        %vm874 = vcmp.gt.s32.totalorder 0, %v873
        %v875 = vsel %vm874, 0, %v873
        %v876 = vsub.s32 32, %v875
        %v877 = vshll.u32 %v868, %v875
        %v878 = vshrl.u32 %v860, %v876
        %v879 = vor.u32 %v877, %v878
        %v880 = vsub.s32 4294967266, %v875
        %v881 = vadd.s32 %v880, 127
        %v882 = vshll.u32 %v881, 23
        %v883 = vor.u32 4788187, %v882
        %v884 = vand.u32 2147483647, %v883
        %v886 = vcvt.s32.f32 %v879
        %v887 = vmul.f32 %v886, %v884
        %v888 = vxor.u32 %v887, 2147483648
        %v889 = vsel %vm768, %v888, %v887
        %v890 = vsub.s32 4, %v866
        %v891 = vsel %vm768, %v890, %v866
        %v892 = vsel %vm767, %v426, %v889
        %v893 = vsel %vm767, 0, %v891
        %v894 = vmul.f32 %v892, %v892
        %v895 = vmul.f32 %v894, -0.001358992
        %v896 = vadd.f32 %v895, 0.041655596
        %v897 = vmul.f32 %v894, %v896
        %v898 = vadd.f32 %v897, -0.4999988
        %v899 = vmul.f32 %v894, %v898
        %v900 = vadd.f32 1.0, %v899
        %v901 = vmul.f32 %v892, %v892
        %v902 = vmul.f32 %v901, -0.00019511016
        %v903 = vadd.f32 %v902, 0.008332121
        %v904 = vmul.f32 %v901, %v903
        %v905 = vadd.f32 %v904, -0.16666654
        %v906 = vmul.f32 %v901, %v905
        %v907 = vadd.f32 %v906, 1.0
        %v908 = vmul.f32 %v907, %v892
        %vm909 = vweird.f32 %v426
        %v910 = vadd.s32 %v893, 3
        %v911 = vand.u32 %v910, 3
        %vm912 = vcmp.lt.s32.totalorder %v911, 2
        %vm913 = vcmp.eq.s32.totalorder %v911, 0
        %v914 = vxor.u32 %v908, 2147483648
        %v915 = vsel %vm913, %v900, %v914
        %vm916 = vcmp.eq.s32.totalorder %v911, 2
        %v917 = vxor.u32 %v900, 2147483648
        %v918 = vsel %vm916, %v917, %v908
        %v919 = vsel %vm912, %v915, %v918
        %v920 = vsel %vm909, nan, %v919
        %v921 = vand.u32 2147483647, %v427
        %vm922 = vcmp.le.f32.partialorder %v921, 0.7853982
        %vm923 = vcmp.lt.s32.totalorder %v427, 0
        %v924 = vand.u32 %v427, 2139095040
        %v925 = vshrl.u32 %v924, 23
        %v926 = vsub.s32 %v925, 127
        %v927 = vand.u32 2147483647, %v427
        %v928 = vand.u32 %v927, 8388607
        %v929 = vor.u32 %v928, 8388608
        %v930 = vsub.s32 0, %v929
        %v931 = vadd.s32 %v926, 1
        %vm932 = vcmp.gt.s32.totalorder %v931, 0
        %v933 = vsel %vm932, %v931, 0
        %v934 = vshrl.u32 %v933, 5
        %v935 = vand.u32 %v933, 31
        %v936 = vsub.s32 32, %v935
        %v937 = vshrl.u32 683565275, %v936
        %v938 = vshll.u32 683565275, %v935
        %v939 = vshrl.u32 2475754826, %v936
        %v940 = vor.u32 %v938, %v939
        %v941 = vshll.u32 2475754826, %v935
        %v942 = vshrl.u32 2131351028, %v936
        %v943 = vor.u32 %v941, %v942
        %v944 = vshll.u32 2131351028, %v935
        %v945 = vshrl.u32 2102212464, %v936
        %v946 = vor.u32 %v944, %v945
        %v947 = vshll.u32 2102212464, %v935
        %v948 = vshrl.u32 920167782, %v936
        %v949 = vor.u32 %v947, %v948
        %v950 = vshll.u32 920167782, %v935
        %v951 = vshrl.u32 1326507024, %v936
        %v952 = vor.u32 %v950, %v951
        %vm953 = vcmp.lt.s32.totalorder %v934, 1
        %vm954 = vcmp.lt.s32.totalorder %v934, 2
        %vm955 = vcmp.lt.s32.totalorder %v934, 3
        %vm956 = vcmp.lt.s32.totalorder %v934, 4
        %v957 = vsel %vm953, %v937, %v940
        %v958 = vsel %vm956, %v946, 2102212464
        %v959 = vsel %vm955, %v943, %v958
        %v960 = vsel %vm954, %v957, %v959
        %v961 = vsel %vm953, %v940, %v943
        %v962 = vsel %vm956, %v949, 920167782
        %v963 = vsel %vm955, %v946, %v962
        %v964 = vsel %vm954, %v961, %v963
        %v965 = vsel %vm953, %v943, %v946
        %v966 = vsel %vm956, %v952, 1326507024
        %v967 = vsel %vm955, %v949, %v966
        %v968 = vsel %vm954, %v965, %v967
        %v969 = vshll.u32 %v929, 8
        %v970 = vand.u32 %v969, 65535
        %v971 = vshrl.u32 %v969, 16
        %v972 = vand.u32 %v968, 65535
        %v973 = vshrl.u32 %v968, 16
        %v974 = vmul.u32 %v970, %v972
        %v975 = vmul.u32 %v970, %v973
        %v976 = vmul.u32 %v971, %v972
        %v977 = vmul.u32 %v971, %v973
        %v978 = vshll.u32 %v975, 16
        %v979 = vshrl.u32 %v975, 16
        %v980 = vshll.u32 %v976, 16
        %v981 = vshrl.u32 %v976, 16
        %vm982 = vc.u32 %v974, %v978
        %v983 = vsel %vm982, 1, 0
        %v984 = vadd.s32 %v974, %v978
        %v985 = vadd.s32 %v977, %v983
        %vm986 = vc.u32 %v984, %v980
        %v987 = vsel %vm986, 1, 0
        %v988 = vadd.s32 %v984, %v980
        %v989 = vadd.s32 %v985, %v987
        %v990 = vadd.s32 %v989, %v979
        %v991 = vadd.s32 %v990, %v981
        %v992 = vand.u32 %v969, 65535
        %v993 = vshrl.u32 %v969, 16
        %v994 = vand.u32 %v964, 65535
        %v995 = vshrl.u32 %v964, 16
        %v996 = vmul.u32 %v992, %v994
        %v997 = vmul.u32 %v992, %v995
        %v998 = vmul.u32 %v993, %v994
        %v999 = vmul.u32 %v993, %v995
        %v1000 = vshll.u32 %v997, 16
        %v1001 = vshrl.u32 %v997, 16
        %v1002 = vshll.u32 %v998, 16
        %v1003 = vshrl.u32 %v998, 16
        %vm1004 = vc.u32 %v996, %v1000
        %v1005 = vsel %vm1004, 1, 0
        %v1006 = vadd.s32 %v996, %v1000
        %v1007 = vadd.s32 %v999, %v1005
        %vm1008 = vc.u32 %v1006, %v1002
        %v1009 = vsel %vm1008, 1, 0
        %v1010 = vadd.s32 %v1006, %v1002
        %v1011 = vadd.s32 %v1007, %v1009
        %v1012 = vadd.s32 %v1011, %v1001
        %v1013 = vadd.s32 %v1012, %v1003
        %v1014 = vmul.u32 %v969, %v960
        %v1015 = vadd.s32 %v991, %v1010
        %vm1016 = vc.u32 %v991, %v1010
        %v1017 = vadd.s32 %v1013, 1
        %v1018 = vsel %vm1016, %v1017, %v1013
        %v1019 = vadd.s32 %v1014, %v1018
        %v1020 = vadd.s32 %v1019, 536870912
        %v1021 = vshrl.u32 %v1020, 30
        %v1022 = vshll.u32 %v1021, 30
        %v1023 = vsub.s32 %v1019, %v1022
        %vm1024 = vcmp.lt.s32.totalorder %v1023, 0
        %v1025 = vsub.s32 0, %v1023
        %v1026 = vsel %vm1024, %v1025, %v1023
        %v1027 = vclz %v1026
        %v1028 = vsub.s32 %v1027, 2
        %vm1029 = vcmp.gt.s32.totalorder 0, %v1028
        %v1030 = vsel %vm1029, 0, %v1028
        %v1031 = vsub.s32 32, %v1030
        %v1032 = vshll.u32 %v1023, %v1030
        %v1033 = vshrl.u32 %v1015, %v1031
        %v1034 = vor.u32 %v1032, %v1033
        %v1035 = vsub.s32 4294967266, %v1030
        %v1036 = vadd.s32 %v1035, 127
        %v1037 = vshll.u32 %v1036, 23
        %v1038 = vor.u32 4788187, %v1037
        %v1039 = vand.u32 2147483647, %v1038
        %v1041 = vcvt.s32.f32 %v1034
        %v1042 = vmul.f32 %v1041, %v1039
        %v1043 = vxor.u32 %v1042, 2147483648
        %v1044 = vsel %vm923, %v1043, %v1042
        %v1045 = vsub.s32 4, %v1021
        %v1046 = vsel %vm923, %v1045, %v1021
        %v1047 = vsel %vm922, %v427, %v1044
        %v1048 = vsel %vm922, 0, %v1046
        %v1049 = vmul.f32 %v1047, %v1047
        %v1050 = vmul.f32 %v1049, -0.001358992
        %v1051 = vadd.f32 %v1050, 0.041655596
        %v1052 = vmul.f32 %v1049, %v1051
        %v1053 = vadd.f32 %v1052, -0.4999988
        %v1054 = vmul.f32 %v1049, %v1053
        %v1055 = vadd.f32 1.0, %v1054
        %v1056 = vmul.f32 %v1047, %v1047
        %v1057 = vmul.f32 %v1056, -0.00019511016
        %v1058 = vadd.f32 %v1057, 0.008332121
        %v1059 = vmul.f32 %v1056, %v1058
        %v1060 = vadd.f32 %v1059, -0.16666654
        %v1061 = vmul.f32 %v1056, %v1060
        %v1062 = vadd.f32 %v1061, 1.0
        %v1063 = vmul.f32 %v1062, %v1047
        %vm1064 = vweird.f32 %v427
        %v1065 = vadd.s32 %v1048, 3
        %v1066 = vand.u32 %v1065, 3
        %vm1067 = vcmp.lt.s32.totalorder %v1066, 2
        %vm1068 = vcmp.eq.s32.totalorder %v1066, 0
        %v1069 = vxor.u32 %v1063, 2147483648
        %v1070 = vsel %vm1068, %v1055, %v1069
        %vm1071 = vcmp.eq.s32.totalorder %v1066, 2
        %v1072 = vxor.u32 %v1055, 2147483648
        %v1073 = vsel %vm1071, %v1072, %v1063
        %v1074 = vsel %vm1067, %v1070, %v1073
        %v1075 = vsel %vm1064, nan, %v1074
        %v1076 = vand.u32 2147483647, %v428
        %vm1077 = vcmp.le.f32.partialorder %v1076, 0.7853982
        %vm1078 = vcmp.lt.s32.totalorder %v428, 0
        %v1079 = vand.u32 %v428, 2139095040
        %v1080 = vshrl.u32 %v1079, 23
        %v1081 = vsub.s32 %v1080, 127
        %v1082 = vand.u32 2147483647, %v428
        %v1083 = vand.u32 %v1082, 8388607
        %v1084 = vor.u32 %v1083, 8388608
        %v1085 = vsub.s32 0, %v1084
        %v1086 = vadd.s32 %v1081, 1
        %vm1087 = vcmp.gt.s32.totalorder %v1086, 0
        %v1088 = vsel %vm1087, %v1086, 0
        %v1089 = vshrl.u32 %v1088, 5
        %v1090 = vand.u32 %v1088, 31
        %v1091 = vsub.s32 32, %v1090
        %v1092 = vshrl.u32 683565275, %v1091
        %v1093 = vshll.u32 683565275, %v1090
        %v1094 = vshrl.u32 2475754826, %v1091
        %v1095 = vor.u32 %v1093, %v1094
        %v1096 = vshll.u32 2475754826, %v1090
        %v1097 = vshrl.u32 2131351028, %v1091
        %v1098 = vor.u32 %v1096, %v1097
        %v1099 = vshll.u32 2131351028, %v1090
        %v1100 = vshrl.u32 2102212464, %v1091
        %v1101 = vor.u32 %v1099, %v1100
        %v1102 = vshll.u32 2102212464, %v1090
        %v1103 = vshrl.u32 920167782, %v1091
        %v1104 = vor.u32 %v1102, %v1103
        %v1105 = vshll.u32 920167782, %v1090
        %v1106 = vshrl.u32 1326507024, %v1091
        %v1107 = vor.u32 %v1105, %v1106
        %vm1108 = vcmp.lt.s32.totalorder %v1089, 1
        %vm1109 = vcmp.lt.s32.totalorder %v1089, 2
        %vm1110 = vcmp.lt.s32.totalorder %v1089, 3
        %vm1111 = vcmp.lt.s32.totalorder %v1089, 4
        %v1112 = vsel %vm1108, %v1092, %v1095
        %v1113 = vsel %vm1111, %v1101, 2102212464
        %v1114 = vsel %vm1110, %v1098, %v1113
        %v1115 = vsel %vm1109, %v1112, %v1114
        %v1116 = vsel %vm1108, %v1095, %v1098
        %v1117 = vsel %vm1111, %v1104, 920167782
        %v1118 = vsel %vm1110, %v1101, %v1117
        %v1119 = vsel %vm1109, %v1116, %v1118
        %v1120 = vsel %vm1108, %v1098, %v1101
        %v1121 = vsel %vm1111, %v1107, 1326507024
        %v1122 = vsel %vm1110, %v1104, %v1121
        %v1123 = vsel %vm1109, %v1120, %v1122
        %v1124 = vshll.u32 %v1084, 8
        %v1125 = vand.u32 %v1124, 65535
        %v1126 = vshrl.u32 %v1124, 16
        %v1127 = vand.u32 %v1123, 65535
        %v1128 = vshrl.u32 %v1123, 16
        %v1129 = vmul.u32 %v1125, %v1127
        %v1130 = vmul.u32 %v1125, %v1128
        %v1131 = vmul.u32 %v1126, %v1127
        %v1132 = vmul.u32 %v1126, %v1128
        %v1133 = vshll.u32 %v1130, 16
        %v1134 = vshrl.u32 %v1130, 16
        %v1135 = vshll.u32 %v1131, 16
        %v1136 = vshrl.u32 %v1131, 16
        %vm1137 = vc.u32 %v1129, %v1133
        %v1138 = vsel %vm1137, 1, 0
        %v1139 = vadd.s32 %v1129, %v1133
        %v1140 = vadd.s32 %v1132, %v1138
        %vm1141 = vc.u32 %v1139, %v1135
        %v1142 = vsel %vm1141, 1, 0
        %v1143 = vadd.s32 %v1139, %v1135
        %v1144 = vadd.s32 %v1140, %v1142
        %v1145 = vadd.s32 %v1144, %v1134
        %v1146 = vadd.s32 %v1145, %v1136
        %v1147 = vand.u32 %v1124, 65535
        %v1148 = vshrl.u32 %v1124, 16
        %v1149 = vand.u32 %v1119, 65535
        %v1150 = vshrl.u32 %v1119, 16
        %v1151 = vmul.u32 %v1147, %v1149
        %v1152 = vmul.u32 %v1147, %v1150
        %v1153 = vmul.u32 %v1148, %v1149
        %v1154 = vmul.u32 %v1148, %v1150
        %v1155 = vshll.u32 %v1152, 16
        %v1156 = vshrl.u32 %v1152, 16
        %v1157 = vshll.u32 %v1153, 16
        %v1158 = vshrl.u32 %v1153, 16
        %vm1159 = vc.u32 %v1151, %v1155
        %v1160 = vsel %vm1159, 1, 0
        %v1161 = vadd.s32 %v1151, %v1155
        %v1162 = vadd.s32 %v1154, %v1160
        %vm1163 = vc.u32 %v1161, %v1157
        %v1164 = vsel %vm1163, 1, 0
        %v1165 = vadd.s32 %v1161, %v1157
        %v1166 = vadd.s32 %v1162, %v1164
        %v1167 = vadd.s32 %v1166, %v1156
        %v1168 = vadd.s32 %v1167, %v1158
        %v1169 = vmul.u32 %v1124, %v1115
        %v1170 = vadd.s32 %v1146, %v1165
        %vm1171 = vc.u32 %v1146, %v1165
        %v1172 = vadd.s32 %v1168, 1
        %v1173 = vsel %vm1171, %v1172, %v1168
        %v1174 = vadd.s32 %v1169, %v1173
        %v1175 = vadd.s32 %v1174, 536870912
        %v1176 = vshrl.u32 %v1175, 30
        %v1177 = vshll.u32 %v1176, 30
        %v1178 = vsub.s32 %v1174, %v1177
        %vm1179 = vcmp.lt.s32.totalorder %v1178, 0
        %v1180 = vsub.s32 0, %v1178
        %v1181 = vsel %vm1179, %v1180, %v1178
        %v1182 = vclz %v1181
        %v1183 = vsub.s32 %v1182, 2
        %vm1184 = vcmp.gt.s32.totalorder 0, %v1183
        %v1185 = vsel %vm1184, 0, %v1183
        %v1186 = vsub.s32 32, %v1185
        %v1187 = vshll.u32 %v1178, %v1185
        %v1188 = vshrl.u32 %v1170, %v1186
        %v1189 = vor.u32 %v1187, %v1188
        %v1190 = vsub.s32 4294967266, %v1185
        %v1191 = vadd.s32 %v1190, 127
        %v1192 = vshll.u32 %v1191, 23
        %v1193 = vor.u32 4788187, %v1192
        %v1194 = vand.u32 2147483647, %v1193
        %v1196 = vcvt.s32.f32 %v1189
        %v1197 = vmul.f32 %v1196, %v1194
        %v1198 = vxor.u32 %v1197, 2147483648
        %v1199 = vsel %vm1078, %v1198, %v1197
        %v1200 = vsub.s32 4, %v1176
        %v1201 = vsel %vm1078, %v1200, %v1176
        %v1202 = vsel %vm1077, %v428, %v1199
        %v1203 = vsel %vm1077, 0, %v1201
        %v1204 = vmul.f32 %v1202, %v1202
        %v1205 = vmul.f32 %v1204, -0.001358992
        %v1206 = vadd.f32 %v1205, 0.041655596
        %v1207 = vmul.f32 %v1204, %v1206
        %v1208 = vadd.f32 %v1207, -0.4999988
        %v1209 = vmul.f32 %v1204, %v1208
        %v1210 = vadd.f32 1.0, %v1209
        %v1211 = vmul.f32 %v1202, %v1202
        %v1212 = vmul.f32 %v1211, -0.00019511016
        %v1213 = vadd.f32 %v1212, 0.008332121
        %v1214 = vmul.f32 %v1211, %v1213
        %v1215 = vadd.f32 %v1214, -0.16666654
        %v1216 = vmul.f32 %v1211, %v1215
        %v1217 = vadd.f32 %v1216, 1.0
        %v1218 = vmul.f32 %v1217, %v1202
        %vm1219 = vweird.f32 %v428
        %v1220 = vadd.s32 %v1203, 3
        %v1221 = vand.u32 %v1220, 3
        %vm1222 = vcmp.lt.s32.totalorder %v1221, 2
        %vm1223 = vcmp.eq.s32.totalorder %v1221, 0
        %v1224 = vxor.u32 %v1218, 2147483648
        %v1225 = vsel %vm1223, %v1210, %v1224
        %vm1226 = vcmp.eq.s32.totalorder %v1221, 2
        %v1227 = vxor.u32 %v1210, 2147483648
        %v1228 = vsel %vm1226, %v1227, %v1218
        %v1229 = vsel %vm1222, %v1225, %v1228
        %v1230 = vsel %vm1219, nan, %v1229
        %v1231 = vand.u32 2147483647, %v429
        %vm1232 = vcmp.le.f32.partialorder %v1231, 0.7853982
        %vm1233 = vcmp.lt.s32.totalorder %v429, 0
        %v1234 = vand.u32 %v429, 2139095040
        %v1235 = vshrl.u32 %v1234, 23
        %v1236 = vsub.s32 %v1235, 127
        %v1237 = vand.u32 2147483647, %v429
        %v1238 = vand.u32 %v1237, 8388607
        %v1239 = vor.u32 %v1238, 8388608
        %v1240 = vsub.s32 0, %v1239
        %v1241 = vadd.s32 %v1236, 1
        %vm1242 = vcmp.gt.s32.totalorder %v1241, 0
        %v1243 = vsel %vm1242, %v1241, 0
        %v1244 = vshrl.u32 %v1243, 5
        %v1245 = vand.u32 %v1243, 31
        %v1246 = vsub.s32 32, %v1245
        %v1247 = vshrl.u32 683565275, %v1246
        %v1248 = vshll.u32 683565275, %v1245
        %v1249 = vshrl.u32 2475754826, %v1246
        %v1250 = vor.u32 %v1248, %v1249
        %v1251 = vshll.u32 2475754826, %v1245
        %v1252 = vshrl.u32 2131351028, %v1246
        %v1253 = vor.u32 %v1251, %v1252
        %v1254 = vshll.u32 2131351028, %v1245
        %v1255 = vshrl.u32 2102212464, %v1246
        %v1256 = vor.u32 %v1254, %v1255
        %v1257 = vshll.u32 2102212464, %v1245
        %v1258 = vshrl.u32 920167782, %v1246
        %v1259 = vor.u32 %v1257, %v1258
        %v1260 = vshll.u32 920167782, %v1245
        %v1261 = vshrl.u32 1326507024, %v1246
        %v1262 = vor.u32 %v1260, %v1261
        %vm1263 = vcmp.lt.s32.totalorder %v1244, 1
        %vm1264 = vcmp.lt.s32.totalorder %v1244, 2
        %vm1265 = vcmp.lt.s32.totalorder %v1244, 3
        %vm1266 = vcmp.lt.s32.totalorder %v1244, 4
        %v1267 = vsel %vm1263, %v1247, %v1250
        %v1268 = vsel %vm1266, %v1256, 2102212464
        %v1269 = vsel %vm1265, %v1253, %v1268
        %v1270 = vsel %vm1264, %v1267, %v1269
        %v1271 = vsel %vm1263, %v1250, %v1253
        %v1272 = vsel %vm1266, %v1259, 920167782
        %v1273 = vsel %vm1265, %v1256, %v1272
        %v1274 = vsel %vm1264, %v1271, %v1273
        %v1275 = vsel %vm1263, %v1253, %v1256
        %v1276 = vsel %vm1266, %v1262, 1326507024
        %v1277 = vsel %vm1265, %v1259, %v1276
        %v1278 = vsel %vm1264, %v1275, %v1277
        %v1279 = vshll.u32 %v1239, 8
        %v1280 = vand.u32 %v1279, 65535
        %v1281 = vshrl.u32 %v1279, 16
        %v1282 = vand.u32 %v1278, 65535
        %v1283 = vshrl.u32 %v1278, 16
        %v1284 = vmul.u32 %v1280, %v1282
        %v1285 = vmul.u32 %v1280, %v1283
        %v1286 = vmul.u32 %v1281, %v1282
        %v1287 = vmul.u32 %v1281, %v1283
        %v1288 = vshll.u32 %v1285, 16
        %v1289 = vshrl.u32 %v1285, 16
        %v1290 = vshll.u32 %v1286, 16
        %v1291 = vshrl.u32 %v1286, 16
        %vm1292 = vc.u32 %v1284, %v1288
        %v1293 = vsel %vm1292, 1, 0
        %v1294 = vadd.s32 %v1284, %v1288
        %v1295 = vadd.s32 %v1287, %v1293
        %vm1296 = vc.u32 %v1294, %v1290
        %v1297 = vsel %vm1296, 1, 0
        %v1298 = vadd.s32 %v1294, %v1290
        %v1299 = vadd.s32 %v1295, %v1297
        %v1300 = vadd.s32 %v1299, %v1289
        %v1301 = vadd.s32 %v1300, %v1291
        %v1302 = vand.u32 %v1279, 65535
        %v1303 = vshrl.u32 %v1279, 16
        %v1304 = vand.u32 %v1274, 65535
        %v1305 = vshrl.u32 %v1274, 16
        %v1306 = vmul.u32 %v1302, %v1304
        %v1307 = vmul.u32 %v1302, %v1305
        %v1308 = vmul.u32 %v1303, %v1304
        %v1309 = vmul.u32 %v1303, %v1305
        %v1310 = vshll.u32 %v1307, 16
        %v1311 = vshrl.u32 %v1307, 16
        %v1312 = vshll.u32 %v1308, 16
        %v1313 = vshrl.u32 %v1308, 16
        %vm1314 = vc.u32 %v1306, %v1310
        %v1315 = vsel %vm1314, 1, 0
        %v1316 = vadd.s32 %v1306, %v1310
        %v1317 = vadd.s32 %v1309, %v1315
        %vm1318 = vc.u32 %v1316, %v1312
        %v1319 = vsel %vm1318, 1, 0
        %v1320 = vadd.s32 %v1316, %v1312
        %v1321 = vadd.s32 %v1317, %v1319
        %v1322 = vadd.s32 %v1321, %v1311
        %v1323 = vadd.s32 %v1322, %v1313
        %v1324 = vmul.u32 %v1279, %v1270
        %v1325 = vadd.s32 %v1301, %v1320
        %vm1326 = vc.u32 %v1301, %v1320
        %v1327 = vadd.s32 %v1323, 1
        %v1328 = vsel %vm1326, %v1327, %v1323
        %v1329 = vadd.s32 %v1324, %v1328
        %v1330 = vadd.s32 %v1329, 536870912
        %v1331 = vshrl.u32 %v1330, 30
        %v1332 = vshll.u32 %v1331, 30
        %v1333 = vsub.s32 %v1329, %v1332
        %vm1334 = vcmp.lt.s32.totalorder %v1333, 0
        %v1335 = vsub.s32 0, %v1333
        %v1336 = vsel %vm1334, %v1335, %v1333
        %v1337 = vclz %v1336
        %v1338 = vsub.s32 %v1337, 2
        %vm1339 = vcmp.gt.s32.totalorder 0, %v1338
        %v1340 = vsel %vm1339, 0, %v1338
        %v1341 = vsub.s32 32, %v1340
        %v1342 = vshll.u32 %v1333, %v1340
        %v1343 = vshrl.u32 %v1325, %v1341
        %v1344 = vor.u32 %v1342, %v1343
        %v1345 = vsub.s32 4294967266, %v1340
        %v1346 = vadd.s32 %v1345, 127
        %v1347 = vshll.u32 %v1346, 23
        %v1348 = vor.u32 4788187, %v1347
        %v1349 = vand.u32 2147483647, %v1348
        %v1351 = vcvt.s32.f32 %v1344
        %v1352 = vmul.f32 %v1351, %v1349
        %v1353 = vxor.u32 %v1352, 2147483648
        %v1354 = vsel %vm1233, %v1353, %v1352
        %v1355 = vsub.s32 4, %v1331
        %v1356 = vsel %vm1233, %v1355, %v1331
        %v1357 = vsel %vm1232, %v429, %v1354
        %v1358 = vsel %vm1232, 0, %v1356
        %v1359 = vmul.f32 %v1357, %v1357
        %v1360 = vmul.f32 %v1359, -0.001358992
        %v1361 = vadd.f32 %v1360, 0.041655596
        %v1362 = vmul.f32 %v1359, %v1361
        %v1363 = vadd.f32 %v1362, -0.4999988
        %v1364 = vmul.f32 %v1359, %v1363
        %v1365 = vadd.f32 1.0, %v1364
        %v1366 = vmul.f32 %v1357, %v1357
        %v1367 = vmul.f32 %v1366, -0.00019511016
        %v1368 = vadd.f32 %v1367, 0.008332121
        %v1369 = vmul.f32 %v1366, %v1368
        %v1370 = vadd.f32 %v1369, -0.16666654
        %v1371 = vmul.f32 %v1366, %v1370
        %v1372 = vadd.f32 %v1371, 1.0
        %v1373 = vmul.f32 %v1372, %v1357
        %vm1374 = vweird.f32 %v429
        %v1375 = vadd.s32 %v1358, 3
        %v1376 = vand.u32 %v1375, 3
        %vm1377 = vcmp.lt.s32.totalorder %v1376, 2
        %vm1378 = vcmp.eq.s32.totalorder %v1376, 0
        %v1379 = vxor.u32 %v1373, 2147483648
        %v1380 = vsel %vm1378, %v1365, %v1379
        %vm1381 = vcmp.eq.s32.totalorder %v1376, 2
        %v1382 = vxor.u32 %v1365, 2147483648
        %v1383 = vsel %vm1381, %v1382, %v1373
        %v1384 = vsel %vm1377, %v1380, %v1383
        %v1385 = vsel %vm1374, nan, %v1384
        %v1386 = vand.u32 2147483647, %v430
        %vm1387 = vcmp.le.f32.partialorder %v1386, 0.7853982
        %vm1388 = vcmp.lt.s32.totalorder %v430, 0
        %v1389 = vand.u32 %v430, 2139095040
        %v1390 = vshrl.u32 %v1389, 23
        %v1391 = vsub.s32 %v1390, 127
        %v1392 = vand.u32 2147483647, %v430
        %v1393 = vand.u32 %v1392, 8388607
        %v1394 = vor.u32 %v1393, 8388608
        %v1395 = vsub.s32 0, %v1394
        %v1396 = vadd.s32 %v1391, 1
        %vm1397 = vcmp.gt.s32.totalorder %v1396, 0
        %v1398 = vsel %vm1397, %v1396, 0
        %v1399 = vshrl.u32 %v1398, 5
        %v1400 = vand.u32 %v1398, 31
        %v1401 = vsub.s32 32, %v1400
        %v1402 = vshrl.u32 683565275, %v1401
        %v1403 = vshll.u32 683565275, %v1400
        %v1404 = vshrl.u32 2475754826, %v1401
        %v1405 = vor.u32 %v1403, %v1404
        %v1406 = vshll.u32 2475754826, %v1400
        %v1407 = vshrl.u32 2131351028, %v1401
        %v1408 = vor.u32 %v1406, %v1407
        %v1409 = vshll.u32 2131351028, %v1400
        %v1410 = vshrl.u32 2102212464, %v1401
        %v1411 = vor.u32 %v1409, %v1410
        %v1412 = vshll.u32 2102212464, %v1400
        %v1413 = vshrl.u32 920167782, %v1401
        %v1414 = vor.u32 %v1412, %v1413
        %v1415 = vshll.u32 920167782, %v1400
        %v1416 = vshrl.u32 1326507024, %v1401
        %v1417 = vor.u32 %v1415, %v1416
        %vm1418 = vcmp.lt.s32.totalorder %v1399, 1
        %vm1419 = vcmp.lt.s32.totalorder %v1399, 2
        %vm1420 = vcmp.lt.s32.totalorder %v1399, 3
        %vm1421 = vcmp.lt.s32.totalorder %v1399, 4
        %v1422 = vsel %vm1418, %v1402, %v1405
        %v1423 = vsel %vm1421, %v1411, 2102212464
        %v1424 = vsel %vm1420, %v1408, %v1423
        %v1425 = vsel %vm1419, %v1422, %v1424
        %v1426 = vsel %vm1418, %v1405, %v1408
        %v1427 = vsel %vm1421, %v1414, 920167782
        %v1428 = vsel %vm1420, %v1411, %v1427
        %v1429 = vsel %vm1419, %v1426, %v1428
        %v1430 = vsel %vm1418, %v1408, %v1411
        %v1431 = vsel %vm1421, %v1417, 1326507024
        %v1432 = vsel %vm1420, %v1414, %v1431
        %v1433 = vsel %vm1419, %v1430, %v1432
        %v1434 = vshll.u32 %v1394, 8
        %v1435 = vand.u32 %v1434, 65535
        %v1436 = vshrl.u32 %v1434, 16
        %v1437 = vand.u32 %v1433, 65535
        %v1438 = vshrl.u32 %v1433, 16
        %v1439 = vmul.u32 %v1435, %v1437
        %v1440 = vmul.u32 %v1435, %v1438
        %v1441 = vmul.u32 %v1436, %v1437
        %v1442 = vmul.u32 %v1436, %v1438
        %v1443 = vshll.u32 %v1440, 16
        %v1444 = vshrl.u32 %v1440, 16
        %v1445 = vshll.u32 %v1441, 16
        %v1446 = vshrl.u32 %v1441, 16
        %vm1447 = vc.u32 %v1439, %v1443
        %v1448 = vsel %vm1447, 1, 0
        %v1449 = vadd.s32 %v1439, %v1443
        %v1450 = vadd.s32 %v1442, %v1448
        %vm1451 = vc.u32 %v1449, %v1445
        %v1452 = vsel %vm1451, 1, 0
        %v1453 = vadd.s32 %v1449, %v1445
        %v1454 = vadd.s32 %v1450, %v1452
        %v1455 = vadd.s32 %v1454, %v1444
        %v1456 = vadd.s32 %v1455, %v1446
        %v1457 = vand.u32 %v1434, 65535
        %v1458 = vshrl.u32 %v1434, 16
        %v1459 = vand.u32 %v1429, 65535
        %v1460 = vshrl.u32 %v1429, 16
        %v1461 = vmul.u32 %v1457, %v1459
        %v1462 = vmul.u32 %v1457, %v1460
        %v1463 = vmul.u32 %v1458, %v1459
        %v1464 = vmul.u32 %v1458, %v1460
        %v1465 = vshll.u32 %v1462, 16
        %v1466 = vshrl.u32 %v1462, 16
        %v1467 = vshll.u32 %v1463, 16
        %v1468 = vshrl.u32 %v1463, 16
        %vm1469 = vc.u32 %v1461, %v1465
        %v1470 = vsel %vm1469, 1, 0
        %v1471 = vadd.s32 %v1461, %v1465
        %v1472 = vadd.s32 %v1464, %v1470
        %vm1473 = vc.u32 %v1471, %v1467
        %v1474 = vsel %vm1473, 1, 0
        %v1475 = vadd.s32 %v1471, %v1467
        %v1476 = vadd.s32 %v1472, %v1474
        %v1477 = vadd.s32 %v1476, %v1466
        %v1478 = vadd.s32 %v1477, %v1468
        %v1479 = vmul.u32 %v1434, %v1425
        %v1480 = vadd.s32 %v1456, %v1475
        %vm1481 = vc.u32 %v1456, %v1475
        %v1482 = vadd.s32 %v1478, 1
        %v1483 = vsel %vm1481, %v1482, %v1478
        %v1484 = vadd.s32 %v1479, %v1483
        %v1485 = vadd.s32 %v1484, 536870912
        %v1486 = vshrl.u32 %v1485, 30
        %v1487 = vshll.u32 %v1486, 30
        %v1488 = vsub.s32 %v1484, %v1487
        %vm1489 = vcmp.lt.s32.totalorder %v1488, 0
        %v1490 = vsub.s32 0, %v1488
        %v1491 = vsel %vm1489, %v1490, %v1488
        %v1492 = vclz %v1491
        %v1493 = vsub.s32 %v1492, 2
        %vm1494 = vcmp.gt.s32.totalorder 0, %v1493
        %v1495 = vsel %vm1494, 0, %v1493
        %v1496 = vsub.s32 32, %v1495
        %v1497 = vshll.u32 %v1488, %v1495
        %v1498 = vshrl.u32 %v1480, %v1496
        %v1499 = vor.u32 %v1497, %v1498
        %v1500 = vsub.s32 4294967266, %v1495
        %v1501 = vadd.s32 %v1500, 127
        %v1502 = vshll.u32 %v1501, 23
        %v1503 = vor.u32 4788187, %v1502
        %v1504 = vand.u32 2147483647, %v1503
        %v1506 = vcvt.s32.f32 %v1499
        %v1507 = vmul.f32 %v1506, %v1504
        %v1508 = vxor.u32 %v1507, 2147483648
        %v1509 = vsel %vm1388, %v1508, %v1507
        %v1510 = vsub.s32 4, %v1486
        %v1511 = vsel %vm1388, %v1510, %v1486
        %v1512 = vsel %vm1387, %v430, %v1509
        %v1513 = vsel %vm1387, 0, %v1511
        %v1514 = vmul.f32 %v1512, %v1512
        %v1515 = vmul.f32 %v1514, -0.001358992
        %v1516 = vadd.f32 %v1515, 0.041655596
        %v1517 = vmul.f32 %v1514, %v1516
        %v1518 = vadd.f32 %v1517, -0.4999988
        %v1519 = vmul.f32 %v1514, %v1518
        %v1520 = vadd.f32 1.0, %v1519
        %v1521 = vmul.f32 %v1512, %v1512
        %v1522 = vmul.f32 %v1521, -0.00019511016
        %v1523 = vadd.f32 %v1522, 0.008332121
        %v1524 = vmul.f32 %v1521, %v1523
        %v1525 = vadd.f32 %v1524, -0.16666654
        %v1526 = vmul.f32 %v1521, %v1525
        %v1527 = vadd.f32 %v1526, 1.0
        %v1528 = vmul.f32 %v1527, %v1512
        %vm1529 = vweird.f32 %v430
        %v1530 = vadd.s32 %v1513, 3
        %v1531 = vand.u32 %v1530, 3
        %vm1532 = vcmp.lt.s32.totalorder %v1531, 2
        %vm1533 = vcmp.eq.s32.totalorder %v1531, 0
        %v1534 = vxor.u32 %v1528, 2147483648
        %v1535 = vsel %vm1533, %v1520, %v1534
        %vm1536 = vcmp.eq.s32.totalorder %v1531, 2
        %v1537 = vxor.u32 %v1520, 2147483648
        %v1538 = vsel %vm1536, %v1537, %v1528
        %v1539 = vsel %vm1532, %v1535, %v1538
        %v1540 = vsel %vm1529, nan, %v1539
        %v1541 = vand.u32 2147483647, %v431
        %vm1542 = vcmp.le.f32.partialorder %v1541, 0.7853982
        %vm1543 = vcmp.lt.s32.totalorder %v431, 0
        %v1544 = vand.u32 %v431, 2139095040
        %v1545 = vshrl.u32 %v1544, 23
        %v1546 = vsub.s32 %v1545, 127
        %v1547 = vand.u32 2147483647, %v431
        %v1548 = vand.u32 %v1547, 8388607
        %v1549 = vor.u32 %v1548, 8388608
        %v1550 = vsub.s32 0, %v1549
        %v1551 = vadd.s32 %v1546, 1
        %vm1552 = vcmp.gt.s32.totalorder %v1551, 0
        %v1553 = vsel %vm1552, %v1551, 0
        %v1554 = vshrl.u32 %v1553, 5
        %v1555 = vand.u32 %v1553, 31
        %v1556 = vsub.s32 32, %v1555
        %v1557 = vshrl.u32 683565275, %v1556
        %v1558 = vshll.u32 683565275, %v1555
        %v1559 = vshrl.u32 2475754826, %v1556
        %v1560 = vor.u32 %v1558, %v1559
        %v1561 = vshll.u32 2475754826, %v1555
        %v1562 = vshrl.u32 2131351028, %v1556
        %v1563 = vor.u32 %v1561, %v1562
        %v1564 = vshll.u32 2131351028, %v1555
        %v1565 = vshrl.u32 2102212464, %v1556
        %v1566 = vor.u32 %v1564, %v1565
        %v1567 = vshll.u32 2102212464, %v1555
        %v1568 = vshrl.u32 920167782, %v1556
        %v1569 = vor.u32 %v1567, %v1568
        %v1570 = vshll.u32 920167782, %v1555
        %v1571 = vshrl.u32 1326507024, %v1556
        %v1572 = vor.u32 %v1570, %v1571
        %vm1573 = vcmp.lt.s32.totalorder %v1554, 1
        %vm1574 = vcmp.lt.s32.totalorder %v1554, 2
        %vm1575 = vcmp.lt.s32.totalorder %v1554, 3
        %vm1576 = vcmp.lt.s32.totalorder %v1554, 4
        %v1577 = vsel %vm1573, %v1557, %v1560
        %v1578 = vsel %vm1576, %v1566, 2102212464
        %v1579 = vsel %vm1575, %v1563, %v1578
        %v1580 = vsel %vm1574, %v1577, %v1579
        %v1581 = vsel %vm1573, %v1560, %v1563
        %v1582 = vsel %vm1576, %v1569, 920167782
        %v1583 = vsel %vm1575, %v1566, %v1582
        %v1584 = vsel %vm1574, %v1581, %v1583
        %v1585 = vsel %vm1573, %v1563, %v1566
        %v1586 = vsel %vm1576, %v1572, 1326507024
        %v1587 = vsel %vm1575, %v1569, %v1586
        %v1588 = vsel %vm1574, %v1585, %v1587
        %v1589 = vshll.u32 %v1549, 8
        %v1590 = vand.u32 %v1589, 65535
        %v1591 = vshrl.u32 %v1589, 16
        %v1592 = vand.u32 %v1588, 65535
        %v1593 = vshrl.u32 %v1588, 16
        %v1594 = vmul.u32 %v1590, %v1592
        %v1595 = vmul.u32 %v1590, %v1593
        %v1596 = vmul.u32 %v1591, %v1592
        %v1597 = vmul.u32 %v1591, %v1593
        %v1598 = vshll.u32 %v1595, 16
        %v1599 = vshrl.u32 %v1595, 16
        %v1600 = vshll.u32 %v1596, 16
        %v1601 = vshrl.u32 %v1596, 16
        %vm1602 = vc.u32 %v1594, %v1598
        %v1603 = vsel %vm1602, 1, 0
        %v1604 = vadd.s32 %v1594, %v1598
        %v1605 = vadd.s32 %v1597, %v1603
        %vm1606 = vc.u32 %v1604, %v1600
        %v1607 = vsel %vm1606, 1, 0
        %v1608 = vadd.s32 %v1604, %v1600
        %v1609 = vadd.s32 %v1605, %v1607
        %v1610 = vadd.s32 %v1609, %v1599
        %v1611 = vadd.s32 %v1610, %v1601
        %v1612 = vand.u32 %v1589, 65535
        %v1613 = vshrl.u32 %v1589, 16
        %v1614 = vand.u32 %v1584, 65535
        %v1615 = vshrl.u32 %v1584, 16
        %v1616 = vmul.u32 %v1612, %v1614
        %v1617 = vmul.u32 %v1612, %v1615
        %v1618 = vmul.u32 %v1613, %v1614
        %v1619 = vmul.u32 %v1613, %v1615
        %v1620 = vshll.u32 %v1617, 16
        %v1621 = vshrl.u32 %v1617, 16
        %v1622 = vshll.u32 %v1618, 16
        %v1623 = vshrl.u32 %v1618, 16
        %vm1624 = vc.u32 %v1616, %v1620
        %v1625 = vsel %vm1624, 1, 0
        %v1626 = vadd.s32 %v1616, %v1620
        %v1627 = vadd.s32 %v1619, %v1625
        %vm1628 = vc.u32 %v1626, %v1622
        %v1629 = vsel %vm1628, 1, 0
        %v1630 = vadd.s32 %v1626, %v1622
        %v1631 = vadd.s32 %v1627, %v1629
        %v1632 = vadd.s32 %v1631, %v1621
        %v1633 = vadd.s32 %v1632, %v1623
        %v1634 = vmul.u32 %v1589, %v1580
        %v1635 = vadd.s32 %v1611, %v1630
        %vm1636 = vc.u32 %v1611, %v1630
        %v1637 = vadd.s32 %v1633, 1
        %v1638 = vsel %vm1636, %v1637, %v1633
        %v1639 = vadd.s32 %v1634, %v1638
        %v1640 = vadd.s32 %v1639, 536870912
        %v1641 = vshrl.u32 %v1640, 30
        %v1642 = vshll.u32 %v1641, 30
        %v1643 = vsub.s32 %v1639, %v1642
        %vm1644 = vcmp.lt.s32.totalorder %v1643, 0
        %v1645 = vsub.s32 0, %v1643
        %v1646 = vsel %vm1644, %v1645, %v1643
        %v1647 = vclz %v1646
        %v1648 = vsub.s32 %v1647, 2
        %vm1649 = vcmp.gt.s32.totalorder 0, %v1648
        %v1650 = vsel %vm1649, 0, %v1648
        %v1651 = vsub.s32 32, %v1650
        %v1652 = vshll.u32 %v1643, %v1650
        %v1653 = vshrl.u32 %v1635, %v1651
        %v1654 = vor.u32 %v1652, %v1653
        %v1655 = vsub.s32 4294967266, %v1650
        %v1656 = vadd.s32 %v1655, 127
        %v1657 = vshll.u32 %v1656, 23
        %v1658 = vor.u32 4788187, %v1657
        %v1659 = vand.u32 2147483647, %v1658
        %v1661 = vcvt.s32.f32 %v1654
        %v1662 = vmul.f32 %v1661, %v1659
        %v1663 = vxor.u32 %v1662, 2147483648
        %v1664 = vsel %vm1543, %v1663, %v1662
        %v1665 = vsub.s32 4, %v1641
        %v1666 = vsel %vm1543, %v1665, %v1641
        %v1667 = vsel %vm1542, %v431, %v1664
        %v1668 = vsel %vm1542, 0, %v1666
        %v1669 = vmul.f32 %v1667, %v1667
        %v1670 = vmul.f32 %v1669, -0.001358992
        %v1671 = vadd.f32 %v1670, 0.041655596
        %v1672 = vmul.f32 %v1669, %v1671
        %v1673 = vadd.f32 %v1672, -0.4999988
        %v1674 = vmul.f32 %v1669, %v1673
        %v1675 = vadd.f32 1.0, %v1674
        %v1676 = vmul.f32 %v1667, %v1667
        %v1677 = vmul.f32 %v1676, -0.00019511016
        %v1678 = vadd.f32 %v1677, 0.008332121
        %v1679 = vmul.f32 %v1676, %v1678
        %v1680 = vadd.f32 %v1679, -0.16666654
        %v1681 = vmul.f32 %v1676, %v1680
        %v1682 = vadd.f32 %v1681, 1.0
        %v1683 = vmul.f32 %v1682, %v1667
        %vm1684 = vweird.f32 %v431
        %v1685 = vadd.s32 %v1668, 3
        %v1686 = vand.u32 %v1685, 3
        %vm1687 = vcmp.lt.s32.totalorder %v1686, 2
        %vm1688 = vcmp.eq.s32.totalorder %v1686, 0
        %v1689 = vxor.u32 %v1683, 2147483648
        %v1690 = vsel %vm1688, %v1675, %v1689
        %vm1691 = vcmp.eq.s32.totalorder %v1686, 2
        %v1692 = vxor.u32 %v1675, 2147483648
        %v1693 = vsel %vm1691, %v1692, %v1683
        %v1694 = vsel %vm1687, %v1690, %v1693
        %v1695 = vsel %vm1684, nan, %v1694
        %v1696 = vand.u32 2147483647, %v432
        %vm1697 = vcmp.le.f32.partialorder %v1696, 0.7853982
        %vm1698 = vcmp.lt.s32.totalorder %v432, 0
        %v1699 = vand.u32 %v432, 2139095040
        %v1700 = vshrl.u32 %v1699, 23
        %v1701 = vsub.s32 %v1700, 127
        %v1702 = vand.u32 2147483647, %v432
        %v1703 = vand.u32 %v1702, 8388607
        %v1704 = vor.u32 %v1703, 8388608
        %v1705 = vsub.s32 0, %v1704
        %v1706 = vadd.s32 %v1701, 1
        %vm1707 = vcmp.gt.s32.totalorder %v1706, 0
        %v1708 = vsel %vm1707, %v1706, 0
        %v1709 = vshrl.u32 %v1708, 5
        %v1710 = vand.u32 %v1708, 31
        %v1711 = vsub.s32 32, %v1710
        %v1712 = vshrl.u32 683565275, %v1711
        %v1713 = vshll.u32 683565275, %v1710
        %v1714 = vshrl.u32 2475754826, %v1711
        %v1715 = vor.u32 %v1713, %v1714
        %v1716 = vshll.u32 2475754826, %v1710
        %v1717 = vshrl.u32 2131351028, %v1711
        %v1718 = vor.u32 %v1716, %v1717
        %v1719 = vshll.u32 2131351028, %v1710
        %v1720 = vshrl.u32 2102212464, %v1711
        %v1721 = vor.u32 %v1719, %v1720
        %v1722 = vshll.u32 2102212464, %v1710
        %v1723 = vshrl.u32 920167782, %v1711
        %v1724 = vor.u32 %v1722, %v1723
        %v1725 = vshll.u32 920167782, %v1710
        %v1726 = vshrl.u32 1326507024, %v1711
        %v1727 = vor.u32 %v1725, %v1726
        %vm1728 = vcmp.lt.s32.totalorder %v1709, 1
        %vm1729 = vcmp.lt.s32.totalorder %v1709, 2
        %vm1730 = vcmp.lt.s32.totalorder %v1709, 3
        %vm1731 = vcmp.lt.s32.totalorder %v1709, 4
        %v1732 = vsel %vm1728, %v1712, %v1715
        %v1733 = vsel %vm1731, %v1721, 2102212464
        %v1734 = vsel %vm1730, %v1718, %v1733
        %v1735 = vsel %vm1729, %v1732, %v1734
        %v1736 = vsel %vm1728, %v1715, %v1718
        %v1737 = vsel %vm1731, %v1724, 920167782
        %v1738 = vsel %vm1730, %v1721, %v1737
        %v1739 = vsel %vm1729, %v1736, %v1738
        %v1740 = vsel %vm1728, %v1718, %v1721
        %v1741 = vsel %vm1731, %v1727, 1326507024
        %v1742 = vsel %vm1730, %v1724, %v1741
        %v1743 = vsel %vm1729, %v1740, %v1742
        %v1744 = vshll.u32 %v1704, 8
        %v1745 = vand.u32 %v1744, 65535
        %v1746 = vshrl.u32 %v1744, 16
        %v1747 = vand.u32 %v1743, 65535
        %v1748 = vshrl.u32 %v1743, 16
        %v1749 = vmul.u32 %v1745, %v1747
        %v1750 = vmul.u32 %v1745, %v1748
        %v1751 = vmul.u32 %v1746, %v1747
        %v1752 = vmul.u32 %v1746, %v1748
        %v1753 = vshll.u32 %v1750, 16
        %v1754 = vshrl.u32 %v1750, 16
        %v1755 = vshll.u32 %v1751, 16
        %v1756 = vshrl.u32 %v1751, 16
        %vm1757 = vc.u32 %v1749, %v1753
        %v1758 = vsel %vm1757, 1, 0
        %v1759 = vadd.s32 %v1749, %v1753
        %v1760 = vadd.s32 %v1752, %v1758
        %vm1761 = vc.u32 %v1759, %v1755
        %v1762 = vsel %vm1761, 1, 0
        %v1763 = vadd.s32 %v1759, %v1755
        %v1764 = vadd.s32 %v1760, %v1762
        %v1765 = vadd.s32 %v1764, %v1754
        %v1766 = vadd.s32 %v1765, %v1756
        %v1767 = vand.u32 %v1744, 65535
        %v1768 = vshrl.u32 %v1744, 16
        %v1769 = vand.u32 %v1739, 65535
        %v1770 = vshrl.u32 %v1739, 16
        %v1771 = vmul.u32 %v1767, %v1769
        %v1772 = vmul.u32 %v1767, %v1770
        %v1773 = vmul.u32 %v1768, %v1769
        %v1774 = vmul.u32 %v1768, %v1770
        %v1775 = vshll.u32 %v1772, 16
        %v1776 = vshrl.u32 %v1772, 16
        %v1777 = vshll.u32 %v1773, 16
        %v1778 = vshrl.u32 %v1773, 16
        %vm1779 = vc.u32 %v1771, %v1775
        %v1780 = vsel %vm1779, 1, 0
        %v1781 = vadd.s32 %v1771, %v1775
        %v1782 = vadd.s32 %v1774, %v1780
        %vm1783 = vc.u32 %v1781, %v1777
        %v1784 = vsel %vm1783, 1, 0
        %v1785 = vadd.s32 %v1781, %v1777
        %v1786 = vadd.s32 %v1782, %v1784
        %v1787 = vadd.s32 %v1786, %v1776
        %v1788 = vadd.s32 %v1787, %v1778
        %v1789 = vmul.u32 %v1744, %v1735
        %v1790 = vadd.s32 %v1766, %v1785
        %vm1791 = vc.u32 %v1766, %v1785
        %v1792 = vadd.s32 %v1788, 1
        %v1793 = vsel %vm1791, %v1792, %v1788
        %v1794 = vadd.s32 %v1789, %v1793
        %v1795 = vadd.s32 %v1794, 536870912
        %v1796 = vshrl.u32 %v1795, 30
        %v1797 = vshll.u32 %v1796, 30
        %v1798 = vsub.s32 %v1794, %v1797
        %vm1799 = vcmp.lt.s32.totalorder %v1798, 0
        %v1800 = vsub.s32 0, %v1798
        %v1801 = vsel %vm1799, %v1800, %v1798
        %v1802 = vclz %v1801
        %v1803 = vsub.s32 %v1802, 2
        %vm1804 = vcmp.gt.s32.totalorder 0, %v1803
        %v1805 = vsel %vm1804, 0, %v1803
        %v1806 = vsub.s32 32, %v1805
        %v1807 = vshll.u32 %v1798, %v1805
        %v1808 = vshrl.u32 %v1790, %v1806
        %v1809 = vor.u32 %v1807, %v1808
        %v1810 = vsub.s32 4294967266, %v1805
        %v1811 = vadd.s32 %v1810, 127
        %v1812 = vshll.u32 %v1811, 23
        %v1813 = vor.u32 4788187, %v1812
        %v1814 = vand.u32 2147483647, %v1813
        %v1816 = vcvt.s32.f32 %v1809
        %v1817 = vmul.f32 %v1816, %v1814
        %v1818 = vxor.u32 %v1817, 2147483648
        %v1819 = vsel %vm1698, %v1818, %v1817
        %v1820 = vsub.s32 4, %v1796
        %v1821 = vsel %vm1698, %v1820, %v1796
        %v1822 = vsel %vm1697, %v432, %v1819
        %v1823 = vsel %vm1697, 0, %v1821
        %v1824 = vmul.f32 %v1822, %v1822
        %v1825 = vmul.f32 %v1824, -0.001358992
        %v1826 = vadd.f32 %v1825, 0.041655596
        %v1827 = vmul.f32 %v1824, %v1826
        %v1828 = vadd.f32 %v1827, -0.4999988
        %v1829 = vmul.f32 %v1824, %v1828
        %v1830 = vadd.f32 1.0, %v1829
        %v1831 = vmul.f32 %v1822, %v1822
        %v1832 = vmul.f32 %v1831, -0.00019511016
        %v1833 = vadd.f32 %v1832, 0.008332121
        %v1834 = vmul.f32 %v1831, %v1833
        %v1835 = vadd.f32 %v1834, -0.16666654
        %v1836 = vmul.f32 %v1831, %v1835
        %v1837 = vadd.f32 %v1836, 1.0
        %v1838 = vmul.f32 %v1837, %v1822
        %vm1839 = vweird.f32 %v432
        %v1840 = vadd.s32 %v1823, 3
        %v1841 = vand.u32 %v1840, 3
        %vm1842 = vcmp.lt.s32.totalorder %v1841, 2
        %vm1843 = vcmp.eq.s32.totalorder %v1841, 0
        %v1844 = vxor.u32 %v1838, 2147483648
        %v1845 = vsel %vm1843, %v1830, %v1844
        %vm1846 = vcmp.eq.s32.totalorder %v1841, 2
        %v1847 = vxor.u32 %v1830, 2147483648
        %v1848 = vsel %vm1846, %v1847, %v1838
        %v1849 = vsel %vm1842, %v1845, %v1848
        %v1850 = vsel %vm1839, nan, %v1849
        %v1851 = vand.u32 2147483647, %v433
        %vm1852 = vcmp.le.f32.partialorder %v1851, 0.7853982
        %vm1853 = vcmp.lt.s32.totalorder %v433, 0
        %v1854 = vand.u32 %v433, 2139095040
        %v1855 = vshrl.u32 %v1854, 23
        %v1856 = vsub.s32 %v1855, 127
        %v1857 = vand.u32 2147483647, %v433
        %v1858 = vand.u32 %v1857, 8388607
        %v1859 = vor.u32 %v1858, 8388608
        %v1860 = vsub.s32 0, %v1859
        %v1861 = vadd.s32 %v1856, 1
        %vm1862 = vcmp.gt.s32.totalorder %v1861, 0
        %v1863 = vsel %vm1862, %v1861, 0
        %v1864 = vshrl.u32 %v1863, 5
        %v1865 = vand.u32 %v1863, 31
        %v1866 = vsub.s32 32, %v1865
        %v1867 = vshrl.u32 683565275, %v1866
        %v1868 = vshll.u32 683565275, %v1865
        %v1869 = vshrl.u32 2475754826, %v1866
        %v1870 = vor.u32 %v1868, %v1869
        %v1871 = vshll.u32 2475754826, %v1865
        %v1872 = vshrl.u32 2131351028, %v1866
        %v1873 = vor.u32 %v1871, %v1872
        %v1874 = vshll.u32 2131351028, %v1865
        %v1875 = vshrl.u32 2102212464, %v1866
        %v1876 = vor.u32 %v1874, %v1875
        %v1877 = vshll.u32 2102212464, %v1865
        %v1878 = vshrl.u32 920167782, %v1866
        %v1879 = vor.u32 %v1877, %v1878
        %v1880 = vshll.u32 920167782, %v1865
        %v1881 = vshrl.u32 1326507024, %v1866
        %v1882 = vor.u32 %v1880, %v1881
        %vm1883 = vcmp.lt.s32.totalorder %v1864, 1
        %vm1884 = vcmp.lt.s32.totalorder %v1864, 2
        %vm1885 = vcmp.lt.s32.totalorder %v1864, 3
        %vm1886 = vcmp.lt.s32.totalorder %v1864, 4
        %v1887 = vsel %vm1883, %v1867, %v1870
        %v1888 = vsel %vm1886, %v1876, 2102212464
        %v1889 = vsel %vm1885, %v1873, %v1888
        %v1890 = vsel %vm1884, %v1887, %v1889
        %v1891 = vsel %vm1883, %v1870, %v1873
        %v1892 = vsel %vm1886, %v1879, 920167782
        %v1893 = vsel %vm1885, %v1876, %v1892
        %v1894 = vsel %vm1884, %v1891, %v1893
        %v1895 = vsel %vm1883, %v1873, %v1876
        %v1896 = vsel %vm1886, %v1882, 1326507024
        %v1897 = vsel %vm1885, %v1879, %v1896
        %v1898 = vsel %vm1884, %v1895, %v1897
        %v1899 = vshll.u32 %v1859, 8
        %v1900 = vand.u32 %v1899, 65535
        %v1901 = vshrl.u32 %v1899, 16
        %v1902 = vand.u32 %v1898, 65535
        %v1903 = vshrl.u32 %v1898, 16
        %v1904 = vmul.u32 %v1900, %v1902
        %v1905 = vmul.u32 %v1900, %v1903
        %v1906 = vmul.u32 %v1901, %v1902
        %v1907 = vmul.u32 %v1901, %v1903
        %v1908 = vshll.u32 %v1905, 16
        %v1909 = vshrl.u32 %v1905, 16
        %v1910 = vshll.u32 %v1906, 16
        %v1911 = vshrl.u32 %v1906, 16
        %vm1912 = vc.u32 %v1904, %v1908
        %v1913 = vsel %vm1912, 1, 0
        %v1914 = vadd.s32 %v1904, %v1908
        %v1915 = vadd.s32 %v1907, %v1913
        %vm1916 = vc.u32 %v1914, %v1910
        %v1917 = vsel %vm1916, 1, 0
        %v1918 = vadd.s32 %v1914, %v1910
        %v1919 = vadd.s32 %v1915, %v1917
        %v1920 = vadd.s32 %v1919, %v1909
        %v1921 = vadd.s32 %v1920, %v1911
        %v1922 = vand.u32 %v1899, 65535
        %v1923 = vshrl.u32 %v1899, 16
        %v1924 = vand.u32 %v1894, 65535
        %v1925 = vshrl.u32 %v1894, 16
        %v1926 = vmul.u32 %v1922, %v1924
        %v1927 = vmul.u32 %v1922, %v1925
        %v1928 = vmul.u32 %v1923, %v1924
        %v1929 = vmul.u32 %v1923, %v1925
        %v1930 = vshll.u32 %v1927, 16
        %v1931 = vshrl.u32 %v1927, 16
        %v1932 = vshll.u32 %v1928, 16
        %v1933 = vshrl.u32 %v1928, 16
        %vm1934 = vc.u32 %v1926, %v1930
        %v1935 = vsel %vm1934, 1, 0
        %v1936 = vadd.s32 %v1926, %v1930
        %v1937 = vadd.s32 %v1929, %v1935
        %vm1938 = vc.u32 %v1936, %v1932
        %v1939 = vsel %vm1938, 1, 0
        %v1940 = vadd.s32 %v1936, %v1932
        %v1941 = vadd.s32 %v1937, %v1939
        %v1942 = vadd.s32 %v1941, %v1931
        %v1943 = vadd.s32 %v1942, %v1933
        %v1944 = vmul.u32 %v1899, %v1890
        %v1945 = vadd.s32 %v1921, %v1940
        %vm1946 = vc.u32 %v1921, %v1940
        %v1947 = vadd.s32 %v1943, 1
        %v1948 = vsel %vm1946, %v1947, %v1943
        %v1949 = vadd.s32 %v1944, %v1948
        %v1950 = vadd.s32 %v1949, 536870912
        %v1951 = vshrl.u32 %v1950, 30
        %v1952 = vshll.u32 %v1951, 30
        %v1953 = vsub.s32 %v1949, %v1952
        %vm1954 = vcmp.lt.s32.totalorder %v1953, 0
        %v1955 = vsub.s32 0, %v1953
        %v1956 = vsel %vm1954, %v1955, %v1953
        %v1957 = vclz %v1956
        %v1958 = vsub.s32 %v1957, 2
        %vm1959 = vcmp.gt.s32.totalorder 0, %v1958
        %v1960 = vsel %vm1959, 0, %v1958
        %v1961 = vsub.s32 32, %v1960
        %v1962 = vshll.u32 %v1953, %v1960
        %v1963 = vshrl.u32 %v1945, %v1961
        %v1964 = vor.u32 %v1962, %v1963
        %v1965 = vsub.s32 4294967266, %v1960
        %v1966 = vadd.s32 %v1965, 127
        %v1967 = vshll.u32 %v1966, 23
        %v1968 = vor.u32 4788187, %v1967
        %v1969 = vand.u32 2147483647, %v1968
        %v1971 = vcvt.s32.f32 %v1964
        %v1972 = vmul.f32 %v1971, %v1969
        %v1973 = vxor.u32 %v1972, 2147483648
        %v1974 = vsel %vm1853, %v1973, %v1972
        %v1975 = vsub.s32 4, %v1951
        %v1976 = vsel %vm1853, %v1975, %v1951
        %v1977 = vsel %vm1852, %v433, %v1974
        %v1978 = vsel %vm1852, 0, %v1976
        %v1979 = vmul.f32 %v1977, %v1977
        %v1980 = vmul.f32 %v1979, -0.001358992
        %v1981 = vadd.f32 %v1980, 0.041655596
        %v1982 = vmul.f32 %v1979, %v1981
        %v1983 = vadd.f32 %v1982, -0.4999988
        %v1984 = vmul.f32 %v1979, %v1983
        %v1985 = vadd.f32 1.0, %v1984
        %v1986 = vmul.f32 %v1977, %v1977
        %v1987 = vmul.f32 %v1986, -0.00019511016
        %v1988 = vadd.f32 %v1987, 0.008332121
        %v1989 = vmul.f32 %v1986, %v1988
        %v1990 = vadd.f32 %v1989, -0.16666654
        %v1991 = vmul.f32 %v1986, %v1990
        %v1992 = vadd.f32 %v1991, 1.0
        %v1993 = vmul.f32 %v1992, %v1977
        %vm1994 = vweird.f32 %v433
        %v1995 = vadd.s32 %v1978, 3
        %v1996 = vand.u32 %v1995, 3
        %vm1997 = vcmp.lt.s32.totalorder %v1996, 2
        %vm1998 = vcmp.eq.s32.totalorder %v1996, 0
        %v1999 = vxor.u32 %v1993, 2147483648
        %v2000 = vsel %vm1998, %v1985, %v1999
        %vm2001 = vcmp.eq.s32.totalorder %v1996, 2
        %v2002 = vxor.u32 %v1985, 2147483648
        %v2003 = vsel %vm2001, %v2002, %v1993
        %v2004 = vsel %vm1997, %v2000, %v2003
        %v2005 = vsel %vm1994, nan, %v2004
        %v2006 = vand.u32 2147483647, %v434
        %vm2007 = vcmp.le.f32.partialorder %v2006, 0.7853982
        %vm2008 = vcmp.lt.s32.totalorder %v434, 0
        %v2009 = vand.u32 %v434, 2139095040
        %v2010 = vshrl.u32 %v2009, 23
        %v2011 = vsub.s32 %v2010, 127
        %v2012 = vand.u32 2147483647, %v434
        %v2013 = vand.u32 %v2012, 8388607
        %v2014 = vor.u32 %v2013, 8388608
        %v2015 = vsub.s32 0, %v2014
        %v2016 = vadd.s32 %v2011, 1
        %vm2017 = vcmp.gt.s32.totalorder %v2016, 0
        %v2018 = vsel %vm2017, %v2016, 0
        %v2019 = vshrl.u32 %v2018, 5
        %v2020 = vand.u32 %v2018, 31
        %v2021 = vsub.s32 32, %v2020
        %v2022 = vshrl.u32 683565275, %v2021
        %v2023 = vshll.u32 683565275, %v2020
        %v2024 = vshrl.u32 2475754826, %v2021
        %v2025 = vor.u32 %v2023, %v2024
        %v2026 = vshll.u32 2475754826, %v2020
        %v2027 = vshrl.u32 2131351028, %v2021
        %v2028 = vor.u32 %v2026, %v2027
        %v2029 = vshll.u32 2131351028, %v2020
        %v2030 = vshrl.u32 2102212464, %v2021
        %v2031 = vor.u32 %v2029, %v2030
        %v2032 = vshll.u32 2102212464, %v2020
        %v2033 = vshrl.u32 920167782, %v2021
        %v2034 = vor.u32 %v2032, %v2033
        %v2035 = vshll.u32 920167782, %v2020
        %v2036 = vshrl.u32 1326507024, %v2021
        %v2037 = vor.u32 %v2035, %v2036
        %vm2038 = vcmp.lt.s32.totalorder %v2019, 1
        %vm2039 = vcmp.lt.s32.totalorder %v2019, 2
        %vm2040 = vcmp.lt.s32.totalorder %v2019, 3
        %vm2041 = vcmp.lt.s32.totalorder %v2019, 4
        %v2042 = vsel %vm2038, %v2022, %v2025
        %v2043 = vsel %vm2041, %v2031, 2102212464
        %v2044 = vsel %vm2040, %v2028, %v2043
        %v2045 = vsel %vm2039, %v2042, %v2044
        %v2046 = vsel %vm2038, %v2025, %v2028
        %v2047 = vsel %vm2041, %v2034, 920167782
        %v2048 = vsel %vm2040, %v2031, %v2047
        %v2049 = vsel %vm2039, %v2046, %v2048
        %v2050 = vsel %vm2038, %v2028, %v2031
        %v2051 = vsel %vm2041, %v2037, 1326507024
        %v2052 = vsel %vm2040, %v2034, %v2051
        %v2053 = vsel %vm2039, %v2050, %v2052
        %v2054 = vshll.u32 %v2014, 8
        %v2055 = vand.u32 %v2054, 65535
        %v2056 = vshrl.u32 %v2054, 16
        %v2057 = vand.u32 %v2053, 65535
        %v2058 = vshrl.u32 %v2053, 16
        %v2059 = vmul.u32 %v2055, %v2057
        %v2060 = vmul.u32 %v2055, %v2058
        %v2061 = vmul.u32 %v2056, %v2057
        %v2062 = vmul.u32 %v2056, %v2058
        %v2063 = vshll.u32 %v2060, 16
        %v2064 = vshrl.u32 %v2060, 16
        %v2065 = vshll.u32 %v2061, 16
        %v2066 = vshrl.u32 %v2061, 16
        %vm2067 = vc.u32 %v2059, %v2063
        %v2068 = vsel %vm2067, 1, 0
        %v2069 = vadd.s32 %v2059, %v2063
        %v2070 = vadd.s32 %v2062, %v2068
        %vm2071 = vc.u32 %v2069, %v2065
        %v2072 = vsel %vm2071, 1, 0
        %v2073 = vadd.s32 %v2069, %v2065
        %v2074 = vadd.s32 %v2070, %v2072
        %v2075 = vadd.s32 %v2074, %v2064
        %v2076 = vadd.s32 %v2075, %v2066
        %v2077 = vand.u32 %v2054, 65535
        %v2078 = vshrl.u32 %v2054, 16
        %v2079 = vand.u32 %v2049, 65535
        %v2080 = vshrl.u32 %v2049, 16
        %v2081 = vmul.u32 %v2077, %v2079
        %v2082 = vmul.u32 %v2077, %v2080
        %v2083 = vmul.u32 %v2078, %v2079
        %v2084 = vmul.u32 %v2078, %v2080
        %v2085 = vshll.u32 %v2082, 16
        %v2086 = vshrl.u32 %v2082, 16
        %v2087 = vshll.u32 %v2083, 16
        %v2088 = vshrl.u32 %v2083, 16
        %vm2089 = vc.u32 %v2081, %v2085
        %v2090 = vsel %vm2089, 1, 0
        %v2091 = vadd.s32 %v2081, %v2085
        %v2092 = vadd.s32 %v2084, %v2090
        %vm2093 = vc.u32 %v2091, %v2087
        %v2094 = vsel %vm2093, 1, 0
        %v2095 = vadd.s32 %v2091, %v2087
        %v2096 = vadd.s32 %v2092, %v2094
        %v2097 = vadd.s32 %v2096, %v2086
        %v2098 = vadd.s32 %v2097, %v2088
        %v2099 = vmul.u32 %v2054, %v2045
        %v2100 = vadd.s32 %v2076, %v2095
        %vm2101 = vc.u32 %v2076, %v2095
        %v2102 = vadd.s32 %v2098, 1
        %v2103 = vsel %vm2101, %v2102, %v2098
        %v2104 = vadd.s32 %v2099, %v2103
        %v2105 = vadd.s32 %v2104, 536870912
        %v2106 = vshrl.u32 %v2105, 30
        %v2107 = vshll.u32 %v2106, 30
        %v2108 = vsub.s32 %v2104, %v2107
        %vm2109 = vcmp.lt.s32.totalorder %v2108, 0
        %v2110 = vsub.s32 0, %v2108
        %v2111 = vsel %vm2109, %v2110, %v2108
        %v2112 = vclz %v2111
        %v2113 = vsub.s32 %v2112, 2
        %vm2114 = vcmp.gt.s32.totalorder 0, %v2113
        %v2115 = vsel %vm2114, 0, %v2113
        %v2116 = vsub.s32 32, %v2115
        %v2117 = vshll.u32 %v2108, %v2115
        %v2118 = vshrl.u32 %v2100, %v2116
        %v2119 = vor.u32 %v2117, %v2118
        %v2120 = vsub.s32 4294967266, %v2115
        %v2121 = vadd.s32 %v2120, 127
        %v2122 = vshll.u32 %v2121, 23
        %v2123 = vor.u32 4788187, %v2122
        %v2124 = vand.u32 2147483647, %v2123
        %v2126 = vcvt.s32.f32 %v2119
        %v2127 = vmul.f32 %v2126, %v2124
        %v2128 = vxor.u32 %v2127, 2147483648
        %v2129 = vsel %vm2008, %v2128, %v2127
        %v2130 = vsub.s32 4, %v2106
        %v2131 = vsel %vm2008, %v2130, %v2106
        %v2132 = vsel %vm2007, %v434, %v2129
        %v2133 = vsel %vm2007, 0, %v2131
        %v2134 = vmul.f32 %v2132, %v2132
        %v2135 = vmul.f32 %v2134, -0.001358992
        %v2136 = vadd.f32 %v2135, 0.041655596
        %v2137 = vmul.f32 %v2134, %v2136
        %v2138 = vadd.f32 %v2137, -0.4999988
        %v2139 = vmul.f32 %v2134, %v2138
        %v2140 = vadd.f32 1.0, %v2139
        %v2141 = vmul.f32 %v2132, %v2132
        %v2142 = vmul.f32 %v2141, -0.00019511016
        %v2143 = vadd.f32 %v2142, 0.008332121
        %v2144 = vmul.f32 %v2141, %v2143
        %v2145 = vadd.f32 %v2144, -0.16666654
        %v2146 = vmul.f32 %v2141, %v2145
        %v2147 = vadd.f32 %v2146, 1.0
        %v2148 = vmul.f32 %v2147, %v2132
        %vm2149 = vweird.f32 %v434
        %v2150 = vadd.s32 %v2133, 3
        %v2151 = vand.u32 %v2150, 3
        %vm2152 = vcmp.lt.s32.totalorder %v2151, 2
        %vm2153 = vcmp.eq.s32.totalorder %v2151, 0
        %v2154 = vxor.u32 %v2148, 2147483648
        %v2155 = vsel %vm2153, %v2140, %v2154
        %vm2156 = vcmp.eq.s32.totalorder %v2151, 2
        %v2157 = vxor.u32 %v2140, 2147483648
        %v2158 = vsel %vm2156, %v2157, %v2148
        %v2159 = vsel %vm2152, %v2155, %v2158
        %v2160 = vsel %vm2149, nan, %v2159
        %v2161 = vand.u32 2147483647, %v435
        %vm2162 = vcmp.le.f32.partialorder %v2161, 0.7853982
        %vm2163 = vcmp.lt.s32.totalorder %v435, 0
        %v2164 = vand.u32 %v435, 2139095040
        %v2165 = vshrl.u32 %v2164, 23
        %v2166 = vsub.s32 %v2165, 127
        %v2167 = vand.u32 2147483647, %v435
        %v2168 = vand.u32 %v2167, 8388607
        %v2169 = vor.u32 %v2168, 8388608
        %v2170 = vsub.s32 0, %v2169
        %v2171 = vadd.s32 %v2166, 1
        %vm2172 = vcmp.gt.s32.totalorder %v2171, 0
        %v2173 = vsel %vm2172, %v2171, 0
        %v2174 = vshrl.u32 %v2173, 5
        %v2175 = vand.u32 %v2173, 31
        %v2176 = vsub.s32 32, %v2175
        %v2177 = vshrl.u32 683565275, %v2176
        %v2178 = vshll.u32 683565275, %v2175
        %v2179 = vshrl.u32 2475754826, %v2176
        %v2180 = vor.u32 %v2178, %v2179
        %v2181 = vshll.u32 2475754826, %v2175
        %v2182 = vshrl.u32 2131351028, %v2176
        %v2183 = vor.u32 %v2181, %v2182
        %v2184 = vshll.u32 2131351028, %v2175
        %v2185 = vshrl.u32 2102212464, %v2176
        %v2186 = vor.u32 %v2184, %v2185
        %v2187 = vshll.u32 2102212464, %v2175
        %v2188 = vshrl.u32 920167782, %v2176
        %v2189 = vor.u32 %v2187, %v2188
        %v2190 = vshll.u32 920167782, %v2175
        %v2191 = vshrl.u32 1326507024, %v2176
        %v2192 = vor.u32 %v2190, %v2191
        %vm2193 = vcmp.lt.s32.totalorder %v2174, 1
        %vm2194 = vcmp.lt.s32.totalorder %v2174, 2
        %vm2195 = vcmp.lt.s32.totalorder %v2174, 3
        %vm2196 = vcmp.lt.s32.totalorder %v2174, 4
        %v2197 = vsel %vm2193, %v2177, %v2180
        %v2198 = vsel %vm2196, %v2186, 2102212464
        %v2199 = vsel %vm2195, %v2183, %v2198
        %v2200 = vsel %vm2194, %v2197, %v2199
        %v2201 = vsel %vm2193, %v2180, %v2183
        %v2202 = vsel %vm2196, %v2189, 920167782
        %v2203 = vsel %vm2195, %v2186, %v2202
        %v2204 = vsel %vm2194, %v2201, %v2203
        %v2205 = vsel %vm2193, %v2183, %v2186
        %v2206 = vsel %vm2196, %v2192, 1326507024
        %v2207 = vsel %vm2195, %v2189, %v2206
        %v2208 = vsel %vm2194, %v2205, %v2207
        %v2209 = vshll.u32 %v2169, 8
        %v2210 = vand.u32 %v2209, 65535
        %v2211 = vshrl.u32 %v2209, 16
        %v2212 = vand.u32 %v2208, 65535
        %v2213 = vshrl.u32 %v2208, 16
        %v2214 = vmul.u32 %v2210, %v2212
        %v2215 = vmul.u32 %v2210, %v2213
        %v2216 = vmul.u32 %v2211, %v2212
        %v2217 = vmul.u32 %v2211, %v2213
        %v2218 = vshll.u32 %v2215, 16
        %v2219 = vshrl.u32 %v2215, 16
        %v2220 = vshll.u32 %v2216, 16
        %v2221 = vshrl.u32 %v2216, 16
        %vm2222 = vc.u32 %v2214, %v2218
        %v2223 = vsel %vm2222, 1, 0
        %v2224 = vadd.s32 %v2214, %v2218
        %v2225 = vadd.s32 %v2217, %v2223
        %vm2226 = vc.u32 %v2224, %v2220
        %v2227 = vsel %vm2226, 1, 0
        %v2228 = vadd.s32 %v2224, %v2220
        %v2229 = vadd.s32 %v2225, %v2227
        %v2230 = vadd.s32 %v2229, %v2219
        %v2231 = vadd.s32 %v2230, %v2221
        %v2232 = vand.u32 %v2209, 65535
        %v2233 = vshrl.u32 %v2209, 16
        %v2234 = vand.u32 %v2204, 65535
        %v2235 = vshrl.u32 %v2204, 16
        %v2236 = vmul.u32 %v2232, %v2234
        %v2237 = vmul.u32 %v2232, %v2235
        %v2238 = vmul.u32 %v2233, %v2234
        %v2239 = vmul.u32 %v2233, %v2235
        %v2240 = vshll.u32 %v2237, 16
        %v2241 = vshrl.u32 %v2237, 16
        %v2242 = vshll.u32 %v2238, 16
        %v2243 = vshrl.u32 %v2238, 16
        %vm2244 = vc.u32 %v2236, %v2240
        %v2245 = vsel %vm2244, 1, 0
        %v2246 = vadd.s32 %v2236, %v2240
        %v2247 = vadd.s32 %v2239, %v2245
        %vm2248 = vc.u32 %v2246, %v2242
        %v2249 = vsel %vm2248, 1, 0
        %v2250 = vadd.s32 %v2246, %v2242
        %v2251 = vadd.s32 %v2247, %v2249
        %v2252 = vadd.s32 %v2251, %v2241
        %v2253 = vadd.s32 %v2252, %v2243
        %v2254 = vmul.u32 %v2209, %v2200
        %v2255 = vadd.s32 %v2231, %v2250
        %vm2256 = vc.u32 %v2231, %v2250
        %v2257 = vadd.s32 %v2253, 1
        %v2258 = vsel %vm2256, %v2257, %v2253
        %v2259 = vadd.s32 %v2254, %v2258
        %v2260 = vadd.s32 %v2259, 536870912
        %v2261 = vshrl.u32 %v2260, 30
        %v2262 = vshll.u32 %v2261, 30
        %v2263 = vsub.s32 %v2259, %v2262
        %vm2264 = vcmp.lt.s32.totalorder %v2263, 0
        %v2265 = vsub.s32 0, %v2263
        %v2266 = vsel %vm2264, %v2265, %v2263
        %v2267 = vclz %v2266
        %v2268 = vsub.s32 %v2267, 2
        %vm2269 = vcmp.gt.s32.totalorder 0, %v2268
        %v2270 = vsel %vm2269, 0, %v2268
        %v2271 = vsub.s32 32, %v2270
        %v2272 = vshll.u32 %v2263, %v2270
        %v2273 = vshrl.u32 %v2255, %v2271
        %v2274 = vor.u32 %v2272, %v2273
        %v2275 = vsub.s32 4294967266, %v2270
        %v2276 = vadd.s32 %v2275, 127
        %v2277 = vshll.u32 %v2276, 23
        %v2278 = vor.u32 4788187, %v2277
        %v2279 = vand.u32 2147483647, %v2278
        %v2281 = vcvt.s32.f32 %v2274
        %v2282 = vmul.f32 %v2281, %v2279
        %v2283 = vxor.u32 %v2282, 2147483648
        %v2284 = vsel %vm2163, %v2283, %v2282
        %v2285 = vsub.s32 4, %v2261
        %v2286 = vsel %vm2163, %v2285, %v2261
        %v2287 = vsel %vm2162, %v435, %v2284
        %v2288 = vsel %vm2162, 0, %v2286
        %v2289 = vmul.f32 %v2287, %v2287
        %v2290 = vmul.f32 %v2289, -0.001358992
        %v2291 = vadd.f32 %v2290, 0.041655596
        %v2292 = vmul.f32 %v2289, %v2291
        %v2293 = vadd.f32 %v2292, -0.4999988
        %v2294 = vmul.f32 %v2289, %v2293
        %v2295 = vadd.f32 1.0, %v2294
        %v2296 = vmul.f32 %v2287, %v2287
        %v2297 = vmul.f32 %v2296, -0.00019511016
        %v2298 = vadd.f32 %v2297, 0.008332121
        %v2299 = vmul.f32 %v2296, %v2298
        %v2300 = vadd.f32 %v2299, -0.16666654
        %v2301 = vmul.f32 %v2296, %v2300
        %v2302 = vadd.f32 %v2301, 1.0
        %v2303 = vmul.f32 %v2302, %v2287
        %vm2304 = vweird.f32 %v435
        %v2305 = vadd.s32 %v2288, 3
        %v2306 = vand.u32 %v2305, 3
        %vm2307 = vcmp.lt.s32.totalorder %v2306, 2
        %vm2308 = vcmp.eq.s32.totalorder %v2306, 0
        %v2309 = vxor.u32 %v2303, 2147483648
        %v2310 = vsel %vm2308, %v2295, %v2309
        %vm2311 = vcmp.eq.s32.totalorder %v2306, 2
        %v2312 = vxor.u32 %v2295, 2147483648
        %v2313 = vsel %vm2311, %v2312, %v2303
        %v2314 = vsel %vm2307, %v2310, %v2313
        %v2315 = vsel %vm2304, nan, %v2314
        %v2316 = vand.u32 2147483647, %v436
        %vm2317 = vcmp.le.f32.partialorder %v2316, 0.7853982
        %vm2318 = vcmp.lt.s32.totalorder %v436, 0
        %v2319 = vand.u32 %v436, 2139095040
        %v2320 = vshrl.u32 %v2319, 23
        %v2321 = vsub.s32 %v2320, 127
        %v2322 = vand.u32 2147483647, %v436
        %v2323 = vand.u32 %v2322, 8388607
        %v2324 = vor.u32 %v2323, 8388608
        %v2325 = vsub.s32 0, %v2324
        %v2326 = vadd.s32 %v2321, 1
        %vm2327 = vcmp.gt.s32.totalorder %v2326, 0
        %v2328 = vsel %vm2327, %v2326, 0
        %v2329 = vshrl.u32 %v2328, 5
        %v2330 = vand.u32 %v2328, 31
        %v2331 = vsub.s32 32, %v2330
        %v2332 = vshrl.u32 683565275, %v2331
        %v2333 = vshll.u32 683565275, %v2330
        %v2334 = vshrl.u32 2475754826, %v2331
        %v2335 = vor.u32 %v2333, %v2334
        %v2336 = vshll.u32 2475754826, %v2330
        %v2337 = vshrl.u32 2131351028, %v2331
        %v2338 = vor.u32 %v2336, %v2337
        %v2339 = vshll.u32 2131351028, %v2330
        %v2340 = vshrl.u32 2102212464, %v2331
        %v2341 = vor.u32 %v2339, %v2340
        %v2342 = vshll.u32 2102212464, %v2330
        %v2343 = vshrl.u32 920167782, %v2331
        %v2344 = vor.u32 %v2342, %v2343
        %v2345 = vshll.u32 920167782, %v2330
        %v2346 = vshrl.u32 1326507024, %v2331
        %v2347 = vor.u32 %v2345, %v2346
        %vm2348 = vcmp.lt.s32.totalorder %v2329, 1
        %vm2349 = vcmp.lt.s32.totalorder %v2329, 2
        %vm2350 = vcmp.lt.s32.totalorder %v2329, 3
        %vm2351 = vcmp.lt.s32.totalorder %v2329, 4
        %v2352 = vsel %vm2348, %v2332, %v2335
        %v2353 = vsel %vm2351, %v2341, 2102212464
        %v2354 = vsel %vm2350, %v2338, %v2353
        %v2355 = vsel %vm2349, %v2352, %v2354
        %v2356 = vsel %vm2348, %v2335, %v2338
        %v2357 = vsel %vm2351, %v2344, 920167782
        %v2358 = vsel %vm2350, %v2341, %v2357
        %v2359 = vsel %vm2349, %v2356, %v2358
        %v2360 = vsel %vm2348, %v2338, %v2341
        %v2361 = vsel %vm2351, %v2347, 1326507024
        %v2362 = vsel %vm2350, %v2344, %v2361
        %v2363 = vsel %vm2349, %v2360, %v2362
        %v2364 = vshll.u32 %v2324, 8
        %v2365 = vand.u32 %v2364, 65535
        %v2366 = vshrl.u32 %v2364, 16
        %v2367 = vand.u32 %v2363, 65535
        %v2368 = vshrl.u32 %v2363, 16
        %v2369 = vmul.u32 %v2365, %v2367
        %v2370 = vmul.u32 %v2365, %v2368
        %v2371 = vmul.u32 %v2366, %v2367
        %v2372 = vmul.u32 %v2366, %v2368
        %v2373 = vshll.u32 %v2370, 16
        %v2374 = vshrl.u32 %v2370, 16
        %v2375 = vshll.u32 %v2371, 16
        %v2376 = vshrl.u32 %v2371, 16
        %vm2377 = vc.u32 %v2369, %v2373
        %v2378 = vsel %vm2377, 1, 0
        %v2379 = vadd.s32 %v2369, %v2373
        %v2380 = vadd.s32 %v2372, %v2378
        %vm2381 = vc.u32 %v2379, %v2375
        %v2382 = vsel %vm2381, 1, 0
        %v2383 = vadd.s32 %v2379, %v2375
        %v2384 = vadd.s32 %v2380, %v2382
        %v2385 = vadd.s32 %v2384, %v2374
        %v2386 = vadd.s32 %v2385, %v2376
        %v2387 = vand.u32 %v2364, 65535
        %v2388 = vshrl.u32 %v2364, 16
        %v2389 = vand.u32 %v2359, 65535
        %v2390 = vshrl.u32 %v2359, 16
        %v2391 = vmul.u32 %v2387, %v2389
        %v2392 = vmul.u32 %v2387, %v2390
        %v2393 = vmul.u32 %v2388, %v2389
        %v2394 = vmul.u32 %v2388, %v2390
        %v2395 = vshll.u32 %v2392, 16
        %v2396 = vshrl.u32 %v2392, 16
        %v2397 = vshll.u32 %v2393, 16
        %v2398 = vshrl.u32 %v2393, 16
        %vm2399 = vc.u32 %v2391, %v2395
        %v2400 = vsel %vm2399, 1, 0
        %v2401 = vadd.s32 %v2391, %v2395
        %v2402 = vadd.s32 %v2394, %v2400
        %vm2403 = vc.u32 %v2401, %v2397
        %v2404 = vsel %vm2403, 1, 0
        %v2405 = vadd.s32 %v2401, %v2397
        %v2406 = vadd.s32 %v2402, %v2404
        %v2407 = vadd.s32 %v2406, %v2396
        %v2408 = vadd.s32 %v2407, %v2398
        %v2409 = vmul.u32 %v2364, %v2355
        %v2410 = vadd.s32 %v2386, %v2405
        %vm2411 = vc.u32 %v2386, %v2405
        %v2412 = vadd.s32 %v2408, 1
        %v2413 = vsel %vm2411, %v2412, %v2408
        %v2414 = vadd.s32 %v2409, %v2413
        %v2415 = vadd.s32 %v2414, 536870912
        %v2416 = vshrl.u32 %v2415, 30
        %v2417 = vshll.u32 %v2416, 30
        %v2418 = vsub.s32 %v2414, %v2417
        %vm2419 = vcmp.lt.s32.totalorder %v2418, 0
        %v2420 = vsub.s32 0, %v2418
        %v2421 = vsel %vm2419, %v2420, %v2418
        %v2422 = vclz %v2421
        %v2423 = vsub.s32 %v2422, 2
        %vm2424 = vcmp.gt.s32.totalorder 0, %v2423
        %v2425 = vsel %vm2424, 0, %v2423
        %v2426 = vsub.s32 32, %v2425
        %v2427 = vshll.u32 %v2418, %v2425
        %v2428 = vshrl.u32 %v2410, %v2426
        %v2429 = vor.u32 %v2427, %v2428
        %v2430 = vsub.s32 4294967266, %v2425
        %v2431 = vadd.s32 %v2430, 127
        %v2432 = vshll.u32 %v2431, 23
        %v2433 = vor.u32 4788187, %v2432
        %v2434 = vand.u32 2147483647, %v2433
        %v2436 = vcvt.s32.f32 %v2429
        %v2437 = vmul.f32 %v2436, %v2434
        %v2438 = vxor.u32 %v2437, 2147483648
        %v2439 = vsel %vm2318, %v2438, %v2437
        %v2440 = vsub.s32 4, %v2416
        %v2441 = vsel %vm2318, %v2440, %v2416
        %v2442 = vsel %vm2317, %v436, %v2439
        %v2443 = vsel %vm2317, 0, %v2441
        %v2444 = vmul.f32 %v2442, %v2442
        %v2445 = vmul.f32 %v2444, -0.001358992
        %v2446 = vadd.f32 %v2445, 0.041655596
        %v2447 = vmul.f32 %v2444, %v2446
        %v2448 = vadd.f32 %v2447, -0.4999988
        %v2449 = vmul.f32 %v2444, %v2448
        %v2450 = vadd.f32 1.0, %v2449
        %v2451 = vmul.f32 %v2442, %v2442
        %v2452 = vmul.f32 %v2451, -0.00019511016
        %v2453 = vadd.f32 %v2452, 0.008332121
        %v2454 = vmul.f32 %v2451, %v2453
        %v2455 = vadd.f32 %v2454, -0.16666654
        %v2456 = vmul.f32 %v2451, %v2455
        %v2457 = vadd.f32 %v2456, 1.0
        %v2458 = vmul.f32 %v2457, %v2442
        %vm2459 = vweird.f32 %v436
        %v2460 = vadd.s32 %v2443, 3
        %v2461 = vand.u32 %v2460, 3
        %vm2462 = vcmp.lt.s32.totalorder %v2461, 2
        %vm2463 = vcmp.eq.s32.totalorder %v2461, 0
        %v2464 = vxor.u32 %v2458, 2147483648
        %v2465 = vsel %vm2463, %v2450, %v2464
        %vm2466 = vcmp.eq.s32.totalorder %v2461, 2
        %v2467 = vxor.u32 %v2450, 2147483648
        %v2468 = vsel %vm2466, %v2467, %v2458
        %v2469 = vsel %vm2462, %v2465, %v2468
        %v2470 = vsel %vm2459, nan, %v2469
        %v2471 = vand.u32 2147483647, %v437
        %vm2472 = vcmp.le.f32.partialorder %v2471, 0.7853982
        %vm2473 = vcmp.lt.s32.totalorder %v437, 0
        %v2474 = vand.u32 %v437, 2139095040
        %v2475 = vshrl.u32 %v2474, 23
        %v2476 = vsub.s32 %v2475, 127
        %v2477 = vand.u32 2147483647, %v437
        %v2478 = vand.u32 %v2477, 8388607
        %v2479 = vor.u32 %v2478, 8388608
        %v2480 = vsub.s32 0, %v2479
        %v2481 = vadd.s32 %v2476, 1
        %vm2482 = vcmp.gt.s32.totalorder %v2481, 0
        %v2483 = vsel %vm2482, %v2481, 0
        %v2484 = vshrl.u32 %v2483, 5
        %v2485 = vand.u32 %v2483, 31
        %v2486 = vsub.s32 32, %v2485
        %v2487 = vshrl.u32 683565275, %v2486
        %v2488 = vshll.u32 683565275, %v2485
        %v2489 = vshrl.u32 2475754826, %v2486
        %v2490 = vor.u32 %v2488, %v2489
        %v2491 = vshll.u32 2475754826, %v2485
        %v2492 = vshrl.u32 2131351028, %v2486
        %v2493 = vor.u32 %v2491, %v2492
        %v2494 = vshll.u32 2131351028, %v2485
        %v2495 = vshrl.u32 2102212464, %v2486
        %v2496 = vor.u32 %v2494, %v2495
        %v2497 = vshll.u32 2102212464, %v2485
        %v2498 = vshrl.u32 920167782, %v2486
        %v2499 = vor.u32 %v2497, %v2498
        %v2500 = vshll.u32 920167782, %v2485
        %v2501 = vshrl.u32 1326507024, %v2486
        %v2502 = vor.u32 %v2500, %v2501
        %vm2503 = vcmp.lt.s32.totalorder %v2484, 1
        %vm2504 = vcmp.lt.s32.totalorder %v2484, 2
        %vm2505 = vcmp.lt.s32.totalorder %v2484, 3
        %vm2506 = vcmp.lt.s32.totalorder %v2484, 4
        %v2507 = vsel %vm2503, %v2487, %v2490
        %v2508 = vsel %vm2506, %v2496, 2102212464
        %v2509 = vsel %vm2505, %v2493, %v2508
        %v2510 = vsel %vm2504, %v2507, %v2509
        %v2511 = vsel %vm2503, %v2490, %v2493
        %v2512 = vsel %vm2506, %v2499, 920167782
        %v2513 = vsel %vm2505, %v2496, %v2512
        %v2514 = vsel %vm2504, %v2511, %v2513
        %v2515 = vsel %vm2503, %v2493, %v2496
        %v2516 = vsel %vm2506, %v2502, 1326507024
        %v2517 = vsel %vm2505, %v2499, %v2516
        %v2518 = vsel %vm2504, %v2515, %v2517
        %v2519 = vshll.u32 %v2479, 8
        %v2520 = vand.u32 %v2519, 65535
        %v2521 = vshrl.u32 %v2519, 16
        %v2522 = vand.u32 %v2518, 65535
        %v2523 = vshrl.u32 %v2518, 16
        %v2524 = vmul.u32 %v2520, %v2522
        %v2525 = vmul.u32 %v2520, %v2523
        %v2526 = vmul.u32 %v2521, %v2522
        %v2527 = vmul.u32 %v2521, %v2523
        %v2528 = vshll.u32 %v2525, 16
        %v2529 = vshrl.u32 %v2525, 16
        %v2530 = vshll.u32 %v2526, 16
        %v2531 = vshrl.u32 %v2526, 16
        %vm2532 = vc.u32 %v2524, %v2528
        %v2533 = vsel %vm2532, 1, 0
        %v2534 = vadd.s32 %v2524, %v2528
        %v2535 = vadd.s32 %v2527, %v2533
        %vm2536 = vc.u32 %v2534, %v2530
        %v2537 = vsel %vm2536, 1, 0
        %v2538 = vadd.s32 %v2534, %v2530
        %v2539 = vadd.s32 %v2535, %v2537
        %v2540 = vadd.s32 %v2539, %v2529
        %v2541 = vadd.s32 %v2540, %v2531
        %v2542 = vand.u32 %v2519, 65535
        %v2543 = vshrl.u32 %v2519, 16
        %v2544 = vand.u32 %v2514, 65535
        %v2545 = vshrl.u32 %v2514, 16
        %v2546 = vmul.u32 %v2542, %v2544
        %v2547 = vmul.u32 %v2542, %v2545
        %v2548 = vmul.u32 %v2543, %v2544
        %v2549 = vmul.u32 %v2543, %v2545
        %v2550 = vshll.u32 %v2547, 16
        %v2551 = vshrl.u32 %v2547, 16
        %v2552 = vshll.u32 %v2548, 16
        %v2553 = vshrl.u32 %v2548, 16
        %vm2554 = vc.u32 %v2546, %v2550
        %v2555 = vsel %vm2554, 1, 0
        %v2556 = vadd.s32 %v2546, %v2550
        %v2557 = vadd.s32 %v2549, %v2555
        %vm2558 = vc.u32 %v2556, %v2552
        %v2559 = vsel %vm2558, 1, 0
        %v2560 = vadd.s32 %v2556, %v2552
        %v2561 = vadd.s32 %v2557, %v2559
        %v2562 = vadd.s32 %v2561, %v2551
        %v2563 = vadd.s32 %v2562, %v2553
        %v2564 = vmul.u32 %v2519, %v2510
        %v2565 = vadd.s32 %v2541, %v2560
        %vm2566 = vc.u32 %v2541, %v2560
        %v2567 = vadd.s32 %v2563, 1
        %v2568 = vsel %vm2566, %v2567, %v2563
        %v2569 = vadd.s32 %v2564, %v2568
        %v2570 = vadd.s32 %v2569, 536870912
        %v2571 = vshrl.u32 %v2570, 30
        %v2572 = vshll.u32 %v2571, 30
        %v2573 = vsub.s32 %v2569, %v2572
        %vm2574 = vcmp.lt.s32.totalorder %v2573, 0
        %v2575 = vsub.s32 0, %v2573
        %v2576 = vsel %vm2574, %v2575, %v2573
        %v2577 = vclz %v2576
        %v2578 = vsub.s32 %v2577, 2
        %vm2579 = vcmp.gt.s32.totalorder 0, %v2578
        %v2580 = vsel %vm2579, 0, %v2578
        %v2581 = vsub.s32 32, %v2580
        %v2582 = vshll.u32 %v2573, %v2580
        %v2583 = vshrl.u32 %v2565, %v2581
        %v2584 = vor.u32 %v2582, %v2583
        %v2585 = vsub.s32 4294967266, %v2580
        %v2586 = vadd.s32 %v2585, 127
        %v2587 = vshll.u32 %v2586, 23
        %v2588 = vor.u32 4788187, %v2587
        %v2589 = vand.u32 2147483647, %v2588
        %v2591 = vcvt.s32.f32 %v2584
        %v2592 = vmul.f32 %v2591, %v2589
        %v2593 = vxor.u32 %v2592, 2147483648
        %v2594 = vsel %vm2473, %v2593, %v2592
        %v2595 = vsub.s32 4, %v2571
        %v2596 = vsel %vm2473, %v2595, %v2571
        %v2597 = vsel %vm2472, %v437, %v2594
        %v2598 = vsel %vm2472, 0, %v2596
        %v2599 = vmul.f32 %v2597, %v2597
        %v2600 = vmul.f32 %v2599, -0.001358992
        %v2601 = vadd.f32 %v2600, 0.041655596
        %v2602 = vmul.f32 %v2599, %v2601
        %v2603 = vadd.f32 %v2602, -0.4999988
        %v2604 = vmul.f32 %v2599, %v2603
        %v2605 = vadd.f32 1.0, %v2604
        %v2606 = vmul.f32 %v2597, %v2597
        %v2607 = vmul.f32 %v2606, -0.00019511016
        %v2608 = vadd.f32 %v2607, 0.008332121
        %v2609 = vmul.f32 %v2606, %v2608
        %v2610 = vadd.f32 %v2609, -0.16666654
        %v2611 = vmul.f32 %v2606, %v2610
        %v2612 = vadd.f32 %v2611, 1.0
        %v2613 = vmul.f32 %v2612, %v2597
        %vm2614 = vweird.f32 %v437
        %v2615 = vadd.s32 %v2598, 3
        %v2616 = vand.u32 %v2615, 3
        %vm2617 = vcmp.lt.s32.totalorder %v2616, 2
        %vm2618 = vcmp.eq.s32.totalorder %v2616, 0
        %v2619 = vxor.u32 %v2613, 2147483648
        %v2620 = vsel %vm2618, %v2605, %v2619
        %vm2621 = vcmp.eq.s32.totalorder %v2616, 2
        %v2622 = vxor.u32 %v2605, 2147483648
        %v2623 = vsel %vm2621, %v2622, %v2613
        %v2624 = vsel %vm2617, %v2620, %v2623
        %v2625 = vsel %vm2614, nan, %v2624
        %v2626 = vand.u32 2147483647, %v438
        %vm2627 = vcmp.le.f32.partialorder %v2626, 0.7853982
        %vm2628 = vcmp.lt.s32.totalorder %v438, 0
        %v2629 = vand.u32 %v438, 2139095040
        %v2630 = vshrl.u32 %v2629, 23
        %v2631 = vsub.s32 %v2630, 127
        %v2632 = vand.u32 2147483647, %v438
        %v2633 = vand.u32 %v2632, 8388607
        %v2634 = vor.u32 %v2633, 8388608
        %v2635 = vsub.s32 0, %v2634
        %v2636 = vadd.s32 %v2631, 1
        %vm2637 = vcmp.gt.s32.totalorder %v2636, 0
        %v2638 = vsel %vm2637, %v2636, 0
        %v2639 = vshrl.u32 %v2638, 5
        %v2640 = vand.u32 %v2638, 31
        %v2641 = vsub.s32 32, %v2640
        %v2642 = vshrl.u32 683565275, %v2641
        %v2643 = vshll.u32 683565275, %v2640
        %v2644 = vshrl.u32 2475754826, %v2641
        %v2645 = vor.u32 %v2643, %v2644
        %v2646 = vshll.u32 2475754826, %v2640
        %v2647 = vshrl.u32 2131351028, %v2641
        %v2648 = vor.u32 %v2646, %v2647
        %v2649 = vshll.u32 2131351028, %v2640
        %v2650 = vshrl.u32 2102212464, %v2641
        %v2651 = vor.u32 %v2649, %v2650
        %v2652 = vshll.u32 2102212464, %v2640
        %v2653 = vshrl.u32 920167782, %v2641
        %v2654 = vor.u32 %v2652, %v2653
        %v2655 = vshll.u32 920167782, %v2640
        %v2656 = vshrl.u32 1326507024, %v2641
        %v2657 = vor.u32 %v2655, %v2656
        %vm2658 = vcmp.lt.s32.totalorder %v2639, 1
        %vm2659 = vcmp.lt.s32.totalorder %v2639, 2
        %vm2660 = vcmp.lt.s32.totalorder %v2639, 3
        %vm2661 = vcmp.lt.s32.totalorder %v2639, 4
        %v2662 = vsel %vm2658, %v2642, %v2645
        %v2663 = vsel %vm2661, %v2651, 2102212464
        %v2664 = vsel %vm2660, %v2648, %v2663
        %v2665 = vsel %vm2659, %v2662, %v2664
        %v2666 = vsel %vm2658, %v2645, %v2648
        %v2667 = vsel %vm2661, %v2654, 920167782
        %v2668 = vsel %vm2660, %v2651, %v2667
        %v2669 = vsel %vm2659, %v2666, %v2668
        %v2670 = vsel %vm2658, %v2648, %v2651
        %v2671 = vsel %vm2661, %v2657, 1326507024
        %v2672 = vsel %vm2660, %v2654, %v2671
        %v2673 = vsel %vm2659, %v2670, %v2672
        %v2674 = vshll.u32 %v2634, 8
        %v2675 = vand.u32 %v2674, 65535
        %v2676 = vshrl.u32 %v2674, 16
        %v2677 = vand.u32 %v2673, 65535
        %v2678 = vshrl.u32 %v2673, 16
        %v2679 = vmul.u32 %v2675, %v2677
        %v2680 = vmul.u32 %v2675, %v2678
        %v2681 = vmul.u32 %v2676, %v2677
        %v2682 = vmul.u32 %v2676, %v2678
        %v2683 = vshll.u32 %v2680, 16
        %v2684 = vshrl.u32 %v2680, 16
        %v2685 = vshll.u32 %v2681, 16
        %v2686 = vshrl.u32 %v2681, 16
        %vm2687 = vc.u32 %v2679, %v2683
        %v2688 = vsel %vm2687, 1, 0
        %v2689 = vadd.s32 %v2679, %v2683
        %v2690 = vadd.s32 %v2682, %v2688
        %vm2691 = vc.u32 %v2689, %v2685
        %v2692 = vsel %vm2691, 1, 0
        %v2693 = vadd.s32 %v2689, %v2685
        %v2694 = vadd.s32 %v2690, %v2692
        %v2695 = vadd.s32 %v2694, %v2684
        %v2696 = vadd.s32 %v2695, %v2686
        %v2697 = vand.u32 %v2674, 65535
        %v2698 = vshrl.u32 %v2674, 16
        %v2699 = vand.u32 %v2669, 65535
        %v2700 = vshrl.u32 %v2669, 16
        %v2701 = vmul.u32 %v2697, %v2699
        %v2702 = vmul.u32 %v2697, %v2700
        %v2703 = vmul.u32 %v2698, %v2699
        %v2704 = vmul.u32 %v2698, %v2700
        %v2705 = vshll.u32 %v2702, 16
        %v2706 = vshrl.u32 %v2702, 16
        %v2707 = vshll.u32 %v2703, 16
        %v2708 = vshrl.u32 %v2703, 16
        %vm2709 = vc.u32 %v2701, %v2705
        %v2710 = vsel %vm2709, 1, 0
        %v2711 = vadd.s32 %v2701, %v2705
        %v2712 = vadd.s32 %v2704, %v2710
        %vm2713 = vc.u32 %v2711, %v2707
        %v2714 = vsel %vm2713, 1, 0
        %v2715 = vadd.s32 %v2711, %v2707
        %v2716 = vadd.s32 %v2712, %v2714
        %v2717 = vadd.s32 %v2716, %v2706
        %v2718 = vadd.s32 %v2717, %v2708
        %v2719 = vmul.u32 %v2674, %v2665
        %v2720 = vadd.s32 %v2696, %v2715
        %vm2721 = vc.u32 %v2696, %v2715
        %v2722 = vadd.s32 %v2718, 1
        %v2723 = vsel %vm2721, %v2722, %v2718
        %v2724 = vadd.s32 %v2719, %v2723
        %v2725 = vadd.s32 %v2724, 536870912
        %v2726 = vshrl.u32 %v2725, 30
        %v2727 = vshll.u32 %v2726, 30
        %v2728 = vsub.s32 %v2724, %v2727
        %vm2729 = vcmp.lt.s32.totalorder %v2728, 0
        %v2730 = vsub.s32 0, %v2728
        %v2731 = vsel %vm2729, %v2730, %v2728
        %v2732 = vclz %v2731
        %v2733 = vsub.s32 %v2732, 2
        %vm2734 = vcmp.gt.s32.totalorder 0, %v2733
        %v2735 = vsel %vm2734, 0, %v2733
        %v2736 = vsub.s32 32, %v2735
        %v2737 = vshll.u32 %v2728, %v2735
        %v2738 = vshrl.u32 %v2720, %v2736
        %v2739 = vor.u32 %v2737, %v2738
        %v2740 = vsub.s32 4294967266, %v2735
        %v2741 = vadd.s32 %v2740, 127
        %v2742 = vshll.u32 %v2741, 23
        %v2743 = vor.u32 4788187, %v2742
        %v2744 = vand.u32 2147483647, %v2743
        %v2746 = vcvt.s32.f32 %v2739
        %v2747 = vmul.f32 %v2746, %v2744
        %v2748 = vxor.u32 %v2747, 2147483648
        %v2749 = vsel %vm2628, %v2748, %v2747
        %v2750 = vsub.s32 4, %v2726
        %v2751 = vsel %vm2628, %v2750, %v2726
        %v2752 = vsel %vm2627, %v438, %v2749
        %v2753 = vsel %vm2627, 0, %v2751
        %v2754 = vmul.f32 %v2752, %v2752
        %v2755 = vmul.f32 %v2754, -0.001358992
        %v2756 = vadd.f32 %v2755, 0.041655596
        %v2757 = vmul.f32 %v2754, %v2756
        %v2758 = vadd.f32 %v2757, -0.4999988
        %v2759 = vmul.f32 %v2754, %v2758
        %v2760 = vadd.f32 1.0, %v2759
        %v2761 = vmul.f32 %v2752, %v2752
        %v2762 = vmul.f32 %v2761, -0.00019511016
        %v2763 = vadd.f32 %v2762, 0.008332121
        %v2764 = vmul.f32 %v2761, %v2763
        %v2765 = vadd.f32 %v2764, -0.16666654
        %v2766 = vmul.f32 %v2761, %v2765
        %v2767 = vadd.f32 %v2766, 1.0
        %v2768 = vmul.f32 %v2767, %v2752
        %vm2769 = vweird.f32 %v438
        %v2770 = vadd.s32 %v2753, 3
        %v2771 = vand.u32 %v2770, 3
        %vm2772 = vcmp.lt.s32.totalorder %v2771, 2
        %vm2773 = vcmp.eq.s32.totalorder %v2771, 0
        %v2774 = vxor.u32 %v2768, 2147483648
        %v2775 = vsel %vm2773, %v2760, %v2774
        %vm2776 = vcmp.eq.s32.totalorder %v2771, 2
        %v2777 = vxor.u32 %v2760, 2147483648
        %v2778 = vsel %vm2776, %v2777, %v2768
        %v2779 = vsel %vm2772, %v2775, %v2778
        %v2780 = vsel %vm2769, nan, %v2779
        %v2781 = vand.u32 2147483647, %v439
        %vm2782 = vcmp.le.f32.partialorder %v2781, 0.7853982
        %vm2783 = vcmp.lt.s32.totalorder %v439, 0
        %v2784 = vand.u32 %v439, 2139095040
        %v2785 = vshrl.u32 %v2784, 23
        %v2786 = vsub.s32 %v2785, 127
        %v2787 = vand.u32 2147483647, %v439
        %v2788 = vand.u32 %v2787, 8388607
        %v2789 = vor.u32 %v2788, 8388608
        %v2790 = vsub.s32 0, %v2789
        %v2791 = vadd.s32 %v2786, 1
        %vm2792 = vcmp.gt.s32.totalorder %v2791, 0
        %v2793 = vsel %vm2792, %v2791, 0
        %v2794 = vshrl.u32 %v2793, 5
        %v2795 = vand.u32 %v2793, 31
        %v2796 = vsub.s32 32, %v2795
        %v2797 = vshrl.u32 683565275, %v2796
        %v2798 = vshll.u32 683565275, %v2795
        %v2799 = vshrl.u32 2475754826, %v2796
        %v2800 = vor.u32 %v2798, %v2799
        %v2801 = vshll.u32 2475754826, %v2795
        %v2802 = vshrl.u32 2131351028, %v2796
        %v2803 = vor.u32 %v2801, %v2802
        %v2804 = vshll.u32 2131351028, %v2795
        %v2805 = vshrl.u32 2102212464, %v2796
        %v2806 = vor.u32 %v2804, %v2805
        %v2807 = vshll.u32 2102212464, %v2795
        %v2808 = vshrl.u32 920167782, %v2796
        %v2809 = vor.u32 %v2807, %v2808
        %v2810 = vshll.u32 920167782, %v2795
        %v2811 = vshrl.u32 1326507024, %v2796
        %v2812 = vor.u32 %v2810, %v2811
        %vm2813 = vcmp.lt.s32.totalorder %v2794, 1
        %vm2814 = vcmp.lt.s32.totalorder %v2794, 2
        %vm2815 = vcmp.lt.s32.totalorder %v2794, 3
        %vm2816 = vcmp.lt.s32.totalorder %v2794, 4
        %v2817 = vsel %vm2813, %v2797, %v2800
        %v2818 = vsel %vm2816, %v2806, 2102212464
        %v2819 = vsel %vm2815, %v2803, %v2818
        %v2820 = vsel %vm2814, %v2817, %v2819
        %v2821 = vsel %vm2813, %v2800, %v2803
        %v2822 = vsel %vm2816, %v2809, 920167782
        %v2823 = vsel %vm2815, %v2806, %v2822
        %v2824 = vsel %vm2814, %v2821, %v2823
        %v2825 = vsel %vm2813, %v2803, %v2806
        %v2826 = vsel %vm2816, %v2812, 1326507024
        %v2827 = vsel %vm2815, %v2809, %v2826
        %v2828 = vsel %vm2814, %v2825, %v2827
        %v2829 = vshll.u32 %v2789, 8
        %v2830 = vand.u32 %v2829, 65535
        %v2831 = vshrl.u32 %v2829, 16
        %v2832 = vand.u32 %v2828, 65535
        %v2833 = vshrl.u32 %v2828, 16
        %v2834 = vmul.u32 %v2830, %v2832
        %v2835 = vmul.u32 %v2830, %v2833
        %v2836 = vmul.u32 %v2831, %v2832
        %v2837 = vmul.u32 %v2831, %v2833
        %v2838 = vshll.u32 %v2835, 16
        %v2839 = vshrl.u32 %v2835, 16
        %v2840 = vshll.u32 %v2836, 16
        %v2841 = vshrl.u32 %v2836, 16
        %vm2842 = vc.u32 %v2834, %v2838
        %v2843 = vsel %vm2842, 1, 0
        %v2844 = vadd.s32 %v2834, %v2838
        %v2845 = vadd.s32 %v2837, %v2843
        %vm2846 = vc.u32 %v2844, %v2840
        %v2847 = vsel %vm2846, 1, 0
        %v2848 = vadd.s32 %v2844, %v2840
        %v2849 = vadd.s32 %v2845, %v2847
        %v2850 = vadd.s32 %v2849, %v2839
        %v2851 = vadd.s32 %v2850, %v2841
        %v2852 = vand.u32 %v2829, 65535
        %v2853 = vshrl.u32 %v2829, 16
        %v2854 = vand.u32 %v2824, 65535
        %v2855 = vshrl.u32 %v2824, 16
        %v2856 = vmul.u32 %v2852, %v2854
        %v2857 = vmul.u32 %v2852, %v2855
        %v2858 = vmul.u32 %v2853, %v2854
        %v2859 = vmul.u32 %v2853, %v2855
        %v2860 = vshll.u32 %v2857, 16
        %v2861 = vshrl.u32 %v2857, 16
        %v2862 = vshll.u32 %v2858, 16
        %v2863 = vshrl.u32 %v2858, 16
        %vm2864 = vc.u32 %v2856, %v2860
        %v2865 = vsel %vm2864, 1, 0
        %v2866 = vadd.s32 %v2856, %v2860
        %v2867 = vadd.s32 %v2859, %v2865
        %vm2868 = vc.u32 %v2866, %v2862
        %v2869 = vsel %vm2868, 1, 0
        %v2870 = vadd.s32 %v2866, %v2862
        %v2871 = vadd.s32 %v2867, %v2869
        %v2872 = vadd.s32 %v2871, %v2861
        %v2873 = vadd.s32 %v2872, %v2863
        %v2874 = vmul.u32 %v2829, %v2820
        %v2875 = vadd.s32 %v2851, %v2870
        %vm2876 = vc.u32 %v2851, %v2870
        %v2877 = vadd.s32 %v2873, 1
        %v2878 = vsel %vm2876, %v2877, %v2873
        %v2879 = vadd.s32 %v2874, %v2878
        %v2880 = vadd.s32 %v2879, 536870912
        %v2881 = vshrl.u32 %v2880, 30
        %v2882 = vshll.u32 %v2881, 30
        %v2883 = vsub.s32 %v2879, %v2882
        %vm2884 = vcmp.lt.s32.totalorder %v2883, 0
        %v2885 = vsub.s32 0, %v2883
        %v2886 = vsel %vm2884, %v2885, %v2883
        %v2887 = vclz %v2886
        %v2888 = vsub.s32 %v2887, 2
        %vm2889 = vcmp.gt.s32.totalorder 0, %v2888
        %v2890 = vsel %vm2889, 0, %v2888
        %v2891 = vsub.s32 32, %v2890
        %v2892 = vshll.u32 %v2883, %v2890
        %v2893 = vshrl.u32 %v2875, %v2891
        %v2894 = vor.u32 %v2892, %v2893
        %v2895 = vsub.s32 4294967266, %v2890
        %v2896 = vadd.s32 %v2895, 127
        %v2897 = vshll.u32 %v2896, 23
        %v2898 = vor.u32 4788187, %v2897
        %v2899 = vand.u32 2147483647, %v2898
        %v2901 = vcvt.s32.f32 %v2894
        %v2902 = vmul.f32 %v2901, %v2899
        %v2903 = vxor.u32 %v2902, 2147483648
        %v2904 = vsel %vm2783, %v2903, %v2902
        %v2905 = vsub.s32 4, %v2881
        %v2906 = vsel %vm2783, %v2905, %v2881
        %v2907 = vsel %vm2782, %v439, %v2904
        %v2908 = vsel %vm2782, 0, %v2906
        %v2909 = vmul.f32 %v2907, %v2907
        %v2910 = vmul.f32 %v2909, -0.001358992
        %v2911 = vadd.f32 %v2910, 0.041655596
        %v2912 = vmul.f32 %v2909, %v2911
        %v2913 = vadd.f32 %v2912, -0.4999988
        %v2914 = vmul.f32 %v2909, %v2913
        %v2915 = vadd.f32 1.0, %v2914
        %v2916 = vmul.f32 %v2907, %v2907
        %v2917 = vmul.f32 %v2916, -0.00019511016
        %v2918 = vadd.f32 %v2917, 0.008332121
        %v2919 = vmul.f32 %v2916, %v2918
        %v2920 = vadd.f32 %v2919, -0.16666654
        %v2921 = vmul.f32 %v2916, %v2920
        %v2922 = vadd.f32 %v2921, 1.0
        %v2923 = vmul.f32 %v2922, %v2907
        %vm2924 = vweird.f32 %v439
        %v2925 = vadd.s32 %v2908, 3
        %v2926 = vand.u32 %v2925, 3
        %vm2927 = vcmp.lt.s32.totalorder %v2926, 2
        %vm2928 = vcmp.eq.s32.totalorder %v2926, 0
        %v2929 = vxor.u32 %v2923, 2147483648
        %v2930 = vsel %vm2928, %v2915, %v2929
        %vm2931 = vcmp.eq.s32.totalorder %v2926, 2
        %v2932 = vxor.u32 %v2915, 2147483648
        %v2933 = vsel %vm2931, %v2932, %v2923
        %v2934 = vsel %vm2927, %v2930, %v2933
        %v2935 = vsel %vm2924, nan, %v2934
        %v2936 = vand.u32 2147483647, %v440
        %vm2937 = vcmp.le.f32.partialorder %v2936, 0.7853982
        %vm2938 = vcmp.lt.s32.totalorder %v440, 0
        %v2939 = vand.u32 %v440, 2139095040
        %v2940 = vshrl.u32 %v2939, 23
        %v2941 = vsub.s32 %v2940, 127
        %v2942 = vand.u32 2147483647, %v440
        %v2943 = vand.u32 %v2942, 8388607
        %v2944 = vor.u32 %v2943, 8388608
        %v2945 = vsub.s32 0, %v2944
        %v2946 = vadd.s32 %v2941, 1
        %vm2947 = vcmp.gt.s32.totalorder %v2946, 0
        %v2948 = vsel %vm2947, %v2946, 0
        %v2949 = vshrl.u32 %v2948, 5
        %v2950 = vand.u32 %v2948, 31
        %v2951 = vsub.s32 32, %v2950
        %v2952 = vshrl.u32 683565275, %v2951
        %v2953 = vshll.u32 683565275, %v2950
        %v2954 = vshrl.u32 2475754826, %v2951
        %v2955 = vor.u32 %v2953, %v2954
        %v2956 = vshll.u32 2475754826, %v2950
        %v2957 = vshrl.u32 2131351028, %v2951
        %v2958 = vor.u32 %v2956, %v2957
        %v2959 = vshll.u32 2131351028, %v2950
        %v2960 = vshrl.u32 2102212464, %v2951
        %v2961 = vor.u32 %v2959, %v2960
        %v2962 = vshll.u32 2102212464, %v2950
        %v2963 = vshrl.u32 920167782, %v2951
        %v2964 = vor.u32 %v2962, %v2963
        %v2965 = vshll.u32 920167782, %v2950
        %v2966 = vshrl.u32 1326507024, %v2951
        %v2967 = vor.u32 %v2965, %v2966
        %vm2968 = vcmp.lt.s32.totalorder %v2949, 1
        %vm2969 = vcmp.lt.s32.totalorder %v2949, 2
        %vm2970 = vcmp.lt.s32.totalorder %v2949, 3
        %vm2971 = vcmp.lt.s32.totalorder %v2949, 4
        %v2972 = vsel %vm2968, %v2952, %v2955
        %v2973 = vsel %vm2971, %v2961, 2102212464
        %v2974 = vsel %vm2970, %v2958, %v2973
        %v2975 = vsel %vm2969, %v2972, %v2974
        %v2976 = vsel %vm2968, %v2955, %v2958
        %v2977 = vsel %vm2971, %v2964, 920167782
        %v2978 = vsel %vm2970, %v2961, %v2977
        %v2979 = vsel %vm2969, %v2976, %v2978
        %v2980 = vsel %vm2968, %v2958, %v2961
        %v2981 = vsel %vm2971, %v2967, 1326507024
        %v2982 = vsel %vm2970, %v2964, %v2981
        %v2983 = vsel %vm2969, %v2980, %v2982
        %v2984 = vshll.u32 %v2944, 8
        %v2985 = vand.u32 %v2984, 65535
        %v2986 = vshrl.u32 %v2984, 16
        %v2987 = vand.u32 %v2983, 65535
        %v2988 = vshrl.u32 %v2983, 16
        %v2989 = vmul.u32 %v2985, %v2987
        %v2990 = vmul.u32 %v2985, %v2988
        %v2991 = vmul.u32 %v2986, %v2987
        %v2992 = vmul.u32 %v2986, %v2988
        %v2993 = vshll.u32 %v2990, 16
        %v2994 = vshrl.u32 %v2990, 16
        %v2995 = vshll.u32 %v2991, 16
        %v2996 = vshrl.u32 %v2991, 16
        %vm2997 = vc.u32 %v2989, %v2993
        %v2998 = vsel %vm2997, 1, 0
        %v2999 = vadd.s32 %v2989, %v2993
        %v3000 = vadd.s32 %v2992, %v2998
        %vm3001 = vc.u32 %v2999, %v2995
        %v3002 = vsel %vm3001, 1, 0
        %v3003 = vadd.s32 %v2999, %v2995
        %v3004 = vadd.s32 %v3000, %v3002
        %v3005 = vadd.s32 %v3004, %v2994
        %v3006 = vadd.s32 %v3005, %v2996
        %v3007 = vand.u32 %v2984, 65535
        %v3008 = vshrl.u32 %v2984, 16
        %v3009 = vand.u32 %v2979, 65535
        %v3010 = vshrl.u32 %v2979, 16
        %v3011 = vmul.u32 %v3007, %v3009
        %v3012 = vmul.u32 %v3007, %v3010
        %v3013 = vmul.u32 %v3008, %v3009
        %v3014 = vmul.u32 %v3008, %v3010
        %v3015 = vshll.u32 %v3012, 16
        %v3016 = vshrl.u32 %v3012, 16
        %v3017 = vshll.u32 %v3013, 16
        %v3018 = vshrl.u32 %v3013, 16
        %vm3019 = vc.u32 %v3011, %v3015
        %v3020 = vsel %vm3019, 1, 0
        %v3021 = vadd.s32 %v3011, %v3015
        %v3022 = vadd.s32 %v3014, %v3020
        %vm3023 = vc.u32 %v3021, %v3017
        %v3024 = vsel %vm3023, 1, 0
        %v3025 = vadd.s32 %v3021, %v3017
        %v3026 = vadd.s32 %v3022, %v3024
        %v3027 = vadd.s32 %v3026, %v3016
        %v3028 = vadd.s32 %v3027, %v3018
        %v3029 = vmul.u32 %v2984, %v2975
        %v3030 = vadd.s32 %v3006, %v3025
        %vm3031 = vc.u32 %v3006, %v3025
        %v3032 = vadd.s32 %v3028, 1
        %v3033 = vsel %vm3031, %v3032, %v3028
        %v3034 = vadd.s32 %v3029, %v3033
        %v3035 = vadd.s32 %v3034, 536870912
        %v3036 = vshrl.u32 %v3035, 30
        %v3037 = vshll.u32 %v3036, 30
        %v3038 = vsub.s32 %v3034, %v3037
        %vm3039 = vcmp.lt.s32.totalorder %v3038, 0
        %v3040 = vsub.s32 0, %v3038
        %v3041 = vsel %vm3039, %v3040, %v3038
        %v3042 = vclz %v3041
        %v3043 = vsub.s32 %v3042, 2
        %vm3044 = vcmp.gt.s32.totalorder 0, %v3043
        %v3045 = vsel %vm3044, 0, %v3043
        %v3046 = vsub.s32 32, %v3045
        %v3047 = vshll.u32 %v3038, %v3045
        %v3048 = vshrl.u32 %v3030, %v3046
        %v3049 = vor.u32 %v3047, %v3048
        %v3050 = vsub.s32 4294967266, %v3045
        %v3051 = vadd.s32 %v3050, 127
        %v3052 = vshll.u32 %v3051, 23
        %v3053 = vor.u32 4788187, %v3052
        %v3054 = vand.u32 2147483647, %v3053
        %v3056 = vcvt.s32.f32 %v3049
        %v3057 = vmul.f32 %v3056, %v3054
        %v3058 = vxor.u32 %v3057, 2147483648
        %v3059 = vsel %vm2938, %v3058, %v3057
        %v3060 = vsub.s32 4, %v3036
        %v3061 = vsel %vm2938, %v3060, %v3036
        %v3062 = vsel %vm2937, %v440, %v3059
        %v3063 = vsel %vm2937, 0, %v3061
        %v3064 = vmul.f32 %v3062, %v3062
        %v3065 = vmul.f32 %v3064, -0.001358992
        %v3066 = vadd.f32 %v3065, 0.041655596
        %v3067 = vmul.f32 %v3064, %v3066
        %v3068 = vadd.f32 %v3067, -0.4999988
        %v3069 = vmul.f32 %v3064, %v3068
        %v3070 = vadd.f32 1.0, %v3069
        %v3071 = vmul.f32 %v3062, %v3062
        %v3072 = vmul.f32 %v3071, -0.00019511016
        %v3073 = vadd.f32 %v3072, 0.008332121
        %v3074 = vmul.f32 %v3071, %v3073
        %v3075 = vadd.f32 %v3074, -0.16666654
        %v3076 = vmul.f32 %v3071, %v3075
        %v3077 = vadd.f32 %v3076, 1.0
        %v3078 = vmul.f32 %v3077, %v3062
        %vm3079 = vweird.f32 %v440
        %v3080 = vadd.s32 %v3063, 3
        %v3081 = vand.u32 %v3080, 3
        %vm3082 = vcmp.lt.s32.totalorder %v3081, 2
        %vm3083 = vcmp.eq.s32.totalorder %v3081, 0
        %v3084 = vxor.u32 %v3078, 2147483648
        %v3085 = vsel %vm3083, %v3070, %v3084
        %vm3086 = vcmp.eq.s32.totalorder %v3081, 2
        %v3087 = vxor.u32 %v3070, 2147483648
        %v3088 = vsel %vm3086, %v3087, %v3078
        %v3089 = vsel %vm3082, %v3085, %v3088
        %v3090 = vsel %vm3079, nan, %v3089
        %v3091 = vand.u32 2147483647, %v441
        %vm3092 = vcmp.le.f32.partialorder %v3091, 0.7853982
        %vm3093 = vcmp.lt.s32.totalorder %v441, 0
        %v3094 = vand.u32 %v441, 2139095040
        %v3095 = vshrl.u32 %v3094, 23
        %v3096 = vsub.s32 %v3095, 127
        %v3097 = vand.u32 2147483647, %v441
        %v3098 = vand.u32 %v3097, 8388607
        %v3099 = vor.u32 %v3098, 8388608
        %v3100 = vsub.s32 0, %v3099
        %v3101 = vadd.s32 %v3096, 1
        %vm3102 = vcmp.gt.s32.totalorder %v3101, 0
        %v3103 = vsel %vm3102, %v3101, 0
        %v3104 = vshrl.u32 %v3103, 5
        %v3105 = vand.u32 %v3103, 31
        %v3106 = vsub.s32 32, %v3105
        %v3107 = vshrl.u32 683565275, %v3106
        %v3108 = vshll.u32 683565275, %v3105
        %v3109 = vshrl.u32 2475754826, %v3106
        %v3110 = vor.u32 %v3108, %v3109
        %v3111 = vshll.u32 2475754826, %v3105
        %v3112 = vshrl.u32 2131351028, %v3106
        %v3113 = vor.u32 %v3111, %v3112
        %v3114 = vshll.u32 2131351028, %v3105
        %v3115 = vshrl.u32 2102212464, %v3106
        %v3116 = vor.u32 %v3114, %v3115
        %v3117 = vshll.u32 2102212464, %v3105
        %v3118 = vshrl.u32 920167782, %v3106
        %v3119 = vor.u32 %v3117, %v3118
        %v3120 = vshll.u32 920167782, %v3105
        %v3121 = vshrl.u32 1326507024, %v3106
        %v3122 = vor.u32 %v3120, %v3121
        %vm3123 = vcmp.lt.s32.totalorder %v3104, 1
        %vm3124 = vcmp.lt.s32.totalorder %v3104, 2
        %vm3125 = vcmp.lt.s32.totalorder %v3104, 3
        %vm3126 = vcmp.lt.s32.totalorder %v3104, 4
        %v3127 = vsel %vm3123, %v3107, %v3110
        %v3128 = vsel %vm3126, %v3116, 2102212464
        %v3129 = vsel %vm3125, %v3113, %v3128
        %v3130 = vsel %vm3124, %v3127, %v3129
        %v3131 = vsel %vm3123, %v3110, %v3113
        %v3132 = vsel %vm3126, %v3119, 920167782
        %v3133 = vsel %vm3125, %v3116, %v3132
        %v3134 = vsel %vm3124, %v3131, %v3133
        %v3135 = vsel %vm3123, %v3113, %v3116
        %v3136 = vsel %vm3126, %v3122, 1326507024
        %v3137 = vsel %vm3125, %v3119, %v3136
        %v3138 = vsel %vm3124, %v3135, %v3137
        %v3139 = vshll.u32 %v3099, 8
        %v3140 = vand.u32 %v3139, 65535
        %v3141 = vshrl.u32 %v3139, 16
        %v3142 = vand.u32 %v3138, 65535
        %v3143 = vshrl.u32 %v3138, 16
        %v3144 = vmul.u32 %v3140, %v3142
        %v3145 = vmul.u32 %v3140, %v3143
        %v3146 = vmul.u32 %v3141, %v3142
        %v3147 = vmul.u32 %v3141, %v3143
        %v3148 = vshll.u32 %v3145, 16
        %v3149 = vshrl.u32 %v3145, 16
        %v3150 = vshll.u32 %v3146, 16
        %v3151 = vshrl.u32 %v3146, 16
        %vm3152 = vc.u32 %v3144, %v3148
        %v3153 = vsel %vm3152, 1, 0
        %v3154 = vadd.s32 %v3144, %v3148
        %v3155 = vadd.s32 %v3147, %v3153
        %vm3156 = vc.u32 %v3154, %v3150
        %v3157 = vsel %vm3156, 1, 0
        %v3158 = vadd.s32 %v3154, %v3150
        %v3159 = vadd.s32 %v3155, %v3157
        %v3160 = vadd.s32 %v3159, %v3149
        %v3161 = vadd.s32 %v3160, %v3151
        %v3162 = vand.u32 %v3139, 65535
        %v3163 = vshrl.u32 %v3139, 16
        %v3164 = vand.u32 %v3134, 65535
        %v3165 = vshrl.u32 %v3134, 16
        %v3166 = vmul.u32 %v3162, %v3164
        %v3167 = vmul.u32 %v3162, %v3165
        %v3168 = vmul.u32 %v3163, %v3164
        %v3169 = vmul.u32 %v3163, %v3165
        %v3170 = vshll.u32 %v3167, 16
        %v3171 = vshrl.u32 %v3167, 16
        %v3172 = vshll.u32 %v3168, 16
        %v3173 = vshrl.u32 %v3168, 16
        %vm3174 = vc.u32 %v3166, %v3170
        %v3175 = vsel %vm3174, 1, 0
        %v3176 = vadd.s32 %v3166, %v3170
        %v3177 = vadd.s32 %v3169, %v3175
        %vm3178 = vc.u32 %v3176, %v3172
        %v3179 = vsel %vm3178, 1, 0
        %v3180 = vadd.s32 %v3176, %v3172
        %v3181 = vadd.s32 %v3177, %v3179
        %v3182 = vadd.s32 %v3181, %v3171
        %v3183 = vadd.s32 %v3182, %v3173
        %v3184 = vmul.u32 %v3139, %v3130
        %v3185 = vadd.s32 %v3161, %v3180
        %vm3186 = vc.u32 %v3161, %v3180
        %v3187 = vadd.s32 %v3183, 1
        %v3188 = vsel %vm3186, %v3187, %v3183
        %v3189 = vadd.s32 %v3184, %v3188
        %v3190 = vadd.s32 %v3189, 536870912
        %v3191 = vshrl.u32 %v3190, 30
        %v3192 = vshll.u32 %v3191, 30
        %v3193 = vsub.s32 %v3189, %v3192
        %vm3194 = vcmp.lt.s32.totalorder %v3193, 0
        %v3195 = vsub.s32 0, %v3193
        %v3196 = vsel %vm3194, %v3195, %v3193
        %v3197 = vclz %v3196
        %v3198 = vsub.s32 %v3197, 2
        %vm3199 = vcmp.gt.s32.totalorder 0, %v3198
        %v3200 = vsel %vm3199, 0, %v3198
        %v3201 = vsub.s32 32, %v3200
        %v3202 = vshll.u32 %v3193, %v3200
        %v3203 = vshrl.u32 %v3185, %v3201
        %v3204 = vor.u32 %v3202, %v3203
        %v3205 = vsub.s32 4294967266, %v3200
        %v3206 = vadd.s32 %v3205, 127
        %v3207 = vshll.u32 %v3206, 23
        %v3208 = vor.u32 4788187, %v3207
        %v3209 = vand.u32 2147483647, %v3208
        %v3211 = vcvt.s32.f32 %v3204
        %v3212 = vmul.f32 %v3211, %v3209
        %v3213 = vxor.u32 %v3212, 2147483648
        %v3214 = vsel %vm3093, %v3213, %v3212
        %v3215 = vsub.s32 4, %v3191
        %v3216 = vsel %vm3093, %v3215, %v3191
        %v3217 = vsel %vm3092, %v441, %v3214
        %v3218 = vsel %vm3092, 0, %v3216
        %v3219 = vmul.f32 %v3217, %v3217
        %v3220 = vmul.f32 %v3219, -0.001358992
        %v3221 = vadd.f32 %v3220, 0.041655596
        %v3222 = vmul.f32 %v3219, %v3221
        %v3223 = vadd.f32 %v3222, -0.4999988
        %v3224 = vmul.f32 %v3219, %v3223
        %v3225 = vadd.f32 1.0, %v3224
        %v3226 = vmul.f32 %v3217, %v3217
        %v3227 = vmul.f32 %v3226, -0.00019511016
        %v3228 = vadd.f32 %v3227, 0.008332121
        %v3229 = vmul.f32 %v3226, %v3228
        %v3230 = vadd.f32 %v3229, -0.16666654
        %v3231 = vmul.f32 %v3226, %v3230
        %v3232 = vadd.f32 %v3231, 1.0
        %v3233 = vmul.f32 %v3232, %v3217
        %vm3234 = vweird.f32 %v441
        %v3235 = vadd.s32 %v3218, 3
        %v3236 = vand.u32 %v3235, 3
        %vm3237 = vcmp.lt.s32.totalorder %v3236, 2
        %vm3238 = vcmp.eq.s32.totalorder %v3236, 0
        %v3239 = vxor.u32 %v3233, 2147483648
        %v3240 = vsel %vm3238, %v3225, %v3239
        %vm3241 = vcmp.eq.s32.totalorder %v3236, 2
        %v3242 = vxor.u32 %v3225, 2147483648
        %v3243 = vsel %vm3241, %v3242, %v3233
        %v3244 = vsel %vm3237, %v3240, %v3243
        %v3245 = vsel %vm3234, nan, %v3244
        %v3246 = vand.u32 2147483647, %v442
        %vm3247 = vcmp.le.f32.partialorder %v3246, 0.7853982
        %vm3248 = vcmp.lt.s32.totalorder %v442, 0
        %v3249 = vand.u32 %v442, 2139095040
        %v3250 = vshrl.u32 %v3249, 23
        %v3251 = vsub.s32 %v3250, 127
        %v3252 = vand.u32 2147483647, %v442
        %v3253 = vand.u32 %v3252, 8388607
        %v3254 = vor.u32 %v3253, 8388608
        %v3255 = vsub.s32 0, %v3254
        %v3256 = vadd.s32 %v3251, 1
        %vm3257 = vcmp.gt.s32.totalorder %v3256, 0
        %v3258 = vsel %vm3257, %v3256, 0
        %v3259 = vshrl.u32 %v3258, 5
        %v3260 = vand.u32 %v3258, 31
        %v3261 = vsub.s32 32, %v3260
        %v3262 = vshrl.u32 683565275, %v3261
        %v3263 = vshll.u32 683565275, %v3260
        %v3264 = vshrl.u32 2475754826, %v3261
        %v3265 = vor.u32 %v3263, %v3264
        %v3266 = vshll.u32 2475754826, %v3260
        %v3267 = vshrl.u32 2131351028, %v3261
        %v3268 = vor.u32 %v3266, %v3267
        %v3269 = vshll.u32 2131351028, %v3260
        %v3270 = vshrl.u32 2102212464, %v3261
        %v3271 = vor.u32 %v3269, %v3270
        %v3272 = vshll.u32 2102212464, %v3260
        %v3273 = vshrl.u32 920167782, %v3261
        %v3274 = vor.u32 %v3272, %v3273
        %v3275 = vshll.u32 920167782, %v3260
        %v3276 = vshrl.u32 1326507024, %v3261
        %v3277 = vor.u32 %v3275, %v3276
        %vm3278 = vcmp.lt.s32.totalorder %v3259, 1
        %vm3279 = vcmp.lt.s32.totalorder %v3259, 2
        %vm3280 = vcmp.lt.s32.totalorder %v3259, 3
        %vm3281 = vcmp.lt.s32.totalorder %v3259, 4
        %v3282 = vsel %vm3278, %v3262, %v3265
        %v3283 = vsel %vm3281, %v3271, 2102212464
        %v3284 = vsel %vm3280, %v3268, %v3283
        %v3285 = vsel %vm3279, %v3282, %v3284
        %v3286 = vsel %vm3278, %v3265, %v3268
        %v3287 = vsel %vm3281, %v3274, 920167782
        %v3288 = vsel %vm3280, %v3271, %v3287
        %v3289 = vsel %vm3279, %v3286, %v3288
        %v3290 = vsel %vm3278, %v3268, %v3271
        %v3291 = vsel %vm3281, %v3277, 1326507024
        %v3292 = vsel %vm3280, %v3274, %v3291
        %v3293 = vsel %vm3279, %v3290, %v3292
        %v3294 = vshll.u32 %v3254, 8
        %v3295 = vand.u32 %v3294, 65535
        %v3296 = vshrl.u32 %v3294, 16
        %v3297 = vand.u32 %v3293, 65535
        %v3298 = vshrl.u32 %v3293, 16
        %v3299 = vmul.u32 %v3295, %v3297
        %v3300 = vmul.u32 %v3295, %v3298
        %v3301 = vmul.u32 %v3296, %v3297
        %v3302 = vmul.u32 %v3296, %v3298
        %v3303 = vshll.u32 %v3300, 16
        %v3304 = vshrl.u32 %v3300, 16
        %v3305 = vshll.u32 %v3301, 16
        %v3306 = vshrl.u32 %v3301, 16
        %vm3307 = vc.u32 %v3299, %v3303
        %v3308 = vsel %vm3307, 1, 0
        %v3309 = vadd.s32 %v3299, %v3303
        %v3310 = vadd.s32 %v3302, %v3308
        %vm3311 = vc.u32 %v3309, %v3305
        %v3312 = vsel %vm3311, 1, 0
        %v3313 = vadd.s32 %v3309, %v3305
        %v3314 = vadd.s32 %v3310, %v3312
        %v3315 = vadd.s32 %v3314, %v3304
        %v3316 = vadd.s32 %v3315, %v3306
        %v3317 = vand.u32 %v3294, 65535
        %v3318 = vshrl.u32 %v3294, 16
        %v3319 = vand.u32 %v3289, 65535
        %v3320 = vshrl.u32 %v3289, 16
        %v3321 = vmul.u32 %v3317, %v3319
        %v3322 = vmul.u32 %v3317, %v3320
        %v3323 = vmul.u32 %v3318, %v3319
        %v3324 = vmul.u32 %v3318, %v3320
        %v3325 = vshll.u32 %v3322, 16
        %v3326 = vshrl.u32 %v3322, 16
        %v3327 = vshll.u32 %v3323, 16
        %v3328 = vshrl.u32 %v3323, 16
        %vm3329 = vc.u32 %v3321, %v3325
        %v3330 = vsel %vm3329, 1, 0
        %v3331 = vadd.s32 %v3321, %v3325
        %v3332 = vadd.s32 %v3324, %v3330
        %vm3333 = vc.u32 %v3331, %v3327
        %v3334 = vsel %vm3333, 1, 0
        %v3335 = vadd.s32 %v3331, %v3327
        %v3336 = vadd.s32 %v3332, %v3334
        %v3337 = vadd.s32 %v3336, %v3326
        %v3338 = vadd.s32 %v3337, %v3328
        %v3339 = vmul.u32 %v3294, %v3285
        %v3340 = vadd.s32 %v3316, %v3335
        %vm3341 = vc.u32 %v3316, %v3335
        %v3342 = vadd.s32 %v3338, 1
        %v3343 = vsel %vm3341, %v3342, %v3338
        %v3344 = vadd.s32 %v3339, %v3343
        %v3345 = vadd.s32 %v3344, 536870912
        %v3346 = vshrl.u32 %v3345, 30
        %v3347 = vshll.u32 %v3346, 30
        %v3348 = vsub.s32 %v3344, %v3347
        %vm3349 = vcmp.lt.s32.totalorder %v3348, 0
        %v3350 = vsub.s32 0, %v3348
        %v3351 = vsel %vm3349, %v3350, %v3348
        %v3352 = vclz %v3351
        %v3353 = vsub.s32 %v3352, 2
        %vm3354 = vcmp.gt.s32.totalorder 0, %v3353
        %v3355 = vsel %vm3354, 0, %v3353
        %v3356 = vsub.s32 32, %v3355
        %v3357 = vshll.u32 %v3348, %v3355
        %v3358 = vshrl.u32 %v3340, %v3356
        %v3359 = vor.u32 %v3357, %v3358
        %v3360 = vsub.s32 4294967266, %v3355
        %v3361 = vadd.s32 %v3360, 127
        %v3362 = vshll.u32 %v3361, 23
        %v3363 = vor.u32 4788187, %v3362
        %v3364 = vand.u32 2147483647, %v3363
        %v3366 = vcvt.s32.f32 %v3359
        %v3367 = vmul.f32 %v3366, %v3364
        %v3368 = vxor.u32 %v3367, 2147483648
        %v3369 = vsel %vm3248, %v3368, %v3367
        %v3370 = vsub.s32 4, %v3346
        %v3371 = vsel %vm3248, %v3370, %v3346
        %v3372 = vsel %vm3247, %v442, %v3369
        %v3373 = vsel %vm3247, 0, %v3371
        %v3374 = vmul.f32 %v3372, %v3372
        %v3375 = vmul.f32 %v3374, -0.001358992
        %v3376 = vadd.f32 %v3375, 0.041655596
        %v3377 = vmul.f32 %v3374, %v3376
        %v3378 = vadd.f32 %v3377, -0.4999988
        %v3379 = vmul.f32 %v3374, %v3378
        %v3380 = vadd.f32 1.0, %v3379
        %v3381 = vmul.f32 %v3372, %v3372
        %v3382 = vmul.f32 %v3381, -0.00019511016
        %v3383 = vadd.f32 %v3382, 0.008332121
        %v3384 = vmul.f32 %v3381, %v3383
        %v3385 = vadd.f32 %v3384, -0.16666654
        %v3386 = vmul.f32 %v3381, %v3385
        %v3387 = vadd.f32 %v3386, 1.0
        %v3388 = vmul.f32 %v3387, %v3372
        %vm3389 = vweird.f32 %v442
        %v3390 = vadd.s32 %v3373, 3
        %v3391 = vand.u32 %v3390, 3
        %vm3392 = vcmp.lt.s32.totalorder %v3391, 2
        %vm3393 = vcmp.eq.s32.totalorder %v3391, 0
        %v3394 = vxor.u32 %v3388, 2147483648
        %v3395 = vsel %vm3393, %v3380, %v3394
        %vm3396 = vcmp.eq.s32.totalorder %v3391, 2
        %v3397 = vxor.u32 %v3380, 2147483648
        %v3398 = vsel %vm3396, %v3397, %v3388
        %v3399 = vsel %vm3392, %v3395, %v3398
        %v3400 = vsel %vm3389, nan, %v3399
        %v3401 = vand.u32 2147483647, %v443
        %vm3402 = vcmp.le.f32.partialorder %v3401, 0.7853982
        %vm3403 = vcmp.lt.s32.totalorder %v443, 0
        %v3404 = vand.u32 %v443, 2139095040
        %v3405 = vshrl.u32 %v3404, 23
        %v3406 = vsub.s32 %v3405, 127
        %v3407 = vand.u32 2147483647, %v443
        %v3408 = vand.u32 %v3407, 8388607
        %v3409 = vor.u32 %v3408, 8388608
        %v3410 = vsub.s32 0, %v3409
        %v3411 = vadd.s32 %v3406, 1
        %vm3412 = vcmp.gt.s32.totalorder %v3411, 0
        %v3413 = vsel %vm3412, %v3411, 0
        %v3414 = vshrl.u32 %v3413, 5
        %v3415 = vand.u32 %v3413, 31
        %v3416 = vsub.s32 32, %v3415
        %v3417 = vshrl.u32 683565275, %v3416
        %v3418 = vshll.u32 683565275, %v3415
        %v3419 = vshrl.u32 2475754826, %v3416
        %v3420 = vor.u32 %v3418, %v3419
        %v3421 = vshll.u32 2475754826, %v3415
        %v3422 = vshrl.u32 2131351028, %v3416
        %v3423 = vor.u32 %v3421, %v3422
        %v3424 = vshll.u32 2131351028, %v3415
        %v3425 = vshrl.u32 2102212464, %v3416
        %v3426 = vor.u32 %v3424, %v3425
        %v3427 = vshll.u32 2102212464, %v3415
        %v3428 = vshrl.u32 920167782, %v3416
        %v3429 = vor.u32 %v3427, %v3428
        %v3430 = vshll.u32 920167782, %v3415
        %v3431 = vshrl.u32 1326507024, %v3416
        %v3432 = vor.u32 %v3430, %v3431
        %vm3433 = vcmp.lt.s32.totalorder %v3414, 1
        %vm3434 = vcmp.lt.s32.totalorder %v3414, 2
        %vm3435 = vcmp.lt.s32.totalorder %v3414, 3
        %vm3436 = vcmp.lt.s32.totalorder %v3414, 4
        %v3437 = vsel %vm3433, %v3417, %v3420
        %v3438 = vsel %vm3436, %v3426, 2102212464
        %v3439 = vsel %vm3435, %v3423, %v3438
        %v3440 = vsel %vm3434, %v3437, %v3439
        %v3441 = vsel %vm3433, %v3420, %v3423
        %v3442 = vsel %vm3436, %v3429, 920167782
        %v3443 = vsel %vm3435, %v3426, %v3442
        %v3444 = vsel %vm3434, %v3441, %v3443
        %v3445 = vsel %vm3433, %v3423, %v3426
        %v3446 = vsel %vm3436, %v3432, 1326507024
        %v3447 = vsel %vm3435, %v3429, %v3446
        %v3448 = vsel %vm3434, %v3445, %v3447
        %v3449 = vshll.u32 %v3409, 8
        %v3450 = vand.u32 %v3449, 65535
        %v3451 = vshrl.u32 %v3449, 16
        %v3452 = vand.u32 %v3448, 65535
        %v3453 = vshrl.u32 %v3448, 16
        %v3454 = vmul.u32 %v3450, %v3452
        %v3455 = vmul.u32 %v3450, %v3453
        %v3456 = vmul.u32 %v3451, %v3452
        %v3457 = vmul.u32 %v3451, %v3453
        %v3458 = vshll.u32 %v3455, 16
        %v3459 = vshrl.u32 %v3455, 16
        %v3460 = vshll.u32 %v3456, 16
        %v3461 = vshrl.u32 %v3456, 16
        %vm3462 = vc.u32 %v3454, %v3458
        %v3463 = vsel %vm3462, 1, 0
        %v3464 = vadd.s32 %v3454, %v3458
        %v3465 = vadd.s32 %v3457, %v3463
        %vm3466 = vc.u32 %v3464, %v3460
        %v3467 = vsel %vm3466, 1, 0
        %v3468 = vadd.s32 %v3464, %v3460
        %v3469 = vadd.s32 %v3465, %v3467
        %v3470 = vadd.s32 %v3469, %v3459
        %v3471 = vadd.s32 %v3470, %v3461
        %v3472 = vand.u32 %v3449, 65535
        %v3473 = vshrl.u32 %v3449, 16
        %v3474 = vand.u32 %v3444, 65535
        %v3475 = vshrl.u32 %v3444, 16
        %v3476 = vmul.u32 %v3472, %v3474
        %v3477 = vmul.u32 %v3472, %v3475
        %v3478 = vmul.u32 %v3473, %v3474
        %v3479 = vmul.u32 %v3473, %v3475
        %v3480 = vshll.u32 %v3477, 16
        %v3481 = vshrl.u32 %v3477, 16
        %v3482 = vshll.u32 %v3478, 16
        %v3483 = vshrl.u32 %v3478, 16
        %vm3484 = vc.u32 %v3476, %v3480
        %v3485 = vsel %vm3484, 1, 0
        %v3486 = vadd.s32 %v3476, %v3480
        %v3487 = vadd.s32 %v3479, %v3485
        %vm3488 = vc.u32 %v3486, %v3482
        %v3489 = vsel %vm3488, 1, 0
        %v3490 = vadd.s32 %v3486, %v3482
        %v3491 = vadd.s32 %v3487, %v3489
        %v3492 = vadd.s32 %v3491, %v3481
        %v3493 = vadd.s32 %v3492, %v3483
        %v3494 = vmul.u32 %v3449, %v3440
        %v3495 = vadd.s32 %v3471, %v3490
        %vm3496 = vc.u32 %v3471, %v3490
        %v3497 = vadd.s32 %v3493, 1
        %v3498 = vsel %vm3496, %v3497, %v3493
        %v3499 = vadd.s32 %v3494, %v3498
        %v3500 = vadd.s32 %v3499, 536870912
        %v3501 = vshrl.u32 %v3500, 30
        %v3502 = vshll.u32 %v3501, 30
        %v3503 = vsub.s32 %v3499, %v3502
        %vm3504 = vcmp.lt.s32.totalorder %v3503, 0
        %v3505 = vsub.s32 0, %v3503
        %v3506 = vsel %vm3504, %v3505, %v3503
        %v3507 = vclz %v3506
        %v3508 = vsub.s32 %v3507, 2
        %vm3509 = vcmp.gt.s32.totalorder 0, %v3508
        %v3510 = vsel %vm3509, 0, %v3508
        %v3511 = vsub.s32 32, %v3510
        %v3512 = vshll.u32 %v3503, %v3510
        %v3513 = vshrl.u32 %v3495, %v3511
        %v3514 = vor.u32 %v3512, %v3513
        %v3515 = vsub.s32 4294967266, %v3510
        %v3516 = vadd.s32 %v3515, 127
        %v3517 = vshll.u32 %v3516, 23
        %v3518 = vor.u32 4788187, %v3517
        %v3519 = vand.u32 2147483647, %v3518
        %v3521 = vcvt.s32.f32 %v3514
        %v3522 = vmul.f32 %v3521, %v3519
        %v3523 = vxor.u32 %v3522, 2147483648
        %v3524 = vsel %vm3403, %v3523, %v3522
        %v3525 = vsub.s32 4, %v3501
        %v3526 = vsel %vm3403, %v3525, %v3501
        %v3527 = vsel %vm3402, %v443, %v3524
        %v3528 = vsel %vm3402, 0, %v3526
        %v3529 = vmul.f32 %v3527, %v3527
        %v3530 = vmul.f32 %v3529, -0.001358992
        %v3531 = vadd.f32 %v3530, 0.041655596
        %v3532 = vmul.f32 %v3529, %v3531
        %v3533 = vadd.f32 %v3532, -0.4999988
        %v3534 = vmul.f32 %v3529, %v3533
        %v3535 = vadd.f32 1.0, %v3534
        %v3536 = vmul.f32 %v3527, %v3527
        %v3537 = vmul.f32 %v3536, -0.00019511016
        %v3538 = vadd.f32 %v3537, 0.008332121
        %v3539 = vmul.f32 %v3536, %v3538
        %v3540 = vadd.f32 %v3539, -0.16666654
        %v3541 = vmul.f32 %v3536, %v3540
        %v3542 = vadd.f32 %v3541, 1.0
        %v3543 = vmul.f32 %v3542, %v3527
        %vm3544 = vweird.f32 %v443
        %v3545 = vadd.s32 %v3528, 3
        %v3546 = vand.u32 %v3545, 3
        %vm3547 = vcmp.lt.s32.totalorder %v3546, 2
        %vm3548 = vcmp.eq.s32.totalorder %v3546, 0
        %v3549 = vxor.u32 %v3543, 2147483648
        %v3550 = vsel %vm3548, %v3535, %v3549
        %vm3551 = vcmp.eq.s32.totalorder %v3546, 2
        %v3552 = vxor.u32 %v3535, 2147483648
        %v3553 = vsel %vm3551, %v3552, %v3543
        %v3554 = vsel %vm3547, %v3550, %v3553
        %v3555 = vsel %vm3544, nan, %v3554
        %v3556 = vand.u32 2147483647, %v444
        %vm3557 = vcmp.le.f32.partialorder %v3556, 0.7853982
        %vm3558 = vcmp.lt.s32.totalorder %v444, 0
        %v3559 = vand.u32 %v444, 2139095040
        %v3560 = vshrl.u32 %v3559, 23
        %v3561 = vsub.s32 %v3560, 127
        %v3562 = vand.u32 2147483647, %v444
        %v3563 = vand.u32 %v3562, 8388607
        %v3564 = vor.u32 %v3563, 8388608
        %v3565 = vsub.s32 0, %v3564
        %v3566 = vadd.s32 %v3561, 1
        %vm3567 = vcmp.gt.s32.totalorder %v3566, 0
        %v3568 = vsel %vm3567, %v3566, 0
        %v3569 = vshrl.u32 %v3568, 5
        %v3570 = vand.u32 %v3568, 31
        %v3571 = vsub.s32 32, %v3570
        %v3572 = vshrl.u32 683565275, %v3571
        %v3573 = vshll.u32 683565275, %v3570
        %v3574 = vshrl.u32 2475754826, %v3571
        %v3575 = vor.u32 %v3573, %v3574
        %v3576 = vshll.u32 2475754826, %v3570
        %v3577 = vshrl.u32 2131351028, %v3571
        %v3578 = vor.u32 %v3576, %v3577
        %v3579 = vshll.u32 2131351028, %v3570
        %v3580 = vshrl.u32 2102212464, %v3571
        %v3581 = vor.u32 %v3579, %v3580
        %v3582 = vshll.u32 2102212464, %v3570
        %v3583 = vshrl.u32 920167782, %v3571
        %v3584 = vor.u32 %v3582, %v3583
        %v3585 = vshll.u32 920167782, %v3570
        %v3586 = vshrl.u32 1326507024, %v3571
        %v3587 = vor.u32 %v3585, %v3586
        %vm3588 = vcmp.lt.s32.totalorder %v3569, 1
        %vm3589 = vcmp.lt.s32.totalorder %v3569, 2
        %vm3590 = vcmp.lt.s32.totalorder %v3569, 3
        %vm3591 = vcmp.lt.s32.totalorder %v3569, 4
        %v3592 = vsel %vm3588, %v3572, %v3575
        %v3593 = vsel %vm3591, %v3581, 2102212464
        %v3594 = vsel %vm3590, %v3578, %v3593
        %v3595 = vsel %vm3589, %v3592, %v3594
        %v3596 = vsel %vm3588, %v3575, %v3578
        %v3597 = vsel %vm3591, %v3584, 920167782
        %v3598 = vsel %vm3590, %v3581, %v3597
        %v3599 = vsel %vm3589, %v3596, %v3598
        %v3600 = vsel %vm3588, %v3578, %v3581
        %v3601 = vsel %vm3591, %v3587, 1326507024
        %v3602 = vsel %vm3590, %v3584, %v3601
        %v3603 = vsel %vm3589, %v3600, %v3602
        %v3604 = vshll.u32 %v3564, 8
        %v3605 = vand.u32 %v3604, 65535
        %v3606 = vshrl.u32 %v3604, 16
        %v3607 = vand.u32 %v3603, 65535
        %v3608 = vshrl.u32 %v3603, 16
        %v3609 = vmul.u32 %v3605, %v3607
        %v3610 = vmul.u32 %v3605, %v3608
        %v3611 = vmul.u32 %v3606, %v3607
        %v3612 = vmul.u32 %v3606, %v3608
        %v3613 = vshll.u32 %v3610, 16
        %v3614 = vshrl.u32 %v3610, 16
        %v3615 = vshll.u32 %v3611, 16
        %v3616 = vshrl.u32 %v3611, 16
        %vm3617 = vc.u32 %v3609, %v3613
        %v3618 = vsel %vm3617, 1, 0
        %v3619 = vadd.s32 %v3609, %v3613
        %v3620 = vadd.s32 %v3612, %v3618
        %vm3621 = vc.u32 %v3619, %v3615
        %v3622 = vsel %vm3621, 1, 0
        %v3623 = vadd.s32 %v3619, %v3615
        %v3624 = vadd.s32 %v3620, %v3622
        %v3625 = vadd.s32 %v3624, %v3614
        %v3626 = vadd.s32 %v3625, %v3616
        %v3627 = vand.u32 %v3604, 65535
        %v3628 = vshrl.u32 %v3604, 16
        %v3629 = vand.u32 %v3599, 65535
        %v3630 = vshrl.u32 %v3599, 16
        %v3631 = vmul.u32 %v3627, %v3629
        %v3632 = vmul.u32 %v3627, %v3630
        %v3633 = vmul.u32 %v3628, %v3629
        %v3634 = vmul.u32 %v3628, %v3630
        %v3635 = vshll.u32 %v3632, 16
        %v3636 = vshrl.u32 %v3632, 16
        %v3637 = vshll.u32 %v3633, 16
        %v3638 = vshrl.u32 %v3633, 16
        %vm3639 = vc.u32 %v3631, %v3635
        %v3640 = vsel %vm3639, 1, 0
        %v3641 = vadd.s32 %v3631, %v3635
        %v3642 = vadd.s32 %v3634, %v3640
        %vm3643 = vc.u32 %v3641, %v3637
        %v3644 = vsel %vm3643, 1, 0
        %v3645 = vadd.s32 %v3641, %v3637
        %v3646 = vadd.s32 %v3642, %v3644
        %v3647 = vadd.s32 %v3646, %v3636
        %v3648 = vadd.s32 %v3647, %v3638
        %v3649 = vmul.u32 %v3604, %v3595
        %v3650 = vadd.s32 %v3626, %v3645
        %vm3651 = vc.u32 %v3626, %v3645
        %v3652 = vadd.s32 %v3648, 1
        %v3653 = vsel %vm3651, %v3652, %v3648
        %v3654 = vadd.s32 %v3649, %v3653
        %v3655 = vadd.s32 %v3654, 536870912
        %v3656 = vshrl.u32 %v3655, 30
        %v3657 = vshll.u32 %v3656, 30
        %v3658 = vsub.s32 %v3654, %v3657
        %vm3659 = vcmp.lt.s32.totalorder %v3658, 0
        %v3660 = vsub.s32 0, %v3658
        %v3661 = vsel %vm3659, %v3660, %v3658
        %v3662 = vclz %v3661
        %v3663 = vsub.s32 %v3662, 2
        %vm3664 = vcmp.gt.s32.totalorder 0, %v3663
        %v3665 = vsel %vm3664, 0, %v3663
        %v3666 = vsub.s32 32, %v3665
        %v3667 = vshll.u32 %v3658, %v3665
        %v3668 = vshrl.u32 %v3650, %v3666
        %v3669 = vor.u32 %v3667, %v3668
        %v3670 = vsub.s32 4294967266, %v3665
        %v3671 = vadd.s32 %v3670, 127
        %v3672 = vshll.u32 %v3671, 23
        %v3673 = vor.u32 4788187, %v3672
        %v3674 = vand.u32 2147483647, %v3673
        %v3676 = vcvt.s32.f32 %v3669
        %v3677 = vmul.f32 %v3676, %v3674
        %v3678 = vxor.u32 %v3677, 2147483648
        %v3679 = vsel %vm3558, %v3678, %v3677
        %v3680 = vsub.s32 4, %v3656
        %v3681 = vsel %vm3558, %v3680, %v3656
        %v3682 = vsel %vm3557, %v444, %v3679
        %v3683 = vsel %vm3557, 0, %v3681
        %v3684 = vmul.f32 %v3682, %v3682
        %v3685 = vmul.f32 %v3684, -0.001358992
        %v3686 = vadd.f32 %v3685, 0.041655596
        %v3687 = vmul.f32 %v3684, %v3686
        %v3688 = vadd.f32 %v3687, -0.4999988
        %v3689 = vmul.f32 %v3684, %v3688
        %v3690 = vadd.f32 1.0, %v3689
        %v3691 = vmul.f32 %v3682, %v3682
        %v3692 = vmul.f32 %v3691, -0.00019511016
        %v3693 = vadd.f32 %v3692, 0.008332121
        %v3694 = vmul.f32 %v3691, %v3693
        %v3695 = vadd.f32 %v3694, -0.16666654
        %v3696 = vmul.f32 %v3691, %v3695
        %v3697 = vadd.f32 %v3696, 1.0
        %v3698 = vmul.f32 %v3697, %v3682
        %vm3699 = vweird.f32 %v444
        %v3700 = vadd.s32 %v3683, 3
        %v3701 = vand.u32 %v3700, 3
        %vm3702 = vcmp.lt.s32.totalorder %v3701, 2
        %vm3703 = vcmp.eq.s32.totalorder %v3701, 0
        %v3704 = vxor.u32 %v3698, 2147483648
        %v3705 = vsel %vm3703, %v3690, %v3704
        %vm3706 = vcmp.eq.s32.totalorder %v3701, 2
        %v3707 = vxor.u32 %v3690, 2147483648
        %v3708 = vsel %vm3706, %v3707, %v3698
        %v3709 = vsel %vm3702, %v3705, %v3708
        %v3710 = vsel %vm3699, nan, %v3709
        %v3711 = vand.u32 2147483647, %v445
        %vm3712 = vcmp.le.f32.partialorder %v3711, 0.7853982
        %vm3713 = vcmp.lt.s32.totalorder %v445, 0
        %v3714 = vand.u32 %v445, 2139095040
        %v3715 = vshrl.u32 %v3714, 23
        %v3716 = vsub.s32 %v3715, 127
        %v3717 = vand.u32 2147483647, %v445
        %v3718 = vand.u32 %v3717, 8388607
        %v3719 = vor.u32 %v3718, 8388608
        %v3720 = vsub.s32 0, %v3719
        %v3721 = vadd.s32 %v3716, 1
        %vm3722 = vcmp.gt.s32.totalorder %v3721, 0
        %v3723 = vsel %vm3722, %v3721, 0
        %v3724 = vshrl.u32 %v3723, 5
        %v3725 = vand.u32 %v3723, 31
        %v3726 = vsub.s32 32, %v3725
        %v3727 = vshrl.u32 683565275, %v3726
        %v3728 = vshll.u32 683565275, %v3725
        %v3729 = vshrl.u32 2475754826, %v3726
        %v3730 = vor.u32 %v3728, %v3729
        %v3731 = vshll.u32 2475754826, %v3725
        %v3732 = vshrl.u32 2131351028, %v3726
        %v3733 = vor.u32 %v3731, %v3732
        %v3734 = vshll.u32 2131351028, %v3725
        %v3735 = vshrl.u32 2102212464, %v3726
        %v3736 = vor.u32 %v3734, %v3735
        %v3737 = vshll.u32 2102212464, %v3725
        %v3738 = vshrl.u32 920167782, %v3726
        %v3739 = vor.u32 %v3737, %v3738
        %v3740 = vshll.u32 920167782, %v3725
        %v3741 = vshrl.u32 1326507024, %v3726
        %v3742 = vor.u32 %v3740, %v3741
        %vm3743 = vcmp.lt.s32.totalorder %v3724, 1
        %vm3744 = vcmp.lt.s32.totalorder %v3724, 2
        %vm3745 = vcmp.lt.s32.totalorder %v3724, 3
        %vm3746 = vcmp.lt.s32.totalorder %v3724, 4
        %v3747 = vsel %vm3743, %v3727, %v3730
        %v3748 = vsel %vm3746, %v3736, 2102212464
        %v3749 = vsel %vm3745, %v3733, %v3748
        %v3750 = vsel %vm3744, %v3747, %v3749
        %v3751 = vsel %vm3743, %v3730, %v3733
        %v3752 = vsel %vm3746, %v3739, 920167782
        %v3753 = vsel %vm3745, %v3736, %v3752
        %v3754 = vsel %vm3744, %v3751, %v3753
        %v3755 = vsel %vm3743, %v3733, %v3736
        %v3756 = vsel %vm3746, %v3742, 1326507024
        %v3757 = vsel %vm3745, %v3739, %v3756
        %v3758 = vsel %vm3744, %v3755, %v3757
        %v3759 = vshll.u32 %v3719, 8
        %v3760 = vand.u32 %v3759, 65535
        %v3761 = vshrl.u32 %v3759, 16
        %v3762 = vand.u32 %v3758, 65535
        %v3763 = vshrl.u32 %v3758, 16
        %v3764 = vmul.u32 %v3760, %v3762
        %v3765 = vmul.u32 %v3760, %v3763
        %v3766 = vmul.u32 %v3761, %v3762
        %v3767 = vmul.u32 %v3761, %v3763
        %v3768 = vshll.u32 %v3765, 16
        %v3769 = vshrl.u32 %v3765, 16
        %v3770 = vshll.u32 %v3766, 16
        %v3771 = vshrl.u32 %v3766, 16
        %vm3772 = vc.u32 %v3764, %v3768
        %v3773 = vsel %vm3772, 1, 0
        %v3774 = vadd.s32 %v3764, %v3768
        %v3775 = vadd.s32 %v3767, %v3773
        %vm3776 = vc.u32 %v3774, %v3770
        %v3777 = vsel %vm3776, 1, 0
        %v3778 = vadd.s32 %v3774, %v3770
        %v3779 = vadd.s32 %v3775, %v3777
        %v3780 = vadd.s32 %v3779, %v3769
        %v3781 = vadd.s32 %v3780, %v3771
        %v3782 = vand.u32 %v3759, 65535
        %v3783 = vshrl.u32 %v3759, 16
        %v3784 = vand.u32 %v3754, 65535
        %v3785 = vshrl.u32 %v3754, 16
        %v3786 = vmul.u32 %v3782, %v3784
        %v3787 = vmul.u32 %v3782, %v3785
        %v3788 = vmul.u32 %v3783, %v3784
        %v3789 = vmul.u32 %v3783, %v3785
        %v3790 = vshll.u32 %v3787, 16
        %v3791 = vshrl.u32 %v3787, 16
        %v3792 = vshll.u32 %v3788, 16
        %v3793 = vshrl.u32 %v3788, 16
        %vm3794 = vc.u32 %v3786, %v3790
        %v3795 = vsel %vm3794, 1, 0
        %v3796 = vadd.s32 %v3786, %v3790
        %v3797 = vadd.s32 %v3789, %v3795
        %vm3798 = vc.u32 %v3796, %v3792
        %v3799 = vsel %vm3798, 1, 0
        %v3800 = vadd.s32 %v3796, %v3792
        %v3801 = vadd.s32 %v3797, %v3799
        %v3802 = vadd.s32 %v3801, %v3791
        %v3803 = vadd.s32 %v3802, %v3793
        %v3804 = vmul.u32 %v3759, %v3750
        %v3805 = vadd.s32 %v3781, %v3800
        %vm3806 = vc.u32 %v3781, %v3800
        %v3807 = vadd.s32 %v3803, 1
        %v3808 = vsel %vm3806, %v3807, %v3803
        %v3809 = vadd.s32 %v3804, %v3808
        %v3810 = vadd.s32 %v3809, 536870912
        %v3811 = vshrl.u32 %v3810, 30
        %v3812 = vshll.u32 %v3811, 30
        %v3813 = vsub.s32 %v3809, %v3812
        %vm3814 = vcmp.lt.s32.totalorder %v3813, 0
        %v3815 = vsub.s32 0, %v3813
        %v3816 = vsel %vm3814, %v3815, %v3813
        %v3817 = vclz %v3816
        %v3818 = vsub.s32 %v3817, 2
        %vm3819 = vcmp.gt.s32.totalorder 0, %v3818
        %v3820 = vsel %vm3819, 0, %v3818
        %v3821 = vsub.s32 32, %v3820
        %v3822 = vshll.u32 %v3813, %v3820
        %v3823 = vshrl.u32 %v3805, %v3821
        %v3824 = vor.u32 %v3822, %v3823
        %v3825 = vsub.s32 4294967266, %v3820
        %v3826 = vadd.s32 %v3825, 127
        %v3827 = vshll.u32 %v3826, 23
        %v3828 = vor.u32 4788187, %v3827
        %v3829 = vand.u32 2147483647, %v3828
        %v3831 = vcvt.s32.f32 %v3824
        %v3832 = vmul.f32 %v3831, %v3829
        %v3833 = vxor.u32 %v3832, 2147483648
        %v3834 = vsel %vm3713, %v3833, %v3832
        %v3835 = vsub.s32 4, %v3811
        %v3836 = vsel %vm3713, %v3835, %v3811
        %v3837 = vsel %vm3712, %v445, %v3834
        %v3838 = vsel %vm3712, 0, %v3836
        %v3839 = vmul.f32 %v3837, %v3837
        %v3840 = vmul.f32 %v3839, -0.001358992
        %v3841 = vadd.f32 %v3840, 0.041655596
        %v3842 = vmul.f32 %v3839, %v3841
        %v3843 = vadd.f32 %v3842, -0.4999988
        %v3844 = vmul.f32 %v3839, %v3843
        %v3845 = vadd.f32 1.0, %v3844
        %v3846 = vmul.f32 %v3837, %v3837
        %v3847 = vmul.f32 %v3846, -0.00019511016
        %v3848 = vadd.f32 %v3847, 0.008332121
        %v3849 = vmul.f32 %v3846, %v3848
        %v3850 = vadd.f32 %v3849, -0.16666654
        %v3851 = vmul.f32 %v3846, %v3850
        %v3852 = vadd.f32 %v3851, 1.0
        %v3853 = vmul.f32 %v3852, %v3837
        %vm3854 = vweird.f32 %v445
        %v3855 = vadd.s32 %v3838, 3
        %v3856 = vand.u32 %v3855, 3
        %vm3857 = vcmp.lt.s32.totalorder %v3856, 2
        %vm3858 = vcmp.eq.s32.totalorder %v3856, 0
        %v3859 = vxor.u32 %v3853, 2147483648
        %v3860 = vsel %vm3858, %v3845, %v3859
        %vm3861 = vcmp.eq.s32.totalorder %v3856, 2
        %v3862 = vxor.u32 %v3845, 2147483648
        %v3863 = vsel %vm3861, %v3862, %v3853
        %v3864 = vsel %vm3857, %v3860, %v3863
        %v3865 = vsel %vm3854, nan, %v3864
        %v3866 = vand.u32 2147483647, %v446
        %vm3867 = vcmp.le.f32.partialorder %v3866, 0.7853982
        %vm3868 = vcmp.lt.s32.totalorder %v446, 0
        %v3869 = vand.u32 %v446, 2139095040
        %v3870 = vshrl.u32 %v3869, 23
        %v3871 = vsub.s32 %v3870, 127
        %v3872 = vand.u32 2147483647, %v446
        %v3873 = vand.u32 %v3872, 8388607
        %v3874 = vor.u32 %v3873, 8388608
        %v3875 = vsub.s32 0, %v3874
        %v3876 = vadd.s32 %v3871, 1
        %vm3877 = vcmp.gt.s32.totalorder %v3876, 0
        %v3878 = vsel %vm3877, %v3876, 0
        %v3879 = vshrl.u32 %v3878, 5
        %v3880 = vand.u32 %v3878, 31
        %v3881 = vsub.s32 32, %v3880
        %v3882 = vshrl.u32 683565275, %v3881
        %v3883 = vshll.u32 683565275, %v3880
        %v3884 = vshrl.u32 2475754826, %v3881
        %v3885 = vor.u32 %v3883, %v3884
        %v3886 = vshll.u32 2475754826, %v3880
        %v3887 = vshrl.u32 2131351028, %v3881
        %v3888 = vor.u32 %v3886, %v3887
        %v3889 = vshll.u32 2131351028, %v3880
        %v3890 = vshrl.u32 2102212464, %v3881
        %v3891 = vor.u32 %v3889, %v3890
        %v3892 = vshll.u32 2102212464, %v3880
        %v3893 = vshrl.u32 920167782, %v3881
        %v3894 = vor.u32 %v3892, %v3893
        %v3895 = vshll.u32 920167782, %v3880
        %v3896 = vshrl.u32 1326507024, %v3881
        %v3897 = vor.u32 %v3895, %v3896
        %vm3898 = vcmp.lt.s32.totalorder %v3879, 1
        %vm3899 = vcmp.lt.s32.totalorder %v3879, 2
        %vm3900 = vcmp.lt.s32.totalorder %v3879, 3
        %vm3901 = vcmp.lt.s32.totalorder %v3879, 4
        %v3902 = vsel %vm3898, %v3882, %v3885
        %v3903 = vsel %vm3901, %v3891, 2102212464
        %v3904 = vsel %vm3900, %v3888, %v3903
        %v3905 = vsel %vm3899, %v3902, %v3904
        %v3906 = vsel %vm3898, %v3885, %v3888
        %v3907 = vsel %vm3901, %v3894, 920167782
        %v3908 = vsel %vm3900, %v3891, %v3907
        %v3909 = vsel %vm3899, %v3906, %v3908
        %v3910 = vsel %vm3898, %v3888, %v3891
        %v3911 = vsel %vm3901, %v3897, 1326507024
        %v3912 = vsel %vm3900, %v3894, %v3911
        %v3913 = vsel %vm3899, %v3910, %v3912
        %v3914 = vshll.u32 %v3874, 8
        %v3915 = vand.u32 %v3914, 65535
        %v3916 = vshrl.u32 %v3914, 16
        %v3917 = vand.u32 %v3913, 65535
        %v3918 = vshrl.u32 %v3913, 16
        %v3919 = vmul.u32 %v3915, %v3917
        %v3920 = vmul.u32 %v3915, %v3918
        %v3921 = vmul.u32 %v3916, %v3917
        %v3922 = vmul.u32 %v3916, %v3918
        %v3923 = vshll.u32 %v3920, 16
        %v3924 = vshrl.u32 %v3920, 16
        %v3925 = vshll.u32 %v3921, 16
        %v3926 = vshrl.u32 %v3921, 16
        %vm3927 = vc.u32 %v3919, %v3923
        %v3928 = vsel %vm3927, 1, 0
        %v3929 = vadd.s32 %v3919, %v3923
        %v3930 = vadd.s32 %v3922, %v3928
        %vm3931 = vc.u32 %v3929, %v3925
        %v3932 = vsel %vm3931, 1, 0
        %v3933 = vadd.s32 %v3929, %v3925
        %v3934 = vadd.s32 %v3930, %v3932
        %v3935 = vadd.s32 %v3934, %v3924
        %v3936 = vadd.s32 %v3935, %v3926
        %v3937 = vand.u32 %v3914, 65535
        %v3938 = vshrl.u32 %v3914, 16
        %v3939 = vand.u32 %v3909, 65535
        %v3940 = vshrl.u32 %v3909, 16
        %v3941 = vmul.u32 %v3937, %v3939
        %v3942 = vmul.u32 %v3937, %v3940
        %v3943 = vmul.u32 %v3938, %v3939
        %v3944 = vmul.u32 %v3938, %v3940
        %v3945 = vshll.u32 %v3942, 16
        %v3946 = vshrl.u32 %v3942, 16
        %v3947 = vshll.u32 %v3943, 16
        %v3948 = vshrl.u32 %v3943, 16
        %vm3949 = vc.u32 %v3941, %v3945
        %v3950 = vsel %vm3949, 1, 0
        %v3951 = vadd.s32 %v3941, %v3945
        %v3952 = vadd.s32 %v3944, %v3950
        %vm3953 = vc.u32 %v3951, %v3947
        %v3954 = vsel %vm3953, 1, 0
        %v3955 = vadd.s32 %v3951, %v3947
        %v3956 = vadd.s32 %v3952, %v3954
        %v3957 = vadd.s32 %v3956, %v3946
        %v3958 = vadd.s32 %v3957, %v3948
        %v3959 = vmul.u32 %v3914, %v3905
        %v3960 = vadd.s32 %v3936, %v3955
        %vm3961 = vc.u32 %v3936, %v3955
        %v3962 = vadd.s32 %v3958, 1
        %v3963 = vsel %vm3961, %v3962, %v3958
        %v3964 = vadd.s32 %v3959, %v3963
        %v3965 = vadd.s32 %v3964, 536870912
        %v3966 = vshrl.u32 %v3965, 30
        %v3967 = vshll.u32 %v3966, 30
        %v3968 = vsub.s32 %v3964, %v3967
        %vm3969 = vcmp.lt.s32.totalorder %v3968, 0
        %v3970 = vsub.s32 0, %v3968
        %v3971 = vsel %vm3969, %v3970, %v3968
        %v3972 = vclz %v3971
        %v3973 = vsub.s32 %v3972, 2
        %vm3974 = vcmp.gt.s32.totalorder 0, %v3973
        %v3975 = vsel %vm3974, 0, %v3973
        %v3976 = vsub.s32 32, %v3975
        %v3977 = vshll.u32 %v3968, %v3975
        %v3978 = vshrl.u32 %v3960, %v3976
        %v3979 = vor.u32 %v3977, %v3978
        %v3980 = vsub.s32 4294967266, %v3975
        %v3981 = vadd.s32 %v3980, 127
        %v3982 = vshll.u32 %v3981, 23
        %v3983 = vor.u32 4788187, %v3982
        %v3984 = vand.u32 2147483647, %v3983
        %v3986 = vcvt.s32.f32 %v3979
        %v3987 = vmul.f32 %v3986, %v3984
        %v3988 = vxor.u32 %v3987, 2147483648
        %v3989 = vsel %vm3868, %v3988, %v3987
        %v3990 = vsub.s32 4, %v3966
        %v3991 = vsel %vm3868, %v3990, %v3966
        %v3992 = vsel %vm3867, %v446, %v3989
        %v3993 = vsel %vm3867, 0, %v3991
        %v3994 = vmul.f32 %v3992, %v3992
        %v3995 = vmul.f32 %v3994, -0.001358992
        %v3996 = vadd.f32 %v3995, 0.041655596
        %v3997 = vmul.f32 %v3994, %v3996
        %v3998 = vadd.f32 %v3997, -0.4999988
        %v3999 = vmul.f32 %v3994, %v3998
        %v4000 = vadd.f32 1.0, %v3999
        %v4001 = vmul.f32 %v3992, %v3992
        %v4002 = vmul.f32 %v4001, -0.00019511016
        %v4003 = vadd.f32 %v4002, 0.008332121
        %v4004 = vmul.f32 %v4001, %v4003
        %v4005 = vadd.f32 %v4004, -0.16666654
        %v4006 = vmul.f32 %v4001, %v4005
        %v4007 = vadd.f32 %v4006, 1.0
        %v4008 = vmul.f32 %v4007, %v3992
        %vm4009 = vweird.f32 %v446
        %v4010 = vadd.s32 %v3993, 3
        %v4011 = vand.u32 %v4010, 3
        %vm4012 = vcmp.lt.s32.totalorder %v4011, 2
        %vm4013 = vcmp.eq.s32.totalorder %v4011, 0
        %v4014 = vxor.u32 %v4008, 2147483648
        %v4015 = vsel %vm4013, %v4000, %v4014
        %vm4016 = vcmp.eq.s32.totalorder %v4011, 2
        %v4017 = vxor.u32 %v4000, 2147483648
        %v4018 = vsel %vm4016, %v4017, %v4008
        %v4019 = vsel %vm4012, %v4015, %v4018
        %v4020 = vsel %vm4009, nan, %v4019
        %v4021 = vand.u32 2147483647, %v447
        %vm4022 = vcmp.le.f32.partialorder %v4021, 0.7853982
        %vm4023 = vcmp.lt.s32.totalorder %v447, 0
        %v4024 = vand.u32 %v447, 2139095040
        %v4025 = vshrl.u32 %v4024, 23
        %v4026 = vsub.s32 %v4025, 127
        %v4027 = vand.u32 2147483647, %v447
        %v4028 = vand.u32 %v4027, 8388607
        %v4029 = vor.u32 %v4028, 8388608
        %v4030 = vsub.s32 0, %v4029
        %v4031 = vadd.s32 %v4026, 1
        %vm4032 = vcmp.gt.s32.totalorder %v4031, 0
        %v4033 = vsel %vm4032, %v4031, 0
        %v4034 = vshrl.u32 %v4033, 5
        %v4035 = vand.u32 %v4033, 31
        %v4036 = vsub.s32 32, %v4035
        %v4037 = vshrl.u32 683565275, %v4036
        %v4038 = vshll.u32 683565275, %v4035
        %v4039 = vshrl.u32 2475754826, %v4036
        %v4040 = vor.u32 %v4038, %v4039
        %v4041 = vshll.u32 2475754826, %v4035
        %v4042 = vshrl.u32 2131351028, %v4036
        %v4043 = vor.u32 %v4041, %v4042
        %v4044 = vshll.u32 2131351028, %v4035
        %v4045 = vshrl.u32 2102212464, %v4036
        %v4046 = vor.u32 %v4044, %v4045
        %v4047 = vshll.u32 2102212464, %v4035
        %v4048 = vshrl.u32 920167782, %v4036
        %v4049 = vor.u32 %v4047, %v4048
        %v4050 = vshll.u32 920167782, %v4035
        %v4051 = vshrl.u32 1326507024, %v4036
        %v4052 = vor.u32 %v4050, %v4051
        %vm4053 = vcmp.lt.s32.totalorder %v4034, 1
        %vm4054 = vcmp.lt.s32.totalorder %v4034, 2
        %vm4055 = vcmp.lt.s32.totalorder %v4034, 3
        %vm4056 = vcmp.lt.s32.totalorder %v4034, 4
        %v4057 = vsel %vm4053, %v4037, %v4040
        %v4058 = vsel %vm4056, %v4046, 2102212464
        %v4059 = vsel %vm4055, %v4043, %v4058
        %v4060 = vsel %vm4054, %v4057, %v4059
        %v4061 = vsel %vm4053, %v4040, %v4043
        %v4062 = vsel %vm4056, %v4049, 920167782
        %v4063 = vsel %vm4055, %v4046, %v4062
        %v4064 = vsel %vm4054, %v4061, %v4063
        %v4065 = vsel %vm4053, %v4043, %v4046
        %v4066 = vsel %vm4056, %v4052, 1326507024
        %v4067 = vsel %vm4055, %v4049, %v4066
        %v4068 = vsel %vm4054, %v4065, %v4067
        %v4069 = vshll.u32 %v4029, 8
        %v4070 = vand.u32 %v4069, 65535
        %v4071 = vshrl.u32 %v4069, 16
        %v4072 = vand.u32 %v4068, 65535
        %v4073 = vshrl.u32 %v4068, 16
        %v4074 = vmul.u32 %v4070, %v4072
        %v4075 = vmul.u32 %v4070, %v4073
        %v4076 = vmul.u32 %v4071, %v4072
        %v4077 = vmul.u32 %v4071, %v4073
        %v4078 = vshll.u32 %v4075, 16
        %v4079 = vshrl.u32 %v4075, 16
        %v4080 = vshll.u32 %v4076, 16
        %v4081 = vshrl.u32 %v4076, 16
        %vm4082 = vc.u32 %v4074, %v4078
        %v4083 = vsel %vm4082, 1, 0
        %v4084 = vadd.s32 %v4074, %v4078
        %v4085 = vadd.s32 %v4077, %v4083
        %vm4086 = vc.u32 %v4084, %v4080
        %v4087 = vsel %vm4086, 1, 0
        %v4088 = vadd.s32 %v4084, %v4080
        %v4089 = vadd.s32 %v4085, %v4087
        %v4090 = vadd.s32 %v4089, %v4079
        %v4091 = vadd.s32 %v4090, %v4081
        %v4092 = vand.u32 %v4069, 65535
        %v4093 = vshrl.u32 %v4069, 16
        %v4094 = vand.u32 %v4064, 65535
        %v4095 = vshrl.u32 %v4064, 16
        %v4096 = vmul.u32 %v4092, %v4094
        %v4097 = vmul.u32 %v4092, %v4095
        %v4098 = vmul.u32 %v4093, %v4094
        %v4099 = vmul.u32 %v4093, %v4095
        %v4100 = vshll.u32 %v4097, 16
        %v4101 = vshrl.u32 %v4097, 16
        %v4102 = vshll.u32 %v4098, 16
        %v4103 = vshrl.u32 %v4098, 16
        %vm4104 = vc.u32 %v4096, %v4100
        %v4105 = vsel %vm4104, 1, 0
        %v4106 = vadd.s32 %v4096, %v4100
        %v4107 = vadd.s32 %v4099, %v4105
        %vm4108 = vc.u32 %v4106, %v4102
        %v4109 = vsel %vm4108, 1, 0
        %v4110 = vadd.s32 %v4106, %v4102
        %v4111 = vadd.s32 %v4107, %v4109
        %v4112 = vadd.s32 %v4111, %v4101
        %v4113 = vadd.s32 %v4112, %v4103
        %v4114 = vmul.u32 %v4069, %v4060
        %v4115 = vadd.s32 %v4091, %v4110
        %vm4116 = vc.u32 %v4091, %v4110
        %v4117 = vadd.s32 %v4113, 1
        %v4118 = vsel %vm4116, %v4117, %v4113
        %v4119 = vadd.s32 %v4114, %v4118
        %v4120 = vadd.s32 %v4119, 536870912
        %v4121 = vshrl.u32 %v4120, 30
        %v4122 = vshll.u32 %v4121, 30
        %v4123 = vsub.s32 %v4119, %v4122
        %vm4124 = vcmp.lt.s32.totalorder %v4123, 0
        %v4125 = vsub.s32 0, %v4123
        %v4126 = vsel %vm4124, %v4125, %v4123
        %v4127 = vclz %v4126
        %v4128 = vsub.s32 %v4127, 2
        %vm4129 = vcmp.gt.s32.totalorder 0, %v4128
        %v4130 = vsel %vm4129, 0, %v4128
        %v4131 = vsub.s32 32, %v4130
        %v4132 = vshll.u32 %v4123, %v4130
        %v4133 = vshrl.u32 %v4115, %v4131
        %v4134 = vor.u32 %v4132, %v4133
        %v4135 = vsub.s32 4294967266, %v4130
        %v4136 = vadd.s32 %v4135, 127
        %v4137 = vshll.u32 %v4136, 23
        %v4138 = vor.u32 4788187, %v4137
        %v4139 = vand.u32 2147483647, %v4138
        %v4141 = vcvt.s32.f32 %v4134
        %v4142 = vmul.f32 %v4141, %v4139
        %v4143 = vxor.u32 %v4142, 2147483648
        %v4144 = vsel %vm4023, %v4143, %v4142
        %v4145 = vsub.s32 4, %v4121
        %v4146 = vsel %vm4023, %v4145, %v4121
        %v4147 = vsel %vm4022, %v447, %v4144
        %v4148 = vsel %vm4022, 0, %v4146
        %v4149 = vmul.f32 %v4147, %v4147
        %v4150 = vmul.f32 %v4149, -0.001358992
        %v4151 = vadd.f32 %v4150, 0.041655596
        %v4152 = vmul.f32 %v4149, %v4151
        %v4153 = vadd.f32 %v4152, -0.4999988
        %v4154 = vmul.f32 %v4149, %v4153
        %v4155 = vadd.f32 1.0, %v4154
        %v4156 = vmul.f32 %v4147, %v4147
        %v4157 = vmul.f32 %v4156, -0.00019511016
        %v4158 = vadd.f32 %v4157, 0.008332121
        %v4159 = vmul.f32 %v4156, %v4158
        %v4160 = vadd.f32 %v4159, -0.16666654
        %v4161 = vmul.f32 %v4156, %v4160
        %v4162 = vadd.f32 %v4161, 1.0
        %v4163 = vmul.f32 %v4162, %v4147
        %vm4164 = vweird.f32 %v447
        %v4165 = vadd.s32 %v4148, 3
        %v4166 = vand.u32 %v4165, 3
        %vm4167 = vcmp.lt.s32.totalorder %v4166, 2
        %vm4168 = vcmp.eq.s32.totalorder %v4166, 0
        %v4169 = vxor.u32 %v4163, 2147483648
        %v4170 = vsel %vm4168, %v4155, %v4169
        %vm4171 = vcmp.eq.s32.totalorder %v4166, 2
        %v4172 = vxor.u32 %v4155, 2147483648
        %v4173 = vsel %vm4171, %v4172, %v4163
        %v4174 = vsel %vm4167, %v4170, %v4173
        %v4175 = vsel %vm4164, nan, %v4174
        %v4176 = vand.u32 2147483647, %v448
        %vm4177 = vcmp.le.f32.partialorder %v4176, 0.7853982
        %vm4178 = vcmp.lt.s32.totalorder %v448, 0
        %v4179 = vand.u32 %v448, 2139095040
        %v4180 = vshrl.u32 %v4179, 23
        %v4181 = vsub.s32 %v4180, 127
        %v4182 = vand.u32 2147483647, %v448
        %v4183 = vand.u32 %v4182, 8388607
        %v4184 = vor.u32 %v4183, 8388608
        %v4185 = vsub.s32 0, %v4184
        %v4186 = vadd.s32 %v4181, 1
        %vm4187 = vcmp.gt.s32.totalorder %v4186, 0
        %v4188 = vsel %vm4187, %v4186, 0
        %v4189 = vshrl.u32 %v4188, 5
        %v4190 = vand.u32 %v4188, 31
        %v4191 = vsub.s32 32, %v4190
        %v4192 = vshrl.u32 683565275, %v4191
        %v4193 = vshll.u32 683565275, %v4190
        %v4194 = vshrl.u32 2475754826, %v4191
        %v4195 = vor.u32 %v4193, %v4194
        %v4196 = vshll.u32 2475754826, %v4190
        %v4197 = vshrl.u32 2131351028, %v4191
        %v4198 = vor.u32 %v4196, %v4197
        %v4199 = vshll.u32 2131351028, %v4190
        %v4200 = vshrl.u32 2102212464, %v4191
        %v4201 = vor.u32 %v4199, %v4200
        %v4202 = vshll.u32 2102212464, %v4190
        %v4203 = vshrl.u32 920167782, %v4191
        %v4204 = vor.u32 %v4202, %v4203
        %v4205 = vshll.u32 920167782, %v4190
        %v4206 = vshrl.u32 1326507024, %v4191
        %v4207 = vor.u32 %v4205, %v4206
        %vm4208 = vcmp.lt.s32.totalorder %v4189, 1
        %vm4209 = vcmp.lt.s32.totalorder %v4189, 2
        %vm4210 = vcmp.lt.s32.totalorder %v4189, 3
        %vm4211 = vcmp.lt.s32.totalorder %v4189, 4
        %v4212 = vsel %vm4208, %v4192, %v4195
        %v4213 = vsel %vm4211, %v4201, 2102212464
        %v4214 = vsel %vm4210, %v4198, %v4213
        %v4215 = vsel %vm4209, %v4212, %v4214
        %v4216 = vsel %vm4208, %v4195, %v4198
        %v4217 = vsel %vm4211, %v4204, 920167782
        %v4218 = vsel %vm4210, %v4201, %v4217
        %v4219 = vsel %vm4209, %v4216, %v4218
        %v4220 = vsel %vm4208, %v4198, %v4201
        %v4221 = vsel %vm4211, %v4207, 1326507024
        %v4222 = vsel %vm4210, %v4204, %v4221
        %v4223 = vsel %vm4209, %v4220, %v4222
        %v4224 = vshll.u32 %v4184, 8
        %v4225 = vand.u32 %v4224, 65535
        %v4226 = vshrl.u32 %v4224, 16
        %v4227 = vand.u32 %v4223, 65535
        %v4228 = vshrl.u32 %v4223, 16
        %v4229 = vmul.u32 %v4225, %v4227
        %v4230 = vmul.u32 %v4225, %v4228
        %v4231 = vmul.u32 %v4226, %v4227
        %v4232 = vmul.u32 %v4226, %v4228
        %v4233 = vshll.u32 %v4230, 16
        %v4234 = vshrl.u32 %v4230, 16
        %v4235 = vshll.u32 %v4231, 16
        %v4236 = vshrl.u32 %v4231, 16
        %vm4237 = vc.u32 %v4229, %v4233
        %v4238 = vsel %vm4237, 1, 0
        %v4239 = vadd.s32 %v4229, %v4233
        %v4240 = vadd.s32 %v4232, %v4238
        %vm4241 = vc.u32 %v4239, %v4235
        %v4242 = vsel %vm4241, 1, 0
        %v4243 = vadd.s32 %v4239, %v4235
        %v4244 = vadd.s32 %v4240, %v4242
        %v4245 = vadd.s32 %v4244, %v4234
        %v4246 = vadd.s32 %v4245, %v4236
        %v4247 = vand.u32 %v4224, 65535
        %v4248 = vshrl.u32 %v4224, 16
        %v4249 = vand.u32 %v4219, 65535
        %v4250 = vshrl.u32 %v4219, 16
        %v4251 = vmul.u32 %v4247, %v4249
        %v4252 = vmul.u32 %v4247, %v4250
        %v4253 = vmul.u32 %v4248, %v4249
        %v4254 = vmul.u32 %v4248, %v4250
        %v4255 = vshll.u32 %v4252, 16
        %v4256 = vshrl.u32 %v4252, 16
        %v4257 = vshll.u32 %v4253, 16
        %v4258 = vshrl.u32 %v4253, 16
        %vm4259 = vc.u32 %v4251, %v4255
        %v4260 = vsel %vm4259, 1, 0
        %v4261 = vadd.s32 %v4251, %v4255
        %v4262 = vadd.s32 %v4254, %v4260
        %vm4263 = vc.u32 %v4261, %v4257
        %v4264 = vsel %vm4263, 1, 0
        %v4265 = vadd.s32 %v4261, %v4257
        %v4266 = vadd.s32 %v4262, %v4264
        %v4267 = vadd.s32 %v4266, %v4256
        %v4268 = vadd.s32 %v4267, %v4258
        %v4269 = vmul.u32 %v4224, %v4215
        %v4270 = vadd.s32 %v4246, %v4265
        %vm4271 = vc.u32 %v4246, %v4265
        %v4272 = vadd.s32 %v4268, 1
        %v4273 = vsel %vm4271, %v4272, %v4268
        %v4274 = vadd.s32 %v4269, %v4273
        %v4275 = vadd.s32 %v4274, 536870912
        %v4276 = vshrl.u32 %v4275, 30
        %v4277 = vshll.u32 %v4276, 30
        %v4278 = vsub.s32 %v4274, %v4277
        %vm4279 = vcmp.lt.s32.totalorder %v4278, 0
        %v4280 = vsub.s32 0, %v4278
        %v4281 = vsel %vm4279, %v4280, %v4278
        %v4282 = vclz %v4281
        %v4283 = vsub.s32 %v4282, 2
        %vm4284 = vcmp.gt.s32.totalorder 0, %v4283
        %v4285 = vsel %vm4284, 0, %v4283
        %v4286 = vsub.s32 32, %v4285
        %v4287 = vshll.u32 %v4278, %v4285
        %v4288 = vshrl.u32 %v4270, %v4286
        %v4289 = vor.u32 %v4287, %v4288
        %v4290 = vsub.s32 4294967266, %v4285
        %v4291 = vadd.s32 %v4290, 127
        %v4292 = vshll.u32 %v4291, 23
        %v4293 = vor.u32 4788187, %v4292
        %v4294 = vand.u32 2147483647, %v4293
        %v4296 = vcvt.s32.f32 %v4289
        %v4297 = vmul.f32 %v4296, %v4294
        %v4298 = vxor.u32 %v4297, 2147483648
        %v4299 = vsel %vm4178, %v4298, %v4297
        %v4300 = vsub.s32 4, %v4276
        %v4301 = vsel %vm4178, %v4300, %v4276
        %v4302 = vsel %vm4177, %v448, %v4299
        %v4303 = vsel %vm4177, 0, %v4301
        %v4304 = vmul.f32 %v4302, %v4302
        %v4305 = vmul.f32 %v4304, -0.001358992
        %v4306 = vadd.f32 %v4305, 0.041655596
        %v4307 = vmul.f32 %v4304, %v4306
        %v4308 = vadd.f32 %v4307, -0.4999988
        %v4309 = vmul.f32 %v4304, %v4308
        %v4310 = vadd.f32 1.0, %v4309
        %v4311 = vmul.f32 %v4302, %v4302
        %v4312 = vmul.f32 %v4311, -0.00019511016
        %v4313 = vadd.f32 %v4312, 0.008332121
        %v4314 = vmul.f32 %v4311, %v4313
        %v4315 = vadd.f32 %v4314, -0.16666654
        %v4316 = vmul.f32 %v4311, %v4315
        %v4317 = vadd.f32 %v4316, 1.0
        %v4318 = vmul.f32 %v4317, %v4302
        %vm4319 = vweird.f32 %v448
        %v4320 = vadd.s32 %v4303, 3
        %v4321 = vand.u32 %v4320, 3
        %vm4322 = vcmp.lt.s32.totalorder %v4321, 2
        %vm4323 = vcmp.eq.s32.totalorder %v4321, 0
        %v4324 = vxor.u32 %v4318, 2147483648
        %v4325 = vsel %vm4323, %v4310, %v4324
        %vm4326 = vcmp.eq.s32.totalorder %v4321, 2
        %v4327 = vxor.u32 %v4310, 2147483648
        %v4328 = vsel %vm4326, %v4327, %v4318
        %v4329 = vsel %vm4322, %v4325, %v4328
        %v4330 = vsel %vm4319, nan, %v4329
        %v4331 = vand.u32 2147483647, %v449
        %vm4332 = vcmp.le.f32.partialorder %v4331, 0.7853982
        %vm4333 = vcmp.lt.s32.totalorder %v449, 0
        %v4334 = vand.u32 %v449, 2139095040
        %v4335 = vshrl.u32 %v4334, 23
        %v4336 = vsub.s32 %v4335, 127
        %v4337 = vand.u32 2147483647, %v449
        %v4338 = vand.u32 %v4337, 8388607
        %v4339 = vor.u32 %v4338, 8388608
        %v4340 = vsub.s32 0, %v4339
        %v4341 = vadd.s32 %v4336, 1
        %vm4342 = vcmp.gt.s32.totalorder %v4341, 0
        %v4343 = vsel %vm4342, %v4341, 0
        %v4344 = vshrl.u32 %v4343, 5
        %v4345 = vand.u32 %v4343, 31
        %v4346 = vsub.s32 32, %v4345
        %v4347 = vshrl.u32 683565275, %v4346
        %v4348 = vshll.u32 683565275, %v4345
        %v4349 = vshrl.u32 2475754826, %v4346
        %v4350 = vor.u32 %v4348, %v4349
        %v4351 = vshll.u32 2475754826, %v4345
        %v4352 = vshrl.u32 2131351028, %v4346
        %v4353 = vor.u32 %v4351, %v4352
        %v4354 = vshll.u32 2131351028, %v4345
        %v4355 = vshrl.u32 2102212464, %v4346
        %v4356 = vor.u32 %v4354, %v4355
        %v4357 = vshll.u32 2102212464, %v4345
        %v4358 = vshrl.u32 920167782, %v4346
        %v4359 = vor.u32 %v4357, %v4358
        %v4360 = vshll.u32 920167782, %v4345
        %v4361 = vshrl.u32 1326507024, %v4346
        %v4362 = vor.u32 %v4360, %v4361
        %vm4363 = vcmp.lt.s32.totalorder %v4344, 1
        %vm4364 = vcmp.lt.s32.totalorder %v4344, 2
        %vm4365 = vcmp.lt.s32.totalorder %v4344, 3
        %vm4366 = vcmp.lt.s32.totalorder %v4344, 4
        %v4367 = vsel %vm4363, %v4347, %v4350
        %v4368 = vsel %vm4366, %v4356, 2102212464
        %v4369 = vsel %vm4365, %v4353, %v4368
        %v4370 = vsel %vm4364, %v4367, %v4369
        %v4371 = vsel %vm4363, %v4350, %v4353
        %v4372 = vsel %vm4366, %v4359, 920167782
        %v4373 = vsel %vm4365, %v4356, %v4372
        %v4374 = vsel %vm4364, %v4371, %v4373
        %v4375 = vsel %vm4363, %v4353, %v4356
        %v4376 = vsel %vm4366, %v4362, 1326507024
        %v4377 = vsel %vm4365, %v4359, %v4376
        %v4378 = vsel %vm4364, %v4375, %v4377
        %v4379 = vshll.u32 %v4339, 8
        %v4380 = vand.u32 %v4379, 65535
        %v4381 = vshrl.u32 %v4379, 16
        %v4382 = vand.u32 %v4378, 65535
        %v4383 = vshrl.u32 %v4378, 16
        %v4384 = vmul.u32 %v4380, %v4382
        %v4385 = vmul.u32 %v4380, %v4383
        %v4386 = vmul.u32 %v4381, %v4382
        %v4387 = vmul.u32 %v4381, %v4383
        %v4388 = vshll.u32 %v4385, 16
        %v4389 = vshrl.u32 %v4385, 16
        %v4390 = vshll.u32 %v4386, 16
        %v4391 = vshrl.u32 %v4386, 16
        %vm4392 = vc.u32 %v4384, %v4388
        %v4393 = vsel %vm4392, 1, 0
        %v4394 = vadd.s32 %v4384, %v4388
        %v4395 = vadd.s32 %v4387, %v4393
        %vm4396 = vc.u32 %v4394, %v4390
        %v4397 = vsel %vm4396, 1, 0
        %v4398 = vadd.s32 %v4394, %v4390
        %v4399 = vadd.s32 %v4395, %v4397
        %v4400 = vadd.s32 %v4399, %v4389
        %v4401 = vadd.s32 %v4400, %v4391
        %v4402 = vand.u32 %v4379, 65535
        %v4403 = vshrl.u32 %v4379, 16
        %v4404 = vand.u32 %v4374, 65535
        %v4405 = vshrl.u32 %v4374, 16
        %v4406 = vmul.u32 %v4402, %v4404
        %v4407 = vmul.u32 %v4402, %v4405
        %v4408 = vmul.u32 %v4403, %v4404
        %v4409 = vmul.u32 %v4403, %v4405
        %v4410 = vshll.u32 %v4407, 16
        %v4411 = vshrl.u32 %v4407, 16
        %v4412 = vshll.u32 %v4408, 16
        %v4413 = vshrl.u32 %v4408, 16
        %vm4414 = vc.u32 %v4406, %v4410
        %v4415 = vsel %vm4414, 1, 0
        %v4416 = vadd.s32 %v4406, %v4410
        %v4417 = vadd.s32 %v4409, %v4415
        %vm4418 = vc.u32 %v4416, %v4412
        %v4419 = vsel %vm4418, 1, 0
        %v4420 = vadd.s32 %v4416, %v4412
        %v4421 = vadd.s32 %v4417, %v4419
        %v4422 = vadd.s32 %v4421, %v4411
        %v4423 = vadd.s32 %v4422, %v4413
        %v4424 = vmul.u32 %v4379, %v4370
        %v4425 = vadd.s32 %v4401, %v4420
        %vm4426 = vc.u32 %v4401, %v4420
        %v4427 = vadd.s32 %v4423, 1
        %v4428 = vsel %vm4426, %v4427, %v4423
        %v4429 = vadd.s32 %v4424, %v4428
        %v4430 = vadd.s32 %v4429, 536870912
        %v4431 = vshrl.u32 %v4430, 30
        %v4432 = vshll.u32 %v4431, 30
        %v4433 = vsub.s32 %v4429, %v4432
        %vm4434 = vcmp.lt.s32.totalorder %v4433, 0
        %v4435 = vsub.s32 0, %v4433
        %v4436 = vsel %vm4434, %v4435, %v4433
        %v4437 = vclz %v4436
        %v4438 = vsub.s32 %v4437, 2
        %vm4439 = vcmp.gt.s32.totalorder 0, %v4438
        %v4440 = vsel %vm4439, 0, %v4438
        %v4441 = vsub.s32 32, %v4440
        %v4442 = vshll.u32 %v4433, %v4440
        %v4443 = vshrl.u32 %v4425, %v4441
        %v4444 = vor.u32 %v4442, %v4443
        %v4445 = vsub.s32 4294967266, %v4440
        %v4446 = vadd.s32 %v4445, 127
        %v4447 = vshll.u32 %v4446, 23
        %v4448 = vor.u32 4788187, %v4447
        %v4449 = vand.u32 2147483647, %v4448
        %v4451 = vcvt.s32.f32 %v4444
        %v4452 = vmul.f32 %v4451, %v4449
        %v4453 = vxor.u32 %v4452, 2147483648
        %v4454 = vsel %vm4333, %v4453, %v4452
        %v4455 = vsub.s32 4, %v4431
        %v4456 = vsel %vm4333, %v4455, %v4431
        %v4457 = vsel %vm4332, %v449, %v4454
        %v4458 = vsel %vm4332, 0, %v4456
        %v4459 = vmul.f32 %v4457, %v4457
        %v4460 = vmul.f32 %v4459, -0.001358992
        %v4461 = vadd.f32 %v4460, 0.041655596
        %v4462 = vmul.f32 %v4459, %v4461
        %v4463 = vadd.f32 %v4462, -0.4999988
        %v4464 = vmul.f32 %v4459, %v4463
        %v4465 = vadd.f32 1.0, %v4464
        %v4466 = vmul.f32 %v4457, %v4457
        %v4467 = vmul.f32 %v4466, -0.00019511016
        %v4468 = vadd.f32 %v4467, 0.008332121
        %v4469 = vmul.f32 %v4466, %v4468
        %v4470 = vadd.f32 %v4469, -0.16666654
        %v4471 = vmul.f32 %v4466, %v4470
        %v4472 = vadd.f32 %v4471, 1.0
        %v4473 = vmul.f32 %v4472, %v4457
        %vm4474 = vweird.f32 %v449
        %v4475 = vadd.s32 %v4458, 3
        %v4476 = vand.u32 %v4475, 3
        %vm4477 = vcmp.lt.s32.totalorder %v4476, 2
        %vm4478 = vcmp.eq.s32.totalorder %v4476, 0
        %v4479 = vxor.u32 %v4473, 2147483648
        %v4480 = vsel %vm4478, %v4465, %v4479
        %vm4481 = vcmp.eq.s32.totalorder %v4476, 2
        %v4482 = vxor.u32 %v4465, 2147483648
        %v4483 = vsel %vm4481, %v4482, %v4473
        %v4484 = vsel %vm4477, %v4480, %v4483
        %v4485 = vsel %vm4474, nan, %v4484
        %v4486 = vand.u32 2147483647, %v450
        %vm4487 = vcmp.le.f32.partialorder %v4486, 0.7853982
        %vm4488 = vcmp.lt.s32.totalorder %v450, 0
        %v4489 = vand.u32 %v450, 2139095040
        %v4490 = vshrl.u32 %v4489, 23
        %v4491 = vsub.s32 %v4490, 127
        %v4492 = vand.u32 2147483647, %v450
        %v4493 = vand.u32 %v4492, 8388607
        %v4494 = vor.u32 %v4493, 8388608
        %v4495 = vsub.s32 0, %v4494
        %v4496 = vadd.s32 %v4491, 1
        %vm4497 = vcmp.gt.s32.totalorder %v4496, 0
        %v4498 = vsel %vm4497, %v4496, 0
        %v4499 = vshrl.u32 %v4498, 5
        %v4500 = vand.u32 %v4498, 31
        %v4501 = vsub.s32 32, %v4500
        %v4502 = vshrl.u32 683565275, %v4501
        %v4503 = vshll.u32 683565275, %v4500
        %v4504 = vshrl.u32 2475754826, %v4501
        %v4505 = vor.u32 %v4503, %v4504
        %v4506 = vshll.u32 2475754826, %v4500
        %v4507 = vshrl.u32 2131351028, %v4501
        %v4508 = vor.u32 %v4506, %v4507
        %v4509 = vshll.u32 2131351028, %v4500
        %v4510 = vshrl.u32 2102212464, %v4501
        %v4511 = vor.u32 %v4509, %v4510
        %v4512 = vshll.u32 2102212464, %v4500
        %v4513 = vshrl.u32 920167782, %v4501
        %v4514 = vor.u32 %v4512, %v4513
        %v4515 = vshll.u32 920167782, %v4500
        %v4516 = vshrl.u32 1326507024, %v4501
        %v4517 = vor.u32 %v4515, %v4516
        %vm4518 = vcmp.lt.s32.totalorder %v4499, 1
        %vm4519 = vcmp.lt.s32.totalorder %v4499, 2
        %vm4520 = vcmp.lt.s32.totalorder %v4499, 3
        %vm4521 = vcmp.lt.s32.totalorder %v4499, 4
        %v4522 = vsel %vm4518, %v4502, %v4505
        %v4523 = vsel %vm4521, %v4511, 2102212464
        %v4524 = vsel %vm4520, %v4508, %v4523
        %v4525 = vsel %vm4519, %v4522, %v4524
        %v4526 = vsel %vm4518, %v4505, %v4508
        %v4527 = vsel %vm4521, %v4514, 920167782
        %v4528 = vsel %vm4520, %v4511, %v4527
        %v4529 = vsel %vm4519, %v4526, %v4528
        %v4530 = vsel %vm4518, %v4508, %v4511
        %v4531 = vsel %vm4521, %v4517, 1326507024
        %v4532 = vsel %vm4520, %v4514, %v4531
        %v4533 = vsel %vm4519, %v4530, %v4532
        %v4534 = vshll.u32 %v4494, 8
        %v4535 = vand.u32 %v4534, 65535
        %v4536 = vshrl.u32 %v4534, 16
        %v4537 = vand.u32 %v4533, 65535
        %v4538 = vshrl.u32 %v4533, 16
        %v4539 = vmul.u32 %v4535, %v4537
        %v4540 = vmul.u32 %v4535, %v4538
        %v4541 = vmul.u32 %v4536, %v4537
        %v4542 = vmul.u32 %v4536, %v4538
        %v4543 = vshll.u32 %v4540, 16
        %v4544 = vshrl.u32 %v4540, 16
        %v4545 = vshll.u32 %v4541, 16
        %v4546 = vshrl.u32 %v4541, 16
        %vm4547 = vc.u32 %v4539, %v4543
        %v4548 = vsel %vm4547, 1, 0
        %v4549 = vadd.s32 %v4539, %v4543
        %v4550 = vadd.s32 %v4542, %v4548
        %vm4551 = vc.u32 %v4549, %v4545
        %v4552 = vsel %vm4551, 1, 0
        %v4553 = vadd.s32 %v4549, %v4545
        %v4554 = vadd.s32 %v4550, %v4552
        %v4555 = vadd.s32 %v4554, %v4544
        %v4556 = vadd.s32 %v4555, %v4546
        %v4557 = vand.u32 %v4534, 65535
        %v4558 = vshrl.u32 %v4534, 16
        %v4559 = vand.u32 %v4529, 65535
        %v4560 = vshrl.u32 %v4529, 16
        %v4561 = vmul.u32 %v4557, %v4559
        %v4562 = vmul.u32 %v4557, %v4560
        %v4563 = vmul.u32 %v4558, %v4559
        %v4564 = vmul.u32 %v4558, %v4560
        %v4565 = vshll.u32 %v4562, 16
        %v4566 = vshrl.u32 %v4562, 16
        %v4567 = vshll.u32 %v4563, 16
        %v4568 = vshrl.u32 %v4563, 16
        %vm4569 = vc.u32 %v4561, %v4565
        %v4570 = vsel %vm4569, 1, 0
        %v4571 = vadd.s32 %v4561, %v4565
        %v4572 = vadd.s32 %v4564, %v4570
        %vm4573 = vc.u32 %v4571, %v4567
        %v4574 = vsel %vm4573, 1, 0
        %v4575 = vadd.s32 %v4571, %v4567
        %v4576 = vadd.s32 %v4572, %v4574
        %v4577 = vadd.s32 %v4576, %v4566
        %v4578 = vadd.s32 %v4577, %v4568
        %v4579 = vmul.u32 %v4534, %v4525
        %v4580 = vadd.s32 %v4556, %v4575
        %vm4581 = vc.u32 %v4556, %v4575
        %v4582 = vadd.s32 %v4578, 1
        %v4583 = vsel %vm4581, %v4582, %v4578
        %v4584 = vadd.s32 %v4579, %v4583
        %v4585 = vadd.s32 %v4584, 536870912
        %v4586 = vshrl.u32 %v4585, 30
        %v4587 = vshll.u32 %v4586, 30
        %v4588 = vsub.s32 %v4584, %v4587
        %vm4589 = vcmp.lt.s32.totalorder %v4588, 0
        %v4590 = vsub.s32 0, %v4588
        %v4591 = vsel %vm4589, %v4590, %v4588
        %v4592 = vclz %v4591
        %v4593 = vsub.s32 %v4592, 2
        %vm4594 = vcmp.gt.s32.totalorder 0, %v4593
        %v4595 = vsel %vm4594, 0, %v4593
        %v4596 = vsub.s32 32, %v4595
        %v4597 = vshll.u32 %v4588, %v4595
        %v4598 = vshrl.u32 %v4580, %v4596
        %v4599 = vor.u32 %v4597, %v4598
        %v4600 = vsub.s32 4294967266, %v4595
        %v4601 = vadd.s32 %v4600, 127
        %v4602 = vshll.u32 %v4601, 23
        %v4603 = vor.u32 4788187, %v4602
        %v4604 = vand.u32 2147483647, %v4603
        %v4606 = vcvt.s32.f32 %v4599
        %v4607 = vmul.f32 %v4606, %v4604
        %v4608 = vxor.u32 %v4607, 2147483648
        %v4609 = vsel %vm4488, %v4608, %v4607
        %v4610 = vsub.s32 4, %v4586
        %v4611 = vsel %vm4488, %v4610, %v4586
        %v4612 = vsel %vm4487, %v450, %v4609
        %v4613 = vsel %vm4487, 0, %v4611
        %v4614 = vmul.f32 %v4612, %v4612
        %v4615 = vmul.f32 %v4614, -0.001358992
        %v4616 = vadd.f32 %v4615, 0.041655596
        %v4617 = vmul.f32 %v4614, %v4616
        %v4618 = vadd.f32 %v4617, -0.4999988
        %v4619 = vmul.f32 %v4614, %v4618
        %v4620 = vadd.f32 1.0, %v4619
        %v4621 = vmul.f32 %v4612, %v4612
        %v4622 = vmul.f32 %v4621, -0.00019511016
        %v4623 = vadd.f32 %v4622, 0.008332121
        %v4624 = vmul.f32 %v4621, %v4623
        %v4625 = vadd.f32 %v4624, -0.16666654
        %v4626 = vmul.f32 %v4621, %v4625
        %v4627 = vadd.f32 %v4626, 1.0
        %v4628 = vmul.f32 %v4627, %v4612
        %vm4629 = vweird.f32 %v450
        %v4630 = vadd.s32 %v4613, 3
        %v4631 = vand.u32 %v4630, 3
        %vm4632 = vcmp.lt.s32.totalorder %v4631, 2
        %vm4633 = vcmp.eq.s32.totalorder %v4631, 0
        %v4634 = vxor.u32 %v4628, 2147483648
        %v4635 = vsel %vm4633, %v4620, %v4634
        %vm4636 = vcmp.eq.s32.totalorder %v4631, 2
        %v4637 = vxor.u32 %v4620, 2147483648
        %v4638 = vsel %vm4636, %v4637, %v4628
        %v4639 = vsel %vm4632, %v4635, %v4638
        %v4640 = vsel %vm4629, nan, %v4639
        %v4641 = vand.u32 2147483647, %v451
        %vm4642 = vcmp.le.f32.partialorder %v4641, 0.7853982
        %vm4643 = vcmp.lt.s32.totalorder %v451, 0
        %v4644 = vand.u32 %v451, 2139095040
        %v4645 = vshrl.u32 %v4644, 23
        %v4646 = vsub.s32 %v4645, 127
        %v4647 = vand.u32 2147483647, %v451
        %v4648 = vand.u32 %v4647, 8388607
        %v4649 = vor.u32 %v4648, 8388608
        %v4650 = vsub.s32 0, %v4649
        %v4651 = vadd.s32 %v4646, 1
        %vm4652 = vcmp.gt.s32.totalorder %v4651, 0
        %v4653 = vsel %vm4652, %v4651, 0
        %v4654 = vshrl.u32 %v4653, 5
        %v4655 = vand.u32 %v4653, 31
        %v4656 = vsub.s32 32, %v4655
        %v4657 = vshrl.u32 683565275, %v4656
        %v4658 = vshll.u32 683565275, %v4655
        %v4659 = vshrl.u32 2475754826, %v4656
        %v4660 = vor.u32 %v4658, %v4659
        %v4661 = vshll.u32 2475754826, %v4655
        %v4662 = vshrl.u32 2131351028, %v4656
        %v4663 = vor.u32 %v4661, %v4662
        %v4664 = vshll.u32 2131351028, %v4655
        %v4665 = vshrl.u32 2102212464, %v4656
        %v4666 = vor.u32 %v4664, %v4665
        %v4667 = vshll.u32 2102212464, %v4655
        %v4668 = vshrl.u32 920167782, %v4656
        %v4669 = vor.u32 %v4667, %v4668
        %v4670 = vshll.u32 920167782, %v4655
        %v4671 = vshrl.u32 1326507024, %v4656
        %v4672 = vor.u32 %v4670, %v4671
        %vm4673 = vcmp.lt.s32.totalorder %v4654, 1
        %vm4674 = vcmp.lt.s32.totalorder %v4654, 2
        %vm4675 = vcmp.lt.s32.totalorder %v4654, 3
        %vm4676 = vcmp.lt.s32.totalorder %v4654, 4
        %v4677 = vsel %vm4673, %v4657, %v4660
        %v4678 = vsel %vm4676, %v4666, 2102212464
        %v4679 = vsel %vm4675, %v4663, %v4678
        %v4680 = vsel %vm4674, %v4677, %v4679
        %v4681 = vsel %vm4673, %v4660, %v4663
        %v4682 = vsel %vm4676, %v4669, 920167782
        %v4683 = vsel %vm4675, %v4666, %v4682
        %v4684 = vsel %vm4674, %v4681, %v4683
        %v4685 = vsel %vm4673, %v4663, %v4666
        %v4686 = vsel %vm4676, %v4672, 1326507024
        %v4687 = vsel %vm4675, %v4669, %v4686
        %v4688 = vsel %vm4674, %v4685, %v4687
        %v4689 = vshll.u32 %v4649, 8
        %v4690 = vand.u32 %v4689, 65535
        %v4691 = vshrl.u32 %v4689, 16
        %v4692 = vand.u32 %v4688, 65535
        %v4693 = vshrl.u32 %v4688, 16
        %v4694 = vmul.u32 %v4690, %v4692
        %v4695 = vmul.u32 %v4690, %v4693
        %v4696 = vmul.u32 %v4691, %v4692
        %v4697 = vmul.u32 %v4691, %v4693
        %v4698 = vshll.u32 %v4695, 16
        %v4699 = vshrl.u32 %v4695, 16
        %v4700 = vshll.u32 %v4696, 16
        %v4701 = vshrl.u32 %v4696, 16
        %vm4702 = vc.u32 %v4694, %v4698
        %v4703 = vsel %vm4702, 1, 0
        %v4704 = vadd.s32 %v4694, %v4698
        %v4705 = vadd.s32 %v4697, %v4703
        %vm4706 = vc.u32 %v4704, %v4700
        %v4707 = vsel %vm4706, 1, 0
        %v4708 = vadd.s32 %v4704, %v4700
        %v4709 = vadd.s32 %v4705, %v4707
        %v4710 = vadd.s32 %v4709, %v4699
        %v4711 = vadd.s32 %v4710, %v4701
        %v4712 = vand.u32 %v4689, 65535
        %v4713 = vshrl.u32 %v4689, 16
        %v4714 = vand.u32 %v4684, 65535
        %v4715 = vshrl.u32 %v4684, 16
        %v4716 = vmul.u32 %v4712, %v4714
        %v4717 = vmul.u32 %v4712, %v4715
        %v4718 = vmul.u32 %v4713, %v4714
        %v4719 = vmul.u32 %v4713, %v4715
        %v4720 = vshll.u32 %v4717, 16
        %v4721 = vshrl.u32 %v4717, 16
        %v4722 = vshll.u32 %v4718, 16
        %v4723 = vshrl.u32 %v4718, 16
        %vm4724 = vc.u32 %v4716, %v4720
        %v4725 = vsel %vm4724, 1, 0
        %v4726 = vadd.s32 %v4716, %v4720
        %v4727 = vadd.s32 %v4719, %v4725
        %vm4728 = vc.u32 %v4726, %v4722
        %v4729 = vsel %vm4728, 1, 0
        %v4730 = vadd.s32 %v4726, %v4722
        %v4731 = vadd.s32 %v4727, %v4729
        %v4732 = vadd.s32 %v4731, %v4721
        %v4733 = vadd.s32 %v4732, %v4723
        %v4734 = vmul.u32 %v4689, %v4680
        %v4735 = vadd.s32 %v4711, %v4730
        %vm4736 = vc.u32 %v4711, %v4730
        %v4737 = vadd.s32 %v4733, 1
        %v4738 = vsel %vm4736, %v4737, %v4733
        %v4739 = vadd.s32 %v4734, %v4738
        %v4740 = vadd.s32 %v4739, 536870912
        %v4741 = vshrl.u32 %v4740, 30
        %v4742 = vshll.u32 %v4741, 30
        %v4743 = vsub.s32 %v4739, %v4742
        %vm4744 = vcmp.lt.s32.totalorder %v4743, 0
        %v4745 = vsub.s32 0, %v4743
        %v4746 = vsel %vm4744, %v4745, %v4743
        %v4747 = vclz %v4746
        %v4748 = vsub.s32 %v4747, 2
        %vm4749 = vcmp.gt.s32.totalorder 0, %v4748
        %v4750 = vsel %vm4749, 0, %v4748
        %v4751 = vsub.s32 32, %v4750
        %v4752 = vshll.u32 %v4743, %v4750
        %v4753 = vshrl.u32 %v4735, %v4751
        %v4754 = vor.u32 %v4752, %v4753
        %v4755 = vsub.s32 4294967266, %v4750
        %v4756 = vadd.s32 %v4755, 127
        %v4757 = vshll.u32 %v4756, 23
        %v4758 = vor.u32 4788187, %v4757
        %v4759 = vand.u32 2147483647, %v4758
        %v4761 = vcvt.s32.f32 %v4754
        %v4762 = vmul.f32 %v4761, %v4759
        %v4763 = vxor.u32 %v4762, 2147483648
        %v4764 = vsel %vm4643, %v4763, %v4762
        %v4765 = vsub.s32 4, %v4741
        %v4766 = vsel %vm4643, %v4765, %v4741
        %v4767 = vsel %vm4642, %v451, %v4764
        %v4768 = vsel %vm4642, 0, %v4766
        %v4769 = vmul.f32 %v4767, %v4767
        %v4770 = vmul.f32 %v4769, -0.001358992
        %v4771 = vadd.f32 %v4770, 0.041655596
        %v4772 = vmul.f32 %v4769, %v4771
        %v4773 = vadd.f32 %v4772, -0.4999988
        %v4774 = vmul.f32 %v4769, %v4773
        %v4775 = vadd.f32 1.0, %v4774
        %v4776 = vmul.f32 %v4767, %v4767
        %v4777 = vmul.f32 %v4776, -0.00019511016
        %v4778 = vadd.f32 %v4777, 0.008332121
        %v4779 = vmul.f32 %v4776, %v4778
        %v4780 = vadd.f32 %v4779, -0.16666654
        %v4781 = vmul.f32 %v4776, %v4780
        %v4782 = vadd.f32 %v4781, 1.0
        %v4783 = vmul.f32 %v4782, %v4767
        %vm4784 = vweird.f32 %v451
        %v4785 = vadd.s32 %v4768, 3
        %v4786 = vand.u32 %v4785, 3
        %vm4787 = vcmp.lt.s32.totalorder %v4786, 2
        %vm4788 = vcmp.eq.s32.totalorder %v4786, 0
        %v4789 = vxor.u32 %v4783, 2147483648
        %v4790 = vsel %vm4788, %v4775, %v4789
        %vm4791 = vcmp.eq.s32.totalorder %v4786, 2
        %v4792 = vxor.u32 %v4775, 2147483648
        %v4793 = vsel %vm4791, %v4792, %v4783
        %v4794 = vsel %vm4787, %v4790, %v4793
        %v4795 = vsel %vm4784, nan, %v4794
        %v4796 = vand.u32 2147483647, %v452
        %vm4797 = vcmp.le.f32.partialorder %v4796, 0.7853982
        %vm4798 = vcmp.lt.s32.totalorder %v452, 0
        %v4799 = vand.u32 %v452, 2139095040
        %v4800 = vshrl.u32 %v4799, 23
        %v4801 = vsub.s32 %v4800, 127
        %v4802 = vand.u32 2147483647, %v452
        %v4803 = vand.u32 %v4802, 8388607
        %v4804 = vor.u32 %v4803, 8388608
        %v4805 = vsub.s32 0, %v4804
        %v4806 = vadd.s32 %v4801, 1
        %vm4807 = vcmp.gt.s32.totalorder %v4806, 0
        %v4808 = vsel %vm4807, %v4806, 0
        %v4809 = vshrl.u32 %v4808, 5
        %v4810 = vand.u32 %v4808, 31
        %v4811 = vsub.s32 32, %v4810
        %v4812 = vshrl.u32 683565275, %v4811
        %v4813 = vshll.u32 683565275, %v4810
        %v4814 = vshrl.u32 2475754826, %v4811
        %v4815 = vor.u32 %v4813, %v4814
        %v4816 = vshll.u32 2475754826, %v4810
        %v4817 = vshrl.u32 2131351028, %v4811
        %v4818 = vor.u32 %v4816, %v4817
        %v4819 = vshll.u32 2131351028, %v4810
        %v4820 = vshrl.u32 2102212464, %v4811
        %v4821 = vor.u32 %v4819, %v4820
        %v4822 = vshll.u32 2102212464, %v4810
        %v4823 = vshrl.u32 920167782, %v4811
        %v4824 = vor.u32 %v4822, %v4823
        %v4825 = vshll.u32 920167782, %v4810
        %v4826 = vshrl.u32 1326507024, %v4811
        %v4827 = vor.u32 %v4825, %v4826
        %vm4828 = vcmp.lt.s32.totalorder %v4809, 1
        %vm4829 = vcmp.lt.s32.totalorder %v4809, 2
        %vm4830 = vcmp.lt.s32.totalorder %v4809, 3
        %vm4831 = vcmp.lt.s32.totalorder %v4809, 4
        %v4832 = vsel %vm4828, %v4812, %v4815
        %v4833 = vsel %vm4831, %v4821, 2102212464
        %v4834 = vsel %vm4830, %v4818, %v4833
        %v4835 = vsel %vm4829, %v4832, %v4834
        %v4836 = vsel %vm4828, %v4815, %v4818
        %v4837 = vsel %vm4831, %v4824, 920167782
        %v4838 = vsel %vm4830, %v4821, %v4837
        %v4839 = vsel %vm4829, %v4836, %v4838
        %v4840 = vsel %vm4828, %v4818, %v4821
        %v4841 = vsel %vm4831, %v4827, 1326507024
        %v4842 = vsel %vm4830, %v4824, %v4841
        %v4843 = vsel %vm4829, %v4840, %v4842
        %v4844 = vshll.u32 %v4804, 8
        %v4845 = vand.u32 %v4844, 65535
        %v4846 = vshrl.u32 %v4844, 16
        %v4847 = vand.u32 %v4843, 65535
        %v4848 = vshrl.u32 %v4843, 16
        %v4849 = vmul.u32 %v4845, %v4847
        %v4850 = vmul.u32 %v4845, %v4848
        %v4851 = vmul.u32 %v4846, %v4847
        %v4852 = vmul.u32 %v4846, %v4848
        %v4853 = vshll.u32 %v4850, 16
        %v4854 = vshrl.u32 %v4850, 16
        %v4855 = vshll.u32 %v4851, 16
        %v4856 = vshrl.u32 %v4851, 16
        %vm4857 = vc.u32 %v4849, %v4853
        %v4858 = vsel %vm4857, 1, 0
        %v4859 = vadd.s32 %v4849, %v4853
        %v4860 = vadd.s32 %v4852, %v4858
        %vm4861 = vc.u32 %v4859, %v4855
        %v4862 = vsel %vm4861, 1, 0
        %v4863 = vadd.s32 %v4859, %v4855
        %v4864 = vadd.s32 %v4860, %v4862
        %v4865 = vadd.s32 %v4864, %v4854
        %v4866 = vadd.s32 %v4865, %v4856
        %v4867 = vand.u32 %v4844, 65535
        %v4868 = vshrl.u32 %v4844, 16
        %v4869 = vand.u32 %v4839, 65535
        %v4870 = vshrl.u32 %v4839, 16
        %v4871 = vmul.u32 %v4867, %v4869
        %v4872 = vmul.u32 %v4867, %v4870
        %v4873 = vmul.u32 %v4868, %v4869
        %v4874 = vmul.u32 %v4868, %v4870
        %v4875 = vshll.u32 %v4872, 16
        %v4876 = vshrl.u32 %v4872, 16
        %v4877 = vshll.u32 %v4873, 16
        %v4878 = vshrl.u32 %v4873, 16
        %vm4879 = vc.u32 %v4871, %v4875
        %v4880 = vsel %vm4879, 1, 0
        %v4881 = vadd.s32 %v4871, %v4875
        %v4882 = vadd.s32 %v4874, %v4880
        %vm4883 = vc.u32 %v4881, %v4877
        %v4884 = vsel %vm4883, 1, 0
        %v4885 = vadd.s32 %v4881, %v4877
        %v4886 = vadd.s32 %v4882, %v4884
        %v4887 = vadd.s32 %v4886, %v4876
        %v4888 = vadd.s32 %v4887, %v4878
        %v4889 = vmul.u32 %v4844, %v4835
        %v4890 = vadd.s32 %v4866, %v4885
        %vm4891 = vc.u32 %v4866, %v4885
        %v4892 = vadd.s32 %v4888, 1
        %v4893 = vsel %vm4891, %v4892, %v4888
        %v4894 = vadd.s32 %v4889, %v4893
        %v4895 = vadd.s32 %v4894, 536870912
        %v4896 = vshrl.u32 %v4895, 30
        %v4897 = vshll.u32 %v4896, 30
        %v4898 = vsub.s32 %v4894, %v4897
        %vm4899 = vcmp.lt.s32.totalorder %v4898, 0
        %v4900 = vsub.s32 0, %v4898
        %v4901 = vsel %vm4899, %v4900, %v4898
        %v4902 = vclz %v4901
        %v4903 = vsub.s32 %v4902, 2
        %vm4904 = vcmp.gt.s32.totalorder 0, %v4903
        %v4905 = vsel %vm4904, 0, %v4903
        %v4906 = vsub.s32 32, %v4905
        %v4907 = vshll.u32 %v4898, %v4905
        %v4908 = vshrl.u32 %v4890, %v4906
        %v4909 = vor.u32 %v4907, %v4908
        %v4910 = vsub.s32 4294967266, %v4905
        %v4911 = vadd.s32 %v4910, 127
        %v4912 = vshll.u32 %v4911, 23
        %v4913 = vor.u32 4788187, %v4912
        %v4914 = vand.u32 2147483647, %v4913
        %v4916 = vcvt.s32.f32 %v4909
        %v4917 = vmul.f32 %v4916, %v4914
        %v4918 = vxor.u32 %v4917, 2147483648
        %v4919 = vsel %vm4798, %v4918, %v4917
        %v4920 = vsub.s32 4, %v4896
        %v4921 = vsel %vm4798, %v4920, %v4896
        %v4922 = vsel %vm4797, %v452, %v4919
        %v4923 = vsel %vm4797, 0, %v4921
        %v4924 = vmul.f32 %v4922, %v4922
        %v4925 = vmul.f32 %v4924, -0.001358992
        %v4926 = vadd.f32 %v4925, 0.041655596
        %v4927 = vmul.f32 %v4924, %v4926
        %v4928 = vadd.f32 %v4927, -0.4999988
        %v4929 = vmul.f32 %v4924, %v4928
        %v4930 = vadd.f32 1.0, %v4929
        %v4931 = vmul.f32 %v4922, %v4922
        %v4932 = vmul.f32 %v4931, -0.00019511016
        %v4933 = vadd.f32 %v4932, 0.008332121
        %v4934 = vmul.f32 %v4931, %v4933
        %v4935 = vadd.f32 %v4934, -0.16666654
        %v4936 = vmul.f32 %v4931, %v4935
        %v4937 = vadd.f32 %v4936, 1.0
        %v4938 = vmul.f32 %v4937, %v4922
        %vm4939 = vweird.f32 %v452
        %v4940 = vadd.s32 %v4923, 3
        %v4941 = vand.u32 %v4940, 3
        %vm4942 = vcmp.lt.s32.totalorder %v4941, 2
        %vm4943 = vcmp.eq.s32.totalorder %v4941, 0
        %v4944 = vxor.u32 %v4938, 2147483648
        %v4945 = vsel %vm4943, %v4930, %v4944
        %vm4946 = vcmp.eq.s32.totalorder %v4941, 2
        %v4947 = vxor.u32 %v4930, 2147483648
        %v4948 = vsel %vm4946, %v4947, %v4938
        %v4949 = vsel %vm4942, %v4945, %v4948
        %v4950 = vsel %vm4939, nan, %v4949
        %v4951 = vand.u32 2147483647, %v453
        %vm4952 = vcmp.le.f32.partialorder %v4951, 0.7853982
        %vm4953 = vcmp.lt.s32.totalorder %v453, 0
        %v4954 = vand.u32 %v453, 2139095040
        %v4955 = vshrl.u32 %v4954, 23
        %v4956 = vsub.s32 %v4955, 127
        %v4957 = vand.u32 2147483647, %v453
        %v4958 = vand.u32 %v4957, 8388607
        %v4959 = vor.u32 %v4958, 8388608
        %v4960 = vsub.s32 0, %v4959
        %v4961 = vadd.s32 %v4956, 1
        %vm4962 = vcmp.gt.s32.totalorder %v4961, 0
        %v4963 = vsel %vm4962, %v4961, 0
        %v4964 = vshrl.u32 %v4963, 5
        %v4965 = vand.u32 %v4963, 31
        %v4966 = vsub.s32 32, %v4965
        %v4967 = vshrl.u32 683565275, %v4966
        %v4968 = vshll.u32 683565275, %v4965
        %v4969 = vshrl.u32 2475754826, %v4966
        %v4970 = vor.u32 %v4968, %v4969
        %v4971 = vshll.u32 2475754826, %v4965
        %v4972 = vshrl.u32 2131351028, %v4966
        %v4973 = vor.u32 %v4971, %v4972
        %v4974 = vshll.u32 2131351028, %v4965
        %v4975 = vshrl.u32 2102212464, %v4966
        %v4976 = vor.u32 %v4974, %v4975
        %v4977 = vshll.u32 2102212464, %v4965
        %v4978 = vshrl.u32 920167782, %v4966
        %v4979 = vor.u32 %v4977, %v4978
        %v4980 = vshll.u32 920167782, %v4965
        %v4981 = vshrl.u32 1326507024, %v4966
        %v4982 = vor.u32 %v4980, %v4981
        %vm4983 = vcmp.lt.s32.totalorder %v4964, 1
        %vm4984 = vcmp.lt.s32.totalorder %v4964, 2
        %vm4985 = vcmp.lt.s32.totalorder %v4964, 3
        %vm4986 = vcmp.lt.s32.totalorder %v4964, 4
        %v4987 = vsel %vm4983, %v4967, %v4970
        %v4988 = vsel %vm4986, %v4976, 2102212464
        %v4989 = vsel %vm4985, %v4973, %v4988
        %v4990 = vsel %vm4984, %v4987, %v4989
        %v4991 = vsel %vm4983, %v4970, %v4973
        %v4992 = vsel %vm4986, %v4979, 920167782
        %v4993 = vsel %vm4985, %v4976, %v4992
        %v4994 = vsel %vm4984, %v4991, %v4993
        %v4995 = vsel %vm4983, %v4973, %v4976
        %v4996 = vsel %vm4986, %v4982, 1326507024
        %v4997 = vsel %vm4985, %v4979, %v4996
        %v4998 = vsel %vm4984, %v4995, %v4997
        %v4999 = vshll.u32 %v4959, 8
        %v5000 = vand.u32 %v4999, 65535
        %v5001 = vshrl.u32 %v4999, 16
        %v5002 = vand.u32 %v4998, 65535
        %v5003 = vshrl.u32 %v4998, 16
        %v5004 = vmul.u32 %v5000, %v5002
        %v5005 = vmul.u32 %v5000, %v5003
        %v5006 = vmul.u32 %v5001, %v5002
        %v5007 = vmul.u32 %v5001, %v5003
        %v5008 = vshll.u32 %v5005, 16
        %v5009 = vshrl.u32 %v5005, 16
        %v5010 = vshll.u32 %v5006, 16
        %v5011 = vshrl.u32 %v5006, 16
        %vm5012 = vc.u32 %v5004, %v5008
        %v5013 = vsel %vm5012, 1, 0
        %v5014 = vadd.s32 %v5004, %v5008
        %v5015 = vadd.s32 %v5007, %v5013
        %vm5016 = vc.u32 %v5014, %v5010
        %v5017 = vsel %vm5016, 1, 0
        %v5018 = vadd.s32 %v5014, %v5010
        %v5019 = vadd.s32 %v5015, %v5017
        %v5020 = vadd.s32 %v5019, %v5009
        %v5021 = vadd.s32 %v5020, %v5011
        %v5022 = vand.u32 %v4999, 65535
        %v5023 = vshrl.u32 %v4999, 16
        %v5024 = vand.u32 %v4994, 65535
        %v5025 = vshrl.u32 %v4994, 16
        %v5026 = vmul.u32 %v5022, %v5024
        %v5027 = vmul.u32 %v5022, %v5025
        %v5028 = vmul.u32 %v5023, %v5024
        %v5029 = vmul.u32 %v5023, %v5025
        %v5030 = vshll.u32 %v5027, 16
        %v5031 = vshrl.u32 %v5027, 16
        %v5032 = vshll.u32 %v5028, 16
        %v5033 = vshrl.u32 %v5028, 16
        %vm5034 = vc.u32 %v5026, %v5030
        %v5035 = vsel %vm5034, 1, 0
        %v5036 = vadd.s32 %v5026, %v5030
        %v5037 = vadd.s32 %v5029, %v5035
        %vm5038 = vc.u32 %v5036, %v5032
        %v5039 = vsel %vm5038, 1, 0
        %v5040 = vadd.s32 %v5036, %v5032
        %v5041 = vadd.s32 %v5037, %v5039
        %v5042 = vadd.s32 %v5041, %v5031
        %v5043 = vadd.s32 %v5042, %v5033
        %v5044 = vmul.u32 %v4999, %v4990
        %v5045 = vadd.s32 %v5021, %v5040
        %vm5046 = vc.u32 %v5021, %v5040
        %v5047 = vadd.s32 %v5043, 1
        %v5048 = vsel %vm5046, %v5047, %v5043
        %v5049 = vadd.s32 %v5044, %v5048
        %v5050 = vadd.s32 %v5049, 536870912
        %v5051 = vshrl.u32 %v5050, 30
        %v5052 = vshll.u32 %v5051, 30
        %v5053 = vsub.s32 %v5049, %v5052
        %vm5054 = vcmp.lt.s32.totalorder %v5053, 0
        %v5055 = vsub.s32 0, %v5053
        %v5056 = vsel %vm5054, %v5055, %v5053
        %v5057 = vclz %v5056
        %v5058 = vsub.s32 %v5057, 2
        %vm5059 = vcmp.gt.s32.totalorder 0, %v5058
        %v5060 = vsel %vm5059, 0, %v5058
        %v5061 = vsub.s32 32, %v5060
        %v5062 = vshll.u32 %v5053, %v5060
        %v5063 = vshrl.u32 %v5045, %v5061
        %v5064 = vor.u32 %v5062, %v5063
        %v5065 = vsub.s32 4294967266, %v5060
        %v5066 = vadd.s32 %v5065, 127
        %v5067 = vshll.u32 %v5066, 23
        %v5068 = vor.u32 4788187, %v5067
        %v5069 = vand.u32 2147483647, %v5068
        %v5071 = vcvt.s32.f32 %v5064
        %v5072 = vmul.f32 %v5071, %v5069
        %v5073 = vxor.u32 %v5072, 2147483648
        %v5074 = vsel %vm4953, %v5073, %v5072
        %v5075 = vsub.s32 4, %v5051
        %v5076 = vsel %vm4953, %v5075, %v5051
        %v5077 = vsel %vm4952, %v453, %v5074
        %v5078 = vsel %vm4952, 0, %v5076
        %v5079 = vmul.f32 %v5077, %v5077
        %v5080 = vmul.f32 %v5079, -0.001358992
        %v5081 = vadd.f32 %v5080, 0.041655596
        %v5082 = vmul.f32 %v5079, %v5081
        %v5083 = vadd.f32 %v5082, -0.4999988
        %v5084 = vmul.f32 %v5079, %v5083
        %v5085 = vadd.f32 1.0, %v5084
        %v5086 = vmul.f32 %v5077, %v5077
        %v5087 = vmul.f32 %v5086, -0.00019511016
        %v5088 = vadd.f32 %v5087, 0.008332121
        %v5089 = vmul.f32 %v5086, %v5088
        %v5090 = vadd.f32 %v5089, -0.16666654
        %v5091 = vmul.f32 %v5086, %v5090
        %v5092 = vadd.f32 %v5091, 1.0
        %v5093 = vmul.f32 %v5092, %v5077
        %vm5094 = vweird.f32 %v453
        %v5095 = vadd.s32 %v5078, 3
        %v5096 = vand.u32 %v5095, 3
        %vm5097 = vcmp.lt.s32.totalorder %v5096, 2
        %vm5098 = vcmp.eq.s32.totalorder %v5096, 0
        %v5099 = vxor.u32 %v5093, 2147483648
        %v5100 = vsel %vm5098, %v5085, %v5099
        %vm5101 = vcmp.eq.s32.totalorder %v5096, 2
        %v5102 = vxor.u32 %v5085, 2147483648
        %v5103 = vsel %vm5101, %v5102, %v5093
        %v5104 = vsel %vm5097, %v5100, %v5103
        %v5105 = vsel %vm5094, nan, %v5104
        %v5106 = vand.u32 2147483647, %v454
        %vm5107 = vcmp.le.f32.partialorder %v5106, 0.7853982
        %vm5108 = vcmp.lt.s32.totalorder %v454, 0
        %v5109 = vand.u32 %v454, 2139095040
        %v5110 = vshrl.u32 %v5109, 23
        %v5111 = vsub.s32 %v5110, 127
        %v5112 = vand.u32 2147483647, %v454
        %v5113 = vand.u32 %v5112, 8388607
        %v5114 = vor.u32 %v5113, 8388608
        %v5115 = vsub.s32 0, %v5114
        %v5116 = vadd.s32 %v5111, 1
        %vm5117 = vcmp.gt.s32.totalorder %v5116, 0
        %v5118 = vsel %vm5117, %v5116, 0
        %v5119 = vshrl.u32 %v5118, 5
        %v5120 = vand.u32 %v5118, 31
        %v5121 = vsub.s32 32, %v5120
        %v5122 = vshrl.u32 683565275, %v5121
        %v5123 = vshll.u32 683565275, %v5120
        %v5124 = vshrl.u32 2475754826, %v5121
        %v5125 = vor.u32 %v5123, %v5124
        %v5126 = vshll.u32 2475754826, %v5120
        %v5127 = vshrl.u32 2131351028, %v5121
        %v5128 = vor.u32 %v5126, %v5127
        %v5129 = vshll.u32 2131351028, %v5120
        %v5130 = vshrl.u32 2102212464, %v5121
        %v5131 = vor.u32 %v5129, %v5130
        %v5132 = vshll.u32 2102212464, %v5120
        %v5133 = vshrl.u32 920167782, %v5121
        %v5134 = vor.u32 %v5132, %v5133
        %v5135 = vshll.u32 920167782, %v5120
        %v5136 = vshrl.u32 1326507024, %v5121
        %v5137 = vor.u32 %v5135, %v5136
        %vm5138 = vcmp.lt.s32.totalorder %v5119, 1
        %vm5139 = vcmp.lt.s32.totalorder %v5119, 2
        %vm5140 = vcmp.lt.s32.totalorder %v5119, 3
        %vm5141 = vcmp.lt.s32.totalorder %v5119, 4
        %v5142 = vsel %vm5138, %v5122, %v5125
        %v5143 = vsel %vm5141, %v5131, 2102212464
        %v5144 = vsel %vm5140, %v5128, %v5143
        %v5145 = vsel %vm5139, %v5142, %v5144
        %v5146 = vsel %vm5138, %v5125, %v5128
        %v5147 = vsel %vm5141, %v5134, 920167782
        %v5148 = vsel %vm5140, %v5131, %v5147
        %v5149 = vsel %vm5139, %v5146, %v5148
        %v5150 = vsel %vm5138, %v5128, %v5131
        %v5151 = vsel %vm5141, %v5137, 1326507024
        %v5152 = vsel %vm5140, %v5134, %v5151
        %v5153 = vsel %vm5139, %v5150, %v5152
        %v5154 = vshll.u32 %v5114, 8
        %v5155 = vand.u32 %v5154, 65535
        %v5156 = vshrl.u32 %v5154, 16
        %v5157 = vand.u32 %v5153, 65535
        %v5158 = vshrl.u32 %v5153, 16
        %v5159 = vmul.u32 %v5155, %v5157
        %v5160 = vmul.u32 %v5155, %v5158
        %v5161 = vmul.u32 %v5156, %v5157
        %v5162 = vmul.u32 %v5156, %v5158
        %v5163 = vshll.u32 %v5160, 16
        %v5164 = vshrl.u32 %v5160, 16
        %v5165 = vshll.u32 %v5161, 16
        %v5166 = vshrl.u32 %v5161, 16
        %vm5167 = vc.u32 %v5159, %v5163
        %v5168 = vsel %vm5167, 1, 0
        %v5169 = vadd.s32 %v5159, %v5163
        %v5170 = vadd.s32 %v5162, %v5168
        %vm5171 = vc.u32 %v5169, %v5165
        %v5172 = vsel %vm5171, 1, 0
        %v5173 = vadd.s32 %v5169, %v5165
        %v5174 = vadd.s32 %v5170, %v5172
        %v5175 = vadd.s32 %v5174, %v5164
        %v5176 = vadd.s32 %v5175, %v5166
        %v5177 = vand.u32 %v5154, 65535
        %v5178 = vshrl.u32 %v5154, 16
        %v5179 = vand.u32 %v5149, 65535
        %v5180 = vshrl.u32 %v5149, 16
        %v5181 = vmul.u32 %v5177, %v5179
        %v5182 = vmul.u32 %v5177, %v5180
        %v5183 = vmul.u32 %v5178, %v5179
        %v5184 = vmul.u32 %v5178, %v5180
        %v5185 = vshll.u32 %v5182, 16
        %v5186 = vshrl.u32 %v5182, 16
        %v5187 = vshll.u32 %v5183, 16
        %v5188 = vshrl.u32 %v5183, 16
        %vm5189 = vc.u32 %v5181, %v5185
        %v5190 = vsel %vm5189, 1, 0
        %v5191 = vadd.s32 %v5181, %v5185
        %v5192 = vadd.s32 %v5184, %v5190
        %vm5193 = vc.u32 %v5191, %v5187
        %v5194 = vsel %vm5193, 1, 0
        %v5195 = vadd.s32 %v5191, %v5187
        %v5196 = vadd.s32 %v5192, %v5194
        %v5197 = vadd.s32 %v5196, %v5186
        %v5198 = vadd.s32 %v5197, %v5188
        %v5199 = vmul.u32 %v5154, %v5145
        %v5200 = vadd.s32 %v5176, %v5195
        %vm5201 = vc.u32 %v5176, %v5195
        %v5202 = vadd.s32 %v5198, 1
        %v5203 = vsel %vm5201, %v5202, %v5198
        %v5204 = vadd.s32 %v5199, %v5203
        %v5205 = vadd.s32 %v5204, 536870912
        %v5206 = vshrl.u32 %v5205, 30
        %v5207 = vshll.u32 %v5206, 30
        %v5208 = vsub.s32 %v5204, %v5207
        %vm5209 = vcmp.lt.s32.totalorder %v5208, 0
        %v5210 = vsub.s32 0, %v5208
        %v5211 = vsel %vm5209, %v5210, %v5208
        %v5212 = vclz %v5211
        %v5213 = vsub.s32 %v5212, 2
        %vm5214 = vcmp.gt.s32.totalorder 0, %v5213
        %v5215 = vsel %vm5214, 0, %v5213
        %v5216 = vsub.s32 32, %v5215
        %v5217 = vshll.u32 %v5208, %v5215
        %v5218 = vshrl.u32 %v5200, %v5216
        %v5219 = vor.u32 %v5217, %v5218
        %v5220 = vsub.s32 4294967266, %v5215
        %v5221 = vadd.s32 %v5220, 127
        %v5222 = vshll.u32 %v5221, 23
        %v5223 = vor.u32 4788187, %v5222
        %v5224 = vand.u32 2147483647, %v5223
        %v5226 = vcvt.s32.f32 %v5219
        %v5227 = vmul.f32 %v5226, %v5224
        %v5228 = vxor.u32 %v5227, 2147483648
        %v5229 = vsel %vm5108, %v5228, %v5227
        %v5230 = vsub.s32 4, %v5206
        %v5231 = vsel %vm5108, %v5230, %v5206
        %v5232 = vsel %vm5107, %v454, %v5229
        %v5233 = vsel %vm5107, 0, %v5231
        %v5234 = vmul.f32 %v5232, %v5232
        %v5235 = vmul.f32 %v5234, -0.001358992
        %v5236 = vadd.f32 %v5235, 0.041655596
        %v5237 = vmul.f32 %v5234, %v5236
        %v5238 = vadd.f32 %v5237, -0.4999988
        %v5239 = vmul.f32 %v5234, %v5238
        %v5240 = vadd.f32 1.0, %v5239
        %v5241 = vmul.f32 %v5232, %v5232
        %v5242 = vmul.f32 %v5241, -0.00019511016
        %v5243 = vadd.f32 %v5242, 0.008332121
        %v5244 = vmul.f32 %v5241, %v5243
        %v5245 = vadd.f32 %v5244, -0.16666654
        %v5246 = vmul.f32 %v5241, %v5245
        %v5247 = vadd.f32 %v5246, 1.0
        %v5248 = vmul.f32 %v5247, %v5232
        %vm5249 = vweird.f32 %v454
        %v5250 = vadd.s32 %v5233, 3
        %v5251 = vand.u32 %v5250, 3
        %vm5252 = vcmp.lt.s32.totalorder %v5251, 2
        %vm5253 = vcmp.eq.s32.totalorder %v5251, 0
        %v5254 = vxor.u32 %v5248, 2147483648
        %v5255 = vsel %vm5253, %v5240, %v5254
        %vm5256 = vcmp.eq.s32.totalorder %v5251, 2
        %v5257 = vxor.u32 %v5240, 2147483648
        %v5258 = vsel %vm5256, %v5257, %v5248
        %v5259 = vsel %vm5252, %v5255, %v5258
        %v5260 = vsel %vm5249, nan, %v5259
        %v5261 = vand.u32 2147483647, %v455
        %vm5262 = vcmp.le.f32.partialorder %v5261, 0.7853982
        %vm5263 = vcmp.lt.s32.totalorder %v455, 0
        %v5264 = vand.u32 %v455, 2139095040
        %v5265 = vshrl.u32 %v5264, 23
        %v5266 = vsub.s32 %v5265, 127
        %v5267 = vand.u32 2147483647, %v455
        %v5268 = vand.u32 %v5267, 8388607
        %v5269 = vor.u32 %v5268, 8388608
        %v5270 = vsub.s32 0, %v5269
        %v5271 = vadd.s32 %v5266, 1
        %vm5272 = vcmp.gt.s32.totalorder %v5271, 0
        %v5273 = vsel %vm5272, %v5271, 0
        %v5274 = vshrl.u32 %v5273, 5
        %v5275 = vand.u32 %v5273, 31
        %v5276 = vsub.s32 32, %v5275
        %v5277 = vshrl.u32 683565275, %v5276
        %v5278 = vshll.u32 683565275, %v5275
        %v5279 = vshrl.u32 2475754826, %v5276
        %v5280 = vor.u32 %v5278, %v5279
        %v5281 = vshll.u32 2475754826, %v5275
        %v5282 = vshrl.u32 2131351028, %v5276
        %v5283 = vor.u32 %v5281, %v5282
        %v5284 = vshll.u32 2131351028, %v5275
        %v5285 = vshrl.u32 2102212464, %v5276
        %v5286 = vor.u32 %v5284, %v5285
        %v5287 = vshll.u32 2102212464, %v5275
        %v5288 = vshrl.u32 920167782, %v5276
        %v5289 = vor.u32 %v5287, %v5288
        %v5290 = vshll.u32 920167782, %v5275
        %v5291 = vshrl.u32 1326507024, %v5276
        %v5292 = vor.u32 %v5290, %v5291
        %vm5293 = vcmp.lt.s32.totalorder %v5274, 1
        %vm5294 = vcmp.lt.s32.totalorder %v5274, 2
        %vm5295 = vcmp.lt.s32.totalorder %v5274, 3
        %vm5296 = vcmp.lt.s32.totalorder %v5274, 4
        %v5297 = vsel %vm5293, %v5277, %v5280
        %v5298 = vsel %vm5296, %v5286, 2102212464
        %v5299 = vsel %vm5295, %v5283, %v5298
        %v5300 = vsel %vm5294, %v5297, %v5299
        %v5301 = vsel %vm5293, %v5280, %v5283
        %v5302 = vsel %vm5296, %v5289, 920167782
        %v5303 = vsel %vm5295, %v5286, %v5302
        %v5304 = vsel %vm5294, %v5301, %v5303
        %v5305 = vsel %vm5293, %v5283, %v5286
        %v5306 = vsel %vm5296, %v5292, 1326507024
        %v5307 = vsel %vm5295, %v5289, %v5306
        %v5308 = vsel %vm5294, %v5305, %v5307
        %v5309 = vshll.u32 %v5269, 8
        %v5310 = vand.u32 %v5309, 65535
        %v5311 = vshrl.u32 %v5309, 16
        %v5312 = vand.u32 %v5308, 65535
        %v5313 = vshrl.u32 %v5308, 16
        %v5314 = vmul.u32 %v5310, %v5312
        %v5315 = vmul.u32 %v5310, %v5313
        %v5316 = vmul.u32 %v5311, %v5312
        %v5317 = vmul.u32 %v5311, %v5313
        %v5318 = vshll.u32 %v5315, 16
        %v5319 = vshrl.u32 %v5315, 16
        %v5320 = vshll.u32 %v5316, 16
        %v5321 = vshrl.u32 %v5316, 16
        %vm5322 = vc.u32 %v5314, %v5318
        %v5323 = vsel %vm5322, 1, 0
        %v5324 = vadd.s32 %v5314, %v5318
        %v5325 = vadd.s32 %v5317, %v5323
        %vm5326 = vc.u32 %v5324, %v5320
        %v5327 = vsel %vm5326, 1, 0
        %v5328 = vadd.s32 %v5324, %v5320
        %v5329 = vadd.s32 %v5325, %v5327
        %v5330 = vadd.s32 %v5329, %v5319
        %v5331 = vadd.s32 %v5330, %v5321
        %v5332 = vand.u32 %v5309, 65535
        %v5333 = vshrl.u32 %v5309, 16
        %v5334 = vand.u32 %v5304, 65535
        %v5335 = vshrl.u32 %v5304, 16
        %v5336 = vmul.u32 %v5332, %v5334
        %v5337 = vmul.u32 %v5332, %v5335
        %v5338 = vmul.u32 %v5333, %v5334
        %v5339 = vmul.u32 %v5333, %v5335
        %v5340 = vshll.u32 %v5337, 16
        %v5341 = vshrl.u32 %v5337, 16
        %v5342 = vshll.u32 %v5338, 16
        %v5343 = vshrl.u32 %v5338, 16
        %vm5344 = vc.u32 %v5336, %v5340
        %v5345 = vsel %vm5344, 1, 0
        %v5346 = vadd.s32 %v5336, %v5340
        %v5347 = vadd.s32 %v5339, %v5345
        %vm5348 = vc.u32 %v5346, %v5342
        %v5349 = vsel %vm5348, 1, 0
        %v5350 = vadd.s32 %v5346, %v5342
        %v5351 = vadd.s32 %v5347, %v5349
        %v5352 = vadd.s32 %v5351, %v5341
        %v5353 = vadd.s32 %v5352, %v5343
        %v5354 = vmul.u32 %v5309, %v5300
        %v5355 = vadd.s32 %v5331, %v5350
        %vm5356 = vc.u32 %v5331, %v5350
        %v5357 = vadd.s32 %v5353, 1
        %v5358 = vsel %vm5356, %v5357, %v5353
        %v5359 = vadd.s32 %v5354, %v5358
        %v5360 = vadd.s32 %v5359, 536870912
        %v5361 = vshrl.u32 %v5360, 30
        %v5362 = vshll.u32 %v5361, 30
        %v5363 = vsub.s32 %v5359, %v5362
        %vm5364 = vcmp.lt.s32.totalorder %v5363, 0
        %v5365 = vsub.s32 0, %v5363
        %v5366 = vsel %vm5364, %v5365, %v5363
        %v5367 = vclz %v5366
        %v5368 = vsub.s32 %v5367, 2
        %vm5369 = vcmp.gt.s32.totalorder 0, %v5368
        %v5370 = vsel %vm5369, 0, %v5368
        %v5371 = vsub.s32 32, %v5370
        %v5372 = vshll.u32 %v5363, %v5370
        %v5373 = vshrl.u32 %v5355, %v5371
        %v5374 = vor.u32 %v5372, %v5373
        %v5375 = vsub.s32 4294967266, %v5370
        %v5376 = vadd.s32 %v5375, 127
        %v5377 = vshll.u32 %v5376, 23
        %v5378 = vor.u32 4788187, %v5377
        %v5379 = vand.u32 2147483647, %v5378
        %v5381 = vcvt.s32.f32 %v5374
        %v5382 = vmul.f32 %v5381, %v5379
        %v5383 = vxor.u32 %v5382, 2147483648
        %v5384 = vsel %vm5263, %v5383, %v5382
        %v5385 = vsub.s32 4, %v5361
        %v5386 = vsel %vm5263, %v5385, %v5361
        %v5387 = vsel %vm5262, %v455, %v5384
        %v5388 = vsel %vm5262, 0, %v5386
        %v5389 = vmul.f32 %v5387, %v5387
        %v5390 = vmul.f32 %v5389, -0.001358992
        %v5391 = vadd.f32 %v5390, 0.041655596
        %v5392 = vmul.f32 %v5389, %v5391
        %v5393 = vadd.f32 %v5392, -0.4999988
        %v5394 = vmul.f32 %v5389, %v5393
        %v5395 = vadd.f32 1.0, %v5394
        %v5396 = vmul.f32 %v5387, %v5387
        %v5397 = vmul.f32 %v5396, -0.00019511016
        %v5398 = vadd.f32 %v5397, 0.008332121
        %v5399 = vmul.f32 %v5396, %v5398
        %v5400 = vadd.f32 %v5399, -0.16666654
        %v5401 = vmul.f32 %v5396, %v5400
        %v5402 = vadd.f32 %v5401, 1.0
        %v5403 = vmul.f32 %v5402, %v5387
        %vm5404 = vweird.f32 %v455
        %v5405 = vadd.s32 %v5388, 3
        %v5406 = vand.u32 %v5405, 3
        %vm5407 = vcmp.lt.s32.totalorder %v5406, 2
        %vm5408 = vcmp.eq.s32.totalorder %v5406, 0
        %v5409 = vxor.u32 %v5403, 2147483648
        %v5410 = vsel %vm5408, %v5395, %v5409
        %vm5411 = vcmp.eq.s32.totalorder %v5406, 2
        %v5412 = vxor.u32 %v5395, 2147483648
        %v5413 = vsel %vm5411, %v5412, %v5403
        %v5414 = vsel %vm5407, %v5410, %v5413
        %v5415 = vsel %vm5404, nan, %v5414
        %v5416 = vsel %vm388, %v610, 0.0
        %v5417 = vsel %vm389, %v765, 0.0
        %v5418 = vsel %vm390, %v920, 0.0
        %v5419 = vsel %vm391, %v1075, 0.0
        %v5420 = vsel %vm392, %v1230, 0.0
        %v5421 = vsel %vm393, %v1385, 0.0
        %v5422 = vsel %vm394, %v1540, 0.0
        %v5423 = vsel %vm395, %v1695, 0.0
        %v5424 = vsel %vm396, %v1850, 0.0
        %v5425 = vsel %vm397, %v2005, 0.0
        %v5426 = vsel %vm398, %v2160, 0.0
        %v5427 = vsel %vm399, %v2315, 0.0
        %v5428 = vsel %vm400, %v2470, 0.0
        %v5429 = vsel %vm401, %v2625, 0.0
        %v5430 = vsel %vm402, %v2780, 0.0
        %v5431 = vsel %vm403, %v2935, 0.0
        %v5432 = vsel %vm404, %v3090, 0.0
        %v5433 = vsel %vm405, %v3245, 0.0
        %v5434 = vsel %vm406, %v3400, 0.0
        %v5435 = vsel %vm407, %v3555, 0.0
        %v5436 = vsel %vm408, %v3710, 0.0
        %v5437 = vsel %vm409, %v3865, 0.0
        %v5438 = vsel %vm410, %v4020, 0.0
        %v5439 = vsel %vm411, %v4175, 0.0
        %v5440 = vsel %vm412, %v4330, 0.0
        %v5441 = vsel %vm413, %v4485, 0.0
        %v5442 = vsel %vm414, %v4640, 0.0
        %v5443 = vsel %vm415, %v4795, 0.0
        %v5444 = vsel %vm416, %v4950, 0.0
        %v5445 = vsel %vm417, %v5105, 0.0
        %v5446 = vsel %vm418, %v5260, 0.0
        %v5447 = vsel %vm419, %v5415, 0.0
        %vm5448 = vcmask 130048
        %5449 = vst.msk [vmem:[%s189] sm:$0xff] %vm5448, %v5416
        %5450 = vst.msk [vmem:[%s189 + $0x8] sm:$0xff] %vm5448, %v5417
        %5451 = vst.msk [vmem:[%s189 + $0x10] sm:$0xff] %vm5448, %v5418
        %5452 = vst.msk [vmem:[%s189 + $0x18] sm:$0xff] %vm5448, %v5419
        %5453 = vst.msk [vmem:[%s189 + $0x20] sm:$0xff] %vm5448, %v5420
        %5454 = vst.msk [vmem:[%s189 + $0x28] sm:$0xff] %vm5448, %v5421
        %5455 = vst.msk [vmem:[%s189 + $0x30] sm:$0xff] %vm5448, %v5422
        %5456 = vst.msk [vmem:[%s189 + $0x38] sm:$0xff] %vm5448, %v5423
        %5457 = vst.msk [vmem:[%s189 + $0x40] sm:$0xff] %vm5448, %v5424
        %5458 = vst.msk [vmem:[%s189 + $0x48] sm:$0xff] %vm5448, %v5425
        %5459 = vst.msk [vmem:[%s189 + $0x50] sm:$0xff] %vm5448, %v5426
        %5460 = vst.msk [vmem:[%s189 + $0x58] sm:$0xff] %vm5448, %v5427
        %5461 = vst.msk [vmem:[%s189 + $0x60] sm:$0xff] %vm5448, %v5428
        %5462 = vst.msk [vmem:[%s189 + $0x68] sm:$0xff] %vm5448, %v5429
        %5463 = vst.msk [vmem:[%s189 + $0x70] sm:$0xff] %vm5448, %v5430
        %5464 = vst.msk [vmem:[%s189 + $0x78] sm:$0xff] %vm5448, %v5431
        %5465 = vst.msk [vmem:[%s189 + $0x80] sm:$0xff] %vm5448, %v5432
        %5466 = vst.msk [vmem:[%s189 + $0x88] sm:$0xff] %vm5448, %v5433
        %5467 = vst.msk [vmem:[%s189 + $0x90] sm:$0xff] %vm5448, %v5434
        %5468 = vst.msk [vmem:[%s189 + $0x98] sm:$0xff] %vm5448, %v5435
        %5469 = vst.msk [vmem:[%s189 + $0xa0] sm:$0xff] %vm5448, %v5436
        %5470 = vst.msk [vmem:[%s189 + $0xa8] sm:$0xff] %vm5448, %v5437
        %5471 = vst.msk [vmem:[%s189 + $0xb0] sm:$0xff] %vm5448, %v5438
        %5472 = vst.msk [vmem:[%s189 + $0xb8] sm:$0xff] %vm5448, %v5439
        %5473 = vst.msk [vmem:[%s189 + $0xc0] sm:$0xff] %vm5448, %v5440
        %5474 = vst.msk [vmem:[%s189 + $0xc8] sm:$0xff] %vm5448, %v5441
        %5475 = vst.msk [vmem:[%s189 + $0xd0] sm:$0xff] %vm5448, %v5442
        %5476 = vst.msk [vmem:[%s189 + $0xd8] sm:$0xff] %vm5448, %v5443
        %5477 = vst.msk [vmem:[%s189 + $0xe0] sm:$0xff] %vm5448, %v5444
        %5478 = vst.msk [vmem:[%s189 + $0xe8] sm:$0xff] %vm5448, %v5445
        %5479 = vst.msk [vmem:[%s189 + $0xf0] sm:$0xff] %vm5448, %v5446
        %5480 = vst.msk [vmem:[%s189 + $0xf8] sm:$0xff] %vm5448, %v5447
        %v5481 = vand.u32 2147483647, %v424
        %vm5482 = vcmp.le.f32.partialorder %v5481, 0.7853982
        %vm5483 = vcmp.lt.s32.totalorder %v424, 0
        %v5484 = vand.u32 %v424, 2139095040
        %v5485 = vshrl.u32 %v5484, 23
        %v5486 = vsub.s32 %v5485, 127
        %v5487 = vand.u32 2147483647, %v424
        %v5488 = vand.u32 %v5487, 8388607
        %v5489 = vor.u32 %v5488, 8388608
        %v5490 = vsub.s32 0, %v5489
        %v5491 = vadd.s32 %v5486, 1
        %vm5492 = vcmp.gt.s32.totalorder %v5491, 0
        %v5493 = vsel %vm5492, %v5491, 0
        %v5494 = vshrl.u32 %v5493, 5
        %v5495 = vand.u32 %v5493, 31
        %v5496 = vsub.s32 32, %v5495
        %v5497 = vshrl.u32 683565275, %v5496
        %v5498 = vshll.u32 683565275, %v5495
        %v5499 = vshrl.u32 2475754826, %v5496
        %v5500 = vor.u32 %v5498, %v5499
        %v5501 = vshll.u32 2475754826, %v5495
        %v5502 = vshrl.u32 2131351028, %v5496
        %v5503 = vor.u32 %v5501, %v5502
        %v5504 = vshll.u32 2131351028, %v5495
        %v5505 = vshrl.u32 2102212464, %v5496
        %v5506 = vor.u32 %v5504, %v5505
        %v5507 = vshll.u32 2102212464, %v5495
        %v5508 = vshrl.u32 920167782, %v5496
        %v5509 = vor.u32 %v5507, %v5508
        %v5510 = vshll.u32 920167782, %v5495
        %v5511 = vshrl.u32 1326507024, %v5496
        %v5512 = vor.u32 %v5510, %v5511
        %vm5513 = vcmp.lt.s32.totalorder %v5494, 1
        %vm5514 = vcmp.lt.s32.totalorder %v5494, 2
        %vm5515 = vcmp.lt.s32.totalorder %v5494, 3
        %vm5516 = vcmp.lt.s32.totalorder %v5494, 4
        %v5517 = vsel %vm5513, %v5497, %v5500
        %v5518 = vsel %vm5516, %v5506, 2102212464
        %v5519 = vsel %vm5515, %v5503, %v5518
        %v5520 = vsel %vm5514, %v5517, %v5519
        %v5521 = vsel %vm5513, %v5500, %v5503
        %v5522 = vsel %vm5516, %v5509, 920167782
        %v5523 = vsel %vm5515, %v5506, %v5522
        %v5524 = vsel %vm5514, %v5521, %v5523
        %v5525 = vsel %vm5513, %v5503, %v5506
        %v5526 = vsel %vm5516, %v5512, 1326507024
        %v5527 = vsel %vm5515, %v5509, %v5526
        %v5528 = vsel %vm5514, %v5525, %v5527
        %v5529 = vshll.u32 %v5489, 8
        %v5530 = vand.u32 %v5529, 65535
        %v5531 = vshrl.u32 %v5529, 16
        %v5532 = vand.u32 %v5528, 65535
        %v5533 = vshrl.u32 %v5528, 16
        %v5534 = vmul.u32 %v5530, %v5532
        %v5535 = vmul.u32 %v5530, %v5533
        %v5536 = vmul.u32 %v5531, %v5532
        %v5537 = vmul.u32 %v5531, %v5533
        %v5538 = vshll.u32 %v5535, 16
        %v5539 = vshrl.u32 %v5535, 16
        %v5540 = vshll.u32 %v5536, 16
        %v5541 = vshrl.u32 %v5536, 16
        %vm5542 = vc.u32 %v5534, %v5538
        %v5543 = vsel %vm5542, 1, 0
        %v5544 = vadd.s32 %v5534, %v5538
        %v5545 = vadd.s32 %v5537, %v5543
        %vm5546 = vc.u32 %v5544, %v5540
        %v5547 = vsel %vm5546, 1, 0
        %v5548 = vadd.s32 %v5544, %v5540
        %v5549 = vadd.s32 %v5545, %v5547
        %v5550 = vadd.s32 %v5549, %v5539
        %v5551 = vadd.s32 %v5550, %v5541
        %v5552 = vand.u32 %v5529, 65535
        %v5553 = vshrl.u32 %v5529, 16
        %v5554 = vand.u32 %v5524, 65535
        %v5555 = vshrl.u32 %v5524, 16
        %v5556 = vmul.u32 %v5552, %v5554
        %v5557 = vmul.u32 %v5552, %v5555
        %v5558 = vmul.u32 %v5553, %v5554
        %v5559 = vmul.u32 %v5553, %v5555
        %v5560 = vshll.u32 %v5557, 16
        %v5561 = vshrl.u32 %v5557, 16
        %v5562 = vshll.u32 %v5558, 16
        %v5563 = vshrl.u32 %v5558, 16
        %vm5564 = vc.u32 %v5556, %v5560
        %v5565 = vsel %vm5564, 1, 0
        %v5566 = vadd.s32 %v5556, %v5560
        %v5567 = vadd.s32 %v5559, %v5565
        %vm5568 = vc.u32 %v5566, %v5562
        %v5569 = vsel %vm5568, 1, 0
        %v5570 = vadd.s32 %v5566, %v5562
        %v5571 = vadd.s32 %v5567, %v5569
        %v5572 = vadd.s32 %v5571, %v5561
        %v5573 = vadd.s32 %v5572, %v5563
        %v5574 = vmul.u32 %v5529, %v5520
        %v5575 = vadd.s32 %v5551, %v5570
        %vm5576 = vc.u32 %v5551, %v5570
        %v5577 = vadd.s32 %v5573, 1
        %v5578 = vsel %vm5576, %v5577, %v5573
        %v5579 = vadd.s32 %v5574, %v5578
        %v5580 = vadd.s32 %v5579, 536870912
        %v5581 = vshrl.u32 %v5580, 30
        %v5582 = vshll.u32 %v5581, 30
        %v5583 = vsub.s32 %v5579, %v5582
        %vm5584 = vcmp.lt.s32.totalorder %v5583, 0
        %v5585 = vsub.s32 0, %v5583
        %v5586 = vsel %vm5584, %v5585, %v5583
        %v5587 = vclz %v5586
        %v5588 = vsub.s32 %v5587, 2
        %vm5589 = vcmp.gt.s32.totalorder 0, %v5588
        %v5590 = vsel %vm5589, 0, %v5588
        %v5591 = vsub.s32 32, %v5590
        %v5592 = vshll.u32 %v5583, %v5590
        %v5593 = vshrl.u32 %v5575, %v5591
        %v5594 = vor.u32 %v5592, %v5593
        %v5595 = vsub.s32 4294967266, %v5590
        %v5596 = vadd.s32 %v5595, 127
        %v5597 = vshll.u32 %v5596, 23
        %v5598 = vor.u32 4788187, %v5597
        %v5599 = vand.u32 2147483647, %v5598
        %v5601 = vcvt.s32.f32 %v5594
        %v5602 = vmul.f32 %v5601, %v5599
        %v5603 = vxor.u32 %v5602, 2147483648
        %v5604 = vsel %vm5483, %v5603, %v5602
        %v5605 = vsub.s32 4, %v5581
        %v5606 = vsel %vm5483, %v5605, %v5581
        %v5607 = vsel %vm5482, %v424, %v5604
        %v5608 = vsel %vm5482, 0, %v5606
        %v5609 = vmul.f32 %v5607, %v5607
        %v5610 = vmul.f32 %v5609, -0.001358992
        %v5611 = vadd.f32 %v5610, 0.041655596
        %v5612 = vmul.f32 %v5609, %v5611
        %v5613 = vadd.f32 %v5612, -0.4999988
        %v5614 = vmul.f32 %v5609, %v5613
        %v5615 = vadd.f32 1.0, %v5614
        %v5616 = vmul.f32 %v5607, %v5607
        %v5617 = vmul.f32 %v5616, -0.00019511016
        %v5618 = vadd.f32 %v5617, 0.008332121
        %v5619 = vmul.f32 %v5616, %v5618
        %v5620 = vadd.f32 %v5619, -0.16666654
        %v5621 = vmul.f32 %v5616, %v5620
        %v5622 = vadd.f32 %v5621, 1.0
        %v5623 = vmul.f32 %v5622, %v5607
        %vm5624 = vweird.f32 %v424
        %v5625 = vand.u32 %v5608, 3
        %vm5626 = vcmp.lt.s32.totalorder %v5625, 2
        %vm5627 = vcmp.eq.s32.totalorder %v5625, 0
        %v5628 = vxor.u32 %v5623, 2147483648
        %v5629 = vsel %vm5627, %v5615, %v5628
        %vm5630 = vcmp.eq.s32.totalorder %v5625, 2
        %v5631 = vxor.u32 %v5615, 2147483648
        %v5632 = vsel %vm5630, %v5631, %v5623
        %v5633 = vsel %vm5626, %v5629, %v5632
        %v5634 = vsel %vm5624, nan, %v5633
        %v5635 = vand.u32 2147483647, %v425
        %vm5636 = vcmp.le.f32.partialorder %v5635, 0.7853982
        %vm5637 = vcmp.lt.s32.totalorder %v425, 0
        %v5638 = vand.u32 %v425, 2139095040
        %v5639 = vshrl.u32 %v5638, 23
        %v5640 = vsub.s32 %v5639, 127
        %v5641 = vand.u32 2147483647, %v425
        %v5642 = vand.u32 %v5641, 8388607
        %v5643 = vor.u32 %v5642, 8388608
        %v5644 = vsub.s32 0, %v5643
        %v5645 = vadd.s32 %v5640, 1
        %vm5646 = vcmp.gt.s32.totalorder %v5645, 0
        %v5647 = vsel %vm5646, %v5645, 0
        %v5648 = vshrl.u32 %v5647, 5
        %v5649 = vand.u32 %v5647, 31
        %v5650 = vsub.s32 32, %v5649
        %v5651 = vshrl.u32 683565275, %v5650
        %v5652 = vshll.u32 683565275, %v5649
        %v5653 = vshrl.u32 2475754826, %v5650
        %v5654 = vor.u32 %v5652, %v5653
        %v5655 = vshll.u32 2475754826, %v5649
        %v5656 = vshrl.u32 2131351028, %v5650
        %v5657 = vor.u32 %v5655, %v5656
        %v5658 = vshll.u32 2131351028, %v5649
        %v5659 = vshrl.u32 2102212464, %v5650
        %v5660 = vor.u32 %v5658, %v5659
        %v5661 = vshll.u32 2102212464, %v5649
        %v5662 = vshrl.u32 920167782, %v5650
        %v5663 = vor.u32 %v5661, %v5662
        %v5664 = vshll.u32 920167782, %v5649
        %v5665 = vshrl.u32 1326507024, %v5650
        %v5666 = vor.u32 %v5664, %v5665
        %vm5667 = vcmp.lt.s32.totalorder %v5648, 1
        %vm5668 = vcmp.lt.s32.totalorder %v5648, 2
        %vm5669 = vcmp.lt.s32.totalorder %v5648, 3
        %vm5670 = vcmp.lt.s32.totalorder %v5648, 4
        %v5671 = vsel %vm5667, %v5651, %v5654
        %v5672 = vsel %vm5670, %v5660, 2102212464
        %v5673 = vsel %vm5669, %v5657, %v5672
        %v5674 = vsel %vm5668, %v5671, %v5673
        %v5675 = vsel %vm5667, %v5654, %v5657
        %v5676 = vsel %vm5670, %v5663, 920167782
        %v5677 = vsel %vm5669, %v5660, %v5676
        %v5678 = vsel %vm5668, %v5675, %v5677
        %v5679 = vsel %vm5667, %v5657, %v5660
        %v5680 = vsel %vm5670, %v5666, 1326507024
        %v5681 = vsel %vm5669, %v5663, %v5680
        %v5682 = vsel %vm5668, %v5679, %v5681
        %v5683 = vshll.u32 %v5643, 8
        %v5684 = vand.u32 %v5683, 65535
        %v5685 = vshrl.u32 %v5683, 16
        %v5686 = vand.u32 %v5682, 65535
        %v5687 = vshrl.u32 %v5682, 16
        %v5688 = vmul.u32 %v5684, %v5686
        %v5689 = vmul.u32 %v5684, %v5687
        %v5690 = vmul.u32 %v5685, %v5686
        %v5691 = vmul.u32 %v5685, %v5687
        %v5692 = vshll.u32 %v5689, 16
        %v5693 = vshrl.u32 %v5689, 16
        %v5694 = vshll.u32 %v5690, 16
        %v5695 = vshrl.u32 %v5690, 16
        %vm5696 = vc.u32 %v5688, %v5692
        %v5697 = vsel %vm5696, 1, 0
        %v5698 = vadd.s32 %v5688, %v5692
        %v5699 = vadd.s32 %v5691, %v5697
        %vm5700 = vc.u32 %v5698, %v5694
        %v5701 = vsel %vm5700, 1, 0
        %v5702 = vadd.s32 %v5698, %v5694
        %v5703 = vadd.s32 %v5699, %v5701
        %v5704 = vadd.s32 %v5703, %v5693
        %v5705 = vadd.s32 %v5704, %v5695
        %v5706 = vand.u32 %v5683, 65535
        %v5707 = vshrl.u32 %v5683, 16
        %v5708 = vand.u32 %v5678, 65535
        %v5709 = vshrl.u32 %v5678, 16
        %v5710 = vmul.u32 %v5706, %v5708
        %v5711 = vmul.u32 %v5706, %v5709
        %v5712 = vmul.u32 %v5707, %v5708
        %v5713 = vmul.u32 %v5707, %v5709
        %v5714 = vshll.u32 %v5711, 16
        %v5715 = vshrl.u32 %v5711, 16
        %v5716 = vshll.u32 %v5712, 16
        %v5717 = vshrl.u32 %v5712, 16
        %vm5718 = vc.u32 %v5710, %v5714
        %v5719 = vsel %vm5718, 1, 0
        %v5720 = vadd.s32 %v5710, %v5714
        %v5721 = vadd.s32 %v5713, %v5719
        %vm5722 = vc.u32 %v5720, %v5716
        %v5723 = vsel %vm5722, 1, 0
        %v5724 = vadd.s32 %v5720, %v5716
        %v5725 = vadd.s32 %v5721, %v5723
        %v5726 = vadd.s32 %v5725, %v5715
        %v5727 = vadd.s32 %v5726, %v5717
        %v5728 = vmul.u32 %v5683, %v5674
        %v5729 = vadd.s32 %v5705, %v5724
        %vm5730 = vc.u32 %v5705, %v5724
        %v5731 = vadd.s32 %v5727, 1
        %v5732 = vsel %vm5730, %v5731, %v5727
        %v5733 = vadd.s32 %v5728, %v5732
        %v5734 = vadd.s32 %v5733, 536870912
        %v5735 = vshrl.u32 %v5734, 30
        %v5736 = vshll.u32 %v5735, 30
        %v5737 = vsub.s32 %v5733, %v5736
        %vm5738 = vcmp.lt.s32.totalorder %v5737, 0
        %v5739 = vsub.s32 0, %v5737
        %v5740 = vsel %vm5738, %v5739, %v5737
        %v5741 = vclz %v5740
        %v5742 = vsub.s32 %v5741, 2
        %vm5743 = vcmp.gt.s32.totalorder 0, %v5742
        %v5744 = vsel %vm5743, 0, %v5742
        %v5745 = vsub.s32 32, %v5744
        %v5746 = vshll.u32 %v5737, %v5744
        %v5747 = vshrl.u32 %v5729, %v5745
        %v5748 = vor.u32 %v5746, %v5747
        %v5749 = vsub.s32 4294967266, %v5744
        %v5750 = vadd.s32 %v5749, 127
        %v5751 = vshll.u32 %v5750, 23
        %v5752 = vor.u32 4788187, %v5751
        %v5753 = vand.u32 2147483647, %v5752
        %v5755 = vcvt.s32.f32 %v5748
        %v5756 = vmul.f32 %v5755, %v5753
        %v5757 = vxor.u32 %v5756, 2147483648
        %v5758 = vsel %vm5637, %v5757, %v5756
        %v5759 = vsub.s32 4, %v5735
        %v5760 = vsel %vm5637, %v5759, %v5735
        %v5761 = vsel %vm5636, %v425, %v5758
        %v5762 = vsel %vm5636, 0, %v5760
        %v5763 = vmul.f32 %v5761, %v5761
        %v5764 = vmul.f32 %v5763, -0.001358992
        %v5765 = vadd.f32 %v5764, 0.041655596
        %v5766 = vmul.f32 %v5763, %v5765
        %v5767 = vadd.f32 %v5766, -0.4999988
        %v5768 = vmul.f32 %v5763, %v5767
        %v5769 = vadd.f32 1.0, %v5768
        %v5770 = vmul.f32 %v5761, %v5761
        %v5771 = vmul.f32 %v5770, -0.00019511016
        %v5772 = vadd.f32 %v5771, 0.008332121
        %v5773 = vmul.f32 %v5770, %v5772
        %v5774 = vadd.f32 %v5773, -0.16666654
        %v5775 = vmul.f32 %v5770, %v5774
        %v5776 = vadd.f32 %v5775, 1.0
        %v5777 = vmul.f32 %v5776, %v5761
        %vm5778 = vweird.f32 %v425
        %v5779 = vand.u32 %v5762, 3
        %vm5780 = vcmp.lt.s32.totalorder %v5779, 2
        %vm5781 = vcmp.eq.s32.totalorder %v5779, 0
        %v5782 = vxor.u32 %v5777, 2147483648
        %v5783 = vsel %vm5781, %v5769, %v5782
        %vm5784 = vcmp.eq.s32.totalorder %v5779, 2
        %v5785 = vxor.u32 %v5769, 2147483648
        %v5786 = vsel %vm5784, %v5785, %v5777
        %v5787 = vsel %vm5780, %v5783, %v5786
        %v5788 = vsel %vm5778, nan, %v5787
        %v5789 = vand.u32 2147483647, %v426
        %vm5790 = vcmp.le.f32.partialorder %v5789, 0.7853982
        %vm5791 = vcmp.lt.s32.totalorder %v426, 0
        %v5792 = vand.u32 %v426, 2139095040
        %v5793 = vshrl.u32 %v5792, 23
        %v5794 = vsub.s32 %v5793, 127
        %v5795 = vand.u32 2147483647, %v426
        %v5796 = vand.u32 %v5795, 8388607
        %v5797 = vor.u32 %v5796, 8388608
        %v5798 = vsub.s32 0, %v5797
        %v5799 = vadd.s32 %v5794, 1
        %vm5800 = vcmp.gt.s32.totalorder %v5799, 0
        %v5801 = vsel %vm5800, %v5799, 0
        %v5802 = vshrl.u32 %v5801, 5
        %v5803 = vand.u32 %v5801, 31
        %v5804 = vsub.s32 32, %v5803
        %v5805 = vshrl.u32 683565275, %v5804
        %v5806 = vshll.u32 683565275, %v5803
        %v5807 = vshrl.u32 2475754826, %v5804
        %v5808 = vor.u32 %v5806, %v5807
        %v5809 = vshll.u32 2475754826, %v5803
        %v5810 = vshrl.u32 2131351028, %v5804
        %v5811 = vor.u32 %v5809, %v5810
        %v5812 = vshll.u32 2131351028, %v5803
        %v5813 = vshrl.u32 2102212464, %v5804
        %v5814 = vor.u32 %v5812, %v5813
        %v5815 = vshll.u32 2102212464, %v5803
        %v5816 = vshrl.u32 920167782, %v5804
        %v5817 = vor.u32 %v5815, %v5816
        %v5818 = vshll.u32 920167782, %v5803
        %v5819 = vshrl.u32 1326507024, %v5804
        %v5820 = vor.u32 %v5818, %v5819
        %vm5821 = vcmp.lt.s32.totalorder %v5802, 1
        %vm5822 = vcmp.lt.s32.totalorder %v5802, 2
        %vm5823 = vcmp.lt.s32.totalorder %v5802, 3
        %vm5824 = vcmp.lt.s32.totalorder %v5802, 4
        %v5825 = vsel %vm5821, %v5805, %v5808
        %v5826 = vsel %vm5824, %v5814, 2102212464
        %v5827 = vsel %vm5823, %v5811, %v5826
        %v5828 = vsel %vm5822, %v5825, %v5827
        %v5829 = vsel %vm5821, %v5808, %v5811
        %v5830 = vsel %vm5824, %v5817, 920167782
        %v5831 = vsel %vm5823, %v5814, %v5830
        %v5832 = vsel %vm5822, %v5829, %v5831
        %v5833 = vsel %vm5821, %v5811, %v5814
        %v5834 = vsel %vm5824, %v5820, 1326507024
        %v5835 = vsel %vm5823, %v5817, %v5834
        %v5836 = vsel %vm5822, %v5833, %v5835
        %v5837 = vshll.u32 %v5797, 8
        %v5838 = vand.u32 %v5837, 65535
        %v5839 = vshrl.u32 %v5837, 16
        %v5840 = vand.u32 %v5836, 65535
        %v5841 = vshrl.u32 %v5836, 16
        %v5842 = vmul.u32 %v5838, %v5840
        %v5843 = vmul.u32 %v5838, %v5841
        %v5844 = vmul.u32 %v5839, %v5840
        %v5845 = vmul.u32 %v5839, %v5841
        %v5846 = vshll.u32 %v5843, 16
        %v5847 = vshrl.u32 %v5843, 16
        %v5848 = vshll.u32 %v5844, 16
        %v5849 = vshrl.u32 %v5844, 16
        %vm5850 = vc.u32 %v5842, %v5846
        %v5851 = vsel %vm5850, 1, 0
        %v5852 = vadd.s32 %v5842, %v5846
        %v5853 = vadd.s32 %v5845, %v5851
        %vm5854 = vc.u32 %v5852, %v5848
        %v5855 = vsel %vm5854, 1, 0
        %v5856 = vadd.s32 %v5852, %v5848
        %v5857 = vadd.s32 %v5853, %v5855
        %v5858 = vadd.s32 %v5857, %v5847
        %v5859 = vadd.s32 %v5858, %v5849
        %v5860 = vand.u32 %v5837, 65535
        %v5861 = vshrl.u32 %v5837, 16
        %v5862 = vand.u32 %v5832, 65535
        %v5863 = vshrl.u32 %v5832, 16
        %v5864 = vmul.u32 %v5860, %v5862
        %v5865 = vmul.u32 %v5860, %v5863
        %v5866 = vmul.u32 %v5861, %v5862
        %v5867 = vmul.u32 %v5861, %v5863
        %v5868 = vshll.u32 %v5865, 16
        %v5869 = vshrl.u32 %v5865, 16
        %v5870 = vshll.u32 %v5866, 16
        %v5871 = vshrl.u32 %v5866, 16
        %vm5872 = vc.u32 %v5864, %v5868
        %v5873 = vsel %vm5872, 1, 0
        %v5874 = vadd.s32 %v5864, %v5868
        %v5875 = vadd.s32 %v5867, %v5873
        %vm5876 = vc.u32 %v5874, %v5870
        %v5877 = vsel %vm5876, 1, 0
        %v5878 = vadd.s32 %v5874, %v5870
        %v5879 = vadd.s32 %v5875, %v5877
        %v5880 = vadd.s32 %v5879, %v5869
        %v5881 = vadd.s32 %v5880, %v5871
        %v5882 = vmul.u32 %v5837, %v5828
        %v5883 = vadd.s32 %v5859, %v5878
        %vm5884 = vc.u32 %v5859, %v5878
        %v5885 = vadd.s32 %v5881, 1
        %v5886 = vsel %vm5884, %v5885, %v5881
        %v5887 = vadd.s32 %v5882, %v5886
        %v5888 = vadd.s32 %v5887, 536870912
        %v5889 = vshrl.u32 %v5888, 30
        %v5890 = vshll.u32 %v5889, 30
        %v5891 = vsub.s32 %v5887, %v5890
        %vm5892 = vcmp.lt.s32.totalorder %v5891, 0
        %v5893 = vsub.s32 0, %v5891
        %v5894 = vsel %vm5892, %v5893, %v5891
        %v5895 = vclz %v5894
        %v5896 = vsub.s32 %v5895, 2
        %vm5897 = vcmp.gt.s32.totalorder 0, %v5896
        %v5898 = vsel %vm5897, 0, %v5896
        %v5899 = vsub.s32 32, %v5898
        %v5900 = vshll.u32 %v5891, %v5898
        %v5901 = vshrl.u32 %v5883, %v5899
        %v5902 = vor.u32 %v5900, %v5901
        %v5903 = vsub.s32 4294967266, %v5898
        %v5904 = vadd.s32 %v5903, 127
        %v5905 = vshll.u32 %v5904, 23
        %v5906 = vor.u32 4788187, %v5905
        %v5907 = vand.u32 2147483647, %v5906
        %v5909 = vcvt.s32.f32 %v5902
        %v5910 = vmul.f32 %v5909, %v5907
        %v5911 = vxor.u32 %v5910, 2147483648
        %v5912 = vsel %vm5791, %v5911, %v5910
        %v5913 = vsub.s32 4, %v5889
        %v5914 = vsel %vm5791, %v5913, %v5889
        %v5915 = vsel %vm5790, %v426, %v5912
        %v5916 = vsel %vm5790, 0, %v5914
        %v5917 = vmul.f32 %v5915, %v5915
        %v5918 = vmul.f32 %v5917, -0.001358992
        %v5919 = vadd.f32 %v5918, 0.041655596
        %v5920 = vmul.f32 %v5917, %v5919
        %v5921 = vadd.f32 %v5920, -0.4999988
        %v5922 = vmul.f32 %v5917, %v5921
        %v5923 = vadd.f32 1.0, %v5922
        %v5924 = vmul.f32 %v5915, %v5915
        %v5925 = vmul.f32 %v5924, -0.00019511016
        %v5926 = vadd.f32 %v5925, 0.008332121
        %v5927 = vmul.f32 %v5924, %v5926
        %v5928 = vadd.f32 %v5927, -0.16666654
        %v5929 = vmul.f32 %v5924, %v5928
        %v5930 = vadd.f32 %v5929, 1.0
        %v5931 = vmul.f32 %v5930, %v5915
        %vm5932 = vweird.f32 %v426
        %v5933 = vand.u32 %v5916, 3
        %vm5934 = vcmp.lt.s32.totalorder %v5933, 2
        %vm5935 = vcmp.eq.s32.totalorder %v5933, 0
        %v5936 = vxor.u32 %v5931, 2147483648
        %v5937 = vsel %vm5935, %v5923, %v5936
        %vm5938 = vcmp.eq.s32.totalorder %v5933, 2
        %v5939 = vxor.u32 %v5923, 2147483648
        %v5940 = vsel %vm5938, %v5939, %v5931
        %v5941 = vsel %vm5934, %v5937, %v5940
        %v5942 = vsel %vm5932, nan, %v5941
        %v5943 = vand.u32 2147483647, %v427
        %vm5944 = vcmp.le.f32.partialorder %v5943, 0.7853982
        %vm5945 = vcmp.lt.s32.totalorder %v427, 0
        %v5946 = vand.u32 %v427, 2139095040
        %v5947 = vshrl.u32 %v5946, 23
        %v5948 = vsub.s32 %v5947, 127
        %v5949 = vand.u32 2147483647, %v427
        %v5950 = vand.u32 %v5949, 8388607
        %v5951 = vor.u32 %v5950, 8388608
        %v5952 = vsub.s32 0, %v5951
        %v5953 = vadd.s32 %v5948, 1
        %vm5954 = vcmp.gt.s32.totalorder %v5953, 0
        %v5955 = vsel %vm5954, %v5953, 0
        %v5956 = vshrl.u32 %v5955, 5
        %v5957 = vand.u32 %v5955, 31
        %v5958 = vsub.s32 32, %v5957
        %v5959 = vshrl.u32 683565275, %v5958
        %v5960 = vshll.u32 683565275, %v5957
        %v5961 = vshrl.u32 2475754826, %v5958
        %v5962 = vor.u32 %v5960, %v5961
        %v5963 = vshll.u32 2475754826, %v5957
        %v5964 = vshrl.u32 2131351028, %v5958
        %v5965 = vor.u32 %v5963, %v5964
        %v5966 = vshll.u32 2131351028, %v5957
        %v5967 = vshrl.u32 2102212464, %v5958
        %v5968 = vor.u32 %v5966, %v5967
        %v5969 = vshll.u32 2102212464, %v5957
        %v5970 = vshrl.u32 920167782, %v5958
        %v5971 = vor.u32 %v5969, %v5970
        %v5972 = vshll.u32 920167782, %v5957
        %v5973 = vshrl.u32 1326507024, %v5958
        %v5974 = vor.u32 %v5972, %v5973
        %vm5975 = vcmp.lt.s32.totalorder %v5956, 1
        %vm5976 = vcmp.lt.s32.totalorder %v5956, 2
        %vm5977 = vcmp.lt.s32.totalorder %v5956, 3
        %vm5978 = vcmp.lt.s32.totalorder %v5956, 4
        %v5979 = vsel %vm5975, %v5959, %v5962
        %v5980 = vsel %vm5978, %v5968, 2102212464
        %v5981 = vsel %vm5977, %v5965, %v5980
        %v5982 = vsel %vm5976, %v5979, %v5981
        %v5983 = vsel %vm5975, %v5962, %v5965
        %v5984 = vsel %vm5978, %v5971, 920167782
        %v5985 = vsel %vm5977, %v5968, %v5984
        %v5986 = vsel %vm5976, %v5983, %v5985
        %v5987 = vsel %vm5975, %v5965, %v5968
        %v5988 = vsel %vm5978, %v5974, 1326507024
        %v5989 = vsel %vm5977, %v5971, %v5988
        %v5990 = vsel %vm5976, %v5987, %v5989
        %v5991 = vshll.u32 %v5951, 8
        %v5992 = vand.u32 %v5991, 65535
        %v5993 = vshrl.u32 %v5991, 16
        %v5994 = vand.u32 %v5990, 65535
        %v5995 = vshrl.u32 %v5990, 16
        %v5996 = vmul.u32 %v5992, %v5994
        %v5997 = vmul.u32 %v5992, %v5995
        %v5998 = vmul.u32 %v5993, %v5994
        %v5999 = vmul.u32 %v5993, %v5995
        %v6000 = vshll.u32 %v5997, 16
        %v6001 = vshrl.u32 %v5997, 16
        %v6002 = vshll.u32 %v5998, 16
        %v6003 = vshrl.u32 %v5998, 16
        %vm6004 = vc.u32 %v5996, %v6000
        %v6005 = vsel %vm6004, 1, 0
        %v6006 = vadd.s32 %v5996, %v6000
        %v6007 = vadd.s32 %v5999, %v6005
        %vm6008 = vc.u32 %v6006, %v6002
        %v6009 = vsel %vm6008, 1, 0
        %v6010 = vadd.s32 %v6006, %v6002
        %v6011 = vadd.s32 %v6007, %v6009
        %v6012 = vadd.s32 %v6011, %v6001
        %v6013 = vadd.s32 %v6012, %v6003
        %v6014 = vand.u32 %v5991, 65535
        %v6015 = vshrl.u32 %v5991, 16
        %v6016 = vand.u32 %v5986, 65535
        %v6017 = vshrl.u32 %v5986, 16
        %v6018 = vmul.u32 %v6014, %v6016
        %v6019 = vmul.u32 %v6014, %v6017
        %v6020 = vmul.u32 %v6015, %v6016
        %v6021 = vmul.u32 %v6015, %v6017
        %v6022 = vshll.u32 %v6019, 16
        %v6023 = vshrl.u32 %v6019, 16
        %v6024 = vshll.u32 %v6020, 16
        %v6025 = vshrl.u32 %v6020, 16
        %vm6026 = vc.u32 %v6018, %v6022
        %v6027 = vsel %vm6026, 1, 0
        %v6028 = vadd.s32 %v6018, %v6022
        %v6029 = vadd.s32 %v6021, %v6027
        %vm6030 = vc.u32 %v6028, %v6024
        %v6031 = vsel %vm6030, 1, 0
        %v6032 = vadd.s32 %v6028, %v6024
        %v6033 = vadd.s32 %v6029, %v6031
        %v6034 = vadd.s32 %v6033, %v6023
        %v6035 = vadd.s32 %v6034, %v6025
        %v6036 = vmul.u32 %v5991, %v5982
        %v6037 = vadd.s32 %v6013, %v6032
        %vm6038 = vc.u32 %v6013, %v6032
        %v6039 = vadd.s32 %v6035, 1
        %v6040 = vsel %vm6038, %v6039, %v6035
        %v6041 = vadd.s32 %v6036, %v6040
        %v6042 = vadd.s32 %v6041, 536870912
        %v6043 = vshrl.u32 %v6042, 30
        %v6044 = vshll.u32 %v6043, 30
        %v6045 = vsub.s32 %v6041, %v6044
        %vm6046 = vcmp.lt.s32.totalorder %v6045, 0
        %v6047 = vsub.s32 0, %v6045
        %v6048 = vsel %vm6046, %v6047, %v6045
        %v6049 = vclz %v6048
        %v6050 = vsub.s32 %v6049, 2
        %vm6051 = vcmp.gt.s32.totalorder 0, %v6050
        %v6052 = vsel %vm6051, 0, %v6050
        %v6053 = vsub.s32 32, %v6052
        %v6054 = vshll.u32 %v6045, %v6052
        %v6055 = vshrl.u32 %v6037, %v6053
        %v6056 = vor.u32 %v6054, %v6055
        %v6057 = vsub.s32 4294967266, %v6052
        %v6058 = vadd.s32 %v6057, 127
        %v6059 = vshll.u32 %v6058, 23
        %v6060 = vor.u32 4788187, %v6059
        %v6061 = vand.u32 2147483647, %v6060
        %v6063 = vcvt.s32.f32 %v6056
        %v6064 = vmul.f32 %v6063, %v6061
        %v6065 = vxor.u32 %v6064, 2147483648
        %v6066 = vsel %vm5945, %v6065, %v6064
        %v6067 = vsub.s32 4, %v6043
        %v6068 = vsel %vm5945, %v6067, %v6043
        %v6069 = vsel %vm5944, %v427, %v6066
        %v6070 = vsel %vm5944, 0, %v6068
        %v6071 = vmul.f32 %v6069, %v6069
        %v6072 = vmul.f32 %v6071, -0.001358992
        %v6073 = vadd.f32 %v6072, 0.041655596
        %v6074 = vmul.f32 %v6071, %v6073
        %v6075 = vadd.f32 %v6074, -0.4999988
        %v6076 = vmul.f32 %v6071, %v6075
        %v6077 = vadd.f32 1.0, %v6076
        %v6078 = vmul.f32 %v6069, %v6069
        %v6079 = vmul.f32 %v6078, -0.00019511016
        %v6080 = vadd.f32 %v6079, 0.008332121
        %v6081 = vmul.f32 %v6078, %v6080
        %v6082 = vadd.f32 %v6081, -0.16666654
        %v6083 = vmul.f32 %v6078, %v6082
        %v6084 = vadd.f32 %v6083, 1.0
        %v6085 = vmul.f32 %v6084, %v6069
        %vm6086 = vweird.f32 %v427
        %v6087 = vand.u32 %v6070, 3
        %vm6088 = vcmp.lt.s32.totalorder %v6087, 2
        %vm6089 = vcmp.eq.s32.totalorder %v6087, 0
        %v6090 = vxor.u32 %v6085, 2147483648
        %v6091 = vsel %vm6089, %v6077, %v6090
        %vm6092 = vcmp.eq.s32.totalorder %v6087, 2
        %v6093 = vxor.u32 %v6077, 2147483648
        %v6094 = vsel %vm6092, %v6093, %v6085
        %v6095 = vsel %vm6088, %v6091, %v6094
        %v6096 = vsel %vm6086, nan, %v6095
        %v6097 = vand.u32 2147483647, %v428
        %vm6098 = vcmp.le.f32.partialorder %v6097, 0.7853982
        %vm6099 = vcmp.lt.s32.totalorder %v428, 0
        %v6100 = vand.u32 %v428, 2139095040
        %v6101 = vshrl.u32 %v6100, 23
        %v6102 = vsub.s32 %v6101, 127
        %v6103 = vand.u32 2147483647, %v428
        %v6104 = vand.u32 %v6103, 8388607
        %v6105 = vor.u32 %v6104, 8388608
        %v6106 = vsub.s32 0, %v6105
        %v6107 = vadd.s32 %v6102, 1
        %vm6108 = vcmp.gt.s32.totalorder %v6107, 0
        %v6109 = vsel %vm6108, %v6107, 0
        %v6110 = vshrl.u32 %v6109, 5
        %v6111 = vand.u32 %v6109, 31
        %v6112 = vsub.s32 32, %v6111
        %v6113 = vshrl.u32 683565275, %v6112
        %v6114 = vshll.u32 683565275, %v6111
        %v6115 = vshrl.u32 2475754826, %v6112
        %v6116 = vor.u32 %v6114, %v6115
        %v6117 = vshll.u32 2475754826, %v6111
        %v6118 = vshrl.u32 2131351028, %v6112
        %v6119 = vor.u32 %v6117, %v6118
        %v6120 = vshll.u32 2131351028, %v6111
        %v6121 = vshrl.u32 2102212464, %v6112
        %v6122 = vor.u32 %v6120, %v6121
        %v6123 = vshll.u32 2102212464, %v6111
        %v6124 = vshrl.u32 920167782, %v6112
        %v6125 = vor.u32 %v6123, %v6124
        %v6126 = vshll.u32 920167782, %v6111
        %v6127 = vshrl.u32 1326507024, %v6112
        %v6128 = vor.u32 %v6126, %v6127
        %vm6129 = vcmp.lt.s32.totalorder %v6110, 1
        %vm6130 = vcmp.lt.s32.totalorder %v6110, 2
        %vm6131 = vcmp.lt.s32.totalorder %v6110, 3
        %vm6132 = vcmp.lt.s32.totalorder %v6110, 4
        %v6133 = vsel %vm6129, %v6113, %v6116
        %v6134 = vsel %vm6132, %v6122, 2102212464
        %v6135 = vsel %vm6131, %v6119, %v6134
        %v6136 = vsel %vm6130, %v6133, %v6135
        %v6137 = vsel %vm6129, %v6116, %v6119
        %v6138 = vsel %vm6132, %v6125, 920167782
        %v6139 = vsel %vm6131, %v6122, %v6138
        %v6140 = vsel %vm6130, %v6137, %v6139
        %v6141 = vsel %vm6129, %v6119, %v6122
        %v6142 = vsel %vm6132, %v6128, 1326507024
        %v6143 = vsel %vm6131, %v6125, %v6142
        %v6144 = vsel %vm6130, %v6141, %v6143
        %v6145 = vshll.u32 %v6105, 8
        %v6146 = vand.u32 %v6145, 65535
        %v6147 = vshrl.u32 %v6145, 16
        %v6148 = vand.u32 %v6144, 65535
        %v6149 = vshrl.u32 %v6144, 16
        %v6150 = vmul.u32 %v6146, %v6148
        %v6151 = vmul.u32 %v6146, %v6149
        %v6152 = vmul.u32 %v6147, %v6148
        %v6153 = vmul.u32 %v6147, %v6149
        %v6154 = vshll.u32 %v6151, 16
        %v6155 = vshrl.u32 %v6151, 16
        %v6156 = vshll.u32 %v6152, 16
        %v6157 = vshrl.u32 %v6152, 16
        %vm6158 = vc.u32 %v6150, %v6154
        %v6159 = vsel %vm6158, 1, 0
        %v6160 = vadd.s32 %v6150, %v6154
        %v6161 = vadd.s32 %v6153, %v6159
        %vm6162 = vc.u32 %v6160, %v6156
        %v6163 = vsel %vm6162, 1, 0
        %v6164 = vadd.s32 %v6160, %v6156
        %v6165 = vadd.s32 %v6161, %v6163
        %v6166 = vadd.s32 %v6165, %v6155
        %v6167 = vadd.s32 %v6166, %v6157
        %v6168 = vand.u32 %v6145, 65535
        %v6169 = vshrl.u32 %v6145, 16
        %v6170 = vand.u32 %v6140, 65535
        %v6171 = vshrl.u32 %v6140, 16
        %v6172 = vmul.u32 %v6168, %v6170
        %v6173 = vmul.u32 %v6168, %v6171
        %v6174 = vmul.u32 %v6169, %v6170
        %v6175 = vmul.u32 %v6169, %v6171
        %v6176 = vshll.u32 %v6173, 16
        %v6177 = vshrl.u32 %v6173, 16
        %v6178 = vshll.u32 %v6174, 16
        %v6179 = vshrl.u32 %v6174, 16
        %vm6180 = vc.u32 %v6172, %v6176
        %v6181 = vsel %vm6180, 1, 0
        %v6182 = vadd.s32 %v6172, %v6176
        %v6183 = vadd.s32 %v6175, %v6181
        %vm6184 = vc.u32 %v6182, %v6178
        %v6185 = vsel %vm6184, 1, 0
        %v6186 = vadd.s32 %v6182, %v6178
        %v6187 = vadd.s32 %v6183, %v6185
        %v6188 = vadd.s32 %v6187, %v6177
        %v6189 = vadd.s32 %v6188, %v6179
        %v6190 = vmul.u32 %v6145, %v6136
        %v6191 = vadd.s32 %v6167, %v6186
        %vm6192 = vc.u32 %v6167, %v6186
        %v6193 = vadd.s32 %v6189, 1
        %v6194 = vsel %vm6192, %v6193, %v6189
        %v6195 = vadd.s32 %v6190, %v6194
        %v6196 = vadd.s32 %v6195, 536870912
        %v6197 = vshrl.u32 %v6196, 30
        %v6198 = vshll.u32 %v6197, 30
        %v6199 = vsub.s32 %v6195, %v6198
        %vm6200 = vcmp.lt.s32.totalorder %v6199, 0
        %v6201 = vsub.s32 0, %v6199
        %v6202 = vsel %vm6200, %v6201, %v6199
        %v6203 = vclz %v6202
        %v6204 = vsub.s32 %v6203, 2
        %vm6205 = vcmp.gt.s32.totalorder 0, %v6204
        %v6206 = vsel %vm6205, 0, %v6204
        %v6207 = vsub.s32 32, %v6206
        %v6208 = vshll.u32 %v6199, %v6206
        %v6209 = vshrl.u32 %v6191, %v6207
        %v6210 = vor.u32 %v6208, %v6209
        %v6211 = vsub.s32 4294967266, %v6206
        %v6212 = vadd.s32 %v6211, 127
        %v6213 = vshll.u32 %v6212, 23
        %v6214 = vor.u32 4788187, %v6213
        %v6215 = vand.u32 2147483647, %v6214
        %v6217 = vcvt.s32.f32 %v6210
        %v6218 = vmul.f32 %v6217, %v6215
        %v6219 = vxor.u32 %v6218, 2147483648
        %v6220 = vsel %vm6099, %v6219, %v6218
        %v6221 = vsub.s32 4, %v6197
        %v6222 = vsel %vm6099, %v6221, %v6197
        %v6223 = vsel %vm6098, %v428, %v6220
        %v6224 = vsel %vm6098, 0, %v6222
        %v6225 = vmul.f32 %v6223, %v6223
        %v6226 = vmul.f32 %v6225, -0.001358992
        %v6227 = vadd.f32 %v6226, 0.041655596
        %v6228 = vmul.f32 %v6225, %v6227
        %v6229 = vadd.f32 %v6228, -0.4999988
        %v6230 = vmul.f32 %v6225, %v6229
        %v6231 = vadd.f32 1.0, %v6230
        %v6232 = vmul.f32 %v6223, %v6223
        %v6233 = vmul.f32 %v6232, -0.00019511016
        %v6234 = vadd.f32 %v6233, 0.008332121
        %v6235 = vmul.f32 %v6232, %v6234
        %v6236 = vadd.f32 %v6235, -0.16666654
        %v6237 = vmul.f32 %v6232, %v6236
        %v6238 = vadd.f32 %v6237, 1.0
        %v6239 = vmul.f32 %v6238, %v6223
        %vm6240 = vweird.f32 %v428
        %v6241 = vand.u32 %v6224, 3
        %vm6242 = vcmp.lt.s32.totalorder %v6241, 2
        %vm6243 = vcmp.eq.s32.totalorder %v6241, 0
        %v6244 = vxor.u32 %v6239, 2147483648
        %v6245 = vsel %vm6243, %v6231, %v6244
        %vm6246 = vcmp.eq.s32.totalorder %v6241, 2
        %v6247 = vxor.u32 %v6231, 2147483648
        %v6248 = vsel %vm6246, %v6247, %v6239
        %v6249 = vsel %vm6242, %v6245, %v6248
        %v6250 = vsel %vm6240, nan, %v6249
        %v6251 = vand.u32 2147483647, %v429
        %vm6252 = vcmp.le.f32.partialorder %v6251, 0.7853982
        %vm6253 = vcmp.lt.s32.totalorder %v429, 0
        %v6254 = vand.u32 %v429, 2139095040
        %v6255 = vshrl.u32 %v6254, 23
        %v6256 = vsub.s32 %v6255, 127
        %v6257 = vand.u32 2147483647, %v429
        %v6258 = vand.u32 %v6257, 8388607
        %v6259 = vor.u32 %v6258, 8388608
        %v6260 = vsub.s32 0, %v6259
        %v6261 = vadd.s32 %v6256, 1
        %vm6262 = vcmp.gt.s32.totalorder %v6261, 0
        %v6263 = vsel %vm6262, %v6261, 0
        %v6264 = vshrl.u32 %v6263, 5
        %v6265 = vand.u32 %v6263, 31
        %v6266 = vsub.s32 32, %v6265
        %v6267 = vshrl.u32 683565275, %v6266
        %v6268 = vshll.u32 683565275, %v6265
        %v6269 = vshrl.u32 2475754826, %v6266
        %v6270 = vor.u32 %v6268, %v6269
        %v6271 = vshll.u32 2475754826, %v6265
        %v6272 = vshrl.u32 2131351028, %v6266
        %v6273 = vor.u32 %v6271, %v6272
        %v6274 = vshll.u32 2131351028, %v6265
        %v6275 = vshrl.u32 2102212464, %v6266
        %v6276 = vor.u32 %v6274, %v6275
        %v6277 = vshll.u32 2102212464, %v6265
        %v6278 = vshrl.u32 920167782, %v6266
        %v6279 = vor.u32 %v6277, %v6278
        %v6280 = vshll.u32 920167782, %v6265
        %v6281 = vshrl.u32 1326507024, %v6266
        %v6282 = vor.u32 %v6280, %v6281
        %vm6283 = vcmp.lt.s32.totalorder %v6264, 1
        %vm6284 = vcmp.lt.s32.totalorder %v6264, 2
        %vm6285 = vcmp.lt.s32.totalorder %v6264, 3
        %vm6286 = vcmp.lt.s32.totalorder %v6264, 4
        %v6287 = vsel %vm6283, %v6267, %v6270
        %v6288 = vsel %vm6286, %v6276, 2102212464
        %v6289 = vsel %vm6285, %v6273, %v6288
        %v6290 = vsel %vm6284, %v6287, %v6289
        %v6291 = vsel %vm6283, %v6270, %v6273
        %v6292 = vsel %vm6286, %v6279, 920167782
        %v6293 = vsel %vm6285, %v6276, %v6292
        %v6294 = vsel %vm6284, %v6291, %v6293
        %v6295 = vsel %vm6283, %v6273, %v6276
        %v6296 = vsel %vm6286, %v6282, 1326507024
        %v6297 = vsel %vm6285, %v6279, %v6296
        %v6298 = vsel %vm6284, %v6295, %v6297
        %v6299 = vshll.u32 %v6259, 8
        %v6300 = vand.u32 %v6299, 65535
        %v6301 = vshrl.u32 %v6299, 16
        %v6302 = vand.u32 %v6298, 65535
        %v6303 = vshrl.u32 %v6298, 16
        %v6304 = vmul.u32 %v6300, %v6302
        %v6305 = vmul.u32 %v6300, %v6303
        %v6306 = vmul.u32 %v6301, %v6302
        %v6307 = vmul.u32 %v6301, %v6303
        %v6308 = vshll.u32 %v6305, 16
        %v6309 = vshrl.u32 %v6305, 16
        %v6310 = vshll.u32 %v6306, 16
        %v6311 = vshrl.u32 %v6306, 16
        %vm6312 = vc.u32 %v6304, %v6308
        %v6313 = vsel %vm6312, 1, 0
        %v6314 = vadd.s32 %v6304, %v6308
        %v6315 = vadd.s32 %v6307, %v6313
        %vm6316 = vc.u32 %v6314, %v6310
        %v6317 = vsel %vm6316, 1, 0
        %v6318 = vadd.s32 %v6314, %v6310
        %v6319 = vadd.s32 %v6315, %v6317
        %v6320 = vadd.s32 %v6319, %v6309
        %v6321 = vadd.s32 %v6320, %v6311
        %v6322 = vand.u32 %v6299, 65535
        %v6323 = vshrl.u32 %v6299, 16
        %v6324 = vand.u32 %v6294, 65535
        %v6325 = vshrl.u32 %v6294, 16
        %v6326 = vmul.u32 %v6322, %v6324
        %v6327 = vmul.u32 %v6322, %v6325
        %v6328 = vmul.u32 %v6323, %v6324
        %v6329 = vmul.u32 %v6323, %v6325
        %v6330 = vshll.u32 %v6327, 16
        %v6331 = vshrl.u32 %v6327, 16
        %v6332 = vshll.u32 %v6328, 16
        %v6333 = vshrl.u32 %v6328, 16
        %vm6334 = vc.u32 %v6326, %v6330
        %v6335 = vsel %vm6334, 1, 0
        %v6336 = vadd.s32 %v6326, %v6330
        %v6337 = vadd.s32 %v6329, %v6335
        %vm6338 = vc.u32 %v6336, %v6332
        %v6339 = vsel %vm6338, 1, 0
        %v6340 = vadd.s32 %v6336, %v6332
        %v6341 = vadd.s32 %v6337, %v6339
        %v6342 = vadd.s32 %v6341, %v6331
        %v6343 = vadd.s32 %v6342, %v6333
        %v6344 = vmul.u32 %v6299, %v6290
        %v6345 = vadd.s32 %v6321, %v6340
        %vm6346 = vc.u32 %v6321, %v6340
        %v6347 = vadd.s32 %v6343, 1
        %v6348 = vsel %vm6346, %v6347, %v6343
        %v6349 = vadd.s32 %v6344, %v6348
        %v6350 = vadd.s32 %v6349, 536870912
        %v6351 = vshrl.u32 %v6350, 30
        %v6352 = vshll.u32 %v6351, 30
        %v6353 = vsub.s32 %v6349, %v6352
        %vm6354 = vcmp.lt.s32.totalorder %v6353, 0
        %v6355 = vsub.s32 0, %v6353
        %v6356 = vsel %vm6354, %v6355, %v6353
        %v6357 = vclz %v6356
        %v6358 = vsub.s32 %v6357, 2
        %vm6359 = vcmp.gt.s32.totalorder 0, %v6358
        %v6360 = vsel %vm6359, 0, %v6358
        %v6361 = vsub.s32 32, %v6360
        %v6362 = vshll.u32 %v6353, %v6360
        %v6363 = vshrl.u32 %v6345, %v6361
        %v6364 = vor.u32 %v6362, %v6363
        %v6365 = vsub.s32 4294967266, %v6360
        %v6366 = vadd.s32 %v6365, 127
        %v6367 = vshll.u32 %v6366, 23
        %v6368 = vor.u32 4788187, %v6367
        %v6369 = vand.u32 2147483647, %v6368
        %v6371 = vcvt.s32.f32 %v6364
        %v6372 = vmul.f32 %v6371, %v6369
        %v6373 = vxor.u32 %v6372, 2147483648
        %v6374 = vsel %vm6253, %v6373, %v6372
        %v6375 = vsub.s32 4, %v6351
        %v6376 = vsel %vm6253, %v6375, %v6351
        %v6377 = vsel %vm6252, %v429, %v6374
        %v6378 = vsel %vm6252, 0, %v6376
        %v6379 = vmul.f32 %v6377, %v6377
        %v6380 = vmul.f32 %v6379, -0.001358992
        %v6381 = vadd.f32 %v6380, 0.041655596
        %v6382 = vmul.f32 %v6379, %v6381
        %v6383 = vadd.f32 %v6382, -0.4999988
        %v6384 = vmul.f32 %v6379, %v6383
        %v6385 = vadd.f32 1.0, %v6384
        %v6386 = vmul.f32 %v6377, %v6377
        %v6387 = vmul.f32 %v6386, -0.00019511016
        %v6388 = vadd.f32 %v6387, 0.008332121
        %v6389 = vmul.f32 %v6386, %v6388
        %v6390 = vadd.f32 %v6389, -0.16666654
        %v6391 = vmul.f32 %v6386, %v6390
        %v6392 = vadd.f32 %v6391, 1.0
        %v6393 = vmul.f32 %v6392, %v6377
        %vm6394 = vweird.f32 %v429
        %v6395 = vand.u32 %v6378, 3
        %vm6396 = vcmp.lt.s32.totalorder %v6395, 2
        %vm6397 = vcmp.eq.s32.totalorder %v6395, 0
        %v6398 = vxor.u32 %v6393, 2147483648
        %v6399 = vsel %vm6397, %v6385, %v6398
        %vm6400 = vcmp.eq.s32.totalorder %v6395, 2
        %v6401 = vxor.u32 %v6385, 2147483648
        %v6402 = vsel %vm6400, %v6401, %v6393
        %v6403 = vsel %vm6396, %v6399, %v6402
        %v6404 = vsel %vm6394, nan, %v6403
        %v6405 = vand.u32 2147483647, %v430
        %vm6406 = vcmp.le.f32.partialorder %v6405, 0.7853982
        %vm6407 = vcmp.lt.s32.totalorder %v430, 0
        %v6408 = vand.u32 %v430, 2139095040
        %v6409 = vshrl.u32 %v6408, 23
        %v6410 = vsub.s32 %v6409, 127
        %v6411 = vand.u32 2147483647, %v430
        %v6412 = vand.u32 %v6411, 8388607
        %v6413 = vor.u32 %v6412, 8388608
        %v6414 = vsub.s32 0, %v6413
        %v6415 = vadd.s32 %v6410, 1
        %vm6416 = vcmp.gt.s32.totalorder %v6415, 0
        %v6417 = vsel %vm6416, %v6415, 0
        %v6418 = vshrl.u32 %v6417, 5
        %v6419 = vand.u32 %v6417, 31
        %v6420 = vsub.s32 32, %v6419
        %v6421 = vshrl.u32 683565275, %v6420
        %v6422 = vshll.u32 683565275, %v6419
        %v6423 = vshrl.u32 2475754826, %v6420
        %v6424 = vor.u32 %v6422, %v6423
        %v6425 = vshll.u32 2475754826, %v6419
        %v6426 = vshrl.u32 2131351028, %v6420
        %v6427 = vor.u32 %v6425, %v6426
        %v6428 = vshll.u32 2131351028, %v6419
        %v6429 = vshrl.u32 2102212464, %v6420
        %v6430 = vor.u32 %v6428, %v6429
        %v6431 = vshll.u32 2102212464, %v6419
        %v6432 = vshrl.u32 920167782, %v6420
        %v6433 = vor.u32 %v6431, %v6432
        %v6434 = vshll.u32 920167782, %v6419
        %v6435 = vshrl.u32 1326507024, %v6420
        %v6436 = vor.u32 %v6434, %v6435
        %vm6437 = vcmp.lt.s32.totalorder %v6418, 1
        %vm6438 = vcmp.lt.s32.totalorder %v6418, 2
        %vm6439 = vcmp.lt.s32.totalorder %v6418, 3
        %vm6440 = vcmp.lt.s32.totalorder %v6418, 4
        %v6441 = vsel %vm6437, %v6421, %v6424
        %v6442 = vsel %vm6440, %v6430, 2102212464
        %v6443 = vsel %vm6439, %v6427, %v6442
        %v6444 = vsel %vm6438, %v6441, %v6443
        %v6445 = vsel %vm6437, %v6424, %v6427
        %v6446 = vsel %vm6440, %v6433, 920167782
        %v6447 = vsel %vm6439, %v6430, %v6446
        %v6448 = vsel %vm6438, %v6445, %v6447
        %v6449 = vsel %vm6437, %v6427, %v6430
        %v6450 = vsel %vm6440, %v6436, 1326507024
        %v6451 = vsel %vm6439, %v6433, %v6450
        %v6452 = vsel %vm6438, %v6449, %v6451
        %v6453 = vshll.u32 %v6413, 8
        %v6454 = vand.u32 %v6453, 65535
        %v6455 = vshrl.u32 %v6453, 16
        %v6456 = vand.u32 %v6452, 65535
        %v6457 = vshrl.u32 %v6452, 16
        %v6458 = vmul.u32 %v6454, %v6456
        %v6459 = vmul.u32 %v6454, %v6457
        %v6460 = vmul.u32 %v6455, %v6456
        %v6461 = vmul.u32 %v6455, %v6457
        %v6462 = vshll.u32 %v6459, 16
        %v6463 = vshrl.u32 %v6459, 16
        %v6464 = vshll.u32 %v6460, 16
        %v6465 = vshrl.u32 %v6460, 16
        %vm6466 = vc.u32 %v6458, %v6462
        %v6467 = vsel %vm6466, 1, 0
        %v6468 = vadd.s32 %v6458, %v6462
        %v6469 = vadd.s32 %v6461, %v6467
        %vm6470 = vc.u32 %v6468, %v6464
        %v6471 = vsel %vm6470, 1, 0
        %v6472 = vadd.s32 %v6468, %v6464
        %v6473 = vadd.s32 %v6469, %v6471
        %v6474 = vadd.s32 %v6473, %v6463
        %v6475 = vadd.s32 %v6474, %v6465
        %v6476 = vand.u32 %v6453, 65535
        %v6477 = vshrl.u32 %v6453, 16
        %v6478 = vand.u32 %v6448, 65535
        %v6479 = vshrl.u32 %v6448, 16
        %v6480 = vmul.u32 %v6476, %v6478
        %v6481 = vmul.u32 %v6476, %v6479
        %v6482 = vmul.u32 %v6477, %v6478
        %v6483 = vmul.u32 %v6477, %v6479
        %v6484 = vshll.u32 %v6481, 16
        %v6485 = vshrl.u32 %v6481, 16
        %v6486 = vshll.u32 %v6482, 16
        %v6487 = vshrl.u32 %v6482, 16
        %vm6488 = vc.u32 %v6480, %v6484
        %v6489 = vsel %vm6488, 1, 0
        %v6490 = vadd.s32 %v6480, %v6484
        %v6491 = vadd.s32 %v6483, %v6489
        %vm6492 = vc.u32 %v6490, %v6486
        %v6493 = vsel %vm6492, 1, 0
        %v6494 = vadd.s32 %v6490, %v6486
        %v6495 = vadd.s32 %v6491, %v6493
        %v6496 = vadd.s32 %v6495, %v6485
        %v6497 = vadd.s32 %v6496, %v6487
        %v6498 = vmul.u32 %v6453, %v6444
        %v6499 = vadd.s32 %v6475, %v6494
        %vm6500 = vc.u32 %v6475, %v6494
        %v6501 = vadd.s32 %v6497, 1
        %v6502 = vsel %vm6500, %v6501, %v6497
        %v6503 = vadd.s32 %v6498, %v6502
        %v6504 = vadd.s32 %v6503, 536870912
        %v6505 = vshrl.u32 %v6504, 30
        %v6506 = vshll.u32 %v6505, 30
        %v6507 = vsub.s32 %v6503, %v6506
        %vm6508 = vcmp.lt.s32.totalorder %v6507, 0
        %v6509 = vsub.s32 0, %v6507
        %v6510 = vsel %vm6508, %v6509, %v6507
        %v6511 = vclz %v6510
        %v6512 = vsub.s32 %v6511, 2
        %vm6513 = vcmp.gt.s32.totalorder 0, %v6512
        %v6514 = vsel %vm6513, 0, %v6512
        %v6515 = vsub.s32 32, %v6514
        %v6516 = vshll.u32 %v6507, %v6514
        %v6517 = vshrl.u32 %v6499, %v6515
        %v6518 = vor.u32 %v6516, %v6517
        %v6519 = vsub.s32 4294967266, %v6514
        %v6520 = vadd.s32 %v6519, 127
        %v6521 = vshll.u32 %v6520, 23
        %v6522 = vor.u32 4788187, %v6521
        %v6523 = vand.u32 2147483647, %v6522
        %v6525 = vcvt.s32.f32 %v6518
        %v6526 = vmul.f32 %v6525, %v6523
        %v6527 = vxor.u32 %v6526, 2147483648
        %v6528 = vsel %vm6407, %v6527, %v6526
        %v6529 = vsub.s32 4, %v6505
        %v6530 = vsel %vm6407, %v6529, %v6505
        %v6531 = vsel %vm6406, %v430, %v6528
        %v6532 = vsel %vm6406, 0, %v6530
        %v6533 = vmul.f32 %v6531, %v6531
        %v6534 = vmul.f32 %v6533, -0.001358992
        %v6535 = vadd.f32 %v6534, 0.041655596
        %v6536 = vmul.f32 %v6533, %v6535
        %v6537 = vadd.f32 %v6536, -0.4999988
        %v6538 = vmul.f32 %v6533, %v6537
        %v6539 = vadd.f32 1.0, %v6538
        %v6540 = vmul.f32 %v6531, %v6531
        %v6541 = vmul.f32 %v6540, -0.00019511016
        %v6542 = vadd.f32 %v6541, 0.008332121
        %v6543 = vmul.f32 %v6540, %v6542
        %v6544 = vadd.f32 %v6543, -0.16666654
        %v6545 = vmul.f32 %v6540, %v6544
        %v6546 = vadd.f32 %v6545, 1.0
        %v6547 = vmul.f32 %v6546, %v6531
        %vm6548 = vweird.f32 %v430
        %v6549 = vand.u32 %v6532, 3
        %vm6550 = vcmp.lt.s32.totalorder %v6549, 2
        %vm6551 = vcmp.eq.s32.totalorder %v6549, 0
        %v6552 = vxor.u32 %v6547, 2147483648
        %v6553 = vsel %vm6551, %v6539, %v6552
        %vm6554 = vcmp.eq.s32.totalorder %v6549, 2
        %v6555 = vxor.u32 %v6539, 2147483648
        %v6556 = vsel %vm6554, %v6555, %v6547
        %v6557 = vsel %vm6550, %v6553, %v6556
        %v6558 = vsel %vm6548, nan, %v6557
        %v6559 = vand.u32 2147483647, %v431
        %vm6560 = vcmp.le.f32.partialorder %v6559, 0.7853982
        %vm6561 = vcmp.lt.s32.totalorder %v431, 0
        %v6562 = vand.u32 %v431, 2139095040
        %v6563 = vshrl.u32 %v6562, 23
        %v6564 = vsub.s32 %v6563, 127
        %v6565 = vand.u32 2147483647, %v431
        %v6566 = vand.u32 %v6565, 8388607
        %v6567 = vor.u32 %v6566, 8388608
        %v6568 = vsub.s32 0, %v6567
        %v6569 = vadd.s32 %v6564, 1
        %vm6570 = vcmp.gt.s32.totalorder %v6569, 0
        %v6571 = vsel %vm6570, %v6569, 0
        %v6572 = vshrl.u32 %v6571, 5
        %v6573 = vand.u32 %v6571, 31
        %v6574 = vsub.s32 32, %v6573
        %v6575 = vshrl.u32 683565275, %v6574
        %v6576 = vshll.u32 683565275, %v6573
        %v6577 = vshrl.u32 2475754826, %v6574
        %v6578 = vor.u32 %v6576, %v6577
        %v6579 = vshll.u32 2475754826, %v6573
        %v6580 = vshrl.u32 2131351028, %v6574
        %v6581 = vor.u32 %v6579, %v6580
        %v6582 = vshll.u32 2131351028, %v6573
        %v6583 = vshrl.u32 2102212464, %v6574
        %v6584 = vor.u32 %v6582, %v6583
        %v6585 = vshll.u32 2102212464, %v6573
        %v6586 = vshrl.u32 920167782, %v6574
        %v6587 = vor.u32 %v6585, %v6586
        %v6588 = vshll.u32 920167782, %v6573
        %v6589 = vshrl.u32 1326507024, %v6574
        %v6590 = vor.u32 %v6588, %v6589
        %vm6591 = vcmp.lt.s32.totalorder %v6572, 1
        %vm6592 = vcmp.lt.s32.totalorder %v6572, 2
        %vm6593 = vcmp.lt.s32.totalorder %v6572, 3
        %vm6594 = vcmp.lt.s32.totalorder %v6572, 4
        %v6595 = vsel %vm6591, %v6575, %v6578
        %v6596 = vsel %vm6594, %v6584, 2102212464
        %v6597 = vsel %vm6593, %v6581, %v6596
        %v6598 = vsel %vm6592, %v6595, %v6597
        %v6599 = vsel %vm6591, %v6578, %v6581
        %v6600 = vsel %vm6594, %v6587, 920167782
        %v6601 = vsel %vm6593, %v6584, %v6600
        %v6602 = vsel %vm6592, %v6599, %v6601
        %v6603 = vsel %vm6591, %v6581, %v6584
        %v6604 = vsel %vm6594, %v6590, 1326507024
        %v6605 = vsel %vm6593, %v6587, %v6604
        %v6606 = vsel %vm6592, %v6603, %v6605
        %v6607 = vshll.u32 %v6567, 8
        %v6608 = vand.u32 %v6607, 65535
        %v6609 = vshrl.u32 %v6607, 16
        %v6610 = vand.u32 %v6606, 65535
        %v6611 = vshrl.u32 %v6606, 16
        %v6612 = vmul.u32 %v6608, %v6610
        %v6613 = vmul.u32 %v6608, %v6611
        %v6614 = vmul.u32 %v6609, %v6610
        %v6615 = vmul.u32 %v6609, %v6611
        %v6616 = vshll.u32 %v6613, 16
        %v6617 = vshrl.u32 %v6613, 16
        %v6618 = vshll.u32 %v6614, 16
        %v6619 = vshrl.u32 %v6614, 16
        %vm6620 = vc.u32 %v6612, %v6616
        %v6621 = vsel %vm6620, 1, 0
        %v6622 = vadd.s32 %v6612, %v6616
        %v6623 = vadd.s32 %v6615, %v6621
        %vm6624 = vc.u32 %v6622, %v6618
        %v6625 = vsel %vm6624, 1, 0
        %v6626 = vadd.s32 %v6622, %v6618
        %v6627 = vadd.s32 %v6623, %v6625
        %v6628 = vadd.s32 %v6627, %v6617
        %v6629 = vadd.s32 %v6628, %v6619
        %v6630 = vand.u32 %v6607, 65535
        %v6631 = vshrl.u32 %v6607, 16
        %v6632 = vand.u32 %v6602, 65535
        %v6633 = vshrl.u32 %v6602, 16
        %v6634 = vmul.u32 %v6630, %v6632
        %v6635 = vmul.u32 %v6630, %v6633
        %v6636 = vmul.u32 %v6631, %v6632
        %v6637 = vmul.u32 %v6631, %v6633
        %v6638 = vshll.u32 %v6635, 16
        %v6639 = vshrl.u32 %v6635, 16
        %v6640 = vshll.u32 %v6636, 16
        %v6641 = vshrl.u32 %v6636, 16
        %vm6642 = vc.u32 %v6634, %v6638
        %v6643 = vsel %vm6642, 1, 0
        %v6644 = vadd.s32 %v6634, %v6638
        %v6645 = vadd.s32 %v6637, %v6643
        %vm6646 = vc.u32 %v6644, %v6640
        %v6647 = vsel %vm6646, 1, 0
        %v6648 = vadd.s32 %v6644, %v6640
        %v6649 = vadd.s32 %v6645, %v6647
        %v6650 = vadd.s32 %v6649, %v6639
        %v6651 = vadd.s32 %v6650, %v6641
        %v6652 = vmul.u32 %v6607, %v6598
        %v6653 = vadd.s32 %v6629, %v6648
        %vm6654 = vc.u32 %v6629, %v6648
        %v6655 = vadd.s32 %v6651, 1
        %v6656 = vsel %vm6654, %v6655, %v6651
        %v6657 = vadd.s32 %v6652, %v6656
        %v6658 = vadd.s32 %v6657, 536870912
        %v6659 = vshrl.u32 %v6658, 30
        %v6660 = vshll.u32 %v6659, 30
        %v6661 = vsub.s32 %v6657, %v6660
        %vm6662 = vcmp.lt.s32.totalorder %v6661, 0
        %v6663 = vsub.s32 0, %v6661
        %v6664 = vsel %vm6662, %v6663, %v6661
        %v6665 = vclz %v6664
        %v6666 = vsub.s32 %v6665, 2
        %vm6667 = vcmp.gt.s32.totalorder 0, %v6666
        %v6668 = vsel %vm6667, 0, %v6666
        %v6669 = vsub.s32 32, %v6668
        %v6670 = vshll.u32 %v6661, %v6668
        %v6671 = vshrl.u32 %v6653, %v6669
        %v6672 = vor.u32 %v6670, %v6671
        %v6673 = vsub.s32 4294967266, %v6668
        %v6674 = vadd.s32 %v6673, 127
        %v6675 = vshll.u32 %v6674, 23
        %v6676 = vor.u32 4788187, %v6675
        %v6677 = vand.u32 2147483647, %v6676
        %v6679 = vcvt.s32.f32 %v6672
        %v6680 = vmul.f32 %v6679, %v6677
        %v6681 = vxor.u32 %v6680, 2147483648
        %v6682 = vsel %vm6561, %v6681, %v6680
        %v6683 = vsub.s32 4, %v6659
        %v6684 = vsel %vm6561, %v6683, %v6659
        %v6685 = vsel %vm6560, %v431, %v6682
        %v6686 = vsel %vm6560, 0, %v6684
        %v6687 = vmul.f32 %v6685, %v6685
        %v6688 = vmul.f32 %v6687, -0.001358992
        %v6689 = vadd.f32 %v6688, 0.041655596
        %v6690 = vmul.f32 %v6687, %v6689
        %v6691 = vadd.f32 %v6690, -0.4999988
        %v6692 = vmul.f32 %v6687, %v6691
        %v6693 = vadd.f32 1.0, %v6692
        %v6694 = vmul.f32 %v6685, %v6685
        %v6695 = vmul.f32 %v6694, -0.00019511016
        %v6696 = vadd.f32 %v6695, 0.008332121
        %v6697 = vmul.f32 %v6694, %v6696
        %v6698 = vadd.f32 %v6697, -0.16666654
        %v6699 = vmul.f32 %v6694, %v6698
        %v6700 = vadd.f32 %v6699, 1.0
        %v6701 = vmul.f32 %v6700, %v6685
        %vm6702 = vweird.f32 %v431
        %v6703 = vand.u32 %v6686, 3
        %vm6704 = vcmp.lt.s32.totalorder %v6703, 2
        %vm6705 = vcmp.eq.s32.totalorder %v6703, 0
        %v6706 = vxor.u32 %v6701, 2147483648
        %v6707 = vsel %vm6705, %v6693, %v6706
        %vm6708 = vcmp.eq.s32.totalorder %v6703, 2
        %v6709 = vxor.u32 %v6693, 2147483648
        %v6710 = vsel %vm6708, %v6709, %v6701
        %v6711 = vsel %vm6704, %v6707, %v6710
        %v6712 = vsel %vm6702, nan, %v6711
        %v6713 = vand.u32 2147483647, %v432
        %vm6714 = vcmp.le.f32.partialorder %v6713, 0.7853982
        %vm6715 = vcmp.lt.s32.totalorder %v432, 0
        %v6716 = vand.u32 %v432, 2139095040
        %v6717 = vshrl.u32 %v6716, 23
        %v6718 = vsub.s32 %v6717, 127
        %v6719 = vand.u32 2147483647, %v432
        %v6720 = vand.u32 %v6719, 8388607
        %v6721 = vor.u32 %v6720, 8388608
        %v6722 = vsub.s32 0, %v6721
        %v6723 = vadd.s32 %v6718, 1
        %vm6724 = vcmp.gt.s32.totalorder %v6723, 0
        %v6725 = vsel %vm6724, %v6723, 0
        %v6726 = vshrl.u32 %v6725, 5
        %v6727 = vand.u32 %v6725, 31
        %v6728 = vsub.s32 32, %v6727
        %v6729 = vshrl.u32 683565275, %v6728
        %v6730 = vshll.u32 683565275, %v6727
        %v6731 = vshrl.u32 2475754826, %v6728
        %v6732 = vor.u32 %v6730, %v6731
        %v6733 = vshll.u32 2475754826, %v6727
        %v6734 = vshrl.u32 2131351028, %v6728
        %v6735 = vor.u32 %v6733, %v6734
        %v6736 = vshll.u32 2131351028, %v6727
        %v6737 = vshrl.u32 2102212464, %v6728
        %v6738 = vor.u32 %v6736, %v6737
        %v6739 = vshll.u32 2102212464, %v6727
        %v6740 = vshrl.u32 920167782, %v6728
        %v6741 = vor.u32 %v6739, %v6740
        %v6742 = vshll.u32 920167782, %v6727
        %v6743 = vshrl.u32 1326507024, %v6728
        %v6744 = vor.u32 %v6742, %v6743
        %vm6745 = vcmp.lt.s32.totalorder %v6726, 1
        %vm6746 = vcmp.lt.s32.totalorder %v6726, 2
        %vm6747 = vcmp.lt.s32.totalorder %v6726, 3
        %vm6748 = vcmp.lt.s32.totalorder %v6726, 4
        %v6749 = vsel %vm6745, %v6729, %v6732
        %v6750 = vsel %vm6748, %v6738, 2102212464
        %v6751 = vsel %vm6747, %v6735, %v6750
        %v6752 = vsel %vm6746, %v6749, %v6751
        %v6753 = vsel %vm6745, %v6732, %v6735
        %v6754 = vsel %vm6748, %v6741, 920167782
        %v6755 = vsel %vm6747, %v6738, %v6754
        %v6756 = vsel %vm6746, %v6753, %v6755
        %v6757 = vsel %vm6745, %v6735, %v6738
        %v6758 = vsel %vm6748, %v6744, 1326507024
        %v6759 = vsel %vm6747, %v6741, %v6758
        %v6760 = vsel %vm6746, %v6757, %v6759
        %v6761 = vshll.u32 %v6721, 8
        %v6762 = vand.u32 %v6761, 65535
        %v6763 = vshrl.u32 %v6761, 16
        %v6764 = vand.u32 %v6760, 65535
        %v6765 = vshrl.u32 %v6760, 16
        %v6766 = vmul.u32 %v6762, %v6764
        %v6767 = vmul.u32 %v6762, %v6765
        %v6768 = vmul.u32 %v6763, %v6764
        %v6769 = vmul.u32 %v6763, %v6765
        %v6770 = vshll.u32 %v6767, 16
        %v6771 = vshrl.u32 %v6767, 16
        %v6772 = vshll.u32 %v6768, 16
        %v6773 = vshrl.u32 %v6768, 16
        %vm6774 = vc.u32 %v6766, %v6770
        %v6775 = vsel %vm6774, 1, 0
        %v6776 = vadd.s32 %v6766, %v6770
        %v6777 = vadd.s32 %v6769, %v6775
        %vm6778 = vc.u32 %v6776, %v6772
        %v6779 = vsel %vm6778, 1, 0
        %v6780 = vadd.s32 %v6776, %v6772
        %v6781 = vadd.s32 %v6777, %v6779
        %v6782 = vadd.s32 %v6781, %v6771
        %v6783 = vadd.s32 %v6782, %v6773
        %v6784 = vand.u32 %v6761, 65535
        %v6785 = vshrl.u32 %v6761, 16
        %v6786 = vand.u32 %v6756, 65535
        %v6787 = vshrl.u32 %v6756, 16
        %v6788 = vmul.u32 %v6784, %v6786
        %v6789 = vmul.u32 %v6784, %v6787
        %v6790 = vmul.u32 %v6785, %v6786
        %v6791 = vmul.u32 %v6785, %v6787
        %v6792 = vshll.u32 %v6789, 16
        %v6793 = vshrl.u32 %v6789, 16
        %v6794 = vshll.u32 %v6790, 16
        %v6795 = vshrl.u32 %v6790, 16
        %vm6796 = vc.u32 %v6788, %v6792
        %v6797 = vsel %vm6796, 1, 0
        %v6798 = vadd.s32 %v6788, %v6792
        %v6799 = vadd.s32 %v6791, %v6797
        %vm6800 = vc.u32 %v6798, %v6794
        %v6801 = vsel %vm6800, 1, 0
        %v6802 = vadd.s32 %v6798, %v6794
        %v6803 = vadd.s32 %v6799, %v6801
        %v6804 = vadd.s32 %v6803, %v6793
        %v6805 = vadd.s32 %v6804, %v6795
        %v6806 = vmul.u32 %v6761, %v6752
        %v6807 = vadd.s32 %v6783, %v6802
        %vm6808 = vc.u32 %v6783, %v6802
        %v6809 = vadd.s32 %v6805, 1
        %v6810 = vsel %vm6808, %v6809, %v6805
        %v6811 = vadd.s32 %v6806, %v6810
        %v6812 = vadd.s32 %v6811, 536870912
        %v6813 = vshrl.u32 %v6812, 30
        %v6814 = vshll.u32 %v6813, 30
        %v6815 = vsub.s32 %v6811, %v6814
        %vm6816 = vcmp.lt.s32.totalorder %v6815, 0
        %v6817 = vsub.s32 0, %v6815
        %v6818 = vsel %vm6816, %v6817, %v6815
        %v6819 = vclz %v6818
        %v6820 = vsub.s32 %v6819, 2
        %vm6821 = vcmp.gt.s32.totalorder 0, %v6820
        %v6822 = vsel %vm6821, 0, %v6820
        %v6823 = vsub.s32 32, %v6822
        %v6824 = vshll.u32 %v6815, %v6822
        %v6825 = vshrl.u32 %v6807, %v6823
        %v6826 = vor.u32 %v6824, %v6825
        %v6827 = vsub.s32 4294967266, %v6822
        %v6828 = vadd.s32 %v6827, 127
        %v6829 = vshll.u32 %v6828, 23
        %v6830 = vor.u32 4788187, %v6829
        %v6831 = vand.u32 2147483647, %v6830
        %v6833 = vcvt.s32.f32 %v6826
        %v6834 = vmul.f32 %v6833, %v6831
        %v6835 = vxor.u32 %v6834, 2147483648
        %v6836 = vsel %vm6715, %v6835, %v6834
        %v6837 = vsub.s32 4, %v6813
        %v6838 = vsel %vm6715, %v6837, %v6813
        %v6839 = vsel %vm6714, %v432, %v6836
        %v6840 = vsel %vm6714, 0, %v6838
        %v6841 = vmul.f32 %v6839, %v6839
        %v6842 = vmul.f32 %v6841, -0.001358992
        %v6843 = vadd.f32 %v6842, 0.041655596
        %v6844 = vmul.f32 %v6841, %v6843
        %v6845 = vadd.f32 %v6844, -0.4999988
        %v6846 = vmul.f32 %v6841, %v6845
        %v6847 = vadd.f32 1.0, %v6846
        %v6848 = vmul.f32 %v6839, %v6839
        %v6849 = vmul.f32 %v6848, -0.00019511016
        %v6850 = vadd.f32 %v6849, 0.008332121
        %v6851 = vmul.f32 %v6848, %v6850
        %v6852 = vadd.f32 %v6851, -0.16666654
        %v6853 = vmul.f32 %v6848, %v6852
        %v6854 = vadd.f32 %v6853, 1.0
        %v6855 = vmul.f32 %v6854, %v6839
        %vm6856 = vweird.f32 %v432
        %v6857 = vand.u32 %v6840, 3
        %vm6858 = vcmp.lt.s32.totalorder %v6857, 2
        %vm6859 = vcmp.eq.s32.totalorder %v6857, 0
        %v6860 = vxor.u32 %v6855, 2147483648
        %v6861 = vsel %vm6859, %v6847, %v6860
        %vm6862 = vcmp.eq.s32.totalorder %v6857, 2
        %v6863 = vxor.u32 %v6847, 2147483648
        %v6864 = vsel %vm6862, %v6863, %v6855
        %v6865 = vsel %vm6858, %v6861, %v6864
        %v6866 = vsel %vm6856, nan, %v6865
        %v6867 = vand.u32 2147483647, %v433
        %vm6868 = vcmp.le.f32.partialorder %v6867, 0.7853982
        %vm6869 = vcmp.lt.s32.totalorder %v433, 0
        %v6870 = vand.u32 %v433, 2139095040
        %v6871 = vshrl.u32 %v6870, 23
        %v6872 = vsub.s32 %v6871, 127
        %v6873 = vand.u32 2147483647, %v433
        %v6874 = vand.u32 %v6873, 8388607
        %v6875 = vor.u32 %v6874, 8388608
        %v6876 = vsub.s32 0, %v6875
        %v6877 = vadd.s32 %v6872, 1
        %vm6878 = vcmp.gt.s32.totalorder %v6877, 0
        %v6879 = vsel %vm6878, %v6877, 0
        %v6880 = vshrl.u32 %v6879, 5
        %v6881 = vand.u32 %v6879, 31
        %v6882 = vsub.s32 32, %v6881
        %v6883 = vshrl.u32 683565275, %v6882
        %v6884 = vshll.u32 683565275, %v6881
        %v6885 = vshrl.u32 2475754826, %v6882
        %v6886 = vor.u32 %v6884, %v6885
        %v6887 = vshll.u32 2475754826, %v6881
        %v6888 = vshrl.u32 2131351028, %v6882
        %v6889 = vor.u32 %v6887, %v6888
        %v6890 = vshll.u32 2131351028, %v6881
        %v6891 = vshrl.u32 2102212464, %v6882
        %v6892 = vor.u32 %v6890, %v6891
        %v6893 = vshll.u32 2102212464, %v6881
        %v6894 = vshrl.u32 920167782, %v6882
        %v6895 = vor.u32 %v6893, %v6894
        %v6896 = vshll.u32 920167782, %v6881
        %v6897 = vshrl.u32 1326507024, %v6882
        %v6898 = vor.u32 %v6896, %v6897
        %vm6899 = vcmp.lt.s32.totalorder %v6880, 1
        %vm6900 = vcmp.lt.s32.totalorder %v6880, 2
        %vm6901 = vcmp.lt.s32.totalorder %v6880, 3
        %vm6902 = vcmp.lt.s32.totalorder %v6880, 4
        %v6903 = vsel %vm6899, %v6883, %v6886
        %v6904 = vsel %vm6902, %v6892, 2102212464
        %v6905 = vsel %vm6901, %v6889, %v6904
        %v6906 = vsel %vm6900, %v6903, %v6905
        %v6907 = vsel %vm6899, %v6886, %v6889
        %v6908 = vsel %vm6902, %v6895, 920167782
        %v6909 = vsel %vm6901, %v6892, %v6908
        %v6910 = vsel %vm6900, %v6907, %v6909
        %v6911 = vsel %vm6899, %v6889, %v6892
        %v6912 = vsel %vm6902, %v6898, 1326507024
        %v6913 = vsel %vm6901, %v6895, %v6912
        %v6914 = vsel %vm6900, %v6911, %v6913
        %v6915 = vshll.u32 %v6875, 8
        %v6916 = vand.u32 %v6915, 65535
        %v6917 = vshrl.u32 %v6915, 16
        %v6918 = vand.u32 %v6914, 65535
        %v6919 = vshrl.u32 %v6914, 16
        %v6920 = vmul.u32 %v6916, %v6918
        %v6921 = vmul.u32 %v6916, %v6919
        %v6922 = vmul.u32 %v6917, %v6918
        %v6923 = vmul.u32 %v6917, %v6919
        %v6924 = vshll.u32 %v6921, 16
        %v6925 = vshrl.u32 %v6921, 16
        %v6926 = vshll.u32 %v6922, 16
        %v6927 = vshrl.u32 %v6922, 16
        %vm6928 = vc.u32 %v6920, %v6924
        %v6929 = vsel %vm6928, 1, 0
        %v6930 = vadd.s32 %v6920, %v6924
        %v6931 = vadd.s32 %v6923, %v6929
        %vm6932 = vc.u32 %v6930, %v6926
        %v6933 = vsel %vm6932, 1, 0
        %v6934 = vadd.s32 %v6930, %v6926
        %v6935 = vadd.s32 %v6931, %v6933
        %v6936 = vadd.s32 %v6935, %v6925
        %v6937 = vadd.s32 %v6936, %v6927
        %v6938 = vand.u32 %v6915, 65535
        %v6939 = vshrl.u32 %v6915, 16
        %v6940 = vand.u32 %v6910, 65535
        %v6941 = vshrl.u32 %v6910, 16
        %v6942 = vmul.u32 %v6938, %v6940
        %v6943 = vmul.u32 %v6938, %v6941
        %v6944 = vmul.u32 %v6939, %v6940
        %v6945 = vmul.u32 %v6939, %v6941
        %v6946 = vshll.u32 %v6943, 16
        %v6947 = vshrl.u32 %v6943, 16
        %v6948 = vshll.u32 %v6944, 16
        %v6949 = vshrl.u32 %v6944, 16
        %vm6950 = vc.u32 %v6942, %v6946
        %v6951 = vsel %vm6950, 1, 0
        %v6952 = vadd.s32 %v6942, %v6946
        %v6953 = vadd.s32 %v6945, %v6951
        %vm6954 = vc.u32 %v6952, %v6948
        %v6955 = vsel %vm6954, 1, 0
        %v6956 = vadd.s32 %v6952, %v6948
        %v6957 = vadd.s32 %v6953, %v6955
        %v6958 = vadd.s32 %v6957, %v6947
        %v6959 = vadd.s32 %v6958, %v6949
        %v6960 = vmul.u32 %v6915, %v6906
        %v6961 = vadd.s32 %v6937, %v6956
        %vm6962 = vc.u32 %v6937, %v6956
        %v6963 = vadd.s32 %v6959, 1
        %v6964 = vsel %vm6962, %v6963, %v6959
        %v6965 = vadd.s32 %v6960, %v6964
        %v6966 = vadd.s32 %v6965, 536870912
        %v6967 = vshrl.u32 %v6966, 30
        %v6968 = vshll.u32 %v6967, 30
        %v6969 = vsub.s32 %v6965, %v6968
        %vm6970 = vcmp.lt.s32.totalorder %v6969, 0
        %v6971 = vsub.s32 0, %v6969
        %v6972 = vsel %vm6970, %v6971, %v6969
        %v6973 = vclz %v6972
        %v6974 = vsub.s32 %v6973, 2
        %vm6975 = vcmp.gt.s32.totalorder 0, %v6974
        %v6976 = vsel %vm6975, 0, %v6974
        %v6977 = vsub.s32 32, %v6976
        %v6978 = vshll.u32 %v6969, %v6976
        %v6979 = vshrl.u32 %v6961, %v6977
        %v6980 = vor.u32 %v6978, %v6979
        %v6981 = vsub.s32 4294967266, %v6976
        %v6982 = vadd.s32 %v6981, 127
        %v6983 = vshll.u32 %v6982, 23
        %v6984 = vor.u32 4788187, %v6983
        %v6985 = vand.u32 2147483647, %v6984
        %v6987 = vcvt.s32.f32 %v6980
        %v6988 = vmul.f32 %v6987, %v6985
        %v6989 = vxor.u32 %v6988, 2147483648
        %v6990 = vsel %vm6869, %v6989, %v6988
        %v6991 = vsub.s32 4, %v6967
        %v6992 = vsel %vm6869, %v6991, %v6967
        %v6993 = vsel %vm6868, %v433, %v6990
        %v6994 = vsel %vm6868, 0, %v6992
        %v6995 = vmul.f32 %v6993, %v6993
        %v6996 = vmul.f32 %v6995, -0.001358992
        %v6997 = vadd.f32 %v6996, 0.041655596
        %v6998 = vmul.f32 %v6995, %v6997
        %v6999 = vadd.f32 %v6998, -0.4999988
        %v7000 = vmul.f32 %v6995, %v6999
        %v7001 = vadd.f32 1.0, %v7000
        %v7002 = vmul.f32 %v6993, %v6993
        %v7003 = vmul.f32 %v7002, -0.00019511016
        %v7004 = vadd.f32 %v7003, 0.008332121
        %v7005 = vmul.f32 %v7002, %v7004
        %v7006 = vadd.f32 %v7005, -0.16666654
        %v7007 = vmul.f32 %v7002, %v7006
        %v7008 = vadd.f32 %v7007, 1.0
        %v7009 = vmul.f32 %v7008, %v6993
        %vm7010 = vweird.f32 %v433
        %v7011 = vand.u32 %v6994, 3
        %vm7012 = vcmp.lt.s32.totalorder %v7011, 2
        %vm7013 = vcmp.eq.s32.totalorder %v7011, 0
        %v7014 = vxor.u32 %v7009, 2147483648
        %v7015 = vsel %vm7013, %v7001, %v7014
        %vm7016 = vcmp.eq.s32.totalorder %v7011, 2
        %v7017 = vxor.u32 %v7001, 2147483648
        %v7018 = vsel %vm7016, %v7017, %v7009
        %v7019 = vsel %vm7012, %v7015, %v7018
        %v7020 = vsel %vm7010, nan, %v7019
        %v7021 = vand.u32 2147483647, %v434
        %vm7022 = vcmp.le.f32.partialorder %v7021, 0.7853982
        %vm7023 = vcmp.lt.s32.totalorder %v434, 0
        %v7024 = vand.u32 %v434, 2139095040
        %v7025 = vshrl.u32 %v7024, 23
        %v7026 = vsub.s32 %v7025, 127
        %v7027 = vand.u32 2147483647, %v434
        %v7028 = vand.u32 %v7027, 8388607
        %v7029 = vor.u32 %v7028, 8388608
        %v7030 = vsub.s32 0, %v7029
        %v7031 = vadd.s32 %v7026, 1
        %vm7032 = vcmp.gt.s32.totalorder %v7031, 0
        %v7033 = vsel %vm7032, %v7031, 0
        %v7034 = vshrl.u32 %v7033, 5
        %v7035 = vand.u32 %v7033, 31
        %v7036 = vsub.s32 32, %v7035
        %v7037 = vshrl.u32 683565275, %v7036
        %v7038 = vshll.u32 683565275, %v7035
        %v7039 = vshrl.u32 2475754826, %v7036
        %v7040 = vor.u32 %v7038, %v7039
        %v7041 = vshll.u32 2475754826, %v7035
        %v7042 = vshrl.u32 2131351028, %v7036
        %v7043 = vor.u32 %v7041, %v7042
        %v7044 = vshll.u32 2131351028, %v7035
        %v7045 = vshrl.u32 2102212464, %v7036
        %v7046 = vor.u32 %v7044, %v7045
        %v7047 = vshll.u32 2102212464, %v7035
        %v7048 = vshrl.u32 920167782, %v7036
        %v7049 = vor.u32 %v7047, %v7048
        %v7050 = vshll.u32 920167782, %v7035
        %v7051 = vshrl.u32 1326507024, %v7036
        %v7052 = vor.u32 %v7050, %v7051
        %vm7053 = vcmp.lt.s32.totalorder %v7034, 1
        %vm7054 = vcmp.lt.s32.totalorder %v7034, 2
        %vm7055 = vcmp.lt.s32.totalorder %v7034, 3
        %vm7056 = vcmp.lt.s32.totalorder %v7034, 4
        %v7057 = vsel %vm7053, %v7037, %v7040
        %v7058 = vsel %vm7056, %v7046, 2102212464
        %v7059 = vsel %vm7055, %v7043, %v7058
        %v7060 = vsel %vm7054, %v7057, %v7059
        %v7061 = vsel %vm7053, %v7040, %v7043
        %v7062 = vsel %vm7056, %v7049, 920167782
        %v7063 = vsel %vm7055, %v7046, %v7062
        %v7064 = vsel %vm7054, %v7061, %v7063
        %v7065 = vsel %vm7053, %v7043, %v7046
        %v7066 = vsel %vm7056, %v7052, 1326507024
        %v7067 = vsel %vm7055, %v7049, %v7066
        %v7068 = vsel %vm7054, %v7065, %v7067
        %v7069 = vshll.u32 %v7029, 8
        %v7070 = vand.u32 %v7069, 65535
        %v7071 = vshrl.u32 %v7069, 16
        %v7072 = vand.u32 %v7068, 65535
        %v7073 = vshrl.u32 %v7068, 16
        %v7074 = vmul.u32 %v7070, %v7072
        %v7075 = vmul.u32 %v7070, %v7073
        %v7076 = vmul.u32 %v7071, %v7072
        %v7077 = vmul.u32 %v7071, %v7073
        %v7078 = vshll.u32 %v7075, 16
        %v7079 = vshrl.u32 %v7075, 16
        %v7080 = vshll.u32 %v7076, 16
        %v7081 = vshrl.u32 %v7076, 16
        %vm7082 = vc.u32 %v7074, %v7078
        %v7083 = vsel %vm7082, 1, 0
        %v7084 = vadd.s32 %v7074, %v7078
        %v7085 = vadd.s32 %v7077, %v7083
        %vm7086 = vc.u32 %v7084, %v7080
        %v7087 = vsel %vm7086, 1, 0
        %v7088 = vadd.s32 %v7084, %v7080
        %v7089 = vadd.s32 %v7085, %v7087
        %v7090 = vadd.s32 %v7089, %v7079
        %v7091 = vadd.s32 %v7090, %v7081
        %v7092 = vand.u32 %v7069, 65535
        %v7093 = vshrl.u32 %v7069, 16
        %v7094 = vand.u32 %v7064, 65535
        %v7095 = vshrl.u32 %v7064, 16
        %v7096 = vmul.u32 %v7092, %v7094
        %v7097 = vmul.u32 %v7092, %v7095
        %v7098 = vmul.u32 %v7093, %v7094
        %v7099 = vmul.u32 %v7093, %v7095
        %v7100 = vshll.u32 %v7097, 16
        %v7101 = vshrl.u32 %v7097, 16
        %v7102 = vshll.u32 %v7098, 16
        %v7103 = vshrl.u32 %v7098, 16
        %vm7104 = vc.u32 %v7096, %v7100
        %v7105 = vsel %vm7104, 1, 0
        %v7106 = vadd.s32 %v7096, %v7100
        %v7107 = vadd.s32 %v7099, %v7105
        %vm7108 = vc.u32 %v7106, %v7102
        %v7109 = vsel %vm7108, 1, 0
        %v7110 = vadd.s32 %v7106, %v7102
        %v7111 = vadd.s32 %v7107, %v7109
        %v7112 = vadd.s32 %v7111, %v7101
        %v7113 = vadd.s32 %v7112, %v7103
        %v7114 = vmul.u32 %v7069, %v7060
        %v7115 = vadd.s32 %v7091, %v7110
        %vm7116 = vc.u32 %v7091, %v7110
        %v7117 = vadd.s32 %v7113, 1
        %v7118 = vsel %vm7116, %v7117, %v7113
        %v7119 = vadd.s32 %v7114, %v7118
        %v7120 = vadd.s32 %v7119, 536870912
        %v7121 = vshrl.u32 %v7120, 30
        %v7122 = vshll.u32 %v7121, 30
        %v7123 = vsub.s32 %v7119, %v7122
        %vm7124 = vcmp.lt.s32.totalorder %v7123, 0
        %v7125 = vsub.s32 0, %v7123
        %v7126 = vsel %vm7124, %v7125, %v7123
        %v7127 = vclz %v7126
        %v7128 = vsub.s32 %v7127, 2
        %vm7129 = vcmp.gt.s32.totalorder 0, %v7128
        %v7130 = vsel %vm7129, 0, %v7128
        %v7131 = vsub.s32 32, %v7130
        %v7132 = vshll.u32 %v7123, %v7130
        %v7133 = vshrl.u32 %v7115, %v7131
        %v7134 = vor.u32 %v7132, %v7133
        %v7135 = vsub.s32 4294967266, %v7130
        %v7136 = vadd.s32 %v7135, 127
        %v7137 = vshll.u32 %v7136, 23
        %v7138 = vor.u32 4788187, %v7137
        %v7139 = vand.u32 2147483647, %v7138
        %v7141 = vcvt.s32.f32 %v7134
        %v7142 = vmul.f32 %v7141, %v7139
        %v7143 = vxor.u32 %v7142, 2147483648
        %v7144 = vsel %vm7023, %v7143, %v7142
        %v7145 = vsub.s32 4, %v7121
        %v7146 = vsel %vm7023, %v7145, %v7121
        %v7147 = vsel %vm7022, %v434, %v7144
        %v7148 = vsel %vm7022, 0, %v7146
        %v7149 = vmul.f32 %v7147, %v7147
        %v7150 = vmul.f32 %v7149, -0.001358992
        %v7151 = vadd.f32 %v7150, 0.041655596
        %v7152 = vmul.f32 %v7149, %v7151
        %v7153 = vadd.f32 %v7152, -0.4999988
        %v7154 = vmul.f32 %v7149, %v7153
        %v7155 = vadd.f32 1.0, %v7154
        %v7156 = vmul.f32 %v7147, %v7147
        %v7157 = vmul.f32 %v7156, -0.00019511016
        %v7158 = vadd.f32 %v7157, 0.008332121
        %v7159 = vmul.f32 %v7156, %v7158
        %v7160 = vadd.f32 %v7159, -0.16666654
        %v7161 = vmul.f32 %v7156, %v7160
        %v7162 = vadd.f32 %v7161, 1.0
        %v7163 = vmul.f32 %v7162, %v7147
        %vm7164 = vweird.f32 %v434
        %v7165 = vand.u32 %v7148, 3
        %vm7166 = vcmp.lt.s32.totalorder %v7165, 2
        %vm7167 = vcmp.eq.s32.totalorder %v7165, 0
        %v7168 = vxor.u32 %v7163, 2147483648
        %v7169 = vsel %vm7167, %v7155, %v7168
        %vm7170 = vcmp.eq.s32.totalorder %v7165, 2
        %v7171 = vxor.u32 %v7155, 2147483648
        %v7172 = vsel %vm7170, %v7171, %v7163
        %v7173 = vsel %vm7166, %v7169, %v7172
        %v7174 = vsel %vm7164, nan, %v7173
        %v7175 = vand.u32 2147483647, %v435
        %vm7176 = vcmp.le.f32.partialorder %v7175, 0.7853982
        %vm7177 = vcmp.lt.s32.totalorder %v435, 0
        %v7178 = vand.u32 %v435, 2139095040
        %v7179 = vshrl.u32 %v7178, 23
        %v7180 = vsub.s32 %v7179, 127
        %v7181 = vand.u32 2147483647, %v435
        %v7182 = vand.u32 %v7181, 8388607
        %v7183 = vor.u32 %v7182, 8388608
        %v7184 = vsub.s32 0, %v7183
        %v7185 = vadd.s32 %v7180, 1
        %vm7186 = vcmp.gt.s32.totalorder %v7185, 0
        %v7187 = vsel %vm7186, %v7185, 0
        %v7188 = vshrl.u32 %v7187, 5
        %v7189 = vand.u32 %v7187, 31
        %v7190 = vsub.s32 32, %v7189
        %v7191 = vshrl.u32 683565275, %v7190
        %v7192 = vshll.u32 683565275, %v7189
        %v7193 = vshrl.u32 2475754826, %v7190
        %v7194 = vor.u32 %v7192, %v7193
        %v7195 = vshll.u32 2475754826, %v7189
        %v7196 = vshrl.u32 2131351028, %v7190
        %v7197 = vor.u32 %v7195, %v7196
        %v7198 = vshll.u32 2131351028, %v7189
        %v7199 = vshrl.u32 2102212464, %v7190
        %v7200 = vor.u32 %v7198, %v7199
        %v7201 = vshll.u32 2102212464, %v7189
        %v7202 = vshrl.u32 920167782, %v7190
        %v7203 = vor.u32 %v7201, %v7202
        %v7204 = vshll.u32 920167782, %v7189
        %v7205 = vshrl.u32 1326507024, %v7190
        %v7206 = vor.u32 %v7204, %v7205
        %vm7207 = vcmp.lt.s32.totalorder %v7188, 1
        %vm7208 = vcmp.lt.s32.totalorder %v7188, 2
        %vm7209 = vcmp.lt.s32.totalorder %v7188, 3
        %vm7210 = vcmp.lt.s32.totalorder %v7188, 4
        %v7211 = vsel %vm7207, %v7191, %v7194
        %v7212 = vsel %vm7210, %v7200, 2102212464
        %v7213 = vsel %vm7209, %v7197, %v7212
        %v7214 = vsel %vm7208, %v7211, %v7213
        %v7215 = vsel %vm7207, %v7194, %v7197
        %v7216 = vsel %vm7210, %v7203, 920167782
        %v7217 = vsel %vm7209, %v7200, %v7216
        %v7218 = vsel %vm7208, %v7215, %v7217
        %v7219 = vsel %vm7207, %v7197, %v7200
        %v7220 = vsel %vm7210, %v7206, 1326507024
        %v7221 = vsel %vm7209, %v7203, %v7220
        %v7222 = vsel %vm7208, %v7219, %v7221
        %v7223 = vshll.u32 %v7183, 8
        %v7224 = vand.u32 %v7223, 65535
        %v7225 = vshrl.u32 %v7223, 16
        %v7226 = vand.u32 %v7222, 65535
        %v7227 = vshrl.u32 %v7222, 16
        %v7228 = vmul.u32 %v7224, %v7226
        %v7229 = vmul.u32 %v7224, %v7227
        %v7230 = vmul.u32 %v7225, %v7226
        %v7231 = vmul.u32 %v7225, %v7227
        %v7232 = vshll.u32 %v7229, 16
        %v7233 = vshrl.u32 %v7229, 16
        %v7234 = vshll.u32 %v7230, 16
        %v7235 = vshrl.u32 %v7230, 16
        %vm7236 = vc.u32 %v7228, %v7232
        %v7237 = vsel %vm7236, 1, 0
        %v7238 = vadd.s32 %v7228, %v7232
        %v7239 = vadd.s32 %v7231, %v7237
        %vm7240 = vc.u32 %v7238, %v7234
        %v7241 = vsel %vm7240, 1, 0
        %v7242 = vadd.s32 %v7238, %v7234
        %v7243 = vadd.s32 %v7239, %v7241
        %v7244 = vadd.s32 %v7243, %v7233
        %v7245 = vadd.s32 %v7244, %v7235
        %v7246 = vand.u32 %v7223, 65535
        %v7247 = vshrl.u32 %v7223, 16
        %v7248 = vand.u32 %v7218, 65535
        %v7249 = vshrl.u32 %v7218, 16
        %v7250 = vmul.u32 %v7246, %v7248
        %v7251 = vmul.u32 %v7246, %v7249
        %v7252 = vmul.u32 %v7247, %v7248
        %v7253 = vmul.u32 %v7247, %v7249
        %v7254 = vshll.u32 %v7251, 16
        %v7255 = vshrl.u32 %v7251, 16
        %v7256 = vshll.u32 %v7252, 16
        %v7257 = vshrl.u32 %v7252, 16
        %vm7258 = vc.u32 %v7250, %v7254
        %v7259 = vsel %vm7258, 1, 0
        %v7260 = vadd.s32 %v7250, %v7254
        %v7261 = vadd.s32 %v7253, %v7259
        %vm7262 = vc.u32 %v7260, %v7256
        %v7263 = vsel %vm7262, 1, 0
        %v7264 = vadd.s32 %v7260, %v7256
        %v7265 = vadd.s32 %v7261, %v7263
        %v7266 = vadd.s32 %v7265, %v7255
        %v7267 = vadd.s32 %v7266, %v7257
        %v7268 = vmul.u32 %v7223, %v7214
        %v7269 = vadd.s32 %v7245, %v7264
        %vm7270 = vc.u32 %v7245, %v7264
        %v7271 = vadd.s32 %v7267, 1
        %v7272 = vsel %vm7270, %v7271, %v7267
        %v7273 = vadd.s32 %v7268, %v7272
        %v7274 = vadd.s32 %v7273, 536870912
        %v7275 = vshrl.u32 %v7274, 30
        %v7276 = vshll.u32 %v7275, 30
        %v7277 = vsub.s32 %v7273, %v7276
        %vm7278 = vcmp.lt.s32.totalorder %v7277, 0
        %v7279 = vsub.s32 0, %v7277
        %v7280 = vsel %vm7278, %v7279, %v7277
        %v7281 = vclz %v7280
        %v7282 = vsub.s32 %v7281, 2
        %vm7283 = vcmp.gt.s32.totalorder 0, %v7282
        %v7284 = vsel %vm7283, 0, %v7282
        %v7285 = vsub.s32 32, %v7284
        %v7286 = vshll.u32 %v7277, %v7284
        %v7287 = vshrl.u32 %v7269, %v7285
        %v7288 = vor.u32 %v7286, %v7287
        %v7289 = vsub.s32 4294967266, %v7284
        %v7290 = vadd.s32 %v7289, 127
        %v7291 = vshll.u32 %v7290, 23
        %v7292 = vor.u32 4788187, %v7291
        %v7293 = vand.u32 2147483647, %v7292
        %v7295 = vcvt.s32.f32 %v7288
        %v7296 = vmul.f32 %v7295, %v7293
        %v7297 = vxor.u32 %v7296, 2147483648
        %v7298 = vsel %vm7177, %v7297, %v7296
        %v7299 = vsub.s32 4, %v7275
        %v7300 = vsel %vm7177, %v7299, %v7275
        %v7301 = vsel %vm7176, %v435, %v7298
        %v7302 = vsel %vm7176, 0, %v7300
        %v7303 = vmul.f32 %v7301, %v7301
        %v7304 = vmul.f32 %v7303, -0.001358992
        %v7305 = vadd.f32 %v7304, 0.041655596
        %v7306 = vmul.f32 %v7303, %v7305
        %v7307 = vadd.f32 %v7306, -0.4999988
        %v7308 = vmul.f32 %v7303, %v7307
        %v7309 = vadd.f32 1.0, %v7308
        %v7310 = vmul.f32 %v7301, %v7301
        %v7311 = vmul.f32 %v7310, -0.00019511016
        %v7312 = vadd.f32 %v7311, 0.008332121
        %v7313 = vmul.f32 %v7310, %v7312
        %v7314 = vadd.f32 %v7313, -0.16666654
        %v7315 = vmul.f32 %v7310, %v7314
        %v7316 = vadd.f32 %v7315, 1.0
        %v7317 = vmul.f32 %v7316, %v7301
        %vm7318 = vweird.f32 %v435
        %v7319 = vand.u32 %v7302, 3
        %vm7320 = vcmp.lt.s32.totalorder %v7319, 2
        %vm7321 = vcmp.eq.s32.totalorder %v7319, 0
        %v7322 = vxor.u32 %v7317, 2147483648
        %v7323 = vsel %vm7321, %v7309, %v7322
        %vm7324 = vcmp.eq.s32.totalorder %v7319, 2
        %v7325 = vxor.u32 %v7309, 2147483648
        %v7326 = vsel %vm7324, %v7325, %v7317
        %v7327 = vsel %vm7320, %v7323, %v7326
        %v7328 = vsel %vm7318, nan, %v7327
        %v7329 = vand.u32 2147483647, %v436
        %vm7330 = vcmp.le.f32.partialorder %v7329, 0.7853982
        %vm7331 = vcmp.lt.s32.totalorder %v436, 0
        %v7332 = vand.u32 %v436, 2139095040
        %v7333 = vshrl.u32 %v7332, 23
        %v7334 = vsub.s32 %v7333, 127
        %v7335 = vand.u32 2147483647, %v436
        %v7336 = vand.u32 %v7335, 8388607
        %v7337 = vor.u32 %v7336, 8388608
        %v7338 = vsub.s32 0, %v7337
        %v7339 = vadd.s32 %v7334, 1
        %vm7340 = vcmp.gt.s32.totalorder %v7339, 0
        %v7341 = vsel %vm7340, %v7339, 0
        %v7342 = vshrl.u32 %v7341, 5
        %v7343 = vand.u32 %v7341, 31
        %v7344 = vsub.s32 32, %v7343
        %v7345 = vshrl.u32 683565275, %v7344
        %v7346 = vshll.u32 683565275, %v7343
        %v7347 = vshrl.u32 2475754826, %v7344
        %v7348 = vor.u32 %v7346, %v7347
        %v7349 = vshll.u32 2475754826, %v7343
        %v7350 = vshrl.u32 2131351028, %v7344
        %v7351 = vor.u32 %v7349, %v7350
        %v7352 = vshll.u32 2131351028, %v7343
        %v7353 = vshrl.u32 2102212464, %v7344
        %v7354 = vor.u32 %v7352, %v7353
        %v7355 = vshll.u32 2102212464, %v7343
        %v7356 = vshrl.u32 920167782, %v7344
        %v7357 = vor.u32 %v7355, %v7356
        %v7358 = vshll.u32 920167782, %v7343
        %v7359 = vshrl.u32 1326507024, %v7344
        %v7360 = vor.u32 %v7358, %v7359
        %vm7361 = vcmp.lt.s32.totalorder %v7342, 1
        %vm7362 = vcmp.lt.s32.totalorder %v7342, 2
        %vm7363 = vcmp.lt.s32.totalorder %v7342, 3
        %vm7364 = vcmp.lt.s32.totalorder %v7342, 4
        %v7365 = vsel %vm7361, %v7345, %v7348
        %v7366 = vsel %vm7364, %v7354, 2102212464
        %v7367 = vsel %vm7363, %v7351, %v7366
        %v7368 = vsel %vm7362, %v7365, %v7367
        %v7369 = vsel %vm7361, %v7348, %v7351
        %v7370 = vsel %vm7364, %v7357, 920167782
        %v7371 = vsel %vm7363, %v7354, %v7370
        %v7372 = vsel %vm7362, %v7369, %v7371
        %v7373 = vsel %vm7361, %v7351, %v7354
        %v7374 = vsel %vm7364, %v7360, 1326507024
        %v7375 = vsel %vm7363, %v7357, %v7374
        %v7376 = vsel %vm7362, %v7373, %v7375
        %v7377 = vshll.u32 %v7337, 8
        %v7378 = vand.u32 %v7377, 65535
        %v7379 = vshrl.u32 %v7377, 16
        %v7380 = vand.u32 %v7376, 65535
        %v7381 = vshrl.u32 %v7376, 16
        %v7382 = vmul.u32 %v7378, %v7380
        %v7383 = vmul.u32 %v7378, %v7381
        %v7384 = vmul.u32 %v7379, %v7380
        %v7385 = vmul.u32 %v7379, %v7381
        %v7386 = vshll.u32 %v7383, 16
        %v7387 = vshrl.u32 %v7383, 16
        %v7388 = vshll.u32 %v7384, 16
        %v7389 = vshrl.u32 %v7384, 16
        %vm7390 = vc.u32 %v7382, %v7386
        %v7391 = vsel %vm7390, 1, 0
        %v7392 = vadd.s32 %v7382, %v7386
        %v7393 = vadd.s32 %v7385, %v7391
        %vm7394 = vc.u32 %v7392, %v7388
        %v7395 = vsel %vm7394, 1, 0
        %v7396 = vadd.s32 %v7392, %v7388
        %v7397 = vadd.s32 %v7393, %v7395
        %v7398 = vadd.s32 %v7397, %v7387
        %v7399 = vadd.s32 %v7398, %v7389
        %v7400 = vand.u32 %v7377, 65535
        %v7401 = vshrl.u32 %v7377, 16
        %v7402 = vand.u32 %v7372, 65535
        %v7403 = vshrl.u32 %v7372, 16
        %v7404 = vmul.u32 %v7400, %v7402
        %v7405 = vmul.u32 %v7400, %v7403
        %v7406 = vmul.u32 %v7401, %v7402
        %v7407 = vmul.u32 %v7401, %v7403
        %v7408 = vshll.u32 %v7405, 16
        %v7409 = vshrl.u32 %v7405, 16
        %v7410 = vshll.u32 %v7406, 16
        %v7411 = vshrl.u32 %v7406, 16
        %vm7412 = vc.u32 %v7404, %v7408
        %v7413 = vsel %vm7412, 1, 0
        %v7414 = vadd.s32 %v7404, %v7408
        %v7415 = vadd.s32 %v7407, %v7413
        %vm7416 = vc.u32 %v7414, %v7410
        %v7417 = vsel %vm7416, 1, 0
        %v7418 = vadd.s32 %v7414, %v7410
        %v7419 = vadd.s32 %v7415, %v7417
        %v7420 = vadd.s32 %v7419, %v7409
        %v7421 = vadd.s32 %v7420, %v7411
        %v7422 = vmul.u32 %v7377, %v7368
        %v7423 = vadd.s32 %v7399, %v7418
        %vm7424 = vc.u32 %v7399, %v7418
        %v7425 = vadd.s32 %v7421, 1
        %v7426 = vsel %vm7424, %v7425, %v7421
        %v7427 = vadd.s32 %v7422, %v7426
        %v7428 = vadd.s32 %v7427, 536870912
        %v7429 = vshrl.u32 %v7428, 30
        %v7430 = vshll.u32 %v7429, 30
        %v7431 = vsub.s32 %v7427, %v7430
        %vm7432 = vcmp.lt.s32.totalorder %v7431, 0
        %v7433 = vsub.s32 0, %v7431
        %v7434 = vsel %vm7432, %v7433, %v7431
        %v7435 = vclz %v7434
        %v7436 = vsub.s32 %v7435, 2
        %vm7437 = vcmp.gt.s32.totalorder 0, %v7436
        %v7438 = vsel %vm7437, 0, %v7436
        %v7439 = vsub.s32 32, %v7438
        %v7440 = vshll.u32 %v7431, %v7438
        %v7441 = vshrl.u32 %v7423, %v7439
        %v7442 = vor.u32 %v7440, %v7441
        %v7443 = vsub.s32 4294967266, %v7438
        %v7444 = vadd.s32 %v7443, 127
        %v7445 = vshll.u32 %v7444, 23
        %v7446 = vor.u32 4788187, %v7445
        %v7447 = vand.u32 2147483647, %v7446
        %v7449 = vcvt.s32.f32 %v7442
        %v7450 = vmul.f32 %v7449, %v7447
        %v7451 = vxor.u32 %v7450, 2147483648
        %v7452 = vsel %vm7331, %v7451, %v7450
        %v7453 = vsub.s32 4, %v7429
        %v7454 = vsel %vm7331, %v7453, %v7429
        %v7455 = vsel %vm7330, %v436, %v7452
        %v7456 = vsel %vm7330, 0, %v7454
        %v7457 = vmul.f32 %v7455, %v7455
        %v7458 = vmul.f32 %v7457, -0.001358992
        %v7459 = vadd.f32 %v7458, 0.041655596
        %v7460 = vmul.f32 %v7457, %v7459
        %v7461 = vadd.f32 %v7460, -0.4999988
        %v7462 = vmul.f32 %v7457, %v7461
        %v7463 = vadd.f32 1.0, %v7462
        %v7464 = vmul.f32 %v7455, %v7455
        %v7465 = vmul.f32 %v7464, -0.00019511016
        %v7466 = vadd.f32 %v7465, 0.008332121
        %v7467 = vmul.f32 %v7464, %v7466
        %v7468 = vadd.f32 %v7467, -0.16666654
        %v7469 = vmul.f32 %v7464, %v7468
        %v7470 = vadd.f32 %v7469, 1.0
        %v7471 = vmul.f32 %v7470, %v7455
        %vm7472 = vweird.f32 %v436
        %v7473 = vand.u32 %v7456, 3
        %vm7474 = vcmp.lt.s32.totalorder %v7473, 2
        %vm7475 = vcmp.eq.s32.totalorder %v7473, 0
        %v7476 = vxor.u32 %v7471, 2147483648
        %v7477 = vsel %vm7475, %v7463, %v7476
        %vm7478 = vcmp.eq.s32.totalorder %v7473, 2
        %v7479 = vxor.u32 %v7463, 2147483648
        %v7480 = vsel %vm7478, %v7479, %v7471
        %v7481 = vsel %vm7474, %v7477, %v7480
        %v7482 = vsel %vm7472, nan, %v7481
        %v7483 = vand.u32 2147483647, %v437
        %vm7484 = vcmp.le.f32.partialorder %v7483, 0.7853982
        %vm7485 = vcmp.lt.s32.totalorder %v437, 0
        %v7486 = vand.u32 %v437, 2139095040
        %v7487 = vshrl.u32 %v7486, 23
        %v7488 = vsub.s32 %v7487, 127
        %v7489 = vand.u32 2147483647, %v437
        %v7490 = vand.u32 %v7489, 8388607
        %v7491 = vor.u32 %v7490, 8388608
        %v7492 = vsub.s32 0, %v7491
        %v7493 = vadd.s32 %v7488, 1
        %vm7494 = vcmp.gt.s32.totalorder %v7493, 0
        %v7495 = vsel %vm7494, %v7493, 0
        %v7496 = vshrl.u32 %v7495, 5
        %v7497 = vand.u32 %v7495, 31
        %v7498 = vsub.s32 32, %v7497
        %v7499 = vshrl.u32 683565275, %v7498
        %v7500 = vshll.u32 683565275, %v7497
        %v7501 = vshrl.u32 2475754826, %v7498
        %v7502 = vor.u32 %v7500, %v7501
        %v7503 = vshll.u32 2475754826, %v7497
        %v7504 = vshrl.u32 2131351028, %v7498
        %v7505 = vor.u32 %v7503, %v7504
        %v7506 = vshll.u32 2131351028, %v7497
        %v7507 = vshrl.u32 2102212464, %v7498
        %v7508 = vor.u32 %v7506, %v7507
        %v7509 = vshll.u32 2102212464, %v7497
        %v7510 = vshrl.u32 920167782, %v7498
        %v7511 = vor.u32 %v7509, %v7510
        %v7512 = vshll.u32 920167782, %v7497
        %v7513 = vshrl.u32 1326507024, %v7498
        %v7514 = vor.u32 %v7512, %v7513
        %vm7515 = vcmp.lt.s32.totalorder %v7496, 1
        %vm7516 = vcmp.lt.s32.totalorder %v7496, 2
        %vm7517 = vcmp.lt.s32.totalorder %v7496, 3
        %vm7518 = vcmp.lt.s32.totalorder %v7496, 4
        %v7519 = vsel %vm7515, %v7499, %v7502
        %v7520 = vsel %vm7518, %v7508, 2102212464
        %v7521 = vsel %vm7517, %v7505, %v7520
        %v7522 = vsel %vm7516, %v7519, %v7521
        %v7523 = vsel %vm7515, %v7502, %v7505
        %v7524 = vsel %vm7518, %v7511, 920167782
        %v7525 = vsel %vm7517, %v7508, %v7524
        %v7526 = vsel %vm7516, %v7523, %v7525
        %v7527 = vsel %vm7515, %v7505, %v7508
        %v7528 = vsel %vm7518, %v7514, 1326507024
        %v7529 = vsel %vm7517, %v7511, %v7528
        %v7530 = vsel %vm7516, %v7527, %v7529
        %v7531 = vshll.u32 %v7491, 8
        %v7532 = vand.u32 %v7531, 65535
        %v7533 = vshrl.u32 %v7531, 16
        %v7534 = vand.u32 %v7530, 65535
        %v7535 = vshrl.u32 %v7530, 16
        %v7536 = vmul.u32 %v7532, %v7534
        %v7537 = vmul.u32 %v7532, %v7535
        %v7538 = vmul.u32 %v7533, %v7534
        %v7539 = vmul.u32 %v7533, %v7535
        %v7540 = vshll.u32 %v7537, 16
        %v7541 = vshrl.u32 %v7537, 16
        %v7542 = vshll.u32 %v7538, 16
        %v7543 = vshrl.u32 %v7538, 16
        %vm7544 = vc.u32 %v7536, %v7540
        %v7545 = vsel %vm7544, 1, 0
        %v7546 = vadd.s32 %v7536, %v7540
        %v7547 = vadd.s32 %v7539, %v7545
        %vm7548 = vc.u32 %v7546, %v7542
        %v7549 = vsel %vm7548, 1, 0
        %v7550 = vadd.s32 %v7546, %v7542
        %v7551 = vadd.s32 %v7547, %v7549
        %v7552 = vadd.s32 %v7551, %v7541
        %v7553 = vadd.s32 %v7552, %v7543
        %v7554 = vand.u32 %v7531, 65535
        %v7555 = vshrl.u32 %v7531, 16
        %v7556 = vand.u32 %v7526, 65535
        %v7557 = vshrl.u32 %v7526, 16
        %v7558 = vmul.u32 %v7554, %v7556
        %v7559 = vmul.u32 %v7554, %v7557
        %v7560 = vmul.u32 %v7555, %v7556
        %v7561 = vmul.u32 %v7555, %v7557
        %v7562 = vshll.u32 %v7559, 16
        %v7563 = vshrl.u32 %v7559, 16
        %v7564 = vshll.u32 %v7560, 16
        %v7565 = vshrl.u32 %v7560, 16
        %vm7566 = vc.u32 %v7558, %v7562
        %v7567 = vsel %vm7566, 1, 0
        %v7568 = vadd.s32 %v7558, %v7562
        %v7569 = vadd.s32 %v7561, %v7567
        %vm7570 = vc.u32 %v7568, %v7564
        %v7571 = vsel %vm7570, 1, 0
        %v7572 = vadd.s32 %v7568, %v7564
        %v7573 = vadd.s32 %v7569, %v7571
        %v7574 = vadd.s32 %v7573, %v7563
        %v7575 = vadd.s32 %v7574, %v7565
        %v7576 = vmul.u32 %v7531, %v7522
        %v7577 = vadd.s32 %v7553, %v7572
        %vm7578 = vc.u32 %v7553, %v7572
        %v7579 = vadd.s32 %v7575, 1
        %v7580 = vsel %vm7578, %v7579, %v7575
        %v7581 = vadd.s32 %v7576, %v7580
        %v7582 = vadd.s32 %v7581, 536870912
        %v7583 = vshrl.u32 %v7582, 30
        %v7584 = vshll.u32 %v7583, 30
        %v7585 = vsub.s32 %v7581, %v7584
        %vm7586 = vcmp.lt.s32.totalorder %v7585, 0
        %v7587 = vsub.s32 0, %v7585
        %v7588 = vsel %vm7586, %v7587, %v7585
        %v7589 = vclz %v7588
        %v7590 = vsub.s32 %v7589, 2
        %vm7591 = vcmp.gt.s32.totalorder 0, %v7590
        %v7592 = vsel %vm7591, 0, %v7590
        %v7593 = vsub.s32 32, %v7592
        %v7594 = vshll.u32 %v7585, %v7592
        %v7595 = vshrl.u32 %v7577, %v7593
        %v7596 = vor.u32 %v7594, %v7595
        %v7597 = vsub.s32 4294967266, %v7592
        %v7598 = vadd.s32 %v7597, 127
        %v7599 = vshll.u32 %v7598, 23
        %v7600 = vor.u32 4788187, %v7599
        %v7601 = vand.u32 2147483647, %v7600
        %v7603 = vcvt.s32.f32 %v7596
        %v7604 = vmul.f32 %v7603, %v7601
        %v7605 = vxor.u32 %v7604, 2147483648
        %v7606 = vsel %vm7485, %v7605, %v7604
        %v7607 = vsub.s32 4, %v7583
        %v7608 = vsel %vm7485, %v7607, %v7583
        %v7609 = vsel %vm7484, %v437, %v7606
        %v7610 = vsel %vm7484, 0, %v7608
        %v7611 = vmul.f32 %v7609, %v7609
        %v7612 = vmul.f32 %v7611, -0.001358992
        %v7613 = vadd.f32 %v7612, 0.041655596
        %v7614 = vmul.f32 %v7611, %v7613
        %v7615 = vadd.f32 %v7614, -0.4999988
        %v7616 = vmul.f32 %v7611, %v7615
        %v7617 = vadd.f32 1.0, %v7616
        %v7618 = vmul.f32 %v7609, %v7609
        %v7619 = vmul.f32 %v7618, -0.00019511016
        %v7620 = vadd.f32 %v7619, 0.008332121
        %v7621 = vmul.f32 %v7618, %v7620
        %v7622 = vadd.f32 %v7621, -0.16666654
        %v7623 = vmul.f32 %v7618, %v7622
        %v7624 = vadd.f32 %v7623, 1.0
        %v7625 = vmul.f32 %v7624, %v7609
        %vm7626 = vweird.f32 %v437
        %v7627 = vand.u32 %v7610, 3
        %vm7628 = vcmp.lt.s32.totalorder %v7627, 2
        %vm7629 = vcmp.eq.s32.totalorder %v7627, 0
        %v7630 = vxor.u32 %v7625, 2147483648
        %v7631 = vsel %vm7629, %v7617, %v7630
        %vm7632 = vcmp.eq.s32.totalorder %v7627, 2
        %v7633 = vxor.u32 %v7617, 2147483648
        %v7634 = vsel %vm7632, %v7633, %v7625
        %v7635 = vsel %vm7628, %v7631, %v7634
        %v7636 = vsel %vm7626, nan, %v7635
        %v7637 = vand.u32 2147483647, %v438
        %vm7638 = vcmp.le.f32.partialorder %v7637, 0.7853982
        %vm7639 = vcmp.lt.s32.totalorder %v438, 0
        %v7640 = vand.u32 %v438, 2139095040
        %v7641 = vshrl.u32 %v7640, 23
        %v7642 = vsub.s32 %v7641, 127
        %v7643 = vand.u32 2147483647, %v438
        %v7644 = vand.u32 %v7643, 8388607
        %v7645 = vor.u32 %v7644, 8388608
        %v7646 = vsub.s32 0, %v7645
        %v7647 = vadd.s32 %v7642, 1
        %vm7648 = vcmp.gt.s32.totalorder %v7647, 0
        %v7649 = vsel %vm7648, %v7647, 0
        %v7650 = vshrl.u32 %v7649, 5
        %v7651 = vand.u32 %v7649, 31
        %v7652 = vsub.s32 32, %v7651
        %v7653 = vshrl.u32 683565275, %v7652
        %v7654 = vshll.u32 683565275, %v7651
        %v7655 = vshrl.u32 2475754826, %v7652
        %v7656 = vor.u32 %v7654, %v7655
        %v7657 = vshll.u32 2475754826, %v7651
        %v7658 = vshrl.u32 2131351028, %v7652
        %v7659 = vor.u32 %v7657, %v7658
        %v7660 = vshll.u32 2131351028, %v7651
        %v7661 = vshrl.u32 2102212464, %v7652
        %v7662 = vor.u32 %v7660, %v7661
        %v7663 = vshll.u32 2102212464, %v7651
        %v7664 = vshrl.u32 920167782, %v7652
        %v7665 = vor.u32 %v7663, %v7664
        %v7666 = vshll.u32 920167782, %v7651
        %v7667 = vshrl.u32 1326507024, %v7652
        %v7668 = vor.u32 %v7666, %v7667
        %vm7669 = vcmp.lt.s32.totalorder %v7650, 1
        %vm7670 = vcmp.lt.s32.totalorder %v7650, 2
        %vm7671 = vcmp.lt.s32.totalorder %v7650, 3
        %vm7672 = vcmp.lt.s32.totalorder %v7650, 4
        %v7673 = vsel %vm7669, %v7653, %v7656
        %v7674 = vsel %vm7672, %v7662, 2102212464
        %v7675 = vsel %vm7671, %v7659, %v7674
        %v7676 = vsel %vm7670, %v7673, %v7675
        %v7677 = vsel %vm7669, %v7656, %v7659
        %v7678 = vsel %vm7672, %v7665, 920167782
        %v7679 = vsel %vm7671, %v7662, %v7678
        %v7680 = vsel %vm7670, %v7677, %v7679
        %v7681 = vsel %vm7669, %v7659, %v7662
        %v7682 = vsel %vm7672, %v7668, 1326507024
        %v7683 = vsel %vm7671, %v7665, %v7682
        %v7684 = vsel %vm7670, %v7681, %v7683
        %v7685 = vshll.u32 %v7645, 8
        %v7686 = vand.u32 %v7685, 65535
        %v7687 = vshrl.u32 %v7685, 16
        %v7688 = vand.u32 %v7684, 65535
        %v7689 = vshrl.u32 %v7684, 16
        %v7690 = vmul.u32 %v7686, %v7688
        %v7691 = vmul.u32 %v7686, %v7689
        %v7692 = vmul.u32 %v7687, %v7688
        %v7693 = vmul.u32 %v7687, %v7689
        %v7694 = vshll.u32 %v7691, 16
        %v7695 = vshrl.u32 %v7691, 16
        %v7696 = vshll.u32 %v7692, 16
        %v7697 = vshrl.u32 %v7692, 16
        %vm7698 = vc.u32 %v7690, %v7694
        %v7699 = vsel %vm7698, 1, 0
        %v7700 = vadd.s32 %v7690, %v7694
        %v7701 = vadd.s32 %v7693, %v7699
        %vm7702 = vc.u32 %v7700, %v7696
        %v7703 = vsel %vm7702, 1, 0
        %v7704 = vadd.s32 %v7700, %v7696
        %v7705 = vadd.s32 %v7701, %v7703
        %v7706 = vadd.s32 %v7705, %v7695
        %v7707 = vadd.s32 %v7706, %v7697
        %v7708 = vand.u32 %v7685, 65535
        %v7709 = vshrl.u32 %v7685, 16
        %v7710 = vand.u32 %v7680, 65535
        %v7711 = vshrl.u32 %v7680, 16
        %v7712 = vmul.u32 %v7708, %v7710
        %v7713 = vmul.u32 %v7708, %v7711
        %v7714 = vmul.u32 %v7709, %v7710
        %v7715 = vmul.u32 %v7709, %v7711
        %v7716 = vshll.u32 %v7713, 16
        %v7717 = vshrl.u32 %v7713, 16
        %v7718 = vshll.u32 %v7714, 16
        %v7719 = vshrl.u32 %v7714, 16
        %vm7720 = vc.u32 %v7712, %v7716
        %v7721 = vsel %vm7720, 1, 0
        %v7722 = vadd.s32 %v7712, %v7716
        %v7723 = vadd.s32 %v7715, %v7721
        %vm7724 = vc.u32 %v7722, %v7718
        %v7725 = vsel %vm7724, 1, 0
        %v7726 = vadd.s32 %v7722, %v7718
        %v7727 = vadd.s32 %v7723, %v7725
        %v7728 = vadd.s32 %v7727, %v7717
        %v7729 = vadd.s32 %v7728, %v7719
        %v7730 = vmul.u32 %v7685, %v7676
        %v7731 = vadd.s32 %v7707, %v7726
        %vm7732 = vc.u32 %v7707, %v7726
        %v7733 = vadd.s32 %v7729, 1
        %v7734 = vsel %vm7732, %v7733, %v7729
        %v7735 = vadd.s32 %v7730, %v7734
        %v7736 = vadd.s32 %v7735, 536870912
        %v7737 = vshrl.u32 %v7736, 30
        %v7738 = vshll.u32 %v7737, 30
        %v7739 = vsub.s32 %v7735, %v7738
        %vm7740 = vcmp.lt.s32.totalorder %v7739, 0
        %v7741 = vsub.s32 0, %v7739
        %v7742 = vsel %vm7740, %v7741, %v7739
        %v7743 = vclz %v7742
        %v7744 = vsub.s32 %v7743, 2
        %vm7745 = vcmp.gt.s32.totalorder 0, %v7744
        %v7746 = vsel %vm7745, 0, %v7744
        %v7747 = vsub.s32 32, %v7746
        %v7748 = vshll.u32 %v7739, %v7746
        %v7749 = vshrl.u32 %v7731, %v7747
        %v7750 = vor.u32 %v7748, %v7749
        %v7751 = vsub.s32 4294967266, %v7746
        %v7752 = vadd.s32 %v7751, 127
        %v7753 = vshll.u32 %v7752, 23
        %v7754 = vor.u32 4788187, %v7753
        %v7755 = vand.u32 2147483647, %v7754
        %v7757 = vcvt.s32.f32 %v7750
        %v7758 = vmul.f32 %v7757, %v7755
        %v7759 = vxor.u32 %v7758, 2147483648
        %v7760 = vsel %vm7639, %v7759, %v7758
        %v7761 = vsub.s32 4, %v7737
        %v7762 = vsel %vm7639, %v7761, %v7737
        %v7763 = vsel %vm7638, %v438, %v7760
        %v7764 = vsel %vm7638, 0, %v7762
        %v7765 = vmul.f32 %v7763, %v7763
        %v7766 = vmul.f32 %v7765, -0.001358992
        %v7767 = vadd.f32 %v7766, 0.041655596
        %v7768 = vmul.f32 %v7765, %v7767
        %v7769 = vadd.f32 %v7768, -0.4999988
        %v7770 = vmul.f32 %v7765, %v7769
        %v7771 = vadd.f32 1.0, %v7770
        %v7772 = vmul.f32 %v7763, %v7763
        %v7773 = vmul.f32 %v7772, -0.00019511016
        %v7774 = vadd.f32 %v7773, 0.008332121
        %v7775 = vmul.f32 %v7772, %v7774
        %v7776 = vadd.f32 %v7775, -0.16666654
        %v7777 = vmul.f32 %v7772, %v7776
        %v7778 = vadd.f32 %v7777, 1.0
        %v7779 = vmul.f32 %v7778, %v7763
        %vm7780 = vweird.f32 %v438
        %v7781 = vand.u32 %v7764, 3
        %vm7782 = vcmp.lt.s32.totalorder %v7781, 2
        %vm7783 = vcmp.eq.s32.totalorder %v7781, 0
        %v7784 = vxor.u32 %v7779, 2147483648
        %v7785 = vsel %vm7783, %v7771, %v7784
        %vm7786 = vcmp.eq.s32.totalorder %v7781, 2
        %v7787 = vxor.u32 %v7771, 2147483648
        %v7788 = vsel %vm7786, %v7787, %v7779
        %v7789 = vsel %vm7782, %v7785, %v7788
        %v7790 = vsel %vm7780, nan, %v7789
        %v7791 = vand.u32 2147483647, %v439
        %vm7792 = vcmp.le.f32.partialorder %v7791, 0.7853982
        %vm7793 = vcmp.lt.s32.totalorder %v439, 0
        %v7794 = vand.u32 %v439, 2139095040
        %v7795 = vshrl.u32 %v7794, 23
        %v7796 = vsub.s32 %v7795, 127
        %v7797 = vand.u32 2147483647, %v439
        %v7798 = vand.u32 %v7797, 8388607
        %v7799 = vor.u32 %v7798, 8388608
        %v7800 = vsub.s32 0, %v7799
        %v7801 = vadd.s32 %v7796, 1
        %vm7802 = vcmp.gt.s32.totalorder %v7801, 0
        %v7803 = vsel %vm7802, %v7801, 0
        %v7804 = vshrl.u32 %v7803, 5
        %v7805 = vand.u32 %v7803, 31
        %v7806 = vsub.s32 32, %v7805
        %v7807 = vshrl.u32 683565275, %v7806
        %v7808 = vshll.u32 683565275, %v7805
        %v7809 = vshrl.u32 2475754826, %v7806
        %v7810 = vor.u32 %v7808, %v7809
        %v7811 = vshll.u32 2475754826, %v7805
        %v7812 = vshrl.u32 2131351028, %v7806
        %v7813 = vor.u32 %v7811, %v7812
        %v7814 = vshll.u32 2131351028, %v7805
        %v7815 = vshrl.u32 2102212464, %v7806
        %v7816 = vor.u32 %v7814, %v7815
        %v7817 = vshll.u32 2102212464, %v7805
        %v7818 = vshrl.u32 920167782, %v7806
        %v7819 = vor.u32 %v7817, %v7818
        %v7820 = vshll.u32 920167782, %v7805
        %v7821 = vshrl.u32 1326507024, %v7806
        %v7822 = vor.u32 %v7820, %v7821
        %vm7823 = vcmp.lt.s32.totalorder %v7804, 1
        %vm7824 = vcmp.lt.s32.totalorder %v7804, 2
        %vm7825 = vcmp.lt.s32.totalorder %v7804, 3
        %vm7826 = vcmp.lt.s32.totalorder %v7804, 4
        %v7827 = vsel %vm7823, %v7807, %v7810
        %v7828 = vsel %vm7826, %v7816, 2102212464
        %v7829 = vsel %vm7825, %v7813, %v7828
        %v7830 = vsel %vm7824, %v7827, %v7829
        %v7831 = vsel %vm7823, %v7810, %v7813
        %v7832 = vsel %vm7826, %v7819, 920167782
        %v7833 = vsel %vm7825, %v7816, %v7832
        %v7834 = vsel %vm7824, %v7831, %v7833
        %v7835 = vsel %vm7823, %v7813, %v7816
        %v7836 = vsel %vm7826, %v7822, 1326507024
        %v7837 = vsel %vm7825, %v7819, %v7836
        %v7838 = vsel %vm7824, %v7835, %v7837
        %v7839 = vshll.u32 %v7799, 8
        %v7840 = vand.u32 %v7839, 65535
        %v7841 = vshrl.u32 %v7839, 16
        %v7842 = vand.u32 %v7838, 65535
        %v7843 = vshrl.u32 %v7838, 16
        %v7844 = vmul.u32 %v7840, %v7842
        %v7845 = vmul.u32 %v7840, %v7843
        %v7846 = vmul.u32 %v7841, %v7842
        %v7847 = vmul.u32 %v7841, %v7843
        %v7848 = vshll.u32 %v7845, 16
        %v7849 = vshrl.u32 %v7845, 16
        %v7850 = vshll.u32 %v7846, 16
        %v7851 = vshrl.u32 %v7846, 16
        %vm7852 = vc.u32 %v7844, %v7848
        %v7853 = vsel %vm7852, 1, 0
        %v7854 = vadd.s32 %v7844, %v7848
        %v7855 = vadd.s32 %v7847, %v7853
        %vm7856 = vc.u32 %v7854, %v7850
        %v7857 = vsel %vm7856, 1, 0
        %v7858 = vadd.s32 %v7854, %v7850
        %v7859 = vadd.s32 %v7855, %v7857
        %v7860 = vadd.s32 %v7859, %v7849
        %v7861 = vadd.s32 %v7860, %v7851
        %v7862 = vand.u32 %v7839, 65535
        %v7863 = vshrl.u32 %v7839, 16
        %v7864 = vand.u32 %v7834, 65535
        %v7865 = vshrl.u32 %v7834, 16
        %v7866 = vmul.u32 %v7862, %v7864
        %v7867 = vmul.u32 %v7862, %v7865
        %v7868 = vmul.u32 %v7863, %v7864
        %v7869 = vmul.u32 %v7863, %v7865
        %v7870 = vshll.u32 %v7867, 16
        %v7871 = vshrl.u32 %v7867, 16
        %v7872 = vshll.u32 %v7868, 16
        %v7873 = vshrl.u32 %v7868, 16
        %vm7874 = vc.u32 %v7866, %v7870
        %v7875 = vsel %vm7874, 1, 0
        %v7876 = vadd.s32 %v7866, %v7870
        %v7877 = vadd.s32 %v7869, %v7875
        %vm7878 = vc.u32 %v7876, %v7872
        %v7879 = vsel %vm7878, 1, 0
        %v7880 = vadd.s32 %v7876, %v7872
        %v7881 = vadd.s32 %v7877, %v7879
        %v7882 = vadd.s32 %v7881, %v7871
        %v7883 = vadd.s32 %v7882, %v7873
        %v7884 = vmul.u32 %v7839, %v7830
        %v7885 = vadd.s32 %v7861, %v7880
        %vm7886 = vc.u32 %v7861, %v7880
        %v7887 = vadd.s32 %v7883, 1
        %v7888 = vsel %vm7886, %v7887, %v7883
        %v7889 = vadd.s32 %v7884, %v7888
        %v7890 = vadd.s32 %v7889, 536870912
        %v7891 = vshrl.u32 %v7890, 30
        %v7892 = vshll.u32 %v7891, 30
        %v7893 = vsub.s32 %v7889, %v7892
        %vm7894 = vcmp.lt.s32.totalorder %v7893, 0
        %v7895 = vsub.s32 0, %v7893
        %v7896 = vsel %vm7894, %v7895, %v7893
        %v7897 = vclz %v7896
        %v7898 = vsub.s32 %v7897, 2
        %vm7899 = vcmp.gt.s32.totalorder 0, %v7898
        %v7900 = vsel %vm7899, 0, %v7898
        %v7901 = vsub.s32 32, %v7900
        %v7902 = vshll.u32 %v7893, %v7900
        %v7903 = vshrl.u32 %v7885, %v7901
        %v7904 = vor.u32 %v7902, %v7903
        %v7905 = vsub.s32 4294967266, %v7900
        %v7906 = vadd.s32 %v7905, 127
        %v7907 = vshll.u32 %v7906, 23
        %v7908 = vor.u32 4788187, %v7907
        %v7909 = vand.u32 2147483647, %v7908
        %v7911 = vcvt.s32.f32 %v7904
        %v7912 = vmul.f32 %v7911, %v7909
        %v7913 = vxor.u32 %v7912, 2147483648
        %v7914 = vsel %vm7793, %v7913, %v7912
        %v7915 = vsub.s32 4, %v7891
        %v7916 = vsel %vm7793, %v7915, %v7891
        %v7917 = vsel %vm7792, %v439, %v7914
        %v7918 = vsel %vm7792, 0, %v7916
        %v7919 = vmul.f32 %v7917, %v7917
        %v7920 = vmul.f32 %v7919, -0.001358992
        %v7921 = vadd.f32 %v7920, 0.041655596
        %v7922 = vmul.f32 %v7919, %v7921
        %v7923 = vadd.f32 %v7922, -0.4999988
        %v7924 = vmul.f32 %v7919, %v7923
        %v7925 = vadd.f32 1.0, %v7924
        %v7926 = vmul.f32 %v7917, %v7917
        %v7927 = vmul.f32 %v7926, -0.00019511016
        %v7928 = vadd.f32 %v7927, 0.008332121
        %v7929 = vmul.f32 %v7926, %v7928
        %v7930 = vadd.f32 %v7929, -0.16666654
        %v7931 = vmul.f32 %v7926, %v7930
        %v7932 = vadd.f32 %v7931, 1.0
        %v7933 = vmul.f32 %v7932, %v7917
        %vm7934 = vweird.f32 %v439
        %v7935 = vand.u32 %v7918, 3
        %vm7936 = vcmp.lt.s32.totalorder %v7935, 2
        %vm7937 = vcmp.eq.s32.totalorder %v7935, 0
        %v7938 = vxor.u32 %v7933, 2147483648
        %v7939 = vsel %vm7937, %v7925, %v7938
        %vm7940 = vcmp.eq.s32.totalorder %v7935, 2
        %v7941 = vxor.u32 %v7925, 2147483648
        %v7942 = vsel %vm7940, %v7941, %v7933
        %v7943 = vsel %vm7936, %v7939, %v7942
        %v7944 = vsel %vm7934, nan, %v7943
        %v7945 = vand.u32 2147483647, %v440
        %vm7946 = vcmp.le.f32.partialorder %v7945, 0.7853982
        %vm7947 = vcmp.lt.s32.totalorder %v440, 0
        %v7948 = vand.u32 %v440, 2139095040
        %v7949 = vshrl.u32 %v7948, 23
        %v7950 = vsub.s32 %v7949, 127
        %v7951 = vand.u32 2147483647, %v440
        %v7952 = vand.u32 %v7951, 8388607
        %v7953 = vor.u32 %v7952, 8388608
        %v7954 = vsub.s32 0, %v7953
        %v7955 = vadd.s32 %v7950, 1
        %vm7956 = vcmp.gt.s32.totalorder %v7955, 0
        %v7957 = vsel %vm7956, %v7955, 0
        %v7958 = vshrl.u32 %v7957, 5
        %v7959 = vand.u32 %v7957, 31
        %v7960 = vsub.s32 32, %v7959
        %v7961 = vshrl.u32 683565275, %v7960
        %v7962 = vshll.u32 683565275, %v7959
        %v7963 = vshrl.u32 2475754826, %v7960
        %v7964 = vor.u32 %v7962, %v7963
        %v7965 = vshll.u32 2475754826, %v7959
        %v7966 = vshrl.u32 2131351028, %v7960
        %v7967 = vor.u32 %v7965, %v7966
        %v7968 = vshll.u32 2131351028, %v7959
        %v7969 = vshrl.u32 2102212464, %v7960
        %v7970 = vor.u32 %v7968, %v7969
        %v7971 = vshll.u32 2102212464, %v7959
        %v7972 = vshrl.u32 920167782, %v7960
        %v7973 = vor.u32 %v7971, %v7972
        %v7974 = vshll.u32 920167782, %v7959
        %v7975 = vshrl.u32 1326507024, %v7960
        %v7976 = vor.u32 %v7974, %v7975
        %vm7977 = vcmp.lt.s32.totalorder %v7958, 1
        %vm7978 = vcmp.lt.s32.totalorder %v7958, 2
        %vm7979 = vcmp.lt.s32.totalorder %v7958, 3
        %vm7980 = vcmp.lt.s32.totalorder %v7958, 4
        %v7981 = vsel %vm7977, %v7961, %v7964
        %v7982 = vsel %vm7980, %v7970, 2102212464
        %v7983 = vsel %vm7979, %v7967, %v7982
        %v7984 = vsel %vm7978, %v7981, %v7983
        %v7985 = vsel %vm7977, %v7964, %v7967
        %v7986 = vsel %vm7980, %v7973, 920167782
        %v7987 = vsel %vm7979, %v7970, %v7986
        %v7988 = vsel %vm7978, %v7985, %v7987
        %v7989 = vsel %vm7977, %v7967, %v7970
        %v7990 = vsel %vm7980, %v7976, 1326507024
        %v7991 = vsel %vm7979, %v7973, %v7990
        %v7992 = vsel %vm7978, %v7989, %v7991
        %v7993 = vshll.u32 %v7953, 8
        %v7994 = vand.u32 %v7993, 65535
        %v7995 = vshrl.u32 %v7993, 16
        %v7996 = vand.u32 %v7992, 65535
        %v7997 = vshrl.u32 %v7992, 16
        %v7998 = vmul.u32 %v7994, %v7996
        %v7999 = vmul.u32 %v7994, %v7997
        %v8000 = vmul.u32 %v7995, %v7996
        %v8001 = vmul.u32 %v7995, %v7997
        %v8002 = vshll.u32 %v7999, 16
        %v8003 = vshrl.u32 %v7999, 16
        %v8004 = vshll.u32 %v8000, 16
        %v8005 = vshrl.u32 %v8000, 16
        %vm8006 = vc.u32 %v7998, %v8002
        %v8007 = vsel %vm8006, 1, 0
        %v8008 = vadd.s32 %v7998, %v8002
        %v8009 = vadd.s32 %v8001, %v8007
        %vm8010 = vc.u32 %v8008, %v8004
        %v8011 = vsel %vm8010, 1, 0
        %v8012 = vadd.s32 %v8008, %v8004
        %v8013 = vadd.s32 %v8009, %v8011
        %v8014 = vadd.s32 %v8013, %v8003
        %v8015 = vadd.s32 %v8014, %v8005
        %v8016 = vand.u32 %v7993, 65535
        %v8017 = vshrl.u32 %v7993, 16
        %v8018 = vand.u32 %v7988, 65535
        %v8019 = vshrl.u32 %v7988, 16
        %v8020 = vmul.u32 %v8016, %v8018
        %v8021 = vmul.u32 %v8016, %v8019
        %v8022 = vmul.u32 %v8017, %v8018
        %v8023 = vmul.u32 %v8017, %v8019
        %v8024 = vshll.u32 %v8021, 16
        %v8025 = vshrl.u32 %v8021, 16
        %v8026 = vshll.u32 %v8022, 16
        %v8027 = vshrl.u32 %v8022, 16
        %vm8028 = vc.u32 %v8020, %v8024
        %v8029 = vsel %vm8028, 1, 0
        %v8030 = vadd.s32 %v8020, %v8024
        %v8031 = vadd.s32 %v8023, %v8029
        %vm8032 = vc.u32 %v8030, %v8026
        %v8033 = vsel %vm8032, 1, 0
        %v8034 = vadd.s32 %v8030, %v8026
        %v8035 = vadd.s32 %v8031, %v8033
        %v8036 = vadd.s32 %v8035, %v8025
        %v8037 = vadd.s32 %v8036, %v8027
        %v8038 = vmul.u32 %v7993, %v7984
        %v8039 = vadd.s32 %v8015, %v8034
        %vm8040 = vc.u32 %v8015, %v8034
        %v8041 = vadd.s32 %v8037, 1
        %v8042 = vsel %vm8040, %v8041, %v8037
        %v8043 = vadd.s32 %v8038, %v8042
        %v8044 = vadd.s32 %v8043, 536870912
        %v8045 = vshrl.u32 %v8044, 30
        %v8046 = vshll.u32 %v8045, 30
        %v8047 = vsub.s32 %v8043, %v8046
        %vm8048 = vcmp.lt.s32.totalorder %v8047, 0
        %v8049 = vsub.s32 0, %v8047
        %v8050 = vsel %vm8048, %v8049, %v8047
        %v8051 = vclz %v8050
        %v8052 = vsub.s32 %v8051, 2
        %vm8053 = vcmp.gt.s32.totalorder 0, %v8052
        %v8054 = vsel %vm8053, 0, %v8052
        %v8055 = vsub.s32 32, %v8054
        %v8056 = vshll.u32 %v8047, %v8054
        %v8057 = vshrl.u32 %v8039, %v8055
        %v8058 = vor.u32 %v8056, %v8057
        %v8059 = vsub.s32 4294967266, %v8054
        %v8060 = vadd.s32 %v8059, 127
        %v8061 = vshll.u32 %v8060, 23
        %v8062 = vor.u32 4788187, %v8061
        %v8063 = vand.u32 2147483647, %v8062
        %v8065 = vcvt.s32.f32 %v8058
        %v8066 = vmul.f32 %v8065, %v8063
        %v8067 = vxor.u32 %v8066, 2147483648
        %v8068 = vsel %vm7947, %v8067, %v8066
        %v8069 = vsub.s32 4, %v8045
        %v8070 = vsel %vm7947, %v8069, %v8045
        %v8071 = vsel %vm7946, %v440, %v8068
        %v8072 = vsel %vm7946, 0, %v8070
        %v8073 = vmul.f32 %v8071, %v8071
        %v8074 = vmul.f32 %v8073, -0.001358992
        %v8075 = vadd.f32 %v8074, 0.041655596
        %v8076 = vmul.f32 %v8073, %v8075
        %v8077 = vadd.f32 %v8076, -0.4999988
        %v8078 = vmul.f32 %v8073, %v8077
        %v8079 = vadd.f32 1.0, %v8078
        %v8080 = vmul.f32 %v8071, %v8071
        %v8081 = vmul.f32 %v8080, -0.00019511016
        %v8082 = vadd.f32 %v8081, 0.008332121
        %v8083 = vmul.f32 %v8080, %v8082
        %v8084 = vadd.f32 %v8083, -0.16666654
        %v8085 = vmul.f32 %v8080, %v8084
        %v8086 = vadd.f32 %v8085, 1.0
        %v8087 = vmul.f32 %v8086, %v8071
        %vm8088 = vweird.f32 %v440
        %v8089 = vand.u32 %v8072, 3
        %vm8090 = vcmp.lt.s32.totalorder %v8089, 2
        %vm8091 = vcmp.eq.s32.totalorder %v8089, 0
        %v8092 = vxor.u32 %v8087, 2147483648
        %v8093 = vsel %vm8091, %v8079, %v8092
        %vm8094 = vcmp.eq.s32.totalorder %v8089, 2
        %v8095 = vxor.u32 %v8079, 2147483648
        %v8096 = vsel %vm8094, %v8095, %v8087
        %v8097 = vsel %vm8090, %v8093, %v8096
        %v8098 = vsel %vm8088, nan, %v8097
        %v8099 = vand.u32 2147483647, %v441
        %vm8100 = vcmp.le.f32.partialorder %v8099, 0.7853982
        %vm8101 = vcmp.lt.s32.totalorder %v441, 0
        %v8102 = vand.u32 %v441, 2139095040
        %v8103 = vshrl.u32 %v8102, 23
        %v8104 = vsub.s32 %v8103, 127
        %v8105 = vand.u32 2147483647, %v441
        %v8106 = vand.u32 %v8105, 8388607
        %v8107 = vor.u32 %v8106, 8388608
        %v8108 = vsub.s32 0, %v8107
        %v8109 = vadd.s32 %v8104, 1
        %vm8110 = vcmp.gt.s32.totalorder %v8109, 0
        %v8111 = vsel %vm8110, %v8109, 0
        %v8112 = vshrl.u32 %v8111, 5
        %v8113 = vand.u32 %v8111, 31
        %v8114 = vsub.s32 32, %v8113
        %v8115 = vshrl.u32 683565275, %v8114
        %v8116 = vshll.u32 683565275, %v8113
        %v8117 = vshrl.u32 2475754826, %v8114
        %v8118 = vor.u32 %v8116, %v8117
        %v8119 = vshll.u32 2475754826, %v8113
        %v8120 = vshrl.u32 2131351028, %v8114
        %v8121 = vor.u32 %v8119, %v8120
        %v8122 = vshll.u32 2131351028, %v8113
        %v8123 = vshrl.u32 2102212464, %v8114
        %v8124 = vor.u32 %v8122, %v8123
        %v8125 = vshll.u32 2102212464, %v8113
        %v8126 = vshrl.u32 920167782, %v8114
        %v8127 = vor.u32 %v8125, %v8126
        %v8128 = vshll.u32 920167782, %v8113
        %v8129 = vshrl.u32 1326507024, %v8114
        %v8130 = vor.u32 %v8128, %v8129
        %vm8131 = vcmp.lt.s32.totalorder %v8112, 1
        %vm8132 = vcmp.lt.s32.totalorder %v8112, 2
        %vm8133 = vcmp.lt.s32.totalorder %v8112, 3
        %vm8134 = vcmp.lt.s32.totalorder %v8112, 4
        %v8135 = vsel %vm8131, %v8115, %v8118
        %v8136 = vsel %vm8134, %v8124, 2102212464
        %v8137 = vsel %vm8133, %v8121, %v8136
        %v8138 = vsel %vm8132, %v8135, %v8137
        %v8139 = vsel %vm8131, %v8118, %v8121
        %v8140 = vsel %vm8134, %v8127, 920167782
        %v8141 = vsel %vm8133, %v8124, %v8140
        %v8142 = vsel %vm8132, %v8139, %v8141
        %v8143 = vsel %vm8131, %v8121, %v8124
        %v8144 = vsel %vm8134, %v8130, 1326507024
        %v8145 = vsel %vm8133, %v8127, %v8144
        %v8146 = vsel %vm8132, %v8143, %v8145
        %v8147 = vshll.u32 %v8107, 8
        %v8148 = vand.u32 %v8147, 65535
        %v8149 = vshrl.u32 %v8147, 16
        %v8150 = vand.u32 %v8146, 65535
        %v8151 = vshrl.u32 %v8146, 16
        %v8152 = vmul.u32 %v8148, %v8150
        %v8153 = vmul.u32 %v8148, %v8151
        %v8154 = vmul.u32 %v8149, %v8150
        %v8155 = vmul.u32 %v8149, %v8151
        %v8156 = vshll.u32 %v8153, 16
        %v8157 = vshrl.u32 %v8153, 16
        %v8158 = vshll.u32 %v8154, 16
        %v8159 = vshrl.u32 %v8154, 16
        %vm8160 = vc.u32 %v8152, %v8156
        %v8161 = vsel %vm8160, 1, 0
        %v8162 = vadd.s32 %v8152, %v8156
        %v8163 = vadd.s32 %v8155, %v8161
        %vm8164 = vc.u32 %v8162, %v8158
        %v8165 = vsel %vm8164, 1, 0
        %v8166 = vadd.s32 %v8162, %v8158
        %v8167 = vadd.s32 %v8163, %v8165
        %v8168 = vadd.s32 %v8167, %v8157
        %v8169 = vadd.s32 %v8168, %v8159
        %v8170 = vand.u32 %v8147, 65535
        %v8171 = vshrl.u32 %v8147, 16
        %v8172 = vand.u32 %v8142, 65535
        %v8173 = vshrl.u32 %v8142, 16
        %v8174 = vmul.u32 %v8170, %v8172
        %v8175 = vmul.u32 %v8170, %v8173
        %v8176 = vmul.u32 %v8171, %v8172
        %v8177 = vmul.u32 %v8171, %v8173
        %v8178 = vshll.u32 %v8175, 16
        %v8179 = vshrl.u32 %v8175, 16
        %v8180 = vshll.u32 %v8176, 16
        %v8181 = vshrl.u32 %v8176, 16
        %vm8182 = vc.u32 %v8174, %v8178
        %v8183 = vsel %vm8182, 1, 0
        %v8184 = vadd.s32 %v8174, %v8178
        %v8185 = vadd.s32 %v8177, %v8183
        %vm8186 = vc.u32 %v8184, %v8180
        %v8187 = vsel %vm8186, 1, 0
        %v8188 = vadd.s32 %v8184, %v8180
        %v8189 = vadd.s32 %v8185, %v8187
        %v8190 = vadd.s32 %v8189, %v8179
        %v8191 = vadd.s32 %v8190, %v8181
        %v8192 = vmul.u32 %v8147, %v8138
        %v8193 = vadd.s32 %v8169, %v8188
        %vm8194 = vc.u32 %v8169, %v8188
        %v8195 = vadd.s32 %v8191, 1
        %v8196 = vsel %vm8194, %v8195, %v8191
        %v8197 = vadd.s32 %v8192, %v8196
        %v8198 = vadd.s32 %v8197, 536870912
        %v8199 = vshrl.u32 %v8198, 30
        %v8200 = vshll.u32 %v8199, 30
        %v8201 = vsub.s32 %v8197, %v8200
        %vm8202 = vcmp.lt.s32.totalorder %v8201, 0
        %v8203 = vsub.s32 0, %v8201
        %v8204 = vsel %vm8202, %v8203, %v8201
        %v8205 = vclz %v8204
        %v8206 = vsub.s32 %v8205, 2
        %vm8207 = vcmp.gt.s32.totalorder 0, %v8206
        %v8208 = vsel %vm8207, 0, %v8206
        %v8209 = vsub.s32 32, %v8208
        %v8210 = vshll.u32 %v8201, %v8208
        %v8211 = vshrl.u32 %v8193, %v8209
        %v8212 = vor.u32 %v8210, %v8211
        %v8213 = vsub.s32 4294967266, %v8208
        %v8214 = vadd.s32 %v8213, 127
        %v8215 = vshll.u32 %v8214, 23
        %v8216 = vor.u32 4788187, %v8215
        %v8217 = vand.u32 2147483647, %v8216
        %v8219 = vcvt.s32.f32 %v8212
        %v8220 = vmul.f32 %v8219, %v8217
        %v8221 = vxor.u32 %v8220, 2147483648
        %v8222 = vsel %vm8101, %v8221, %v8220
        %v8223 = vsub.s32 4, %v8199
        %v8224 = vsel %vm8101, %v8223, %v8199
        %v8225 = vsel %vm8100, %v441, %v8222
        %v8226 = vsel %vm8100, 0, %v8224
        %v8227 = vmul.f32 %v8225, %v8225
        %v8228 = vmul.f32 %v8227, -0.001358992
        %v8229 = vadd.f32 %v8228, 0.041655596
        %v8230 = vmul.f32 %v8227, %v8229
        %v8231 = vadd.f32 %v8230, -0.4999988
        %v8232 = vmul.f32 %v8227, %v8231
        %v8233 = vadd.f32 1.0, %v8232
        %v8234 = vmul.f32 %v8225, %v8225
        %v8235 = vmul.f32 %v8234, -0.00019511016
        %v8236 = vadd.f32 %v8235, 0.008332121
        %v8237 = vmul.f32 %v8234, %v8236
        %v8238 = vadd.f32 %v8237, -0.16666654
        %v8239 = vmul.f32 %v8234, %v8238
        %v8240 = vadd.f32 %v8239, 1.0
        %v8241 = vmul.f32 %v8240, %v8225
        %vm8242 = vweird.f32 %v441
        %v8243 = vand.u32 %v8226, 3
        %vm8244 = vcmp.lt.s32.totalorder %v8243, 2
        %vm8245 = vcmp.eq.s32.totalorder %v8243, 0
        %v8246 = vxor.u32 %v8241, 2147483648
        %v8247 = vsel %vm8245, %v8233, %v8246
        %vm8248 = vcmp.eq.s32.totalorder %v8243, 2
        %v8249 = vxor.u32 %v8233, 2147483648
        %v8250 = vsel %vm8248, %v8249, %v8241
        %v8251 = vsel %vm8244, %v8247, %v8250
        %v8252 = vsel %vm8242, nan, %v8251
        %v8253 = vand.u32 2147483647, %v442
        %vm8254 = vcmp.le.f32.partialorder %v8253, 0.7853982
        %vm8255 = vcmp.lt.s32.totalorder %v442, 0
        %v8256 = vand.u32 %v442, 2139095040
        %v8257 = vshrl.u32 %v8256, 23
        %v8258 = vsub.s32 %v8257, 127
        %v8259 = vand.u32 2147483647, %v442
        %v8260 = vand.u32 %v8259, 8388607
        %v8261 = vor.u32 %v8260, 8388608
        %v8262 = vsub.s32 0, %v8261
        %v8263 = vadd.s32 %v8258, 1
        %vm8264 = vcmp.gt.s32.totalorder %v8263, 0
        %v8265 = vsel %vm8264, %v8263, 0
        %v8266 = vshrl.u32 %v8265, 5
        %v8267 = vand.u32 %v8265, 31
        %v8268 = vsub.s32 32, %v8267
        %v8269 = vshrl.u32 683565275, %v8268
        %v8270 = vshll.u32 683565275, %v8267
        %v8271 = vshrl.u32 2475754826, %v8268
        %v8272 = vor.u32 %v8270, %v8271
        %v8273 = vshll.u32 2475754826, %v8267
        %v8274 = vshrl.u32 2131351028, %v8268
        %v8275 = vor.u32 %v8273, %v8274
        %v8276 = vshll.u32 2131351028, %v8267
        %v8277 = vshrl.u32 2102212464, %v8268
        %v8278 = vor.u32 %v8276, %v8277
        %v8279 = vshll.u32 2102212464, %v8267
        %v8280 = vshrl.u32 920167782, %v8268
        %v8281 = vor.u32 %v8279, %v8280
        %v8282 = vshll.u32 920167782, %v8267
        %v8283 = vshrl.u32 1326507024, %v8268
        %v8284 = vor.u32 %v8282, %v8283
        %vm8285 = vcmp.lt.s32.totalorder %v8266, 1
        %vm8286 = vcmp.lt.s32.totalorder %v8266, 2
        %vm8287 = vcmp.lt.s32.totalorder %v8266, 3
        %vm8288 = vcmp.lt.s32.totalorder %v8266, 4
        %v8289 = vsel %vm8285, %v8269, %v8272
        %v8290 = vsel %vm8288, %v8278, 2102212464
        %v8291 = vsel %vm8287, %v8275, %v8290
        %v8292 = vsel %vm8286, %v8289, %v8291
        %v8293 = vsel %vm8285, %v8272, %v8275
        %v8294 = vsel %vm8288, %v8281, 920167782
        %v8295 = vsel %vm8287, %v8278, %v8294
        %v8296 = vsel %vm8286, %v8293, %v8295
        %v8297 = vsel %vm8285, %v8275, %v8278
        %v8298 = vsel %vm8288, %v8284, 1326507024
        %v8299 = vsel %vm8287, %v8281, %v8298
        %v8300 = vsel %vm8286, %v8297, %v8299
        %v8301 = vshll.u32 %v8261, 8
        %v8302 = vand.u32 %v8301, 65535
        %v8303 = vshrl.u32 %v8301, 16
        %v8304 = vand.u32 %v8300, 65535
        %v8305 = vshrl.u32 %v8300, 16
        %v8306 = vmul.u32 %v8302, %v8304
        %v8307 = vmul.u32 %v8302, %v8305
        %v8308 = vmul.u32 %v8303, %v8304
        %v8309 = vmul.u32 %v8303, %v8305
        %v8310 = vshll.u32 %v8307, 16
        %v8311 = vshrl.u32 %v8307, 16
        %v8312 = vshll.u32 %v8308, 16
        %v8313 = vshrl.u32 %v8308, 16
        %vm8314 = vc.u32 %v8306, %v8310
        %v8315 = vsel %vm8314, 1, 0
        %v8316 = vadd.s32 %v8306, %v8310
        %v8317 = vadd.s32 %v8309, %v8315
        %vm8318 = vc.u32 %v8316, %v8312
        %v8319 = vsel %vm8318, 1, 0
        %v8320 = vadd.s32 %v8316, %v8312
        %v8321 = vadd.s32 %v8317, %v8319
        %v8322 = vadd.s32 %v8321, %v8311
        %v8323 = vadd.s32 %v8322, %v8313
        %v8324 = vand.u32 %v8301, 65535
        %v8325 = vshrl.u32 %v8301, 16
        %v8326 = vand.u32 %v8296, 65535
        %v8327 = vshrl.u32 %v8296, 16
        %v8328 = vmul.u32 %v8324, %v8326
        %v8329 = vmul.u32 %v8324, %v8327
        %v8330 = vmul.u32 %v8325, %v8326
        %v8331 = vmul.u32 %v8325, %v8327
        %v8332 = vshll.u32 %v8329, 16
        %v8333 = vshrl.u32 %v8329, 16
        %v8334 = vshll.u32 %v8330, 16
        %v8335 = vshrl.u32 %v8330, 16
        %vm8336 = vc.u32 %v8328, %v8332
        %v8337 = vsel %vm8336, 1, 0
        %v8338 = vadd.s32 %v8328, %v8332
        %v8339 = vadd.s32 %v8331, %v8337
        %vm8340 = vc.u32 %v8338, %v8334
        %v8341 = vsel %vm8340, 1, 0
        %v8342 = vadd.s32 %v8338, %v8334
        %v8343 = vadd.s32 %v8339, %v8341
        %v8344 = vadd.s32 %v8343, %v8333
        %v8345 = vadd.s32 %v8344, %v8335
        %v8346 = vmul.u32 %v8301, %v8292
        %v8347 = vadd.s32 %v8323, %v8342
        %vm8348 = vc.u32 %v8323, %v8342
        %v8349 = vadd.s32 %v8345, 1
        %v8350 = vsel %vm8348, %v8349, %v8345
        %v8351 = vadd.s32 %v8346, %v8350
        %v8352 = vadd.s32 %v8351, 536870912
        %v8353 = vshrl.u32 %v8352, 30
        %v8354 = vshll.u32 %v8353, 30
        %v8355 = vsub.s32 %v8351, %v8354
        %vm8356 = vcmp.lt.s32.totalorder %v8355, 0
        %v8357 = vsub.s32 0, %v8355
        %v8358 = vsel %vm8356, %v8357, %v8355
        %v8359 = vclz %v8358
        %v8360 = vsub.s32 %v8359, 2
        %vm8361 = vcmp.gt.s32.totalorder 0, %v8360
        %v8362 = vsel %vm8361, 0, %v8360
        %v8363 = vsub.s32 32, %v8362
        %v8364 = vshll.u32 %v8355, %v8362
        %v8365 = vshrl.u32 %v8347, %v8363
        %v8366 = vor.u32 %v8364, %v8365
        %v8367 = vsub.s32 4294967266, %v8362
        %v8368 = vadd.s32 %v8367, 127
        %v8369 = vshll.u32 %v8368, 23
        %v8370 = vor.u32 4788187, %v8369
        %v8371 = vand.u32 2147483647, %v8370
        %v8373 = vcvt.s32.f32 %v8366
        %v8374 = vmul.f32 %v8373, %v8371
        %v8375 = vxor.u32 %v8374, 2147483648
        %v8376 = vsel %vm8255, %v8375, %v8374
        %v8377 = vsub.s32 4, %v8353
        %v8378 = vsel %vm8255, %v8377, %v8353
        %v8379 = vsel %vm8254, %v442, %v8376
        %v8380 = vsel %vm8254, 0, %v8378
        %v8381 = vmul.f32 %v8379, %v8379
        %v8382 = vmul.f32 %v8381, -0.001358992
        %v8383 = vadd.f32 %v8382, 0.041655596
        %v8384 = vmul.f32 %v8381, %v8383
        %v8385 = vadd.f32 %v8384, -0.4999988
        %v8386 = vmul.f32 %v8381, %v8385
        %v8387 = vadd.f32 1.0, %v8386
        %v8388 = vmul.f32 %v8379, %v8379
        %v8389 = vmul.f32 %v8388, -0.00019511016
        %v8390 = vadd.f32 %v8389, 0.008332121
        %v8391 = vmul.f32 %v8388, %v8390
        %v8392 = vadd.f32 %v8391, -0.16666654
        %v8393 = vmul.f32 %v8388, %v8392
        %v8394 = vadd.f32 %v8393, 1.0
        %v8395 = vmul.f32 %v8394, %v8379
        %vm8396 = vweird.f32 %v442
        %v8397 = vand.u32 %v8380, 3
        %vm8398 = vcmp.lt.s32.totalorder %v8397, 2
        %vm8399 = vcmp.eq.s32.totalorder %v8397, 0
        %v8400 = vxor.u32 %v8395, 2147483648
        %v8401 = vsel %vm8399, %v8387, %v8400
        %vm8402 = vcmp.eq.s32.totalorder %v8397, 2
        %v8403 = vxor.u32 %v8387, 2147483648
        %v8404 = vsel %vm8402, %v8403, %v8395
        %v8405 = vsel %vm8398, %v8401, %v8404
        %v8406 = vsel %vm8396, nan, %v8405
        %v8407 = vand.u32 2147483647, %v443
        %vm8408 = vcmp.le.f32.partialorder %v8407, 0.7853982
        %vm8409 = vcmp.lt.s32.totalorder %v443, 0
        %v8410 = vand.u32 %v443, 2139095040
        %v8411 = vshrl.u32 %v8410, 23
        %v8412 = vsub.s32 %v8411, 127
        %v8413 = vand.u32 2147483647, %v443
        %v8414 = vand.u32 %v8413, 8388607
        %v8415 = vor.u32 %v8414, 8388608
        %v8416 = vsub.s32 0, %v8415
        %v8417 = vadd.s32 %v8412, 1
        %vm8418 = vcmp.gt.s32.totalorder %v8417, 0
        %v8419 = vsel %vm8418, %v8417, 0
        %v8420 = vshrl.u32 %v8419, 5
        %v8421 = vand.u32 %v8419, 31
        %v8422 = vsub.s32 32, %v8421
        %v8423 = vshrl.u32 683565275, %v8422
        %v8424 = vshll.u32 683565275, %v8421
        %v8425 = vshrl.u32 2475754826, %v8422
        %v8426 = vor.u32 %v8424, %v8425
        %v8427 = vshll.u32 2475754826, %v8421
        %v8428 = vshrl.u32 2131351028, %v8422
        %v8429 = vor.u32 %v8427, %v8428
        %v8430 = vshll.u32 2131351028, %v8421
        %v8431 = vshrl.u32 2102212464, %v8422
        %v8432 = vor.u32 %v8430, %v8431
        %v8433 = vshll.u32 2102212464, %v8421
        %v8434 = vshrl.u32 920167782, %v8422
        %v8435 = vor.u32 %v8433, %v8434
        %v8436 = vshll.u32 920167782, %v8421
        %v8437 = vshrl.u32 1326507024, %v8422
        %v8438 = vor.u32 %v8436, %v8437
        %vm8439 = vcmp.lt.s32.totalorder %v8420, 1
        %vm8440 = vcmp.lt.s32.totalorder %v8420, 2
        %vm8441 = vcmp.lt.s32.totalorder %v8420, 3
        %vm8442 = vcmp.lt.s32.totalorder %v8420, 4
        %v8443 = vsel %vm8439, %v8423, %v8426
        %v8444 = vsel %vm8442, %v8432, 2102212464
        %v8445 = vsel %vm8441, %v8429, %v8444
        %v8446 = vsel %vm8440, %v8443, %v8445
        %v8447 = vsel %vm8439, %v8426, %v8429
        %v8448 = vsel %vm8442, %v8435, 920167782
        %v8449 = vsel %vm8441, %v8432, %v8448
        %v8450 = vsel %vm8440, %v8447, %v8449
        %v8451 = vsel %vm8439, %v8429, %v8432
        %v8452 = vsel %vm8442, %v8438, 1326507024
        %v8453 = vsel %vm8441, %v8435, %v8452
        %v8454 = vsel %vm8440, %v8451, %v8453
        %v8455 = vshll.u32 %v8415, 8
        %v8456 = vand.u32 %v8455, 65535
        %v8457 = vshrl.u32 %v8455, 16
        %v8458 = vand.u32 %v8454, 65535
        %v8459 = vshrl.u32 %v8454, 16
        %v8460 = vmul.u32 %v8456, %v8458
        %v8461 = vmul.u32 %v8456, %v8459
        %v8462 = vmul.u32 %v8457, %v8458
        %v8463 = vmul.u32 %v8457, %v8459
        %v8464 = vshll.u32 %v8461, 16
        %v8465 = vshrl.u32 %v8461, 16
        %v8466 = vshll.u32 %v8462, 16
        %v8467 = vshrl.u32 %v8462, 16
        %vm8468 = vc.u32 %v8460, %v8464
        %v8469 = vsel %vm8468, 1, 0
        %v8470 = vadd.s32 %v8460, %v8464
        %v8471 = vadd.s32 %v8463, %v8469
        %vm8472 = vc.u32 %v8470, %v8466
        %v8473 = vsel %vm8472, 1, 0
        %v8474 = vadd.s32 %v8470, %v8466
        %v8475 = vadd.s32 %v8471, %v8473
        %v8476 = vadd.s32 %v8475, %v8465
        %v8477 = vadd.s32 %v8476, %v8467
        %v8478 = vand.u32 %v8455, 65535
        %v8479 = vshrl.u32 %v8455, 16
        %v8480 = vand.u32 %v8450, 65535
        %v8481 = vshrl.u32 %v8450, 16
        %v8482 = vmul.u32 %v8478, %v8480
        %v8483 = vmul.u32 %v8478, %v8481
        %v8484 = vmul.u32 %v8479, %v8480
        %v8485 = vmul.u32 %v8479, %v8481
        %v8486 = vshll.u32 %v8483, 16
        %v8487 = vshrl.u32 %v8483, 16
        %v8488 = vshll.u32 %v8484, 16
        %v8489 = vshrl.u32 %v8484, 16
        %vm8490 = vc.u32 %v8482, %v8486
        %v8491 = vsel %vm8490, 1, 0
        %v8492 = vadd.s32 %v8482, %v8486
        %v8493 = vadd.s32 %v8485, %v8491
        %vm8494 = vc.u32 %v8492, %v8488
        %v8495 = vsel %vm8494, 1, 0
        %v8496 = vadd.s32 %v8492, %v8488
        %v8497 = vadd.s32 %v8493, %v8495
        %v8498 = vadd.s32 %v8497, %v8487
        %v8499 = vadd.s32 %v8498, %v8489
        %v8500 = vmul.u32 %v8455, %v8446
        %v8501 = vadd.s32 %v8477, %v8496
        %vm8502 = vc.u32 %v8477, %v8496
        %v8503 = vadd.s32 %v8499, 1
        %v8504 = vsel %vm8502, %v8503, %v8499
        %v8505 = vadd.s32 %v8500, %v8504
        %v8506 = vadd.s32 %v8505, 536870912
        %v8507 = vshrl.u32 %v8506, 30
        %v8508 = vshll.u32 %v8507, 30
        %v8509 = vsub.s32 %v8505, %v8508
        %vm8510 = vcmp.lt.s32.totalorder %v8509, 0
        %v8511 = vsub.s32 0, %v8509
        %v8512 = vsel %vm8510, %v8511, %v8509
        %v8513 = vclz %v8512
        %v8514 = vsub.s32 %v8513, 2
        %vm8515 = vcmp.gt.s32.totalorder 0, %v8514
        %v8516 = vsel %vm8515, 0, %v8514
        %v8517 = vsub.s32 32, %v8516
        %v8518 = vshll.u32 %v8509, %v8516
        %v8519 = vshrl.u32 %v8501, %v8517
        %v8520 = vor.u32 %v8518, %v8519
        %v8521 = vsub.s32 4294967266, %v8516
        %v8522 = vadd.s32 %v8521, 127
        %v8523 = vshll.u32 %v8522, 23
        %v8524 = vor.u32 4788187, %v8523
        %v8525 = vand.u32 2147483647, %v8524
        %v8527 = vcvt.s32.f32 %v8520
        %v8528 = vmul.f32 %v8527, %v8525
        %v8529 = vxor.u32 %v8528, 2147483648
        %v8530 = vsel %vm8409, %v8529, %v8528
        %v8531 = vsub.s32 4, %v8507
        %v8532 = vsel %vm8409, %v8531, %v8507
        %v8533 = vsel %vm8408, %v443, %v8530
        %v8534 = vsel %vm8408, 0, %v8532
        %v8535 = vmul.f32 %v8533, %v8533
        %v8536 = vmul.f32 %v8535, -0.001358992
        %v8537 = vadd.f32 %v8536, 0.041655596
        %v8538 = vmul.f32 %v8535, %v8537
        %v8539 = vadd.f32 %v8538, -0.4999988
        %v8540 = vmul.f32 %v8535, %v8539
        %v8541 = vadd.f32 1.0, %v8540
        %v8542 = vmul.f32 %v8533, %v8533
        %v8543 = vmul.f32 %v8542, -0.00019511016
        %v8544 = vadd.f32 %v8543, 0.008332121
        %v8545 = vmul.f32 %v8542, %v8544
        %v8546 = vadd.f32 %v8545, -0.16666654
        %v8547 = vmul.f32 %v8542, %v8546
        %v8548 = vadd.f32 %v8547, 1.0
        %v8549 = vmul.f32 %v8548, %v8533
        %vm8550 = vweird.f32 %v443
        %v8551 = vand.u32 %v8534, 3
        %vm8552 = vcmp.lt.s32.totalorder %v8551, 2
        %vm8553 = vcmp.eq.s32.totalorder %v8551, 0
        %v8554 = vxor.u32 %v8549, 2147483648
        %v8555 = vsel %vm8553, %v8541, %v8554
        %vm8556 = vcmp.eq.s32.totalorder %v8551, 2
        %v8557 = vxor.u32 %v8541, 2147483648
        %v8558 = vsel %vm8556, %v8557, %v8549
        %v8559 = vsel %vm8552, %v8555, %v8558
        %v8560 = vsel %vm8550, nan, %v8559
        %v8561 = vand.u32 2147483647, %v444
        %vm8562 = vcmp.le.f32.partialorder %v8561, 0.7853982
        %vm8563 = vcmp.lt.s32.totalorder %v444, 0
        %v8564 = vand.u32 %v444, 2139095040
        %v8565 = vshrl.u32 %v8564, 23
        %v8566 = vsub.s32 %v8565, 127
        %v8567 = vand.u32 2147483647, %v444
        %v8568 = vand.u32 %v8567, 8388607
        %v8569 = vor.u32 %v8568, 8388608
        %v8570 = vsub.s32 0, %v8569
        %v8571 = vadd.s32 %v8566, 1
        %vm8572 = vcmp.gt.s32.totalorder %v8571, 0
        %v8573 = vsel %vm8572, %v8571, 0
        %v8574 = vshrl.u32 %v8573, 5
        %v8575 = vand.u32 %v8573, 31
        %v8576 = vsub.s32 32, %v8575
        %v8577 = vshrl.u32 683565275, %v8576
        %v8578 = vshll.u32 683565275, %v8575
        %v8579 = vshrl.u32 2475754826, %v8576
        %v8580 = vor.u32 %v8578, %v8579
        %v8581 = vshll.u32 2475754826, %v8575
        %v8582 = vshrl.u32 2131351028, %v8576
        %v8583 = vor.u32 %v8581, %v8582
        %v8584 = vshll.u32 2131351028, %v8575
        %v8585 = vshrl.u32 2102212464, %v8576
        %v8586 = vor.u32 %v8584, %v8585
        %v8587 = vshll.u32 2102212464, %v8575
        %v8588 = vshrl.u32 920167782, %v8576
        %v8589 = vor.u32 %v8587, %v8588
        %v8590 = vshll.u32 920167782, %v8575
        %v8591 = vshrl.u32 1326507024, %v8576
        %v8592 = vor.u32 %v8590, %v8591
        %vm8593 = vcmp.lt.s32.totalorder %v8574, 1
        %vm8594 = vcmp.lt.s32.totalorder %v8574, 2
        %vm8595 = vcmp.lt.s32.totalorder %v8574, 3
        %vm8596 = vcmp.lt.s32.totalorder %v8574, 4
        %v8597 = vsel %vm8593, %v8577, %v8580
        %v8598 = vsel %vm8596, %v8586, 2102212464
        %v8599 = vsel %vm8595, %v8583, %v8598
        %v8600 = vsel %vm8594, %v8597, %v8599
        %v8601 = vsel %vm8593, %v8580, %v8583
        %v8602 = vsel %vm8596, %v8589, 920167782
        %v8603 = vsel %vm8595, %v8586, %v8602
        %v8604 = vsel %vm8594, %v8601, %v8603
        %v8605 = vsel %vm8593, %v8583, %v8586
        %v8606 = vsel %vm8596, %v8592, 1326507024
        %v8607 = vsel %vm8595, %v8589, %v8606
        %v8608 = vsel %vm8594, %v8605, %v8607
        %v8609 = vshll.u32 %v8569, 8
        %v8610 = vand.u32 %v8609, 65535
        %v8611 = vshrl.u32 %v8609, 16
        %v8612 = vand.u32 %v8608, 65535
        %v8613 = vshrl.u32 %v8608, 16
        %v8614 = vmul.u32 %v8610, %v8612
        %v8615 = vmul.u32 %v8610, %v8613
        %v8616 = vmul.u32 %v8611, %v8612
        %v8617 = vmul.u32 %v8611, %v8613
        %v8618 = vshll.u32 %v8615, 16
        %v8619 = vshrl.u32 %v8615, 16
        %v8620 = vshll.u32 %v8616, 16
        %v8621 = vshrl.u32 %v8616, 16
        %vm8622 = vc.u32 %v8614, %v8618
        %v8623 = vsel %vm8622, 1, 0
        %v8624 = vadd.s32 %v8614, %v8618
        %v8625 = vadd.s32 %v8617, %v8623
        %vm8626 = vc.u32 %v8624, %v8620
        %v8627 = vsel %vm8626, 1, 0
        %v8628 = vadd.s32 %v8624, %v8620
        %v8629 = vadd.s32 %v8625, %v8627
        %v8630 = vadd.s32 %v8629, %v8619
        %v8631 = vadd.s32 %v8630, %v8621
        %v8632 = vand.u32 %v8609, 65535
        %v8633 = vshrl.u32 %v8609, 16
        %v8634 = vand.u32 %v8604, 65535
        %v8635 = vshrl.u32 %v8604, 16
        %v8636 = vmul.u32 %v8632, %v8634
        %v8637 = vmul.u32 %v8632, %v8635
        %v8638 = vmul.u32 %v8633, %v8634
        %v8639 = vmul.u32 %v8633, %v8635
        %v8640 = vshll.u32 %v8637, 16
        %v8641 = vshrl.u32 %v8637, 16
        %v8642 = vshll.u32 %v8638, 16
        %v8643 = vshrl.u32 %v8638, 16
        %vm8644 = vc.u32 %v8636, %v8640
        %v8645 = vsel %vm8644, 1, 0
        %v8646 = vadd.s32 %v8636, %v8640
        %v8647 = vadd.s32 %v8639, %v8645
        %vm8648 = vc.u32 %v8646, %v8642
        %v8649 = vsel %vm8648, 1, 0
        %v8650 = vadd.s32 %v8646, %v8642
        %v8651 = vadd.s32 %v8647, %v8649
        %v8652 = vadd.s32 %v8651, %v8641
        %v8653 = vadd.s32 %v8652, %v8643
        %v8654 = vmul.u32 %v8609, %v8600
        %v8655 = vadd.s32 %v8631, %v8650
        %vm8656 = vc.u32 %v8631, %v8650
        %v8657 = vadd.s32 %v8653, 1
        %v8658 = vsel %vm8656, %v8657, %v8653
        %v8659 = vadd.s32 %v8654, %v8658
        %v8660 = vadd.s32 %v8659, 536870912
        %v8661 = vshrl.u32 %v8660, 30
        %v8662 = vshll.u32 %v8661, 30
        %v8663 = vsub.s32 %v8659, %v8662
        %vm8664 = vcmp.lt.s32.totalorder %v8663, 0
        %v8665 = vsub.s32 0, %v8663
        %v8666 = vsel %vm8664, %v8665, %v8663
        %v8667 = vclz %v8666
        %v8668 = vsub.s32 %v8667, 2
        %vm8669 = vcmp.gt.s32.totalorder 0, %v8668
        %v8670 = vsel %vm8669, 0, %v8668
        %v8671 = vsub.s32 32, %v8670
        %v8672 = vshll.u32 %v8663, %v8670
        %v8673 = vshrl.u32 %v8655, %v8671
        %v8674 = vor.u32 %v8672, %v8673
        %v8675 = vsub.s32 4294967266, %v8670
        %v8676 = vadd.s32 %v8675, 127
        %v8677 = vshll.u32 %v8676, 23
        %v8678 = vor.u32 4788187, %v8677
        %v8679 = vand.u32 2147483647, %v8678
        %v8681 = vcvt.s32.f32 %v8674
        %v8682 = vmul.f32 %v8681, %v8679
        %v8683 = vxor.u32 %v8682, 2147483648
        %v8684 = vsel %vm8563, %v8683, %v8682
        %v8685 = vsub.s32 4, %v8661
        %v8686 = vsel %vm8563, %v8685, %v8661
        %v8687 = vsel %vm8562, %v444, %v8684
        %v8688 = vsel %vm8562, 0, %v8686
        %v8689 = vmul.f32 %v8687, %v8687
        %v8690 = vmul.f32 %v8689, -0.001358992
        %v8691 = vadd.f32 %v8690, 0.041655596
        %v8692 = vmul.f32 %v8689, %v8691
        %v8693 = vadd.f32 %v8692, -0.4999988
        %v8694 = vmul.f32 %v8689, %v8693
        %v8695 = vadd.f32 1.0, %v8694
        %v8696 = vmul.f32 %v8687, %v8687
        %v8697 = vmul.f32 %v8696, -0.00019511016
        %v8698 = vadd.f32 %v8697, 0.008332121
        %v8699 = vmul.f32 %v8696, %v8698
        %v8700 = vadd.f32 %v8699, -0.16666654
        %v8701 = vmul.f32 %v8696, %v8700
        %v8702 = vadd.f32 %v8701, 1.0
        %v8703 = vmul.f32 %v8702, %v8687
        %vm8704 = vweird.f32 %v444
        %v8705 = vand.u32 %v8688, 3
        %vm8706 = vcmp.lt.s32.totalorder %v8705, 2
        %vm8707 = vcmp.eq.s32.totalorder %v8705, 0
        %v8708 = vxor.u32 %v8703, 2147483648
        %v8709 = vsel %vm8707, %v8695, %v8708
        %vm8710 = vcmp.eq.s32.totalorder %v8705, 2
        %v8711 = vxor.u32 %v8695, 2147483648
        %v8712 = vsel %vm8710, %v8711, %v8703
        %v8713 = vsel %vm8706, %v8709, %v8712
        %v8714 = vsel %vm8704, nan, %v8713
        %v8715 = vand.u32 2147483647, %v445
        %vm8716 = vcmp.le.f32.partialorder %v8715, 0.7853982
        %vm8717 = vcmp.lt.s32.totalorder %v445, 0
        %v8718 = vand.u32 %v445, 2139095040
        %v8719 = vshrl.u32 %v8718, 23
        %v8720 = vsub.s32 %v8719, 127
        %v8721 = vand.u32 2147483647, %v445
        %v8722 = vand.u32 %v8721, 8388607
        %v8723 = vor.u32 %v8722, 8388608
        %v8724 = vsub.s32 0, %v8723
        %v8725 = vadd.s32 %v8720, 1
        %vm8726 = vcmp.gt.s32.totalorder %v8725, 0
        %v8727 = vsel %vm8726, %v8725, 0
        %v8728 = vshrl.u32 %v8727, 5
        %v8729 = vand.u32 %v8727, 31
        %v8730 = vsub.s32 32, %v8729
        %v8731 = vshrl.u32 683565275, %v8730
        %v8732 = vshll.u32 683565275, %v8729
        %v8733 = vshrl.u32 2475754826, %v8730
        %v8734 = vor.u32 %v8732, %v8733
        %v8735 = vshll.u32 2475754826, %v8729
        %v8736 = vshrl.u32 2131351028, %v8730
        %v8737 = vor.u32 %v8735, %v8736
        %v8738 = vshll.u32 2131351028, %v8729
        %v8739 = vshrl.u32 2102212464, %v8730
        %v8740 = vor.u32 %v8738, %v8739
        %v8741 = vshll.u32 2102212464, %v8729
        %v8742 = vshrl.u32 920167782, %v8730
        %v8743 = vor.u32 %v8741, %v8742
        %v8744 = vshll.u32 920167782, %v8729
        %v8745 = vshrl.u32 1326507024, %v8730
        %v8746 = vor.u32 %v8744, %v8745
        %vm8747 = vcmp.lt.s32.totalorder %v8728, 1
        %vm8748 = vcmp.lt.s32.totalorder %v8728, 2
        %vm8749 = vcmp.lt.s32.totalorder %v8728, 3
        %vm8750 = vcmp.lt.s32.totalorder %v8728, 4
        %v8751 = vsel %vm8747, %v8731, %v8734
        %v8752 = vsel %vm8750, %v8740, 2102212464
        %v8753 = vsel %vm8749, %v8737, %v8752
        %v8754 = vsel %vm8748, %v8751, %v8753
        %v8755 = vsel %vm8747, %v8734, %v8737
        %v8756 = vsel %vm8750, %v8743, 920167782
        %v8757 = vsel %vm8749, %v8740, %v8756
        %v8758 = vsel %vm8748, %v8755, %v8757
        %v8759 = vsel %vm8747, %v8737, %v8740
        %v8760 = vsel %vm8750, %v8746, 1326507024
        %v8761 = vsel %vm8749, %v8743, %v8760
        %v8762 = vsel %vm8748, %v8759, %v8761
        %v8763 = vshll.u32 %v8723, 8
        %v8764 = vand.u32 %v8763, 65535
        %v8765 = vshrl.u32 %v8763, 16
        %v8766 = vand.u32 %v8762, 65535
        %v8767 = vshrl.u32 %v8762, 16
        %v8768 = vmul.u32 %v8764, %v8766
        %v8769 = vmul.u32 %v8764, %v8767
        %v8770 = vmul.u32 %v8765, %v8766
        %v8771 = vmul.u32 %v8765, %v8767
        %v8772 = vshll.u32 %v8769, 16
        %v8773 = vshrl.u32 %v8769, 16
        %v8774 = vshll.u32 %v8770, 16
        %v8775 = vshrl.u32 %v8770, 16
        %vm8776 = vc.u32 %v8768, %v8772
        %v8777 = vsel %vm8776, 1, 0
        %v8778 = vadd.s32 %v8768, %v8772
        %v8779 = vadd.s32 %v8771, %v8777
        %vm8780 = vc.u32 %v8778, %v8774
        %v8781 = vsel %vm8780, 1, 0
        %v8782 = vadd.s32 %v8778, %v8774
        %v8783 = vadd.s32 %v8779, %v8781
        %v8784 = vadd.s32 %v8783, %v8773
        %v8785 = vadd.s32 %v8784, %v8775
        %v8786 = vand.u32 %v8763, 65535
        %v8787 = vshrl.u32 %v8763, 16
        %v8788 = vand.u32 %v8758, 65535
        %v8789 = vshrl.u32 %v8758, 16
        %v8790 = vmul.u32 %v8786, %v8788
        %v8791 = vmul.u32 %v8786, %v8789
        %v8792 = vmul.u32 %v8787, %v8788
        %v8793 = vmul.u32 %v8787, %v8789
        %v8794 = vshll.u32 %v8791, 16
        %v8795 = vshrl.u32 %v8791, 16
        %v8796 = vshll.u32 %v8792, 16
        %v8797 = vshrl.u32 %v8792, 16
        %vm8798 = vc.u32 %v8790, %v8794
        %v8799 = vsel %vm8798, 1, 0
        %v8800 = vadd.s32 %v8790, %v8794
        %v8801 = vadd.s32 %v8793, %v8799
        %vm8802 = vc.u32 %v8800, %v8796
        %v8803 = vsel %vm8802, 1, 0
        %v8804 = vadd.s32 %v8800, %v8796
        %v8805 = vadd.s32 %v8801, %v8803
        %v8806 = vadd.s32 %v8805, %v8795
        %v8807 = vadd.s32 %v8806, %v8797
        %v8808 = vmul.u32 %v8763, %v8754
        %v8809 = vadd.s32 %v8785, %v8804
        %vm8810 = vc.u32 %v8785, %v8804
        %v8811 = vadd.s32 %v8807, 1
        %v8812 = vsel %vm8810, %v8811, %v8807
        %v8813 = vadd.s32 %v8808, %v8812
        %v8814 = vadd.s32 %v8813, 536870912
        %v8815 = vshrl.u32 %v8814, 30
        %v8816 = vshll.u32 %v8815, 30
        %v8817 = vsub.s32 %v8813, %v8816
        %vm8818 = vcmp.lt.s32.totalorder %v8817, 0
        %v8819 = vsub.s32 0, %v8817
        %v8820 = vsel %vm8818, %v8819, %v8817
        %v8821 = vclz %v8820
        %v8822 = vsub.s32 %v8821, 2
        %vm8823 = vcmp.gt.s32.totalorder 0, %v8822
        %v8824 = vsel %vm8823, 0, %v8822
        %v8825 = vsub.s32 32, %v8824
        %v8826 = vshll.u32 %v8817, %v8824
        %v8827 = vshrl.u32 %v8809, %v8825
        %v8828 = vor.u32 %v8826, %v8827
        %v8829 = vsub.s32 4294967266, %v8824
        %v8830 = vadd.s32 %v8829, 127
        %v8831 = vshll.u32 %v8830, 23
        %v8832 = vor.u32 4788187, %v8831
        %v8833 = vand.u32 2147483647, %v8832
        %v8835 = vcvt.s32.f32 %v8828
        %v8836 = vmul.f32 %v8835, %v8833
        %v8837 = vxor.u32 %v8836, 2147483648
        %v8838 = vsel %vm8717, %v8837, %v8836
        %v8839 = vsub.s32 4, %v8815
        %v8840 = vsel %vm8717, %v8839, %v8815
        %v8841 = vsel %vm8716, %v445, %v8838
        %v8842 = vsel %vm8716, 0, %v8840
        %v8843 = vmul.f32 %v8841, %v8841
        %v8844 = vmul.f32 %v8843, -0.001358992
        %v8845 = vadd.f32 %v8844, 0.041655596
        %v8846 = vmul.f32 %v8843, %v8845
        %v8847 = vadd.f32 %v8846, -0.4999988
        %v8848 = vmul.f32 %v8843, %v8847
        %v8849 = vadd.f32 1.0, %v8848
        %v8850 = vmul.f32 %v8841, %v8841
        %v8851 = vmul.f32 %v8850, -0.00019511016
        %v8852 = vadd.f32 %v8851, 0.008332121
        %v8853 = vmul.f32 %v8850, %v8852
        %v8854 = vadd.f32 %v8853, -0.16666654
        %v8855 = vmul.f32 %v8850, %v8854
        %v8856 = vadd.f32 %v8855, 1.0
        %v8857 = vmul.f32 %v8856, %v8841
        %vm8858 = vweird.f32 %v445
        %v8859 = vand.u32 %v8842, 3
        %vm8860 = vcmp.lt.s32.totalorder %v8859, 2
        %vm8861 = vcmp.eq.s32.totalorder %v8859, 0
        %v8862 = vxor.u32 %v8857, 2147483648
        %v8863 = vsel %vm8861, %v8849, %v8862
        %vm8864 = vcmp.eq.s32.totalorder %v8859, 2
        %v8865 = vxor.u32 %v8849, 2147483648
        %v8866 = vsel %vm8864, %v8865, %v8857
        %v8867 = vsel %vm8860, %v8863, %v8866
        %v8868 = vsel %vm8858, nan, %v8867
        %v8869 = vand.u32 2147483647, %v446
        %vm8870 = vcmp.le.f32.partialorder %v8869, 0.7853982
        %vm8871 = vcmp.lt.s32.totalorder %v446, 0
        %v8872 = vand.u32 %v446, 2139095040
        %v8873 = vshrl.u32 %v8872, 23
        %v8874 = vsub.s32 %v8873, 127
        %v8875 = vand.u32 2147483647, %v446
        %v8876 = vand.u32 %v8875, 8388607
        %v8877 = vor.u32 %v8876, 8388608
        %v8878 = vsub.s32 0, %v8877
        %v8879 = vadd.s32 %v8874, 1
        %vm8880 = vcmp.gt.s32.totalorder %v8879, 0
        %v8881 = vsel %vm8880, %v8879, 0
        %v8882 = vshrl.u32 %v8881, 5
        %v8883 = vand.u32 %v8881, 31
        %v8884 = vsub.s32 32, %v8883
        %v8885 = vshrl.u32 683565275, %v8884
        %v8886 = vshll.u32 683565275, %v8883
        %v8887 = vshrl.u32 2475754826, %v8884
        %v8888 = vor.u32 %v8886, %v8887
        %v8889 = vshll.u32 2475754826, %v8883
        %v8890 = vshrl.u32 2131351028, %v8884
        %v8891 = vor.u32 %v8889, %v8890
        %v8892 = vshll.u32 2131351028, %v8883
        %v8893 = vshrl.u32 2102212464, %v8884
        %v8894 = vor.u32 %v8892, %v8893
        %v8895 = vshll.u32 2102212464, %v8883
        %v8896 = vshrl.u32 920167782, %v8884
        %v8897 = vor.u32 %v8895, %v8896
        %v8898 = vshll.u32 920167782, %v8883
        %v8899 = vshrl.u32 1326507024, %v8884
        %v8900 = vor.u32 %v8898, %v8899
        %vm8901 = vcmp.lt.s32.totalorder %v8882, 1
        %vm8902 = vcmp.lt.s32.totalorder %v8882, 2
        %vm8903 = vcmp.lt.s32.totalorder %v8882, 3
        %vm8904 = vcmp.lt.s32.totalorder %v8882, 4
        %v8905 = vsel %vm8901, %v8885, %v8888
        %v8906 = vsel %vm8904, %v8894, 2102212464
        %v8907 = vsel %vm8903, %v8891, %v8906
        %v8908 = vsel %vm8902, %v8905, %v8907
        %v8909 = vsel %vm8901, %v8888, %v8891
        %v8910 = vsel %vm8904, %v8897, 920167782
        %v8911 = vsel %vm8903, %v8894, %v8910
        %v8912 = vsel %vm8902, %v8909, %v8911
        %v8913 = vsel %vm8901, %v8891, %v8894
        %v8914 = vsel %vm8904, %v8900, 1326507024
        %v8915 = vsel %vm8903, %v8897, %v8914
        %v8916 = vsel %vm8902, %v8913, %v8915
        %v8917 = vshll.u32 %v8877, 8
        %v8918 = vand.u32 %v8917, 65535
        %v8919 = vshrl.u32 %v8917, 16
        %v8920 = vand.u32 %v8916, 65535
        %v8921 = vshrl.u32 %v8916, 16
        %v8922 = vmul.u32 %v8918, %v8920
        %v8923 = vmul.u32 %v8918, %v8921
        %v8924 = vmul.u32 %v8919, %v8920
        %v8925 = vmul.u32 %v8919, %v8921
        %v8926 = vshll.u32 %v8923, 16
        %v8927 = vshrl.u32 %v8923, 16
        %v8928 = vshll.u32 %v8924, 16
        %v8929 = vshrl.u32 %v8924, 16
        %vm8930 = vc.u32 %v8922, %v8926
        %v8931 = vsel %vm8930, 1, 0
        %v8932 = vadd.s32 %v8922, %v8926
        %v8933 = vadd.s32 %v8925, %v8931
        %vm8934 = vc.u32 %v8932, %v8928
        %v8935 = vsel %vm8934, 1, 0
        %v8936 = vadd.s32 %v8932, %v8928
        %v8937 = vadd.s32 %v8933, %v8935
        %v8938 = vadd.s32 %v8937, %v8927
        %v8939 = vadd.s32 %v8938, %v8929
        %v8940 = vand.u32 %v8917, 65535
        %v8941 = vshrl.u32 %v8917, 16
        %v8942 = vand.u32 %v8912, 65535
        %v8943 = vshrl.u32 %v8912, 16
        %v8944 = vmul.u32 %v8940, %v8942
        %v8945 = vmul.u32 %v8940, %v8943
        %v8946 = vmul.u32 %v8941, %v8942
        %v8947 = vmul.u32 %v8941, %v8943
        %v8948 = vshll.u32 %v8945, 16
        %v8949 = vshrl.u32 %v8945, 16
        %v8950 = vshll.u32 %v8946, 16
        %v8951 = vshrl.u32 %v8946, 16
        %vm8952 = vc.u32 %v8944, %v8948
        %v8953 = vsel %vm8952, 1, 0
        %v8954 = vadd.s32 %v8944, %v8948
        %v8955 = vadd.s32 %v8947, %v8953
        %vm8956 = vc.u32 %v8954, %v8950
        %v8957 = vsel %vm8956, 1, 0
        %v8958 = vadd.s32 %v8954, %v8950
        %v8959 = vadd.s32 %v8955, %v8957
        %v8960 = vadd.s32 %v8959, %v8949
        %v8961 = vadd.s32 %v8960, %v8951
        %v8962 = vmul.u32 %v8917, %v8908
        %v8963 = vadd.s32 %v8939, %v8958
        %vm8964 = vc.u32 %v8939, %v8958
        %v8965 = vadd.s32 %v8961, 1
        %v8966 = vsel %vm8964, %v8965, %v8961
        %v8967 = vadd.s32 %v8962, %v8966
        %v8968 = vadd.s32 %v8967, 536870912
        %v8969 = vshrl.u32 %v8968, 30
        %v8970 = vshll.u32 %v8969, 30
        %v8971 = vsub.s32 %v8967, %v8970
        %vm8972 = vcmp.lt.s32.totalorder %v8971, 0
        %v8973 = vsub.s32 0, %v8971
        %v8974 = vsel %vm8972, %v8973, %v8971
        %v8975 = vclz %v8974
        %v8976 = vsub.s32 %v8975, 2
        %vm8977 = vcmp.gt.s32.totalorder 0, %v8976
        %v8978 = vsel %vm8977, 0, %v8976
        %v8979 = vsub.s32 32, %v8978
        %v8980 = vshll.u32 %v8971, %v8978
        %v8981 = vshrl.u32 %v8963, %v8979
        %v8982 = vor.u32 %v8980, %v8981
        %v8983 = vsub.s32 4294967266, %v8978
        %v8984 = vadd.s32 %v8983, 127
        %v8985 = vshll.u32 %v8984, 23
        %v8986 = vor.u32 4788187, %v8985
        %v8987 = vand.u32 2147483647, %v8986
        %v8989 = vcvt.s32.f32 %v8982
        %v8990 = vmul.f32 %v8989, %v8987
        %v8991 = vxor.u32 %v8990, 2147483648
        %v8992 = vsel %vm8871, %v8991, %v8990
        %v8993 = vsub.s32 4, %v8969
        %v8994 = vsel %vm8871, %v8993, %v8969
        %v8995 = vsel %vm8870, %v446, %v8992
        %v8996 = vsel %vm8870, 0, %v8994
        %v8997 = vmul.f32 %v8995, %v8995
        %v8998 = vmul.f32 %v8997, -0.001358992
        %v8999 = vadd.f32 %v8998, 0.041655596
        %v9000 = vmul.f32 %v8997, %v8999
        %v9001 = vadd.f32 %v9000, -0.4999988
        %v9002 = vmul.f32 %v8997, %v9001
        %v9003 = vadd.f32 1.0, %v9002
        %v9004 = vmul.f32 %v8995, %v8995
        %v9005 = vmul.f32 %v9004, -0.00019511016
        %v9006 = vadd.f32 %v9005, 0.008332121
        %v9007 = vmul.f32 %v9004, %v9006
        %v9008 = vadd.f32 %v9007, -0.16666654
        %v9009 = vmul.f32 %v9004, %v9008
        %v9010 = vadd.f32 %v9009, 1.0
        %v9011 = vmul.f32 %v9010, %v8995
        %vm9012 = vweird.f32 %v446
        %v9013 = vand.u32 %v8996, 3
        %vm9014 = vcmp.lt.s32.totalorder %v9013, 2
        %vm9015 = vcmp.eq.s32.totalorder %v9013, 0
        %v9016 = vxor.u32 %v9011, 2147483648
        %v9017 = vsel %vm9015, %v9003, %v9016
        %vm9018 = vcmp.eq.s32.totalorder %v9013, 2
        %v9019 = vxor.u32 %v9003, 2147483648
        %v9020 = vsel %vm9018, %v9019, %v9011
        %v9021 = vsel %vm9014, %v9017, %v9020
        %v9022 = vsel %vm9012, nan, %v9021
        %v9023 = vand.u32 2147483647, %v447
        %vm9024 = vcmp.le.f32.partialorder %v9023, 0.7853982
        %vm9025 = vcmp.lt.s32.totalorder %v447, 0
        %v9026 = vand.u32 %v447, 2139095040
        %v9027 = vshrl.u32 %v9026, 23
        %v9028 = vsub.s32 %v9027, 127
        %v9029 = vand.u32 2147483647, %v447
        %v9030 = vand.u32 %v9029, 8388607
        %v9031 = vor.u32 %v9030, 8388608
        %v9032 = vsub.s32 0, %v9031
        %v9033 = vadd.s32 %v9028, 1
        %vm9034 = vcmp.gt.s32.totalorder %v9033, 0
        %v9035 = vsel %vm9034, %v9033, 0
        %v9036 = vshrl.u32 %v9035, 5
        %v9037 = vand.u32 %v9035, 31
        %v9038 = vsub.s32 32, %v9037
        %v9039 = vshrl.u32 683565275, %v9038
        %v9040 = vshll.u32 683565275, %v9037
        %v9041 = vshrl.u32 2475754826, %v9038
        %v9042 = vor.u32 %v9040, %v9041
        %v9043 = vshll.u32 2475754826, %v9037
        %v9044 = vshrl.u32 2131351028, %v9038
        %v9045 = vor.u32 %v9043, %v9044
        %v9046 = vshll.u32 2131351028, %v9037
        %v9047 = vshrl.u32 2102212464, %v9038
        %v9048 = vor.u32 %v9046, %v9047
        %v9049 = vshll.u32 2102212464, %v9037
        %v9050 = vshrl.u32 920167782, %v9038
        %v9051 = vor.u32 %v9049, %v9050
        %v9052 = vshll.u32 920167782, %v9037
        %v9053 = vshrl.u32 1326507024, %v9038
        %v9054 = vor.u32 %v9052, %v9053
        %vm9055 = vcmp.lt.s32.totalorder %v9036, 1
        %vm9056 = vcmp.lt.s32.totalorder %v9036, 2
        %vm9057 = vcmp.lt.s32.totalorder %v9036, 3
        %vm9058 = vcmp.lt.s32.totalorder %v9036, 4
        %v9059 = vsel %vm9055, %v9039, %v9042
        %v9060 = vsel %vm9058, %v9048, 2102212464
        %v9061 = vsel %vm9057, %v9045, %v9060
        %v9062 = vsel %vm9056, %v9059, %v9061
        %v9063 = vsel %vm9055, %v9042, %v9045
        %v9064 = vsel %vm9058, %v9051, 920167782
        %v9065 = vsel %vm9057, %v9048, %v9064
        %v9066 = vsel %vm9056, %v9063, %v9065
        %v9067 = vsel %vm9055, %v9045, %v9048
        %v9068 = vsel %vm9058, %v9054, 1326507024
        %v9069 = vsel %vm9057, %v9051, %v9068
        %v9070 = vsel %vm9056, %v9067, %v9069
        %v9071 = vshll.u32 %v9031, 8
        %v9072 = vand.u32 %v9071, 65535
        %v9073 = vshrl.u32 %v9071, 16
        %v9074 = vand.u32 %v9070, 65535
        %v9075 = vshrl.u32 %v9070, 16
        %v9076 = vmul.u32 %v9072, %v9074
        %v9077 = vmul.u32 %v9072, %v9075
        %v9078 = vmul.u32 %v9073, %v9074
        %v9079 = vmul.u32 %v9073, %v9075
        %v9080 = vshll.u32 %v9077, 16
        %v9081 = vshrl.u32 %v9077, 16
        %v9082 = vshll.u32 %v9078, 16
        %v9083 = vshrl.u32 %v9078, 16
        %vm9084 = vc.u32 %v9076, %v9080
        %v9085 = vsel %vm9084, 1, 0
        %v9086 = vadd.s32 %v9076, %v9080
        %v9087 = vadd.s32 %v9079, %v9085
        %vm9088 = vc.u32 %v9086, %v9082
        %v9089 = vsel %vm9088, 1, 0
        %v9090 = vadd.s32 %v9086, %v9082
        %v9091 = vadd.s32 %v9087, %v9089
        %v9092 = vadd.s32 %v9091, %v9081
        %v9093 = vadd.s32 %v9092, %v9083
        %v9094 = vand.u32 %v9071, 65535
        %v9095 = vshrl.u32 %v9071, 16
        %v9096 = vand.u32 %v9066, 65535
        %v9097 = vshrl.u32 %v9066, 16
        %v9098 = vmul.u32 %v9094, %v9096
        %v9099 = vmul.u32 %v9094, %v9097
        %v9100 = vmul.u32 %v9095, %v9096
        %v9101 = vmul.u32 %v9095, %v9097
        %v9102 = vshll.u32 %v9099, 16
        %v9103 = vshrl.u32 %v9099, 16
        %v9104 = vshll.u32 %v9100, 16
        %v9105 = vshrl.u32 %v9100, 16
        %vm9106 = vc.u32 %v9098, %v9102
        %v9107 = vsel %vm9106, 1, 0
        %v9108 = vadd.s32 %v9098, %v9102
        %v9109 = vadd.s32 %v9101, %v9107
        %vm9110 = vc.u32 %v9108, %v9104
        %v9111 = vsel %vm9110, 1, 0
        %v9112 = vadd.s32 %v9108, %v9104
        %v9113 = vadd.s32 %v9109, %v9111
        %v9114 = vadd.s32 %v9113, %v9103
        %v9115 = vadd.s32 %v9114, %v9105
        %v9116 = vmul.u32 %v9071, %v9062
        %v9117 = vadd.s32 %v9093, %v9112
        %vm9118 = vc.u32 %v9093, %v9112
        %v9119 = vadd.s32 %v9115, 1
        %v9120 = vsel %vm9118, %v9119, %v9115
        %v9121 = vadd.s32 %v9116, %v9120
        %v9122 = vadd.s32 %v9121, 536870912
        %v9123 = vshrl.u32 %v9122, 30
        %v9124 = vshll.u32 %v9123, 30
        %v9125 = vsub.s32 %v9121, %v9124
        %vm9126 = vcmp.lt.s32.totalorder %v9125, 0
        %v9127 = vsub.s32 0, %v9125
        %v9128 = vsel %vm9126, %v9127, %v9125
        %v9129 = vclz %v9128
        %v9130 = vsub.s32 %v9129, 2
        %vm9131 = vcmp.gt.s32.totalorder 0, %v9130
        %v9132 = vsel %vm9131, 0, %v9130
        %v9133 = vsub.s32 32, %v9132
        %v9134 = vshll.u32 %v9125, %v9132
        %v9135 = vshrl.u32 %v9117, %v9133
        %v9136 = vor.u32 %v9134, %v9135
        %v9137 = vsub.s32 4294967266, %v9132
        %v9138 = vadd.s32 %v9137, 127
        %v9139 = vshll.u32 %v9138, 23
        %v9140 = vor.u32 4788187, %v9139
        %v9141 = vand.u32 2147483647, %v9140
        %v9143 = vcvt.s32.f32 %v9136
        %v9144 = vmul.f32 %v9143, %v9141
        %v9145 = vxor.u32 %v9144, 2147483648
        %v9146 = vsel %vm9025, %v9145, %v9144
        %v9147 = vsub.s32 4, %v9123
        %v9148 = vsel %vm9025, %v9147, %v9123
        %v9149 = vsel %vm9024, %v447, %v9146
        %v9150 = vsel %vm9024, 0, %v9148
        %v9151 = vmul.f32 %v9149, %v9149
        %v9152 = vmul.f32 %v9151, -0.001358992
        %v9153 = vadd.f32 %v9152, 0.041655596
        %v9154 = vmul.f32 %v9151, %v9153
        %v9155 = vadd.f32 %v9154, -0.4999988
        %v9156 = vmul.f32 %v9151, %v9155
        %v9157 = vadd.f32 1.0, %v9156
        %v9158 = vmul.f32 %v9149, %v9149
        %v9159 = vmul.f32 %v9158, -0.00019511016
        %v9160 = vadd.f32 %v9159, 0.008332121
        %v9161 = vmul.f32 %v9158, %v9160
        %v9162 = vadd.f32 %v9161, -0.16666654
        %v9163 = vmul.f32 %v9158, %v9162
        %v9164 = vadd.f32 %v9163, 1.0
        %v9165 = vmul.f32 %v9164, %v9149
        %vm9166 = vweird.f32 %v447
        %v9167 = vand.u32 %v9150, 3
        %vm9168 = vcmp.lt.s32.totalorder %v9167, 2
        %vm9169 = vcmp.eq.s32.totalorder %v9167, 0
        %v9170 = vxor.u32 %v9165, 2147483648
        %v9171 = vsel %vm9169, %v9157, %v9170
        %vm9172 = vcmp.eq.s32.totalorder %v9167, 2
        %v9173 = vxor.u32 %v9157, 2147483648
        %v9174 = vsel %vm9172, %v9173, %v9165
        %v9175 = vsel %vm9168, %v9171, %v9174
        %v9176 = vsel %vm9166, nan, %v9175
        %v9177 = vand.u32 2147483647, %v448
        %vm9178 = vcmp.le.f32.partialorder %v9177, 0.7853982
        %vm9179 = vcmp.lt.s32.totalorder %v448, 0
        %v9180 = vand.u32 %v448, 2139095040
        %v9181 = vshrl.u32 %v9180, 23
        %v9182 = vsub.s32 %v9181, 127
        %v9183 = vand.u32 2147483647, %v448
        %v9184 = vand.u32 %v9183, 8388607
        %v9185 = vor.u32 %v9184, 8388608
        %v9186 = vsub.s32 0, %v9185
        %v9187 = vadd.s32 %v9182, 1
        %vm9188 = vcmp.gt.s32.totalorder %v9187, 0
        %v9189 = vsel %vm9188, %v9187, 0
        %v9190 = vshrl.u32 %v9189, 5
        %v9191 = vand.u32 %v9189, 31
        %v9192 = vsub.s32 32, %v9191
        %v9193 = vshrl.u32 683565275, %v9192
        %v9194 = vshll.u32 683565275, %v9191
        %v9195 = vshrl.u32 2475754826, %v9192
        %v9196 = vor.u32 %v9194, %v9195
        %v9197 = vshll.u32 2475754826, %v9191
        %v9198 = vshrl.u32 2131351028, %v9192
        %v9199 = vor.u32 %v9197, %v9198
        %v9200 = vshll.u32 2131351028, %v9191
        %v9201 = vshrl.u32 2102212464, %v9192
        %v9202 = vor.u32 %v9200, %v9201
        %v9203 = vshll.u32 2102212464, %v9191
        %v9204 = vshrl.u32 920167782, %v9192
        %v9205 = vor.u32 %v9203, %v9204
        %v9206 = vshll.u32 920167782, %v9191
        %v9207 = vshrl.u32 1326507024, %v9192
        %v9208 = vor.u32 %v9206, %v9207
        %vm9209 = vcmp.lt.s32.totalorder %v9190, 1
        %vm9210 = vcmp.lt.s32.totalorder %v9190, 2
        %vm9211 = vcmp.lt.s32.totalorder %v9190, 3
        %vm9212 = vcmp.lt.s32.totalorder %v9190, 4
        %v9213 = vsel %vm9209, %v9193, %v9196
        %v9214 = vsel %vm9212, %v9202, 2102212464
        %v9215 = vsel %vm9211, %v9199, %v9214
        %v9216 = vsel %vm9210, %v9213, %v9215
        %v9217 = vsel %vm9209, %v9196, %v9199
        %v9218 = vsel %vm9212, %v9205, 920167782
        %v9219 = vsel %vm9211, %v9202, %v9218
        %v9220 = vsel %vm9210, %v9217, %v9219
        %v9221 = vsel %vm9209, %v9199, %v9202
        %v9222 = vsel %vm9212, %v9208, 1326507024
        %v9223 = vsel %vm9211, %v9205, %v9222
        %v9224 = vsel %vm9210, %v9221, %v9223
        %v9225 = vshll.u32 %v9185, 8
        %v9226 = vand.u32 %v9225, 65535
        %v9227 = vshrl.u32 %v9225, 16
        %v9228 = vand.u32 %v9224, 65535
        %v9229 = vshrl.u32 %v9224, 16
        %v9230 = vmul.u32 %v9226, %v9228
        %v9231 = vmul.u32 %v9226, %v9229
        %v9232 = vmul.u32 %v9227, %v9228
        %v9233 = vmul.u32 %v9227, %v9229
        %v9234 = vshll.u32 %v9231, 16
        %v9235 = vshrl.u32 %v9231, 16
        %v9236 = vshll.u32 %v9232, 16
        %v9237 = vshrl.u32 %v9232, 16
        %vm9238 = vc.u32 %v9230, %v9234
        %v9239 = vsel %vm9238, 1, 0
        %v9240 = vadd.s32 %v9230, %v9234
        %v9241 = vadd.s32 %v9233, %v9239
        %vm9242 = vc.u32 %v9240, %v9236
        %v9243 = vsel %vm9242, 1, 0
        %v9244 = vadd.s32 %v9240, %v9236
        %v9245 = vadd.s32 %v9241, %v9243
        %v9246 = vadd.s32 %v9245, %v9235
        %v9247 = vadd.s32 %v9246, %v9237
        %v9248 = vand.u32 %v9225, 65535
        %v9249 = vshrl.u32 %v9225, 16
        %v9250 = vand.u32 %v9220, 65535
        %v9251 = vshrl.u32 %v9220, 16
        %v9252 = vmul.u32 %v9248, %v9250
        %v9253 = vmul.u32 %v9248, %v9251
        %v9254 = vmul.u32 %v9249, %v9250
        %v9255 = vmul.u32 %v9249, %v9251
        %v9256 = vshll.u32 %v9253, 16
        %v9257 = vshrl.u32 %v9253, 16
        %v9258 = vshll.u32 %v9254, 16
        %v9259 = vshrl.u32 %v9254, 16
        %vm9260 = vc.u32 %v9252, %v9256
        %v9261 = vsel %vm9260, 1, 0
        %v9262 = vadd.s32 %v9252, %v9256
        %v9263 = vadd.s32 %v9255, %v9261
        %vm9264 = vc.u32 %v9262, %v9258
        %v9265 = vsel %vm9264, 1, 0
        %v9266 = vadd.s32 %v9262, %v9258
        %v9267 = vadd.s32 %v9263, %v9265
        %v9268 = vadd.s32 %v9267, %v9257
        %v9269 = vadd.s32 %v9268, %v9259
        %v9270 = vmul.u32 %v9225, %v9216
        %v9271 = vadd.s32 %v9247, %v9266
        %vm9272 = vc.u32 %v9247, %v9266
        %v9273 = vadd.s32 %v9269, 1
        %v9274 = vsel %vm9272, %v9273, %v9269
        %v9275 = vadd.s32 %v9270, %v9274
        %v9276 = vadd.s32 %v9275, 536870912
        %v9277 = vshrl.u32 %v9276, 30
        %v9278 = vshll.u32 %v9277, 30
        %v9279 = vsub.s32 %v9275, %v9278
        %vm9280 = vcmp.lt.s32.totalorder %v9279, 0
        %v9281 = vsub.s32 0, %v9279
        %v9282 = vsel %vm9280, %v9281, %v9279
        %v9283 = vclz %v9282
        %v9284 = vsub.s32 %v9283, 2
        %vm9285 = vcmp.gt.s32.totalorder 0, %v9284
        %v9286 = vsel %vm9285, 0, %v9284
        %v9287 = vsub.s32 32, %v9286
        %v9288 = vshll.u32 %v9279, %v9286
        %v9289 = vshrl.u32 %v9271, %v9287
        %v9290 = vor.u32 %v9288, %v9289
        %v9291 = vsub.s32 4294967266, %v9286
        %v9292 = vadd.s32 %v9291, 127
        %v9293 = vshll.u32 %v9292, 23
        %v9294 = vor.u32 4788187, %v9293
        %v9295 = vand.u32 2147483647, %v9294
        %v9297 = vcvt.s32.f32 %v9290
        %v9298 = vmul.f32 %v9297, %v9295
        %v9299 = vxor.u32 %v9298, 2147483648
        %v9300 = vsel %vm9179, %v9299, %v9298
        %v9301 = vsub.s32 4, %v9277
        %v9302 = vsel %vm9179, %v9301, %v9277
        %v9303 = vsel %vm9178, %v448, %v9300
        %v9304 = vsel %vm9178, 0, %v9302
        %v9305 = vmul.f32 %v9303, %v9303
        %v9306 = vmul.f32 %v9305, -0.001358992
        %v9307 = vadd.f32 %v9306, 0.041655596
        %v9308 = vmul.f32 %v9305, %v9307
        %v9309 = vadd.f32 %v9308, -0.4999988
        %v9310 = vmul.f32 %v9305, %v9309
        %v9311 = vadd.f32 1.0, %v9310
        %v9312 = vmul.f32 %v9303, %v9303
        %v9313 = vmul.f32 %v9312, -0.00019511016
        %v9314 = vadd.f32 %v9313, 0.008332121
        %v9315 = vmul.f32 %v9312, %v9314
        %v9316 = vadd.f32 %v9315, -0.16666654
        %v9317 = vmul.f32 %v9312, %v9316
        %v9318 = vadd.f32 %v9317, 1.0
        %v9319 = vmul.f32 %v9318, %v9303
        %vm9320 = vweird.f32 %v448
        %v9321 = vand.u32 %v9304, 3
        %vm9322 = vcmp.lt.s32.totalorder %v9321, 2
        %vm9323 = vcmp.eq.s32.totalorder %v9321, 0
        %v9324 = vxor.u32 %v9319, 2147483648
        %v9325 = vsel %vm9323, %v9311, %v9324
        %vm9326 = vcmp.eq.s32.totalorder %v9321, 2
        %v9327 = vxor.u32 %v9311, 2147483648
        %v9328 = vsel %vm9326, %v9327, %v9319
        %v9329 = vsel %vm9322, %v9325, %v9328
        %v9330 = vsel %vm9320, nan, %v9329
        %v9331 = vand.u32 2147483647, %v449
        %vm9332 = vcmp.le.f32.partialorder %v9331, 0.7853982
        %vm9333 = vcmp.lt.s32.totalorder %v449, 0
        %v9334 = vand.u32 %v449, 2139095040
        %v9335 = vshrl.u32 %v9334, 23
        %v9336 = vsub.s32 %v9335, 127
        %v9337 = vand.u32 2147483647, %v449
        %v9338 = vand.u32 %v9337, 8388607
        %v9339 = vor.u32 %v9338, 8388608
        %v9340 = vsub.s32 0, %v9339
        %v9341 = vadd.s32 %v9336, 1
        %vm9342 = vcmp.gt.s32.totalorder %v9341, 0
        %v9343 = vsel %vm9342, %v9341, 0
        %v9344 = vshrl.u32 %v9343, 5
        %v9345 = vand.u32 %v9343, 31
        %v9346 = vsub.s32 32, %v9345
        %v9347 = vshrl.u32 683565275, %v9346
        %v9348 = vshll.u32 683565275, %v9345
        %v9349 = vshrl.u32 2475754826, %v9346
        %v9350 = vor.u32 %v9348, %v9349
        %v9351 = vshll.u32 2475754826, %v9345
        %v9352 = vshrl.u32 2131351028, %v9346
        %v9353 = vor.u32 %v9351, %v9352
        %v9354 = vshll.u32 2131351028, %v9345
        %v9355 = vshrl.u32 2102212464, %v9346
        %v9356 = vor.u32 %v9354, %v9355
        %v9357 = vshll.u32 2102212464, %v9345
        %v9358 = vshrl.u32 920167782, %v9346
        %v9359 = vor.u32 %v9357, %v9358
        %v9360 = vshll.u32 920167782, %v9345
        %v9361 = vshrl.u32 1326507024, %v9346
        %v9362 = vor.u32 %v9360, %v9361
        %vm9363 = vcmp.lt.s32.totalorder %v9344, 1
        %vm9364 = vcmp.lt.s32.totalorder %v9344, 2
        %vm9365 = vcmp.lt.s32.totalorder %v9344, 3
        %vm9366 = vcmp.lt.s32.totalorder %v9344, 4
        %v9367 = vsel %vm9363, %v9347, %v9350
        %v9368 = vsel %vm9366, %v9356, 2102212464
        %v9369 = vsel %vm9365, %v9353, %v9368
        %v9370 = vsel %vm9364, %v9367, %v9369
        %v9371 = vsel %vm9363, %v9350, %v9353
        %v9372 = vsel %vm9366, %v9359, 920167782
        %v9373 = vsel %vm9365, %v9356, %v9372
        %v9374 = vsel %vm9364, %v9371, %v9373
        %v9375 = vsel %vm9363, %v9353, %v9356
        %v9376 = vsel %vm9366, %v9362, 1326507024
        %v9377 = vsel %vm9365, %v9359, %v9376
        %v9378 = vsel %vm9364, %v9375, %v9377
        %v9379 = vshll.u32 %v9339, 8
        %v9380 = vand.u32 %v9379, 65535
        %v9381 = vshrl.u32 %v9379, 16
        %v9382 = vand.u32 %v9378, 65535
        %v9383 = vshrl.u32 %v9378, 16
        %v9384 = vmul.u32 %v9380, %v9382
        %v9385 = vmul.u32 %v9380, %v9383
        %v9386 = vmul.u32 %v9381, %v9382
        %v9387 = vmul.u32 %v9381, %v9383
        %v9388 = vshll.u32 %v9385, 16
        %v9389 = vshrl.u32 %v9385, 16
        %v9390 = vshll.u32 %v9386, 16
        %v9391 = vshrl.u32 %v9386, 16
        %vm9392 = vc.u32 %v9384, %v9388
        %v9393 = vsel %vm9392, 1, 0
        %v9394 = vadd.s32 %v9384, %v9388
        %v9395 = vadd.s32 %v9387, %v9393
        %vm9396 = vc.u32 %v9394, %v9390
        %v9397 = vsel %vm9396, 1, 0
        %v9398 = vadd.s32 %v9394, %v9390
        %v9399 = vadd.s32 %v9395, %v9397
        %v9400 = vadd.s32 %v9399, %v9389
        %v9401 = vadd.s32 %v9400, %v9391
        %v9402 = vand.u32 %v9379, 65535
        %v9403 = vshrl.u32 %v9379, 16
        %v9404 = vand.u32 %v9374, 65535
        %v9405 = vshrl.u32 %v9374, 16
        %v9406 = vmul.u32 %v9402, %v9404
        %v9407 = vmul.u32 %v9402, %v9405
        %v9408 = vmul.u32 %v9403, %v9404
        %v9409 = vmul.u32 %v9403, %v9405
        %v9410 = vshll.u32 %v9407, 16
        %v9411 = vshrl.u32 %v9407, 16
        %v9412 = vshll.u32 %v9408, 16
        %v9413 = vshrl.u32 %v9408, 16
        %vm9414 = vc.u32 %v9406, %v9410
        %v9415 = vsel %vm9414, 1, 0
        %v9416 = vadd.s32 %v9406, %v9410
        %v9417 = vadd.s32 %v9409, %v9415
        %vm9418 = vc.u32 %v9416, %v9412
        %v9419 = vsel %vm9418, 1, 0
        %v9420 = vadd.s32 %v9416, %v9412
        %v9421 = vadd.s32 %v9417, %v9419
        %v9422 = vadd.s32 %v9421, %v9411
        %v9423 = vadd.s32 %v9422, %v9413
        %v9424 = vmul.u32 %v9379, %v9370
        %v9425 = vadd.s32 %v9401, %v9420
        %vm9426 = vc.u32 %v9401, %v9420
        %v9427 = vadd.s32 %v9423, 1
        %v9428 = vsel %vm9426, %v9427, %v9423
        %v9429 = vadd.s32 %v9424, %v9428
        %v9430 = vadd.s32 %v9429, 536870912
        %v9431 = vshrl.u32 %v9430, 30
        %v9432 = vshll.u32 %v9431, 30
        %v9433 = vsub.s32 %v9429, %v9432
        %vm9434 = vcmp.lt.s32.totalorder %v9433, 0
        %v9435 = vsub.s32 0, %v9433
        %v9436 = vsel %vm9434, %v9435, %v9433
        %v9437 = vclz %v9436
        %v9438 = vsub.s32 %v9437, 2
        %vm9439 = vcmp.gt.s32.totalorder 0, %v9438
        %v9440 = vsel %vm9439, 0, %v9438
        %v9441 = vsub.s32 32, %v9440
        %v9442 = vshll.u32 %v9433, %v9440
        %v9443 = vshrl.u32 %v9425, %v9441
        %v9444 = vor.u32 %v9442, %v9443
        %v9445 = vsub.s32 4294967266, %v9440
        %v9446 = vadd.s32 %v9445, 127
        %v9447 = vshll.u32 %v9446, 23
        %v9448 = vor.u32 4788187, %v9447
        %v9449 = vand.u32 2147483647, %v9448
        %v9451 = vcvt.s32.f32 %v9444
        %v9452 = vmul.f32 %v9451, %v9449
        %v9453 = vxor.u32 %v9452, 2147483648
        %v9454 = vsel %vm9333, %v9453, %v9452
        %v9455 = vsub.s32 4, %v9431
        %v9456 = vsel %vm9333, %v9455, %v9431
        %v9457 = vsel %vm9332, %v449, %v9454
        %v9458 = vsel %vm9332, 0, %v9456
        %v9459 = vmul.f32 %v9457, %v9457
        %v9460 = vmul.f32 %v9459, -0.001358992
        %v9461 = vadd.f32 %v9460, 0.041655596
        %v9462 = vmul.f32 %v9459, %v9461
        %v9463 = vadd.f32 %v9462, -0.4999988
        %v9464 = vmul.f32 %v9459, %v9463
        %v9465 = vadd.f32 1.0, %v9464
        %v9466 = vmul.f32 %v9457, %v9457
        %v9467 = vmul.f32 %v9466, -0.00019511016
        %v9468 = vadd.f32 %v9467, 0.008332121
        %v9469 = vmul.f32 %v9466, %v9468
        %v9470 = vadd.f32 %v9469, -0.16666654
        %v9471 = vmul.f32 %v9466, %v9470
        %v9472 = vadd.f32 %v9471, 1.0
        %v9473 = vmul.f32 %v9472, %v9457
        %vm9474 = vweird.f32 %v449
        %v9475 = vand.u32 %v9458, 3
        %vm9476 = vcmp.lt.s32.totalorder %v9475, 2
        %vm9477 = vcmp.eq.s32.totalorder %v9475, 0
        %v9478 = vxor.u32 %v9473, 2147483648
        %v9479 = vsel %vm9477, %v9465, %v9478
        %vm9480 = vcmp.eq.s32.totalorder %v9475, 2
        %v9481 = vxor.u32 %v9465, 2147483648
        %v9482 = vsel %vm9480, %v9481, %v9473
        %v9483 = vsel %vm9476, %v9479, %v9482
        %v9484 = vsel %vm9474, nan, %v9483
        %v9485 = vand.u32 2147483647, %v450
        %vm9486 = vcmp.le.f32.partialorder %v9485, 0.7853982
        %vm9487 = vcmp.lt.s32.totalorder %v450, 0
        %v9488 = vand.u32 %v450, 2139095040
        %v9489 = vshrl.u32 %v9488, 23
        %v9490 = vsub.s32 %v9489, 127
        %v9491 = vand.u32 2147483647, %v450
        %v9492 = vand.u32 %v9491, 8388607
        %v9493 = vor.u32 %v9492, 8388608
        %v9494 = vsub.s32 0, %v9493
        %v9495 = vadd.s32 %v9490, 1
        %vm9496 = vcmp.gt.s32.totalorder %v9495, 0
        %v9497 = vsel %vm9496, %v9495, 0
        %v9498 = vshrl.u32 %v9497, 5
        %v9499 = vand.u32 %v9497, 31
        %v9500 = vsub.s32 32, %v9499
        %v9501 = vshrl.u32 683565275, %v9500
        %v9502 = vshll.u32 683565275, %v9499
        %v9503 = vshrl.u32 2475754826, %v9500
        %v9504 = vor.u32 %v9502, %v9503
        %v9505 = vshll.u32 2475754826, %v9499
        %v9506 = vshrl.u32 2131351028, %v9500
        %v9507 = vor.u32 %v9505, %v9506
        %v9508 = vshll.u32 2131351028, %v9499
        %v9509 = vshrl.u32 2102212464, %v9500
        %v9510 = vor.u32 %v9508, %v9509
        %v9511 = vshll.u32 2102212464, %v9499
        %v9512 = vshrl.u32 920167782, %v9500
        %v9513 = vor.u32 %v9511, %v9512
        %v9514 = vshll.u32 920167782, %v9499
        %v9515 = vshrl.u32 1326507024, %v9500
        %v9516 = vor.u32 %v9514, %v9515
        %vm9517 = vcmp.lt.s32.totalorder %v9498, 1
        %vm9518 = vcmp.lt.s32.totalorder %v9498, 2
        %vm9519 = vcmp.lt.s32.totalorder %v9498, 3
        %vm9520 = vcmp.lt.s32.totalorder %v9498, 4
        %v9521 = vsel %vm9517, %v9501, %v9504
        %v9522 = vsel %vm9520, %v9510, 2102212464
        %v9523 = vsel %vm9519, %v9507, %v9522
        %v9524 = vsel %vm9518, %v9521, %v9523
        %v9525 = vsel %vm9517, %v9504, %v9507
        %v9526 = vsel %vm9520, %v9513, 920167782
        %v9527 = vsel %vm9519, %v9510, %v9526
        %v9528 = vsel %vm9518, %v9525, %v9527
        %v9529 = vsel %vm9517, %v9507, %v9510
        %v9530 = vsel %vm9520, %v9516, 1326507024
        %v9531 = vsel %vm9519, %v9513, %v9530
        %v9532 = vsel %vm9518, %v9529, %v9531
        %v9533 = vshll.u32 %v9493, 8
        %v9534 = vand.u32 %v9533, 65535
        %v9535 = vshrl.u32 %v9533, 16
        %v9536 = vand.u32 %v9532, 65535
        %v9537 = vshrl.u32 %v9532, 16
        %v9538 = vmul.u32 %v9534, %v9536
        %v9539 = vmul.u32 %v9534, %v9537
        %v9540 = vmul.u32 %v9535, %v9536
        %v9541 = vmul.u32 %v9535, %v9537
        %v9542 = vshll.u32 %v9539, 16
        %v9543 = vshrl.u32 %v9539, 16
        %v9544 = vshll.u32 %v9540, 16
        %v9545 = vshrl.u32 %v9540, 16
        %vm9546 = vc.u32 %v9538, %v9542
        %v9547 = vsel %vm9546, 1, 0
        %v9548 = vadd.s32 %v9538, %v9542
        %v9549 = vadd.s32 %v9541, %v9547
        %vm9550 = vc.u32 %v9548, %v9544
        %v9551 = vsel %vm9550, 1, 0
        %v9552 = vadd.s32 %v9548, %v9544
        %v9553 = vadd.s32 %v9549, %v9551
        %v9554 = vadd.s32 %v9553, %v9543
        %v9555 = vadd.s32 %v9554, %v9545
        %v9556 = vand.u32 %v9533, 65535
        %v9557 = vshrl.u32 %v9533, 16
        %v9558 = vand.u32 %v9528, 65535
        %v9559 = vshrl.u32 %v9528, 16
        %v9560 = vmul.u32 %v9556, %v9558
        %v9561 = vmul.u32 %v9556, %v9559
        %v9562 = vmul.u32 %v9557, %v9558
        %v9563 = vmul.u32 %v9557, %v9559
        %v9564 = vshll.u32 %v9561, 16
        %v9565 = vshrl.u32 %v9561, 16
        %v9566 = vshll.u32 %v9562, 16
        %v9567 = vshrl.u32 %v9562, 16
        %vm9568 = vc.u32 %v9560, %v9564
        %v9569 = vsel %vm9568, 1, 0
        %v9570 = vadd.s32 %v9560, %v9564
        %v9571 = vadd.s32 %v9563, %v9569
        %vm9572 = vc.u32 %v9570, %v9566
        %v9573 = vsel %vm9572, 1, 0
        %v9574 = vadd.s32 %v9570, %v9566
        %v9575 = vadd.s32 %v9571, %v9573
        %v9576 = vadd.s32 %v9575, %v9565
        %v9577 = vadd.s32 %v9576, %v9567
        %v9578 = vmul.u32 %v9533, %v9524
        %v9579 = vadd.s32 %v9555, %v9574
        %vm9580 = vc.u32 %v9555, %v9574
        %v9581 = vadd.s32 %v9577, 1
        %v9582 = vsel %vm9580, %v9581, %v9577
        %v9583 = vadd.s32 %v9578, %v9582
        %v9584 = vadd.s32 %v9583, 536870912
        %v9585 = vshrl.u32 %v9584, 30
        %v9586 = vshll.u32 %v9585, 30
        %v9587 = vsub.s32 %v9583, %v9586
        %vm9588 = vcmp.lt.s32.totalorder %v9587, 0
        %v9589 = vsub.s32 0, %v9587
        %v9590 = vsel %vm9588, %v9589, %v9587
        %v9591 = vclz %v9590
        %v9592 = vsub.s32 %v9591, 2
        %vm9593 = vcmp.gt.s32.totalorder 0, %v9592
        %v9594 = vsel %vm9593, 0, %v9592
        %v9595 = vsub.s32 32, %v9594
        %v9596 = vshll.u32 %v9587, %v9594
        %v9597 = vshrl.u32 %v9579, %v9595
        %v9598 = vor.u32 %v9596, %v9597
        %v9599 = vsub.s32 4294967266, %v9594
        %v9600 = vadd.s32 %v9599, 127
        %v9601 = vshll.u32 %v9600, 23
        %v9602 = vor.u32 4788187, %v9601
        %v9603 = vand.u32 2147483647, %v9602
        %v9605 = vcvt.s32.f32 %v9598
        %v9606 = vmul.f32 %v9605, %v9603
        %v9607 = vxor.u32 %v9606, 2147483648
        %v9608 = vsel %vm9487, %v9607, %v9606
        %v9609 = vsub.s32 4, %v9585
        %v9610 = vsel %vm9487, %v9609, %v9585
        %v9611 = vsel %vm9486, %v450, %v9608
        %v9612 = vsel %vm9486, 0, %v9610
        %v9613 = vmul.f32 %v9611, %v9611
        %v9614 = vmul.f32 %v9613, -0.001358992
        %v9615 = vadd.f32 %v9614, 0.041655596
        %v9616 = vmul.f32 %v9613, %v9615
        %v9617 = vadd.f32 %v9616, -0.4999988
        %v9618 = vmul.f32 %v9613, %v9617
        %v9619 = vadd.f32 1.0, %v9618
        %v9620 = vmul.f32 %v9611, %v9611
        %v9621 = vmul.f32 %v9620, -0.00019511016
        %v9622 = vadd.f32 %v9621, 0.008332121
        %v9623 = vmul.f32 %v9620, %v9622
        %v9624 = vadd.f32 %v9623, -0.16666654
        %v9625 = vmul.f32 %v9620, %v9624
        %v9626 = vadd.f32 %v9625, 1.0
        %v9627 = vmul.f32 %v9626, %v9611
        %vm9628 = vweird.f32 %v450
        %v9629 = vand.u32 %v9612, 3
        %vm9630 = vcmp.lt.s32.totalorder %v9629, 2
        %vm9631 = vcmp.eq.s32.totalorder %v9629, 0
        %v9632 = vxor.u32 %v9627, 2147483648
        %v9633 = vsel %vm9631, %v9619, %v9632
        %vm9634 = vcmp.eq.s32.totalorder %v9629, 2
        %v9635 = vxor.u32 %v9619, 2147483648
        %v9636 = vsel %vm9634, %v9635, %v9627
        %v9637 = vsel %vm9630, %v9633, %v9636
        %v9638 = vsel %vm9628, nan, %v9637
        %v9639 = vand.u32 2147483647, %v451
        %vm9640 = vcmp.le.f32.partialorder %v9639, 0.7853982
        %vm9641 = vcmp.lt.s32.totalorder %v451, 0
        %v9642 = vand.u32 %v451, 2139095040
        %v9643 = vshrl.u32 %v9642, 23
        %v9644 = vsub.s32 %v9643, 127
        %v9645 = vand.u32 2147483647, %v451
        %v9646 = vand.u32 %v9645, 8388607
        %v9647 = vor.u32 %v9646, 8388608
        %v9648 = vsub.s32 0, %v9647
        %v9649 = vadd.s32 %v9644, 1
        %vm9650 = vcmp.gt.s32.totalorder %v9649, 0
        %v9651 = vsel %vm9650, %v9649, 0
        %v9652 = vshrl.u32 %v9651, 5
        %v9653 = vand.u32 %v9651, 31
        %v9654 = vsub.s32 32, %v9653
        %v9655 = vshrl.u32 683565275, %v9654
        %v9656 = vshll.u32 683565275, %v9653
        %v9657 = vshrl.u32 2475754826, %v9654
        %v9658 = vor.u32 %v9656, %v9657
        %v9659 = vshll.u32 2475754826, %v9653
        %v9660 = vshrl.u32 2131351028, %v9654
        %v9661 = vor.u32 %v9659, %v9660
        %v9662 = vshll.u32 2131351028, %v9653
        %v9663 = vshrl.u32 2102212464, %v9654
        %v9664 = vor.u32 %v9662, %v9663
        %v9665 = vshll.u32 2102212464, %v9653
        %v9666 = vshrl.u32 920167782, %v9654
        %v9667 = vor.u32 %v9665, %v9666
        %v9668 = vshll.u32 920167782, %v9653
        %v9669 = vshrl.u32 1326507024, %v9654
        %v9670 = vor.u32 %v9668, %v9669
        %vm9671 = vcmp.lt.s32.totalorder %v9652, 1
        %vm9672 = vcmp.lt.s32.totalorder %v9652, 2
        %vm9673 = vcmp.lt.s32.totalorder %v9652, 3
        %vm9674 = vcmp.lt.s32.totalorder %v9652, 4
        %v9675 = vsel %vm9671, %v9655, %v9658
        %v9676 = vsel %vm9674, %v9664, 2102212464
        %v9677 = vsel %vm9673, %v9661, %v9676
        %v9678 = vsel %vm9672, %v9675, %v9677
        %v9679 = vsel %vm9671, %v9658, %v9661
        %v9680 = vsel %vm9674, %v9667, 920167782
        %v9681 = vsel %vm9673, %v9664, %v9680
        %v9682 = vsel %vm9672, %v9679, %v9681
        %v9683 = vsel %vm9671, %v9661, %v9664
        %v9684 = vsel %vm9674, %v9670, 1326507024
        %v9685 = vsel %vm9673, %v9667, %v9684
        %v9686 = vsel %vm9672, %v9683, %v9685
        %v9687 = vshll.u32 %v9647, 8
        %v9688 = vand.u32 %v9687, 65535
        %v9689 = vshrl.u32 %v9687, 16
        %v9690 = vand.u32 %v9686, 65535
        %v9691 = vshrl.u32 %v9686, 16
        %v9692 = vmul.u32 %v9688, %v9690
        %v9693 = vmul.u32 %v9688, %v9691
        %v9694 = vmul.u32 %v9689, %v9690
        %v9695 = vmul.u32 %v9689, %v9691
        %v9696 = vshll.u32 %v9693, 16
        %v9697 = vshrl.u32 %v9693, 16
        %v9698 = vshll.u32 %v9694, 16
        %v9699 = vshrl.u32 %v9694, 16
        %vm9700 = vc.u32 %v9692, %v9696
        %v9701 = vsel %vm9700, 1, 0
        %v9702 = vadd.s32 %v9692, %v9696
        %v9703 = vadd.s32 %v9695, %v9701
        %vm9704 = vc.u32 %v9702, %v9698
        %v9705 = vsel %vm9704, 1, 0
        %v9706 = vadd.s32 %v9702, %v9698
        %v9707 = vadd.s32 %v9703, %v9705
        %v9708 = vadd.s32 %v9707, %v9697
        %v9709 = vadd.s32 %v9708, %v9699
        %v9710 = vand.u32 %v9687, 65535
        %v9711 = vshrl.u32 %v9687, 16
        %v9712 = vand.u32 %v9682, 65535
        %v9713 = vshrl.u32 %v9682, 16
        %v9714 = vmul.u32 %v9710, %v9712
        %v9715 = vmul.u32 %v9710, %v9713
        %v9716 = vmul.u32 %v9711, %v9712
        %v9717 = vmul.u32 %v9711, %v9713
        %v9718 = vshll.u32 %v9715, 16
        %v9719 = vshrl.u32 %v9715, 16
        %v9720 = vshll.u32 %v9716, 16
        %v9721 = vshrl.u32 %v9716, 16
        %vm9722 = vc.u32 %v9714, %v9718
        %v9723 = vsel %vm9722, 1, 0
        %v9724 = vadd.s32 %v9714, %v9718
        %v9725 = vadd.s32 %v9717, %v9723
        %vm9726 = vc.u32 %v9724, %v9720
        %v9727 = vsel %vm9726, 1, 0
        %v9728 = vadd.s32 %v9724, %v9720
        %v9729 = vadd.s32 %v9725, %v9727
        %v9730 = vadd.s32 %v9729, %v9719
        %v9731 = vadd.s32 %v9730, %v9721
        %v9732 = vmul.u32 %v9687, %v9678
        %v9733 = vadd.s32 %v9709, %v9728
        %vm9734 = vc.u32 %v9709, %v9728
        %v9735 = vadd.s32 %v9731, 1
        %v9736 = vsel %vm9734, %v9735, %v9731
        %v9737 = vadd.s32 %v9732, %v9736
        %v9738 = vadd.s32 %v9737, 536870912
        %v9739 = vshrl.u32 %v9738, 30
        %v9740 = vshll.u32 %v9739, 30
        %v9741 = vsub.s32 %v9737, %v9740
        %vm9742 = vcmp.lt.s32.totalorder %v9741, 0
        %v9743 = vsub.s32 0, %v9741
        %v9744 = vsel %vm9742, %v9743, %v9741
        %v9745 = vclz %v9744
        %v9746 = vsub.s32 %v9745, 2
        %vm9747 = vcmp.gt.s32.totalorder 0, %v9746
        %v9748 = vsel %vm9747, 0, %v9746
        %v9749 = vsub.s32 32, %v9748
        %v9750 = vshll.u32 %v9741, %v9748
        %v9751 = vshrl.u32 %v9733, %v9749
        %v9752 = vor.u32 %v9750, %v9751
        %v9753 = vsub.s32 4294967266, %v9748
        %v9754 = vadd.s32 %v9753, 127
        %v9755 = vshll.u32 %v9754, 23
        %v9756 = vor.u32 4788187, %v9755
        %v9757 = vand.u32 2147483647, %v9756
        %v9759 = vcvt.s32.f32 %v9752
        %v9760 = vmul.f32 %v9759, %v9757
        %v9761 = vxor.u32 %v9760, 2147483648
        %v9762 = vsel %vm9641, %v9761, %v9760
        %v9763 = vsub.s32 4, %v9739
        %v9764 = vsel %vm9641, %v9763, %v9739
        %v9765 = vsel %vm9640, %v451, %v9762
        %v9766 = vsel %vm9640, 0, %v9764
        %v9767 = vmul.f32 %v9765, %v9765
        %v9768 = vmul.f32 %v9767, -0.001358992
        %v9769 = vadd.f32 %v9768, 0.041655596
        %v9770 = vmul.f32 %v9767, %v9769
        %v9771 = vadd.f32 %v9770, -0.4999988
        %v9772 = vmul.f32 %v9767, %v9771
        %v9773 = vadd.f32 1.0, %v9772
        %v9774 = vmul.f32 %v9765, %v9765
        %v9775 = vmul.f32 %v9774, -0.00019511016
        %v9776 = vadd.f32 %v9775, 0.008332121
        %v9777 = vmul.f32 %v9774, %v9776
        %v9778 = vadd.f32 %v9777, -0.16666654
        %v9779 = vmul.f32 %v9774, %v9778
        %v9780 = vadd.f32 %v9779, 1.0
        %v9781 = vmul.f32 %v9780, %v9765
        %vm9782 = vweird.f32 %v451
        %v9783 = vand.u32 %v9766, 3
        %vm9784 = vcmp.lt.s32.totalorder %v9783, 2
        %vm9785 = vcmp.eq.s32.totalorder %v9783, 0
        %v9786 = vxor.u32 %v9781, 2147483648
        %v9787 = vsel %vm9785, %v9773, %v9786
        %vm9788 = vcmp.eq.s32.totalorder %v9783, 2
        %v9789 = vxor.u32 %v9773, 2147483648
        %v9790 = vsel %vm9788, %v9789, %v9781
        %v9791 = vsel %vm9784, %v9787, %v9790
        %v9792 = vsel %vm9782, nan, %v9791
        %v9793 = vand.u32 2147483647, %v452
        %vm9794 = vcmp.le.f32.partialorder %v9793, 0.7853982
        %vm9795 = vcmp.lt.s32.totalorder %v452, 0
        %v9796 = vand.u32 %v452, 2139095040
        %v9797 = vshrl.u32 %v9796, 23
        %v9798 = vsub.s32 %v9797, 127
        %v9799 = vand.u32 2147483647, %v452
        %v9800 = vand.u32 %v9799, 8388607
        %v9801 = vor.u32 %v9800, 8388608
        %v9802 = vsub.s32 0, %v9801
        %v9803 = vadd.s32 %v9798, 1
        %vm9804 = vcmp.gt.s32.totalorder %v9803, 0
        %v9805 = vsel %vm9804, %v9803, 0
        %v9806 = vshrl.u32 %v9805, 5
        %v9807 = vand.u32 %v9805, 31
        %v9808 = vsub.s32 32, %v9807
        %v9809 = vshrl.u32 683565275, %v9808
        %v9810 = vshll.u32 683565275, %v9807
        %v9811 = vshrl.u32 2475754826, %v9808
        %v9812 = vor.u32 %v9810, %v9811
        %v9813 = vshll.u32 2475754826, %v9807
        %v9814 = vshrl.u32 2131351028, %v9808
        %v9815 = vor.u32 %v9813, %v9814
        %v9816 = vshll.u32 2131351028, %v9807
        %v9817 = vshrl.u32 2102212464, %v9808
        %v9818 = vor.u32 %v9816, %v9817
        %v9819 = vshll.u32 2102212464, %v9807
        %v9820 = vshrl.u32 920167782, %v9808
        %v9821 = vor.u32 %v9819, %v9820
        %v9822 = vshll.u32 920167782, %v9807
        %v9823 = vshrl.u32 1326507024, %v9808
        %v9824 = vor.u32 %v9822, %v9823
        %vm9825 = vcmp.lt.s32.totalorder %v9806, 1
        %vm9826 = vcmp.lt.s32.totalorder %v9806, 2
        %vm9827 = vcmp.lt.s32.totalorder %v9806, 3
        %vm9828 = vcmp.lt.s32.totalorder %v9806, 4
        %v9829 = vsel %vm9825, %v9809, %v9812
        %v9830 = vsel %vm9828, %v9818, 2102212464
        %v9831 = vsel %vm9827, %v9815, %v9830
        %v9832 = vsel %vm9826, %v9829, %v9831
        %v9833 = vsel %vm9825, %v9812, %v9815
        %v9834 = vsel %vm9828, %v9821, 920167782
        %v9835 = vsel %vm9827, %v9818, %v9834
        %v9836 = vsel %vm9826, %v9833, %v9835
        %v9837 = vsel %vm9825, %v9815, %v9818
        %v9838 = vsel %vm9828, %v9824, 1326507024
        %v9839 = vsel %vm9827, %v9821, %v9838
        %v9840 = vsel %vm9826, %v9837, %v9839
        %v9841 = vshll.u32 %v9801, 8
        %v9842 = vand.u32 %v9841, 65535
        %v9843 = vshrl.u32 %v9841, 16
        %v9844 = vand.u32 %v9840, 65535
        %v9845 = vshrl.u32 %v9840, 16
        %v9846 = vmul.u32 %v9842, %v9844
        %v9847 = vmul.u32 %v9842, %v9845
        %v9848 = vmul.u32 %v9843, %v9844
        %v9849 = vmul.u32 %v9843, %v9845
        %v9850 = vshll.u32 %v9847, 16
        %v9851 = vshrl.u32 %v9847, 16
        %v9852 = vshll.u32 %v9848, 16
        %v9853 = vshrl.u32 %v9848, 16
        %vm9854 = vc.u32 %v9846, %v9850
        %v9855 = vsel %vm9854, 1, 0
        %v9856 = vadd.s32 %v9846, %v9850
        %v9857 = vadd.s32 %v9849, %v9855
        %vm9858 = vc.u32 %v9856, %v9852
        %v9859 = vsel %vm9858, 1, 0
        %v9860 = vadd.s32 %v9856, %v9852
        %v9861 = vadd.s32 %v9857, %v9859
        %v9862 = vadd.s32 %v9861, %v9851
        %v9863 = vadd.s32 %v9862, %v9853
        %v9864 = vand.u32 %v9841, 65535
        %v9865 = vshrl.u32 %v9841, 16
        %v9866 = vand.u32 %v9836, 65535
        %v9867 = vshrl.u32 %v9836, 16
        %v9868 = vmul.u32 %v9864, %v9866
        %v9869 = vmul.u32 %v9864, %v9867
        %v9870 = vmul.u32 %v9865, %v9866
        %v9871 = vmul.u32 %v9865, %v9867
        %v9872 = vshll.u32 %v9869, 16
        %v9873 = vshrl.u32 %v9869, 16
        %v9874 = vshll.u32 %v9870, 16
        %v9875 = vshrl.u32 %v9870, 16
        %vm9876 = vc.u32 %v9868, %v9872
        %v9877 = vsel %vm9876, 1, 0
        %v9878 = vadd.s32 %v9868, %v9872
        %v9879 = vadd.s32 %v9871, %v9877
        %vm9880 = vc.u32 %v9878, %v9874
        %v9881 = vsel %vm9880, 1, 0
        %v9882 = vadd.s32 %v9878, %v9874
        %v9883 = vadd.s32 %v9879, %v9881
        %v9884 = vadd.s32 %v9883, %v9873
        %v9885 = vadd.s32 %v9884, %v9875
        %v9886 = vmul.u32 %v9841, %v9832
        %v9887 = vadd.s32 %v9863, %v9882
        %vm9888 = vc.u32 %v9863, %v9882
        %v9889 = vadd.s32 %v9885, 1
        %v9890 = vsel %vm9888, %v9889, %v9885
        %v9891 = vadd.s32 %v9886, %v9890
        %v9892 = vadd.s32 %v9891, 536870912
        %v9893 = vshrl.u32 %v9892, 30
        %v9894 = vshll.u32 %v9893, 30
        %v9895 = vsub.s32 %v9891, %v9894
        %vm9896 = vcmp.lt.s32.totalorder %v9895, 0
        %v9897 = vsub.s32 0, %v9895
        %v9898 = vsel %vm9896, %v9897, %v9895
        %v9899 = vclz %v9898
        %v9900 = vsub.s32 %v9899, 2
        %vm9901 = vcmp.gt.s32.totalorder 0, %v9900
        %v9902 = vsel %vm9901, 0, %v9900
        %v9903 = vsub.s32 32, %v9902
        %v9904 = vshll.u32 %v9895, %v9902
        %v9905 = vshrl.u32 %v9887, %v9903
        %v9906 = vor.u32 %v9904, %v9905
        %v9907 = vsub.s32 4294967266, %v9902
        %v9908 = vadd.s32 %v9907, 127
        %v9909 = vshll.u32 %v9908, 23
        %v9910 = vor.u32 4788187, %v9909
        %v9911 = vand.u32 2147483647, %v9910
        %v9913 = vcvt.s32.f32 %v9906
        %v9914 = vmul.f32 %v9913, %v9911
        %v9915 = vxor.u32 %v9914, 2147483648
        %v9916 = vsel %vm9795, %v9915, %v9914
        %v9917 = vsub.s32 4, %v9893
        %v9918 = vsel %vm9795, %v9917, %v9893
        %v9919 = vsel %vm9794, %v452, %v9916
        %v9920 = vsel %vm9794, 0, %v9918
        %v9921 = vmul.f32 %v9919, %v9919
        %v9922 = vmul.f32 %v9921, -0.001358992
        %v9923 = vadd.f32 %v9922, 0.041655596
        %v9924 = vmul.f32 %v9921, %v9923
        %v9925 = vadd.f32 %v9924, -0.4999988
        %v9926 = vmul.f32 %v9921, %v9925
        %v9927 = vadd.f32 1.0, %v9926
        %v9928 = vmul.f32 %v9919, %v9919
        %v9929 = vmul.f32 %v9928, -0.00019511016
        %v9930 = vadd.f32 %v9929, 0.008332121
        %v9931 = vmul.f32 %v9928, %v9930
        %v9932 = vadd.f32 %v9931, -0.16666654
        %v9933 = vmul.f32 %v9928, %v9932
        %v9934 = vadd.f32 %v9933, 1.0
        %v9935 = vmul.f32 %v9934, %v9919
        %vm9936 = vweird.f32 %v452
        %v9937 = vand.u32 %v9920, 3
        %vm9938 = vcmp.lt.s32.totalorder %v9937, 2
        %vm9939 = vcmp.eq.s32.totalorder %v9937, 0
        %v9940 = vxor.u32 %v9935, 2147483648
        %v9941 = vsel %vm9939, %v9927, %v9940
        %vm9942 = vcmp.eq.s32.totalorder %v9937, 2
        %v9943 = vxor.u32 %v9927, 2147483648
        %v9944 = vsel %vm9942, %v9943, %v9935
        %v9945 = vsel %vm9938, %v9941, %v9944
        %v9946 = vsel %vm9936, nan, %v9945
        %v9947 = vand.u32 2147483647, %v453
        %vm9948 = vcmp.le.f32.partialorder %v9947, 0.7853982
        %vm9949 = vcmp.lt.s32.totalorder %v453, 0
        %v9950 = vand.u32 %v453, 2139095040
        %v9951 = vshrl.u32 %v9950, 23
        %v9952 = vsub.s32 %v9951, 127
        %v9953 = vand.u32 2147483647, %v453
        %v9954 = vand.u32 %v9953, 8388607
        %v9955 = vor.u32 %v9954, 8388608
        %v9956 = vsub.s32 0, %v9955
        %v9957 = vadd.s32 %v9952, 1
        %vm9958 = vcmp.gt.s32.totalorder %v9957, 0
        %v9959 = vsel %vm9958, %v9957, 0
        %v9960 = vshrl.u32 %v9959, 5
        %v9961 = vand.u32 %v9959, 31
        %v9962 = vsub.s32 32, %v9961
        %v9963 = vshrl.u32 683565275, %v9962
        %v9964 = vshll.u32 683565275, %v9961
        %v9965 = vshrl.u32 2475754826, %v9962
        %v9966 = vor.u32 %v9964, %v9965
        %v9967 = vshll.u32 2475754826, %v9961
        %v9968 = vshrl.u32 2131351028, %v9962
        %v9969 = vor.u32 %v9967, %v9968
        %v9970 = vshll.u32 2131351028, %v9961
        %v9971 = vshrl.u32 2102212464, %v9962
        %v9972 = vor.u32 %v9970, %v9971
        %v9973 = vshll.u32 2102212464, %v9961
        %v9974 = vshrl.u32 920167782, %v9962
        %v9975 = vor.u32 %v9973, %v9974
        %v9976 = vshll.u32 920167782, %v9961
        %v9977 = vshrl.u32 1326507024, %v9962
        %v9978 = vor.u32 %v9976, %v9977
        %vm9979 = vcmp.lt.s32.totalorder %v9960, 1
        %vm9980 = vcmp.lt.s32.totalorder %v9960, 2
        %vm9981 = vcmp.lt.s32.totalorder %v9960, 3
        %vm9982 = vcmp.lt.s32.totalorder %v9960, 4
        %v9983 = vsel %vm9979, %v9963, %v9966
        %v9984 = vsel %vm9982, %v9972, 2102212464
        %v9985 = vsel %vm9981, %v9969, %v9984
        %v9986 = vsel %vm9980, %v9983, %v9985
        %v9987 = vsel %vm9979, %v9966, %v9969
        %v9988 = vsel %vm9982, %v9975, 920167782
        %v9989 = vsel %vm9981, %v9972, %v9988
        %v9990 = vsel %vm9980, %v9987, %v9989
        %v9991 = vsel %vm9979, %v9969, %v9972
        %v9992 = vsel %vm9982, %v9978, 1326507024
        %v9993 = vsel %vm9981, %v9975, %v9992
        %v9994 = vsel %vm9980, %v9991, %v9993
        %v9995 = vshll.u32 %v9955, 8
        %v9996 = vand.u32 %v9995, 65535
        %v9997 = vshrl.u32 %v9995, 16
        %v9998 = vand.u32 %v9994, 65535
        %v9999 = vshrl.u32 %v9994, 16
        %v10000 = vmul.u32 %v9996, %v9998
        %v10001 = vmul.u32 %v9996, %v9999
        %v10002 = vmul.u32 %v9997, %v9998
        %v10003 = vmul.u32 %v9997, %v9999
        %v10004 = vshll.u32 %v10001, 16
        %v10005 = vshrl.u32 %v10001, 16
        %v10006 = vshll.u32 %v10002, 16
        %v10007 = vshrl.u32 %v10002, 16
        %vm10008 = vc.u32 %v10000, %v10004
        %v10009 = vsel %vm10008, 1, 0
        %v10010 = vadd.s32 %v10000, %v10004
        %v10011 = vadd.s32 %v10003, %v10009
        %vm10012 = vc.u32 %v10010, %v10006
        %v10013 = vsel %vm10012, 1, 0
        %v10014 = vadd.s32 %v10010, %v10006
        %v10015 = vadd.s32 %v10011, %v10013
        %v10016 = vadd.s32 %v10015, %v10005
        %v10017 = vadd.s32 %v10016, %v10007
        %v10018 = vand.u32 %v9995, 65535
        %v10019 = vshrl.u32 %v9995, 16
        %v10020 = vand.u32 %v9990, 65535
        %v10021 = vshrl.u32 %v9990, 16
        %v10022 = vmul.u32 %v10018, %v10020
        %v10023 = vmul.u32 %v10018, %v10021
        %v10024 = vmul.u32 %v10019, %v10020
        %v10025 = vmul.u32 %v10019, %v10021
        %v10026 = vshll.u32 %v10023, 16
        %v10027 = vshrl.u32 %v10023, 16
        %v10028 = vshll.u32 %v10024, 16
        %v10029 = vshrl.u32 %v10024, 16
        %vm10030 = vc.u32 %v10022, %v10026
        %v10031 = vsel %vm10030, 1, 0
        %v10032 = vadd.s32 %v10022, %v10026
        %v10033 = vadd.s32 %v10025, %v10031
        %vm10034 = vc.u32 %v10032, %v10028
        %v10035 = vsel %vm10034, 1, 0
        %v10036 = vadd.s32 %v10032, %v10028
        %v10037 = vadd.s32 %v10033, %v10035
        %v10038 = vadd.s32 %v10037, %v10027
        %v10039 = vadd.s32 %v10038, %v10029
        %v10040 = vmul.u32 %v9995, %v9986
        %v10041 = vadd.s32 %v10017, %v10036
        %vm10042 = vc.u32 %v10017, %v10036
        %v10043 = vadd.s32 %v10039, 1
        %v10044 = vsel %vm10042, %v10043, %v10039
        %v10045 = vadd.s32 %v10040, %v10044
        %v10046 = vadd.s32 %v10045, 536870912
        %v10047 = vshrl.u32 %v10046, 30
        %v10048 = vshll.u32 %v10047, 30
        %v10049 = vsub.s32 %v10045, %v10048
        %vm10050 = vcmp.lt.s32.totalorder %v10049, 0
        %v10051 = vsub.s32 0, %v10049
        %v10052 = vsel %vm10050, %v10051, %v10049
        %v10053 = vclz %v10052
        %v10054 = vsub.s32 %v10053, 2
        %vm10055 = vcmp.gt.s32.totalorder 0, %v10054
        %v10056 = vsel %vm10055, 0, %v10054
        %v10057 = vsub.s32 32, %v10056
        %v10058 = vshll.u32 %v10049, %v10056
        %v10059 = vshrl.u32 %v10041, %v10057
        %v10060 = vor.u32 %v10058, %v10059
        %v10061 = vsub.s32 4294967266, %v10056
        %v10062 = vadd.s32 %v10061, 127
        %v10063 = vshll.u32 %v10062, 23
        %v10064 = vor.u32 4788187, %v10063
        %v10065 = vand.u32 2147483647, %v10064
        %v10067 = vcvt.s32.f32 %v10060
        %v10068 = vmul.f32 %v10067, %v10065
        %v10069 = vxor.u32 %v10068, 2147483648
        %v10070 = vsel %vm9949, %v10069, %v10068
        %v10071 = vsub.s32 4, %v10047
        %v10072 = vsel %vm9949, %v10071, %v10047
        %v10073 = vsel %vm9948, %v453, %v10070
        %v10074 = vsel %vm9948, 0, %v10072
        %v10075 = vmul.f32 %v10073, %v10073
        %v10076 = vmul.f32 %v10075, -0.001358992
        %v10077 = vadd.f32 %v10076, 0.041655596
        %v10078 = vmul.f32 %v10075, %v10077
        %v10079 = vadd.f32 %v10078, -0.4999988
        %v10080 = vmul.f32 %v10075, %v10079
        %v10081 = vadd.f32 1.0, %v10080
        %v10082 = vmul.f32 %v10073, %v10073
        %v10083 = vmul.f32 %v10082, -0.00019511016
        %v10084 = vadd.f32 %v10083, 0.008332121
        %v10085 = vmul.f32 %v10082, %v10084
        %v10086 = vadd.f32 %v10085, -0.16666654
        %v10087 = vmul.f32 %v10082, %v10086
        %v10088 = vadd.f32 %v10087, 1.0
        %v10089 = vmul.f32 %v10088, %v10073
        %vm10090 = vweird.f32 %v453
        %v10091 = vand.u32 %v10074, 3
        %vm10092 = vcmp.lt.s32.totalorder %v10091, 2
        %vm10093 = vcmp.eq.s32.totalorder %v10091, 0
        %v10094 = vxor.u32 %v10089, 2147483648
        %v10095 = vsel %vm10093, %v10081, %v10094
        %vm10096 = vcmp.eq.s32.totalorder %v10091, 2
        %v10097 = vxor.u32 %v10081, 2147483648
        %v10098 = vsel %vm10096, %v10097, %v10089
        %v10099 = vsel %vm10092, %v10095, %v10098
        %v10100 = vsel %vm10090, nan, %v10099
        %v10101 = vand.u32 2147483647, %v454
        %vm10102 = vcmp.le.f32.partialorder %v10101, 0.7853982
        %vm10103 = vcmp.lt.s32.totalorder %v454, 0
        %v10104 = vand.u32 %v454, 2139095040
        %v10105 = vshrl.u32 %v10104, 23
        %v10106 = vsub.s32 %v10105, 127
        %v10107 = vand.u32 2147483647, %v454
        %v10108 = vand.u32 %v10107, 8388607
        %v10109 = vor.u32 %v10108, 8388608
        %v10110 = vsub.s32 0, %v10109
        %v10111 = vadd.s32 %v10106, 1
        %vm10112 = vcmp.gt.s32.totalorder %v10111, 0
        %v10113 = vsel %vm10112, %v10111, 0
        %v10114 = vshrl.u32 %v10113, 5
        %v10115 = vand.u32 %v10113, 31
        %v10116 = vsub.s32 32, %v10115
        %v10117 = vshrl.u32 683565275, %v10116
        %v10118 = vshll.u32 683565275, %v10115
        %v10119 = vshrl.u32 2475754826, %v10116
        %v10120 = vor.u32 %v10118, %v10119
        %v10121 = vshll.u32 2475754826, %v10115
        %v10122 = vshrl.u32 2131351028, %v10116
        %v10123 = vor.u32 %v10121, %v10122
        %v10124 = vshll.u32 2131351028, %v10115
        %v10125 = vshrl.u32 2102212464, %v10116
        %v10126 = vor.u32 %v10124, %v10125
        %v10127 = vshll.u32 2102212464, %v10115
        %v10128 = vshrl.u32 920167782, %v10116
        %v10129 = vor.u32 %v10127, %v10128
        %v10130 = vshll.u32 920167782, %v10115
        %v10131 = vshrl.u32 1326507024, %v10116
        %v10132 = vor.u32 %v10130, %v10131
        %vm10133 = vcmp.lt.s32.totalorder %v10114, 1
        %vm10134 = vcmp.lt.s32.totalorder %v10114, 2
        %vm10135 = vcmp.lt.s32.totalorder %v10114, 3
        %vm10136 = vcmp.lt.s32.totalorder %v10114, 4
        %v10137 = vsel %vm10133, %v10117, %v10120
        %v10138 = vsel %vm10136, %v10126, 2102212464
        %v10139 = vsel %vm10135, %v10123, %v10138
        %v10140 = vsel %vm10134, %v10137, %v10139
        %v10141 = vsel %vm10133, %v10120, %v10123
        %v10142 = vsel %vm10136, %v10129, 920167782
        %v10143 = vsel %vm10135, %v10126, %v10142
        %v10144 = vsel %vm10134, %v10141, %v10143
        %v10145 = vsel %vm10133, %v10123, %v10126
        %v10146 = vsel %vm10136, %v10132, 1326507024
        %v10147 = vsel %vm10135, %v10129, %v10146
        %v10148 = vsel %vm10134, %v10145, %v10147
        %v10149 = vshll.u32 %v10109, 8
        %v10150 = vand.u32 %v10149, 65535
        %v10151 = vshrl.u32 %v10149, 16
        %v10152 = vand.u32 %v10148, 65535
        %v10153 = vshrl.u32 %v10148, 16
        %v10154 = vmul.u32 %v10150, %v10152
        %v10155 = vmul.u32 %v10150, %v10153
        %v10156 = vmul.u32 %v10151, %v10152
        %v10157 = vmul.u32 %v10151, %v10153
        %v10158 = vshll.u32 %v10155, 16
        %v10159 = vshrl.u32 %v10155, 16
        %v10160 = vshll.u32 %v10156, 16
        %v10161 = vshrl.u32 %v10156, 16
        %vm10162 = vc.u32 %v10154, %v10158
        %v10163 = vsel %vm10162, 1, 0
        %v10164 = vadd.s32 %v10154, %v10158
        %v10165 = vadd.s32 %v10157, %v10163
        %vm10166 = vc.u32 %v10164, %v10160
        %v10167 = vsel %vm10166, 1, 0
        %v10168 = vadd.s32 %v10164, %v10160
        %v10169 = vadd.s32 %v10165, %v10167
        %v10170 = vadd.s32 %v10169, %v10159
        %v10171 = vadd.s32 %v10170, %v10161
        %v10172 = vand.u32 %v10149, 65535
        %v10173 = vshrl.u32 %v10149, 16
        %v10174 = vand.u32 %v10144, 65535
        %v10175 = vshrl.u32 %v10144, 16
        %v10176 = vmul.u32 %v10172, %v10174
        %v10177 = vmul.u32 %v10172, %v10175
        %v10178 = vmul.u32 %v10173, %v10174
        %v10179 = vmul.u32 %v10173, %v10175
        %v10180 = vshll.u32 %v10177, 16
        %v10181 = vshrl.u32 %v10177, 16
        %v10182 = vshll.u32 %v10178, 16
        %v10183 = vshrl.u32 %v10178, 16
        %vm10184 = vc.u32 %v10176, %v10180
        %v10185 = vsel %vm10184, 1, 0
        %v10186 = vadd.s32 %v10176, %v10180
        %v10187 = vadd.s32 %v10179, %v10185
        %vm10188 = vc.u32 %v10186, %v10182
        %v10189 = vsel %vm10188, 1, 0
        %v10190 = vadd.s32 %v10186, %v10182
        %v10191 = vadd.s32 %v10187, %v10189
        %v10192 = vadd.s32 %v10191, %v10181
        %v10193 = vadd.s32 %v10192, %v10183
        %v10194 = vmul.u32 %v10149, %v10140
        %v10195 = vadd.s32 %v10171, %v10190
        %vm10196 = vc.u32 %v10171, %v10190
        %v10197 = vadd.s32 %v10193, 1
        %v10198 = vsel %vm10196, %v10197, %v10193
        %v10199 = vadd.s32 %v10194, %v10198
        %v10200 = vadd.s32 %v10199, 536870912
        %v10201 = vshrl.u32 %v10200, 30
        %v10202 = vshll.u32 %v10201, 30
        %v10203 = vsub.s32 %v10199, %v10202
        %vm10204 = vcmp.lt.s32.totalorder %v10203, 0
        %v10205 = vsub.s32 0, %v10203
        %v10206 = vsel %vm10204, %v10205, %v10203
        %v10207 = vclz %v10206
        %v10208 = vsub.s32 %v10207, 2
        %vm10209 = vcmp.gt.s32.totalorder 0, %v10208
        %v10210 = vsel %vm10209, 0, %v10208
        %v10211 = vsub.s32 32, %v10210
        %v10212 = vshll.u32 %v10203, %v10210
        %v10213 = vshrl.u32 %v10195, %v10211
        %v10214 = vor.u32 %v10212, %v10213
        %v10215 = vsub.s32 4294967266, %v10210
        %v10216 = vadd.s32 %v10215, 127
        %v10217 = vshll.u32 %v10216, 23
        %v10218 = vor.u32 4788187, %v10217
        %v10219 = vand.u32 2147483647, %v10218
        %v10221 = vcvt.s32.f32 %v10214
        %v10222 = vmul.f32 %v10221, %v10219
        %v10223 = vxor.u32 %v10222, 2147483648
        %v10224 = vsel %vm10103, %v10223, %v10222
        %v10225 = vsub.s32 4, %v10201
        %v10226 = vsel %vm10103, %v10225, %v10201
        %v10227 = vsel %vm10102, %v454, %v10224
        %v10228 = vsel %vm10102, 0, %v10226
        %v10229 = vmul.f32 %v10227, %v10227
        %v10230 = vmul.f32 %v10229, -0.001358992
        %v10231 = vadd.f32 %v10230, 0.041655596
        %v10232 = vmul.f32 %v10229, %v10231
        %v10233 = vadd.f32 %v10232, -0.4999988
        %v10234 = vmul.f32 %v10229, %v10233
        %v10235 = vadd.f32 1.0, %v10234
        %v10236 = vmul.f32 %v10227, %v10227
        %v10237 = vmul.f32 %v10236, -0.00019511016
        %v10238 = vadd.f32 %v10237, 0.008332121
        %v10239 = vmul.f32 %v10236, %v10238
        %v10240 = vadd.f32 %v10239, -0.16666654
        %v10241 = vmul.f32 %v10236, %v10240
        %v10242 = vadd.f32 %v10241, 1.0
        %v10243 = vmul.f32 %v10242, %v10227
        %vm10244 = vweird.f32 %v454
        %v10245 = vand.u32 %v10228, 3
        %vm10246 = vcmp.lt.s32.totalorder %v10245, 2
        %vm10247 = vcmp.eq.s32.totalorder %v10245, 0
        %v10248 = vxor.u32 %v10243, 2147483648
        %v10249 = vsel %vm10247, %v10235, %v10248
        %vm10250 = vcmp.eq.s32.totalorder %v10245, 2
        %v10251 = vxor.u32 %v10235, 2147483648
        %v10252 = vsel %vm10250, %v10251, %v10243
        %v10253 = vsel %vm10246, %v10249, %v10252
        %v10254 = vsel %vm10244, nan, %v10253
        %v10255 = vand.u32 2147483647, %v455
        %vm10256 = vcmp.le.f32.partialorder %v10255, 0.7853982
        %vm10257 = vcmp.lt.s32.totalorder %v455, 0
        %v10258 = vand.u32 %v455, 2139095040
        %v10259 = vshrl.u32 %v10258, 23
        %v10260 = vsub.s32 %v10259, 127
        %v10261 = vand.u32 2147483647, %v455
        %v10262 = vand.u32 %v10261, 8388607
        %v10263 = vor.u32 %v10262, 8388608
        %v10264 = vsub.s32 0, %v10263
        %v10265 = vadd.s32 %v10260, 1
        %vm10266 = vcmp.gt.s32.totalorder %v10265, 0
        %v10267 = vsel %vm10266, %v10265, 0
        %v10268 = vshrl.u32 %v10267, 5
        %v10269 = vand.u32 %v10267, 31
        %v10270 = vsub.s32 32, %v10269
        %v10271 = vshrl.u32 683565275, %v10270
        %v10272 = vshll.u32 683565275, %v10269
        %v10273 = vshrl.u32 2475754826, %v10270
        %v10274 = vor.u32 %v10272, %v10273
        %v10275 = vshll.u32 2475754826, %v10269
        %v10276 = vshrl.u32 2131351028, %v10270
        %v10277 = vor.u32 %v10275, %v10276
        %v10278 = vshll.u32 2131351028, %v10269
        %v10279 = vshrl.u32 2102212464, %v10270
        %v10280 = vor.u32 %v10278, %v10279
        %v10281 = vshll.u32 2102212464, %v10269
        %v10282 = vshrl.u32 920167782, %v10270
        %v10283 = vor.u32 %v10281, %v10282
        %v10284 = vshll.u32 920167782, %v10269
        %v10285 = vshrl.u32 1326507024, %v10270
        %v10286 = vor.u32 %v10284, %v10285
        %vm10287 = vcmp.lt.s32.totalorder %v10268, 1
        %vm10288 = vcmp.lt.s32.totalorder %v10268, 2
        %vm10289 = vcmp.lt.s32.totalorder %v10268, 3
        %vm10290 = vcmp.lt.s32.totalorder %v10268, 4
        %v10291 = vsel %vm10287, %v10271, %v10274
        %v10292 = vsel %vm10290, %v10280, 2102212464
        %v10293 = vsel %vm10289, %v10277, %v10292
        %v10294 = vsel %vm10288, %v10291, %v10293
        %v10295 = vsel %vm10287, %v10274, %v10277
        %v10296 = vsel %vm10290, %v10283, 920167782
        %v10297 = vsel %vm10289, %v10280, %v10296
        %v10298 = vsel %vm10288, %v10295, %v10297
        %v10299 = vsel %vm10287, %v10277, %v10280
        %v10300 = vsel %vm10290, %v10286, 1326507024
        %v10301 = vsel %vm10289, %v10283, %v10300
        %v10302 = vsel %vm10288, %v10299, %v10301
        %v10303 = vshll.u32 %v10263, 8
        %v10304 = vand.u32 %v10303, 65535
        %v10305 = vshrl.u32 %v10303, 16
        %v10306 = vand.u32 %v10302, 65535
        %v10307 = vshrl.u32 %v10302, 16
        %v10308 = vmul.u32 %v10304, %v10306
        %v10309 = vmul.u32 %v10304, %v10307
        %v10310 = vmul.u32 %v10305, %v10306
        %v10311 = vmul.u32 %v10305, %v10307
        %v10312 = vshll.u32 %v10309, 16
        %v10313 = vshrl.u32 %v10309, 16
        %v10314 = vshll.u32 %v10310, 16
        %v10315 = vshrl.u32 %v10310, 16
        %vm10316 = vc.u32 %v10308, %v10312
        %v10317 = vsel %vm10316, 1, 0
        %v10318 = vadd.s32 %v10308, %v10312
        %v10319 = vadd.s32 %v10311, %v10317
        %vm10320 = vc.u32 %v10318, %v10314
        %v10321 = vsel %vm10320, 1, 0
        %v10322 = vadd.s32 %v10318, %v10314
        %v10323 = vadd.s32 %v10319, %v10321
        %v10324 = vadd.s32 %v10323, %v10313
        %v10325 = vadd.s32 %v10324, %v10315
        %v10326 = vand.u32 %v10303, 65535
        %v10327 = vshrl.u32 %v10303, 16
        %v10328 = vand.u32 %v10298, 65535
        %v10329 = vshrl.u32 %v10298, 16
        %v10330 = vmul.u32 %v10326, %v10328
        %v10331 = vmul.u32 %v10326, %v10329
        %v10332 = vmul.u32 %v10327, %v10328
        %v10333 = vmul.u32 %v10327, %v10329
        %v10334 = vshll.u32 %v10331, 16
        %v10335 = vshrl.u32 %v10331, 16
        %v10336 = vshll.u32 %v10332, 16
        %v10337 = vshrl.u32 %v10332, 16
        %vm10338 = vc.u32 %v10330, %v10334
        %v10339 = vsel %vm10338, 1, 0
        %v10340 = vadd.s32 %v10330, %v10334
        %v10341 = vadd.s32 %v10333, %v10339
        %vm10342 = vc.u32 %v10340, %v10336
        %v10343 = vsel %vm10342, 1, 0
        %v10344 = vadd.s32 %v10340, %v10336
        %v10345 = vadd.s32 %v10341, %v10343
        %v10346 = vadd.s32 %v10345, %v10335
        %v10347 = vadd.s32 %v10346, %v10337
        %v10348 = vmul.u32 %v10303, %v10294
        %v10349 = vadd.s32 %v10325, %v10344
        %vm10350 = vc.u32 %v10325, %v10344
        %v10351 = vadd.s32 %v10347, 1
        %v10352 = vsel %vm10350, %v10351, %v10347
        %v10353 = vadd.s32 %v10348, %v10352
        %v10354 = vadd.s32 %v10353, 536870912
        %v10355 = vshrl.u32 %v10354, 30
        %v10356 = vshll.u32 %v10355, 30
        %v10357 = vsub.s32 %v10353, %v10356
        %vm10358 = vcmp.lt.s32.totalorder %v10357, 0
        %v10359 = vsub.s32 0, %v10357
        %v10360 = vsel %vm10358, %v10359, %v10357
        %v10361 = vclz %v10360
        %v10362 = vsub.s32 %v10361, 2
        %vm10363 = vcmp.gt.s32.totalorder 0, %v10362
        %v10364 = vsel %vm10363, 0, %v10362
        %v10365 = vsub.s32 32, %v10364
        %v10366 = vshll.u32 %v10357, %v10364
        %v10367 = vshrl.u32 %v10349, %v10365
        %v10368 = vor.u32 %v10366, %v10367
        %v10369 = vsub.s32 4294967266, %v10364
        %v10370 = vadd.s32 %v10369, 127
        %v10371 = vshll.u32 %v10370, 23
        %v10372 = vor.u32 4788187, %v10371
        %v10373 = vand.u32 2147483647, %v10372
        %v10375 = vcvt.s32.f32 %v10368
        %v10376 = vmul.f32 %v10375, %v10373
        %v10377 = vxor.u32 %v10376, 2147483648
        %v10378 = vsel %vm10257, %v10377, %v10376
        %v10379 = vsub.s32 4, %v10355
        %v10380 = vsel %vm10257, %v10379, %v10355
        %v10381 = vsel %vm10256, %v455, %v10378
        %v10382 = vsel %vm10256, 0, %v10380
        %v10383 = vmul.f32 %v10381, %v10381
        %v10384 = vmul.f32 %v10383, -0.001358992
        %v10385 = vadd.f32 %v10384, 0.041655596
        %v10386 = vmul.f32 %v10383, %v10385
        %v10387 = vadd.f32 %v10386, -0.4999988
        %v10388 = vmul.f32 %v10383, %v10387
        %v10389 = vadd.f32 1.0, %v10388
        %v10390 = vmul.f32 %v10381, %v10381
        %v10391 = vmul.f32 %v10390, -0.00019511016
        %v10392 = vadd.f32 %v10391, 0.008332121
        %v10393 = vmul.f32 %v10390, %v10392
        %v10394 = vadd.f32 %v10393, -0.16666654
        %v10395 = vmul.f32 %v10390, %v10394
        %v10396 = vadd.f32 %v10395, 1.0
        %v10397 = vmul.f32 %v10396, %v10381
        %vm10398 = vweird.f32 %v455
        %v10399 = vand.u32 %v10382, 3
        %vm10400 = vcmp.lt.s32.totalorder %v10399, 2
        %vm10401 = vcmp.eq.s32.totalorder %v10399, 0
        %v10402 = vxor.u32 %v10397, 2147483648
        %v10403 = vsel %vm10401, %v10389, %v10402
        %vm10404 = vcmp.eq.s32.totalorder %v10399, 2
        %v10405 = vxor.u32 %v10389, 2147483648
        %v10406 = vsel %vm10404, %v10405, %v10397
        %v10407 = vsel %vm10400, %v10403, %v10406
        %v10408 = vsel %vm10398, nan, %v10407
        %v10409 = vsel %vm388, %v5634, 0.0
        %v10410 = vsel %vm389, %v5788, 0.0
        %v10411 = vsel %vm390, %v5942, 0.0
        %v10412 = vsel %vm391, %v6096, 0.0
        %v10413 = vsel %vm392, %v6250, 0.0
        %v10414 = vsel %vm393, %v6404, 0.0
        %v10415 = vsel %vm394, %v6558, 0.0
        %v10416 = vsel %vm395, %v6712, 0.0
        %v10417 = vsel %vm396, %v6866, 0.0
        %v10418 = vsel %vm397, %v7020, 0.0
        %v10419 = vsel %vm398, %v7174, 0.0
        %v10420 = vsel %vm399, %v7328, 0.0
        %v10421 = vsel %vm400, %v7482, 0.0
        %v10422 = vsel %vm401, %v7636, 0.0
        %v10423 = vsel %vm402, %v7790, 0.0
        %v10424 = vsel %vm403, %v7944, 0.0
        %v10425 = vsel %vm404, %v8098, 0.0
        %v10426 = vsel %vm405, %v8252, 0.0
        %v10427 = vsel %vm406, %v8406, 0.0
        %v10428 = vsel %vm407, %v8560, 0.0
        %v10429 = vsel %vm408, %v8714, 0.0
        %v10430 = vsel %vm409, %v8868, 0.0
        %v10431 = vsel %vm410, %v9022, 0.0
        %v10432 = vsel %vm411, %v9176, 0.0
        %v10433 = vsel %vm412, %v9330, 0.0
        %v10434 = vsel %vm413, %v9484, 0.0
        %v10435 = vsel %vm414, %v9638, 0.0
        %v10436 = vsel %vm415, %v9792, 0.0
        %v10437 = vsel %vm416, %v9946, 0.0
        %v10438 = vsel %vm417, %v10100, 0.0
        %v10439 = vsel %vm418, %v10254, 0.0
        %v10440 = vsel %vm419, %v10408, 0.0
        %10473 = vrot.lane.b32.xlu0 %v10409, 16
        %v10474 = vpop.permute.xlu0 %10473
        %10475 = vrot.lane.b32.xlu0 %v10410, 16
        %v10476 = vpop.permute.xlu0 %10475
        %10477 = vrot.lane.b32.xlu0 %v10411, 16
        %v10478 = vpop.permute.xlu0 %10477
        %10479 = vrot.lane.b32.xlu0 %v10412, 16
        %v10480 = vpop.permute.xlu0 %10479
        %10481 = vrot.lane.b32.xlu0 %v10413, 16
        %v10482 = vpop.permute.xlu0 %10481
        %10483 = vrot.lane.b32.xlu0 %v10414, 16
        %v10484 = vpop.permute.xlu0 %10483
        %10485 = vrot.lane.b32.xlu0 %v10415, 16
        %v10486 = vpop.permute.xlu0 %10485
        %10487 = vrot.lane.b32.xlu0 %v10416, 16
        %v10488 = vpop.permute.xlu0 %10487
        %10489 = vrot.lane.b32.xlu0 %v10417, 16
        %v10490 = vpop.permute.xlu0 %10489
        %10491 = vrot.lane.b32.xlu0 %v10418, 16
        %v10492 = vpop.permute.xlu0 %10491
        %10493 = vrot.lane.b32.xlu0 %v10419, 16
        %v10494 = vpop.permute.xlu0 %10493
        %10495 = vrot.lane.b32.xlu0 %v10420, 16
        %v10496 = vpop.permute.xlu0 %10495
        %10497 = vrot.lane.b32.xlu0 %v10421, 16
        %v10498 = vpop.permute.xlu0 %10497
        %10499 = vrot.lane.b32.xlu0 %v10422, 16
        %v10500 = vpop.permute.xlu0 %10499
        %10501 = vrot.lane.b32.xlu0 %v10423, 16
        %v10502 = vpop.permute.xlu0 %10501
        %10503 = vrot.lane.b32.xlu0 %v10424, 16
        %v10504 = vpop.permute.xlu0 %10503
        %10505 = vrot.lane.b32.xlu0 %v10425, 16
        %v10506 = vpop.permute.xlu0 %10505
        %10507 = vrot.lane.b32.xlu0 %v10426, 16
        %v10508 = vpop.permute.xlu0 %10507
        %10509 = vrot.lane.b32.xlu0 %v10427, 16
        %v10510 = vpop.permute.xlu0 %10509
        %10511 = vrot.lane.b32.xlu0 %v10428, 16
        %v10512 = vpop.permute.xlu0 %10511
        %10513 = vrot.lane.b32.xlu0 %v10429, 16
        %v10514 = vpop.permute.xlu0 %10513
        %10515 = vrot.lane.b32.xlu0 %v10430, 16
        %v10516 = vpop.permute.xlu0 %10515
        %10517 = vrot.lane.b32.xlu0 %v10431, 16
        %v10518 = vpop.permute.xlu0 %10517
        %10519 = vrot.lane.b32.xlu0 %v10432, 16
        %v10520 = vpop.permute.xlu0 %10519
        %10521 = vrot.lane.b32.xlu0 %v10433, 16
        %v10522 = vpop.permute.xlu0 %10521
        %10523 = vrot.lane.b32.xlu0 %v10434, 16
        %v10524 = vpop.permute.xlu0 %10523
        %10525 = vrot.lane.b32.xlu0 %v10435, 16
        %v10526 = vpop.permute.xlu0 %10525
        %10527 = vrot.lane.b32.xlu0 %v10436, 16
        %v10528 = vpop.permute.xlu0 %10527
        %10529 = vrot.lane.b32.xlu0 %v10437, 16
        %v10530 = vpop.permute.xlu0 %10529
        %10531 = vrot.lane.b32.xlu0 %v10438, 16
        %v10532 = vpop.permute.xlu0 %10531
        %10533 = vrot.lane.b32.xlu0 %v10439, 16
        %v10534 = vpop.permute.xlu0 %10533
        %10535 = vrot.lane.b32.xlu0 %v10440, 16
        %v10536 = vpop.permute.xlu0 %10535
        %vm10569 = vcmask 261248
        %10570 = vst.msk [vmem:[%s189] sm:$0xff] %vm10569, %v10474
        %10571 = vst.msk [vmem:[%s189 + $0x8] sm:$0xff] %vm10569, %v10476
        %10572 = vst.msk [vmem:[%s189 + $0x10] sm:$0xff] %vm10569, %v10478
        %10573 = vst.msk [vmem:[%s189 + $0x18] sm:$0xff] %vm10569, %v10480
        %10574 = vst.msk [vmem:[%s189 + $0x20] sm:$0xff] %vm10569, %v10482
        %10575 = vst.msk [vmem:[%s189 + $0x28] sm:$0xff] %vm10569, %v10484
        %10576 = vst.msk [vmem:[%s189 + $0x30] sm:$0xff] %vm10569, %v10486
        %10577 = vst.msk [vmem:[%s189 + $0x38] sm:$0xff] %vm10569, %v10488
        %10578 = vst.msk [vmem:[%s189 + $0x40] sm:$0xff] %vm10569, %v10490
        %10579 = vst.msk [vmem:[%s189 + $0x48] sm:$0xff] %vm10569, %v10492
        %10580 = vst.msk [vmem:[%s189 + $0x50] sm:$0xff] %vm10569, %v10494
        %10581 = vst.msk [vmem:[%s189 + $0x58] sm:$0xff] %vm10569, %v10496
        %10582 = vst.msk [vmem:[%s189 + $0x60] sm:$0xff] %vm10569, %v10498
        %10583 = vst.msk [vmem:[%s189 + $0x68] sm:$0xff] %vm10569, %v10500
        %10584 = vst.msk [vmem:[%s189 + $0x70] sm:$0xff] %vm10569, %v10502
        %10585 = vst.msk [vmem:[%s189 + $0x78] sm:$0xff] %vm10569, %v10504
        %10586 = vst.msk [vmem:[%s189 + $0x80] sm:$0xff] %vm10569, %v10506
        %10587 = vst.msk [vmem:[%s189 + $0x88] sm:$0xff] %vm10569, %v10508
        %10588 = vst.msk [vmem:[%s189 + $0x90] sm:$0xff] %vm10569, %v10510
        %10589 = vst.msk [vmem:[%s189 + $0x98] sm:$0xff] %vm10569, %v10512
        %10590 = vst.msk [vmem:[%s189 + $0xa0] sm:$0xff] %vm10569, %v10514
        %10591 = vst.msk [vmem:[%s189 + $0xa8] sm:$0xff] %vm10569, %v10516
        %10592 = vst.msk [vmem:[%s189 + $0xb0] sm:$0xff] %vm10569, %v10518
        %10593 = vst.msk [vmem:[%s189 + $0xb8] sm:$0xff] %vm10569, %v10520
        %10594 = vst.msk [vmem:[%s189 + $0xc0] sm:$0xff] %vm10569, %v10522
        %10595 = vst.msk [vmem:[%s189 + $0xc8] sm:$0xff] %vm10569, %v10524
        %10596 = vst.msk [vmem:[%s189 + $0xd0] sm:$0xff] %vm10569, %v10526
        %10597 = vst.msk [vmem:[%s189 + $0xd8] sm:$0xff] %vm10569, %v10528
        %10598 = vst.msk [vmem:[%s189 + $0xe0] sm:$0xff] %vm10569, %v10530
        %10599 = vst.msk [vmem:[%s189 + $0xe8] sm:$0xff] %vm10569, %v10532
        %10600 = vst.msk [vmem:[%s189 + $0xf0] sm:$0xff] %vm10569, %v10534
        %10601 = vst.msk [vmem:[%s189 + $0xf8] sm:$0xff] %vm10569, %v10536
        %s10602 = sand.u32 %s88, 1
        %s10603 = sand.u32 %s88, 1
        %s10604 = smul.addr %s10603, 256
        %s10605 = scalar_lea.vmem [#allocation6], %s10604
        // Predicated region
        $region37: #{tpu_custom_call.1} parent=27 // pred_check
          %p10606 = pneg %p98
        $region38: #{tpu_custom_call.1} parent=27 // pred_check_branch
          %10608 = sbr.rel (%p10606) target = $region40
        $region39: #{tpu_custom_call.1} parent=27 // pred_region
          %s10609 = smul.u32 2, %s21
          %s10610 = smul.u32 16, %s22
          %s10611 = smul.addr %s10609, 32
          %s10612 = sadd.s32 %s10610, %s10611
          %s10613 = smul.addr %s10612, 8
          %s10614 = scalar_lea.vmem %s2, %s10613
          // Predicated region
          $region41: #{tpu_custom_call.1} parent=39 // pred_check
            _
          $region42: #{tpu_custom_call.1} parent=39 // pred_check_branch
            %10616 = sbr.rel (0) target = $region44
          $region43: #{tpu_custom_call.1} parent=39 // pred_region
            // Predicated region
            $region45: #{tpu_custom_call.1} parent=43 // pred_check
              _
            $region46: #{tpu_custom_call.1} parent=43 // pred_check_branch
              %10618 = sbr.rel (0) target = $region48
            $region47: #{tpu_custom_call.1} parent=43 // pred_region
              // Predicated region
              $region60: #{tpu_custom_call.1} parent=47 // pred_check
                _
              $region61: #{tpu_custom_call.1} parent=47 // pred_check_branch
                %10696 = sbr.rel (0) target = $region63
              $region62: #{tpu_custom_call.1} parent=47 // pred_region
                loop: start=0, step=1, limit=1
                $region64: #{tpu_custom_call.1} parent=62 // loop_pre_header
                  _
                $region65: #{tpu_custom_call.1} parent=62 // loop_header
                  %s10698 = sphi 0, %s10702
                  %p10699 = scmp.ge.s32.totalorder %s10698, 1
                  %s10703 = sphi %s10605, %s10605
                  %s10704 = sphi %s10614, %s10614
                $region66: #{tpu_custom_call.1} parent=62 // loop_header_branch
                  %10701 = sbr.rel (%p10699) target = $region70
                $region67: #{tpu_custom_call.1} parent=62 // loop_body
                  %v10705 = vld [vmem:[%s10703] sm:$0xff]
                  %10706 = vst [vmem:[%s10704] sm:$0xff] %v10705
                  %v10707 = vld [vmem:[%s10703 + $0x8] sm:$0xff]
                  %10708 = vst [vmem:[%s10704 + $0x8] sm:$0xff] %v10707
                  %v10709 = vld [vmem:[%s10703 + $0x10] sm:$0xff]
                  %10710 = vst [vmem:[%s10704 + $0x10] sm:$0xff] %v10709
                  %v10711 = vld [vmem:[%s10703 + $0x18] sm:$0xff]
                  %10712 = vst [vmem:[%s10704 + $0x18] sm:$0xff] %v10711
                  %v10713 = vld [vmem:[%s10703 + $0x20] sm:$0xff]
                  %10714 = vst [vmem:[%s10704 + $0x20] sm:$0xff] %v10713
                  %v10715 = vld [vmem:[%s10703 + $0x28] sm:$0xff]
                  %10716 = vst [vmem:[%s10704 + $0x28] sm:$0xff] %v10715
                  %v10717 = vld [vmem:[%s10703 + $0x30] sm:$0xff]
                  %10718 = vst [vmem:[%s10704 + $0x30] sm:$0xff] %v10717
                  %v10719 = vld [vmem:[%s10703 + $0x38] sm:$0xff]
                  %10720 = vst [vmem:[%s10704 + $0x38] sm:$0xff] %v10719
                  %v10721 = vld [vmem:[%s10703 + $0x40] sm:$0xff]
                  %10722 = vst [vmem:[%s10704 + $0x40] sm:$0xff] %v10721
                  %v10723 = vld [vmem:[%s10703 + $0x48] sm:$0xff]
                  %10724 = vst [vmem:[%s10704 + $0x48] sm:$0xff] %v10723
                  %v10725 = vld [vmem:[%s10703 + $0x50] sm:$0xff]
                  %10726 = vst [vmem:[%s10704 + $0x50] sm:$0xff] %v10725
                  %v10727 = vld [vmem:[%s10703 + $0x58] sm:$0xff]
                  %10728 = vst [vmem:[%s10704 + $0x58] sm:$0xff] %v10727
                  %v10729 = vld [vmem:[%s10703 + $0x60] sm:$0xff]
                  %10730 = vst [vmem:[%s10704 + $0x60] sm:$0xff] %v10729
                  %v10731 = vld [vmem:[%s10703 + $0x68] sm:$0xff]
                  %10732 = vst [vmem:[%s10704 + $0x68] sm:$0xff] %v10731
                  %v10733 = vld [vmem:[%s10703 + $0x70] sm:$0xff]
                  %10734 = vst [vmem:[%s10704 + $0x70] sm:$0xff] %v10733
                  %v10735 = vld [vmem:[%s10703 + $0x78] sm:$0xff]
                  %10736 = vst [vmem:[%s10704 + $0x78] sm:$0xff] %v10735
                  %v10737 = vld [vmem:[%s10703 + $0x80] sm:$0xff]
                  %10738 = vst [vmem:[%s10704 + $0x100] sm:$0xff] %v10737
                  %v10739 = vld [vmem:[%s10703 + $0x88] sm:$0xff]
                  %10740 = vst [vmem:[%s10704 + $0x108] sm:$0xff] %v10739
                  %v10741 = vld [vmem:[%s10703 + $0x90] sm:$0xff]
                  %10742 = vst [vmem:[%s10704 + $0x110] sm:$0xff] %v10741
                  %v10743 = vld [vmem:[%s10703 + $0x98] sm:$0xff]
                  %10744 = vst [vmem:[%s10704 + $0x118] sm:$0xff] %v10743
                  %v10745 = vld [vmem:[%s10703 + $0xa0] sm:$0xff]
                  %10746 = vst [vmem:[%s10704 + $0x120] sm:$0xff] %v10745
                  %v10747 = vld [vmem:[%s10703 + $0xa8] sm:$0xff]
                  %10748 = vst [vmem:[%s10704 + $0x128] sm:$0xff] %v10747
                  %v10749 = vld [vmem:[%s10703 + $0xb0] sm:$0xff]
                  %10750 = vst [vmem:[%s10704 + $0x130] sm:$0xff] %v10749
                  %v10751 = vld [vmem:[%s10703 + $0xb8] sm:$0xff]
                  %10752 = vst [vmem:[%s10704 + $0x138] sm:$0xff] %v10751
                  %v10753 = vld [vmem:[%s10703 + $0xc0] sm:$0xff]
                  %10754 = vst [vmem:[%s10704 + $0x140] sm:$0xff] %v10753
                  %v10755 = vld [vmem:[%s10703 + $0xc8] sm:$0xff]
                  %10756 = vst [vmem:[%s10704 + $0x148] sm:$0xff] %v10755
                  %v10757 = vld [vmem:[%s10703 + $0xd0] sm:$0xff]
                  %10758 = vst [vmem:[%s10704 + $0x150] sm:$0xff] %v10757
                  %v10759 = vld [vmem:[%s10703 + $0xd8] sm:$0xff]
                  %10760 = vst [vmem:[%s10704 + $0x158] sm:$0xff] %v10759
                  %v10761 = vld [vmem:[%s10703 + $0xe0] sm:$0xff]
                  %10762 = vst [vmem:[%s10704 + $0x160] sm:$0xff] %v10761
                  %v10763 = vld [vmem:[%s10703 + $0xe8] sm:$0xff]
                  %10764 = vst [vmem:[%s10704 + $0x168] sm:$0xff] %v10763
                  %v10765 = vld [vmem:[%s10703 + $0xf0] sm:$0xff]
                  %10766 = vst [vmem:[%s10704 + $0x170] sm:$0xff] %v10765
                  %v10767 = vld [vmem:[%s10703 + $0xf8] sm:$0xff]
                  %10768 = vst [vmem:[%s10704 + $0x178] sm:$0xff] %v10767
                $region68: #{tpu_custom_call.1} parent=62 // loop_footer
                  %s10702 = sadd.s32 1, %s10698
                $region69: #{tpu_custom_call.1} parent=62 // loop_footer_branch
                  %10697 = sbr.rel target = $region65
                $region70: #{tpu_custom_call.1} parent=62 // loop_exit
                  _
              $region63: #{tpu_custom_call.1} parent=47 // pred_fallthru
                _
              // Predicated region
              $region71: #{tpu_custom_call.1} parent=47 // pred_check
                _
              $region72: #{tpu_custom_call.1} parent=47 // pred_check_branch
                %10770 = sbr.rel target = $region74
              $region73: #{tpu_custom_call.1} parent=47 // pred_region
                _
              $region74: #{tpu_custom_call.1} parent=47 // pred_fallthru
                _
            $region48: #{tpu_custom_call.1} parent=43 // pred_fallthru
              _
            // Predicated region
            $region49: #{tpu_custom_call.1} parent=43 // pred_check
              _
            $region50: #{tpu_custom_call.1} parent=43 // pred_check_branch
              %10620 = sbr.rel target = $region52
            $region51: #{tpu_custom_call.1} parent=43 // pred_region
              %s10622 = ssub.s32 256, 1
              loop: start=0, step=1, limit=1
              $region53: #{tpu_custom_call.1} parent=51 // loop_pre_header
                _
              $region54: #{tpu_custom_call.1} parent=51 // loop_header
                %s10624 = sphi 0, %s10628
                %p10625 = scmp.ge.s32.totalorder %s10624, 1
                %s10629 = sphi %s10605, %s10605
                %s10630 = sphi %s10614, %s10614
              $region55: #{tpu_custom_call.1} parent=51 // loop_header_branch
                %10627 = sbr.rel (%p10625) target = $region59
              $region56: #{tpu_custom_call.1} parent=51 // loop_body
                %v10631 = vld [vmem:[%s10629] sm:%s10622]
                %10632 = vst [vmem:[%s10630] sm:%s10622] %v10631
                %v10633 = vld [vmem:[%s10629 + $0x8] sm:%s10622]
                %10634 = vst [vmem:[%s10630 + $0x8] sm:%s10622] %v10633
                %v10635 = vld [vmem:[%s10629 + $0x10] sm:%s10622]
                %10636 = vst [vmem:[%s10630 + $0x10] sm:%s10622] %v10635
                %v10637 = vld [vmem:[%s10629 + $0x18] sm:%s10622]
                %10638 = vst [vmem:[%s10630 + $0x18] sm:%s10622] %v10637
                %v10639 = vld [vmem:[%s10629 + $0x20] sm:%s10622]
                %10640 = vst [vmem:[%s10630 + $0x20] sm:%s10622] %v10639
                %v10641 = vld [vmem:[%s10629 + $0x28] sm:%s10622]
                %10642 = vst [vmem:[%s10630 + $0x28] sm:%s10622] %v10641
                %v10643 = vld [vmem:[%s10629 + $0x30] sm:%s10622]
                %10644 = vst [vmem:[%s10630 + $0x30] sm:%s10622] %v10643
                %v10645 = vld [vmem:[%s10629 + $0x38] sm:%s10622]
                %10646 = vst [vmem:[%s10630 + $0x38] sm:%s10622] %v10645
                %v10647 = vld [vmem:[%s10629 + $0x40] sm:%s10622]
                %10648 = vst [vmem:[%s10630 + $0x40] sm:%s10622] %v10647
                %v10649 = vld [vmem:[%s10629 + $0x48] sm:%s10622]
                %10650 = vst [vmem:[%s10630 + $0x48] sm:%s10622] %v10649
                %v10651 = vld [vmem:[%s10629 + $0x50] sm:%s10622]
                %10652 = vst [vmem:[%s10630 + $0x50] sm:%s10622] %v10651
                %v10653 = vld [vmem:[%s10629 + $0x58] sm:%s10622]
                %10654 = vst [vmem:[%s10630 + $0x58] sm:%s10622] %v10653
                %v10655 = vld [vmem:[%s10629 + $0x60] sm:%s10622]
                %10656 = vst [vmem:[%s10630 + $0x60] sm:%s10622] %v10655
                %v10657 = vld [vmem:[%s10629 + $0x68] sm:%s10622]
                %10658 = vst [vmem:[%s10630 + $0x68] sm:%s10622] %v10657
                %v10659 = vld [vmem:[%s10629 + $0x70] sm:%s10622]
                %10660 = vst [vmem:[%s10630 + $0x70] sm:%s10622] %v10659
                %v10661 = vld [vmem:[%s10629 + $0x78] sm:%s10622]
                %10662 = vst [vmem:[%s10630 + $0x78] sm:%s10622] %v10661
                %v10663 = vld [vmem:[%s10629 + $0x80] sm:%s10622]
                %10664 = vst [vmem:[%s10630 + $0x100] sm:%s10622] %v10663
                %v10665 = vld [vmem:[%s10629 + $0x88] sm:%s10622]
                %10666 = vst [vmem:[%s10630 + $0x108] sm:%s10622] %v10665
                %v10667 = vld [vmem:[%s10629 + $0x90] sm:%s10622]
                %10668 = vst [vmem:[%s10630 + $0x110] sm:%s10622] %v10667
                %v10669 = vld [vmem:[%s10629 + $0x98] sm:%s10622]
                %10670 = vst [vmem:[%s10630 + $0x118] sm:%s10622] %v10669
                %v10671 = vld [vmem:[%s10629 + $0xa0] sm:%s10622]
                %10672 = vst [vmem:[%s10630 + $0x120] sm:%s10622] %v10671
                %v10673 = vld [vmem:[%s10629 + $0xa8] sm:%s10622]
                %10674 = vst [vmem:[%s10630 + $0x128] sm:%s10622] %v10673
                %v10675 = vld [vmem:[%s10629 + $0xb0] sm:%s10622]
                %10676 = vst [vmem:[%s10630 + $0x130] sm:%s10622] %v10675
                %v10677 = vld [vmem:[%s10629 + $0xb8] sm:%s10622]
                %10678 = vst [vmem:[%s10630 + $0x138] sm:%s10622] %v10677
                %v10679 = vld [vmem:[%s10629 + $0xc0] sm:%s10622]
                %10680 = vst [vmem:[%s10630 + $0x140] sm:%s10622] %v10679
                %v10681 = vld [vmem:[%s10629 + $0xc8] sm:%s10622]
                %10682 = vst [vmem:[%s10630 + $0x148] sm:%s10622] %v10681
                %v10683 = vld [vmem:[%s10629 + $0xd0] sm:%s10622]
                %10684 = vst [vmem:[%s10630 + $0x150] sm:%s10622] %v10683
                %v10685 = vld [vmem:[%s10629 + $0xd8] sm:%s10622]
                %10686 = vst [vmem:[%s10630 + $0x158] sm:%s10622] %v10685
                %v10687 = vld [vmem:[%s10629 + $0xe0] sm:%s10622]
                %10688 = vst [vmem:[%s10630 + $0x160] sm:%s10622] %v10687
                %v10689 = vld [vmem:[%s10629 + $0xe8] sm:%s10622]
                %10690 = vst [vmem:[%s10630 + $0x168] sm:%s10622] %v10689
                %v10691 = vld [vmem:[%s10629 + $0xf0] sm:%s10622]
                %10692 = vst [vmem:[%s10630 + $0x170] sm:%s10622] %v10691
                %v10693 = vld [vmem:[%s10629 + $0xf8] sm:%s10622]
                %10694 = vst [vmem:[%s10630 + $0x178] sm:%s10622] %v10693
              $region57: #{tpu_custom_call.1} parent=51 // loop_footer
                %s10628 = sadd.s32 1, %s10624
              $region58: #{tpu_custom_call.1} parent=51 // loop_footer_branch
                %10623 = sbr.rel target = $region54
              $region59: #{tpu_custom_call.1} parent=51 // loop_exit
                _
            $region52: #{tpu_custom_call.1} parent=43 // pred_fallthru
              _
          $region44: #{tpu_custom_call.1} parent=39 // pred_fallthru
            _
          %10771 = vnop
        $region40: #{tpu_custom_call.1} parent=27 // pred_fallthru
          _
      $region28: #{tpu_custom_call.1} parent=5 // pred_fallthru
        _
      %p10772 = scmp.le.s32.totalorder 2, %s12
      // Predicated region
      $region75: #{tpu_custom_call.1} parent=5 // pred_check
        %p10773 = pneg %p10772
      $region76: #{tpu_custom_call.1} parent=5 // pred_check_branch
        %10775 = sbr.rel (%p10773) target = $region78
      $region77: #{tpu_custom_call.1} parent=5 // pred_region
        %s10776 = ssub.s32 %s12, 2
        // Predicated region
        $region79: #{tpu_custom_call.1} parent=77 // pred_check
          %p10777 = pneg %p104
        $region80: #{tpu_custom_call.1} parent=77 // pred_check_branch
          %10779 = sbr.rel (%p10777) target = $region82
        $region81: #{tpu_custom_call.1} parent=77 // pred_region
          %s10780 = sand.u32 %s89, 1
          %s10781 = sand.u32 %s89, 1
          %s10782 = smul.addr %s10781, 256
          %s10783 = scalar_lea.vmem [#allocation6], %s10782
        $region82: #{tpu_custom_call.1} parent=77 // pred_fallthru
          _
      $region78: #{tpu_custom_call.1} parent=5 // pred_fallthru
        _
    $region6: #{tpu_custom_call.1} parent=1 // loop_footer
      %s16 = sadd.s32 1, %s12
    $region7: #{tpu_custom_call.1} parent=1 // loop_footer_branch
      %11 = sbr.rel target = $region3
    $region8: #{tpu_custom_call.1} parent=1 // loop_exit
      _
    %10784 = vsyncpa [#allocation3], 1
    %s10785 = scalar_lea.sflag [#allocation3], 1
    %10786 = vsyncpa %s10785, 1
    %10787 = vsyncpa [#allocation5], 1

</llo_original>
